<compile_context>
chip_gen: v6e
topology: v6e:2x2x1
jax: 0.10.0
libtpu: 0.0.40
codegen_flags: <defaults>
</compile_context>

<pallas_src>
import functools

import jax
import jax.numpy as jnp
from jax import lax
from jax.experimental import pallas as pl
from jax.experimental.pallas import tpu as pltpu

EPS = 1e-5
MATMUL_DTYPE = jnp.bfloat16     # MXU operand dtype; accumulation stays f32.


def _folded_bn(h, gamma, beta, inv_n):
    """Training-mode BN folded to per-channel scale/shift, two-pass variance."""
    mean = jnp.sum(h, axis=0, keepdims=True) * inv_n
    hc = h - mean
    var = jnp.sum(hc * hc, axis=0, keepdims=True) * inv_n   # biased var (training BN)
    scale = gamma * lax.rsqrt(var + EPS)                     # rsqrt -> EUP slot
    return hc * scale + beta


def _row_coords(rows, H, W):
    """Per-row (i, j) spatial coordinates from an in-kernel iota (no HBM inputs)."""
    r = lax.broadcasted_iota(jnp.int32, (rows, 1), 0)
    if (W & (W - 1)) == 0 and (H & (H - 1)) == 0:
        # Power-of-two spatial dims: pure shift / and (always true for the test).
        jj = r & (W - 1)
        ii = (r >> (W.bit_length() - 1)) & (H - 1)
    else:
        jj = r % W
        ii = (r // W) % H
    return ii, jj


def _bottleneck_kernel(x_ref, w1_ref, w2_ref, w3_ref,
                       g1_ref, b1_ref, g2_ref, b2_ref, g3_ref, b3_ref,
                       o_ref,
                       hpad_ref,
                       *, H, W, pad):
    rows = x_ref.shape[0]                     # rows = N*H*W
    planes = w1_ref.shape[1]
    inv_n = 1.0 / rows

    # ---- conv1: 1x1 conv == channel matmul, then folded BN + ReLU ----------
    h1 = jnp.dot(x_ref[...].astype(MATMUL_DTYPE), w1_ref[...],
                 preferred_element_type=jnp.float32)          # (rows, planes) f32
    h1 = jnp.maximum(_folded_bn(h1, g1_ref[...], b1_ref[...], inv_n), 0.0)

    # Stage the activation once in a guard-padded f32 VMEM scratch so each 3x3
    # tap is a single contiguous sublane-offset window read. pad is a multiple
    # of 8, so the large interior store is sublane-aligned and unmasked.
    zeros_guard = jnp.zeros((pad, planes), jnp.float32)
    hpad_ref[0:pad, :] = zeros_guard
    hpad_ref[pad + rows:pad + rows + pad, :] = zeros_guard
    hpad_ref[pad:pad + rows, :] = h1

    # ---- conv2: 3x3, stride=1, padding=1, dilation=1 ------------------------
    # Zero-padding boundary masks from in-kernel iota; hoisted out of the loop.
    ii, jj = _row_coords(rows, H, W)
    h_ok = {-1: ii >= 1, 0: None, 1: ii <= H - 2}
    w_ok = {-1: jj >= 1, 0: None, 1: jj <= W - 2}

    # im2col within the tile: 9 shifted / masked window reads concatenated
    # along channels, then ONE MXU matmul with contraction K = 9*planes.
    patches = []
    for kh in range(3):
        for kw in range(3):
            di, dj = kh - 1, kw - 1
            start = pad + di * W + dj                         # static offset
            patch = hpad_ref[start:start + rows, :]           # (rows, planes) f32
            mask = h_ok[di]
            if w_ok[dj] is not None:
                mask = w_ok[dj] if mask is None else (mask & w_ok[dj])
            if mask is not None:
                patch = jnp.where(mask, patch, 0.0)
            patches.append(patch)
    im2col = jnp.concatenate(patches, axis=1)                 # (rows, 9*planes) f32
    h2 = jnp.dot(im2col.astype(MATMUL_DTYPE), w2_ref[...],
                 preferred_element_type=jnp.float32)          # (rows, planes) f32
    h2 = jnp.maximum(_folded_bn(h2, g2_ref[...], b2_ref[...], inv_n), 0.0)

    # ---- conv3: 1x1 conv + folded BN + residual + ReLU ----------------------
    h3 = jnp.dot(h2.astype(MATMUL_DTYPE), w3_ref[...],
                 preferred_element_type=jnp.float32)          # (rows, Cout) f32
    h3 = _folded_bn(h3, g3_ref[...], b3_ref[...], inv_n)
    # Re-read x here (residual) instead of carrying it live through the convs.
    o_ref[...] = jnp.maximum(h3 + x_ref[...], 0.0).astype(o_ref.dtype)  # downsample=None


def _vmem_limit_bytes():
    """Generation-aware VMEM scoped limit (~96 MiB on v5e/v6e, ~48 MiB on v7x)."""
    try:
        cap = int(pltpu.get_tpu_info().vmem_capacity_bytes)
    except Exception:
        cap = 64 * 1024 * 1024
    return max(32 * 1024 * 1024, min(cap * 3 // 4, 96 * 1024 * 1024))


def bottleneck(x_nhwc, params):
    N, H, W, cin = x_nhwc.shape
    planes = params["w1"].shape[1]
    cout = params["w3"].shape[1]
    assert cin == cout, "downsample=None / stride=1 requires inplanes == planes*expansion"
    rows = N * H * W
    pad = ((W + 1 + 7) // 8) * 8              # guard rows; sublane-aligned interior

    # Free (XLA-level) layout plumbing: flatten spatial, cast weights to bf16.
    xm = x_nhwc.reshape(rows, cin)
    w1 = params["w1"].astype(MATMUL_DTYPE)                    # (cin, planes)
    w2 = params["w2"].astype(MATMUL_DTYPE)                    # (9*planes, planes), rows=(kh,kw,cin)
    w3 = params["w3"].astype(MATMUL_DTYPE)                    # (planes, cout)

    args = (xm, w1, w2, w3,
            params["g1"], params["b1"], params["g2"], params["b2"],
            params["g3"], params["b3"])

    kernel = functools.partial(_bottleneck_kernel, H=H, W=W, pad=pad)
    out_flat = pl.pallas_call(
        kernel,
        out_shape=jax.ShapeDtypeStruct((rows, cout), x_nhwc.dtype),
        in_specs=[pl.BlockSpec(memory_space=pltpu.MemorySpace.VMEM)] * len(args),
        out_specs=pl.BlockSpec(memory_space=pltpu.MemorySpace.VMEM),
        scratch_shapes=[
            pltpu.VMEM((rows + 2 * pad, planes), jnp.float32),  # padded activation
        ],
        compiler_params=pltpu.CompilerParams(vmem_limit_bytes=_vmem_limit_bytes()),
    )(*args)
    return out_flat.reshape(N, H, W, cout)


# --------------------------- pure-JAX reference -------------------------------
def ref_bottleneck(x, params, operand_dtype=jnp.float32):
    planes = params["w1"].shape[1]

    def bn(h, g, b):
        mean = jnp.mean(h, axis=(0, 1, 2), keepdims=True)
        var = jnp.mean((h - mean) ** 2, axis=(0, 1, 2), keepdims=True)
        return ((h - mean) * lax.rsqrt(var + EPS) * g.reshape(1, 1, 1, -1)
                + b.reshape(1, 1, 1, -1))

    cast = lambda a: a.astype(operand_dtype)

    h = jnp.einsum("nhwc,co->nhwo", cast(x), cast(params["w1"]),
                   preferred_element_type=jnp.float32)
    h = jnp.maximum(bn(h, params["g1"], params["b1"]), 0.0)
    w2 = params["w2"].reshape(3, 3, planes, planes)          # HWIO
    h = lax.conv_general_dilated(cast(h), cast(w2), (1, 1), ((1, 1), (1, 1)),
                                 dimension_numbers=("NHWC", "HWIO", "NHWC"),
                                 preferred_element_type=jnp.float32)
    h = jnp.maximum(bn(h, params["g2"], params["b2"]), 0.0)
    h = jnp.einsum("nhwc,co->nhwo", cast(h), cast(params["w3"]),
                   preferred_element_type=jnp.float32)
    h = bn(h, params["g3"], params["b3"]) + x
    return jnp.maximum(h, 0.0)


if __name__ == "__main__":
    # Small shapes consistent with the module: inplanes = planes * expansion.
    N, H, W = 2, 16, 16
    planes, expansion = 4, 4
    inplanes = planes * expansion             # 16 (residual add requires this)
    cout = planes * expansion                 # 16

    key = jax.random.PRNGKey(0)
    ks = jax.random.split(key, 11)
    params = {
        "w1": jax.random.normal(ks[0], (inplanes, planes), jnp.float32) * 0.1,
        "w2": jax.random.normal(ks[1], (9 * planes, planes), jnp.float32) * 0.1,
        "w3": jax.random.normal(ks[2], (planes, cout), jnp.float32) * 0.1,
        "g1": 1.0 + 0.1 * jax.random.normal(ks[3], (1, planes), jnp.float32),
        "b1": 0.1 * jax.random.normal(ks[4], (1, planes), jnp.float32),
        "g2": 1.0 + 0.1 * jax.random.normal(ks[5], (1, planes), jnp.float32),
        "b2": 0.1 * jax.random.normal(ks[6], (1, planes), jnp.float32),
        "g3": 1.0 + 0.1 * jax.random.normal(ks[7], (1, cout), jnp.float32),
        "b3": 0.1 * jax.random.normal(ks[8], (1, cout), jnp.float32),
    }
    x = jax.random.normal(ks[9], (N, H, W, inplanes), jnp.float32)   # NHWC

    out = jax.block_until_ready(bottleneck(x, params))
    assert out.shape == (N, H, W, cout)

    # Structural check: reference using the same bf16 matmul operands (tight).
    ref_match = ref_bottleneck(x, params, operand_dtype=MATMUL_DTYPE)
    err_m = float(jnp.max(jnp.abs(out - ref_match)))
    assert jnp.allclose(out, ref_match, rtol=2e-2, atol=2e-2), err_m

    # Semantic check vs. pure-f32 (PyTorch) math: bf16 MXU operands introduce
    # ~1% drift, so the tolerance is loosened (review-anticipated tradeoff).
    ref_f32 = ref_bottleneck(x, params, operand_dtype=jnp.float32)
    err_f = float(jnp.max(jnp.abs(out - ref_f32)))
    assert jnp.allclose(out, ref_f32, rtol=1e-1, atol=1e-1), err_f

    print("KERNEL_OK")
</pallas_src>

<mosaic_0001>
module attributes {stable_mosaic.version = 11 : i64} {
  func.func @_bottleneck_kernel(%arg0: memref<512x16xf32, #tpu.memory_space<vmem>>, %arg1: memref<16x4xbf16, #tpu.memory_space<vmem>>, %arg2: memref<36x4xbf16, #tpu.memory_space<vmem>>, %arg3: memref<4x16xbf16, #tpu.memory_space<vmem>>, %arg4: memref<1x4xf32, #tpu.memory_space<vmem>>, %arg5: memref<1x4xf32, #tpu.memory_space<vmem>>, %arg6: memref<1x4xf32, #tpu.memory_space<vmem>>, %arg7: memref<1x4xf32, #tpu.memory_space<vmem>>, %arg8: memref<1x16xf32, #tpu.memory_space<vmem>>, %arg9: memref<1x16xf32, #tpu.memory_space<vmem>>, %arg10: memref<512x16xf32, #tpu.memory_space<vmem>>, %arg11: memref<560x4xf32, #tpu.memory_space<vmem>>) attributes {dimension_semantics = [], scalar_prefetch = 0 : i64, scratch_operands = 1 : i64, tpu.core_type = #tpu.core_type<tc>} {
    %c0 = arith.constant 0 : index
    %c0_0 = arith.constant 0 : index
    %0 = vector.load %arg0[%c0, %c0_0] : memref<512x16xf32, #tpu.memory_space<vmem>>, vector<512x16xf32>
    %1 = arith.truncf %0 : vector<512x16xf32> to vector<512x16xbf16>
    %c0_1 = arith.constant 0 : index
    %c0_2 = arith.constant 0 : index
    %2 = vector.load %arg1[%c0_1, %c0_2] : memref<16x4xbf16, #tpu.memory_space<vmem>>, vector<16x4xbf16>
    %cst = arith.constant dense<0.000000e+00> : vector<512x4xf32>
    %3 = tpu.matmul %1, %2, %cst {dimension_numbers = #tpu.dot_dimension_numbers<[1], [0], [0], [1], [0, 0, 1, 1], [], []>} : vector<512x16xbf16>, vector<16x4xbf16>, vector<512x4xf32> -> vector<512x4xf32>
    %c0_3 = arith.constant 0 : index
    %c0_4 = arith.constant 0 : index
    %4 = vector.load %arg4[%c0_3, %c0_4] : memref<1x4xf32, #tpu.memory_space<vmem>>, vector<1x4xf32>
    %c0_5 = arith.constant 0 : index
    %c0_6 = arith.constant 0 : index
    %5 = vector.load %arg5[%c0_5, %c0_6] : memref<1x4xf32, #tpu.memory_space<vmem>>, vector<1x4xf32>
    %cst_7 = arith.constant dense<0.000000e+00> : vector<4xf32>
    %6 = vector.multi_reduction <add>, %3, %cst_7 [0] : vector<512x4xf32> to vector<4xf32>
    %7 = vector.shape_cast %6 : vector<4xf32> to vector<1x4xf32>
    %cst_8 = arith.constant 0.001953125 : f32
    %8 = vector.broadcast %cst_8 : f32 to vector<1x4xf32>
    %9 = arith.mulf %7, %8 : vector<1x4xf32>
    %10 = vector.broadcast %9 : vector<1x4xf32> to vector<512x4xf32>
    %11 = arith.subf %3, %10 : vector<512x4xf32>
    %12 = arith.mulf %11, %11 : vector<512x4xf32>
    %cst_9 = arith.constant dense<0.000000e+00> : vector<4xf32>
    %13 = vector.multi_reduction <add>, %12, %cst_9 [0] : vector<512x4xf32> to vector<4xf32>
    %14 = vector.shape_cast %13 : vector<4xf32> to vector<1x4xf32>
    %cst_10 = arith.constant 0.001953125 : f32
    %15 = vector.broadcast %cst_10 : f32 to vector<1x4xf32>
    %16 = arith.mulf %14, %15 : vector<1x4xf32>
    %cst_11 = arith.constant 9.99999974E-6 : f32
    %17 = vector.broadcast %cst_11 : f32 to vector<1x4xf32>
    %18 = arith.addf %16, %17 : vector<1x4xf32>
    %19 = math.rsqrt %18 : vector<1x4xf32>
    %20 = arith.mulf %4, %19 : vector<1x4xf32>
    %21 = vector.broadcast %20 : vector<1x4xf32> to vector<512x4xf32>
    %22 = arith.mulf %11, %21 : vector<512x4xf32>
    %23 = vector.broadcast %5 : vector<1x4xf32> to vector<512x4xf32>
    %24 = arith.addf %22, %23 : vector<512x4xf32>
    %cst_12 = arith.constant 0.000000e+00 : f32
    %25 = vector.broadcast %cst_12 : f32 to vector<512x4xf32>
    %26 = arith.maximumf %24, %25 : vector<512x4xf32>
    %cst_13 = arith.constant 0.000000e+00 : f32
    %27 = vector.broadcast %cst_13 : f32 to vector<24x4xf32>
    %c0_14 = arith.constant 0 : index
    %c0_15 = arith.constant 0 : index
    %28 = vector.load %arg11[%c0_14, %c0_15] : memref<560x4xf32, #tpu.memory_space<vmem>>, vector<24x4xf32>
    tpu.vector_store %arg11[%c0_14, %c0_15], %27 {strides = array<i32>} : memref<560x4xf32, #tpu.memory_space<vmem>>, vector<24x4xf32>,
    %c536 = arith.constant 536 : index
    %c0_16 = arith.constant 0 : index
    %29 = vector.load %arg11[%c536, %c0_16] : memref<560x4xf32, #tpu.memory_space<vmem>>, vector<24x4xf32>
    tpu.vector_store %arg11[%c536, %c0_16], %27 {strides = array<i32>} : memref<560x4xf32, #tpu.memory_space<vmem>>, vector<24x4xf32>,
    %c24 = arith.constant 24 : index
    %c0_17 = arith.constant 0 : index
    %30 = vector.load %arg11[%c24, %c0_17] : memref<560x4xf32, #tpu.memory_space<vmem>>, vector<512x4xf32>
    tpu.vector_store %arg11[%c24, %c0_17], %26 {strides = array<i32>} : memref<560x4xf32, #tpu.memory_space<vmem>>, vector<512x4xf32>,
    %31 = tpu.iota {dimensions = array<i32: 0>} : vector<512x1xi32>
    %c15_i32 = arith.constant 15 : i32
    %32 = vector.broadcast %c15_i32 : i32 to vector<512x1xi32>
    %33 = arith.andi %31, %32 : vector<512x1xi32>
    %c4_i32 = arith.constant 4 : i32
    %34 = vector.broadcast %c4_i32 : i32 to vector<512x1xi32>
    %35 = arith.shrsi %31, %34 : vector<512x1xi32>
    %c15_i32_18 = arith.constant 15 : i32
    %36 = vector.broadcast %c15_i32_18 : i32 to vector<512x1xi32>
    %37 = arith.andi %35, %36 : vector<512x1xi32>
    %c1_i32 = arith.constant 1 : i32
    %38 = vector.broadcast %c1_i32 : i32 to vector<512x1xi32>
    %39 = arith.cmpi sge, %37, %38 : vector<512x1xi32>
    %c14_i32 = arith.constant 14 : i32
    %40 = vector.broadcast %c14_i32 : i32 to vector<512x1xi32>
    %41 = arith.cmpi sle, %37, %40 : vector<512x1xi32>
    %c1_i32_19 = arith.constant 1 : i32
    %42 = vector.broadcast %c1_i32_19 : i32 to vector<512x1xi32>
    %43 = arith.cmpi sge, %33, %42 : vector<512x1xi32>
    %c14_i32_20 = arith.constant 14 : i32
    %44 = vector.broadcast %c14_i32_20 : i32 to vector<512x1xi32>
    %45 = arith.cmpi sle, %33, %44 : vector<512x1xi32>
    %c7 = arith.constant 7 : index
    %c0_21 = arith.constant 0 : index
    %46 = vector.load %arg11[%c7, %c0_21] : memref<560x4xf32, #tpu.memory_space<vmem>>, vector<512x4xf32>
    %47 = arith.andi %39, %43 : vector<512x1xi1>
    %cst_22 = arith.constant 0.000000e+00 : f32
    %48 = vector.shape_cast %47 : vector<512x1xi1> to vector<512x1xi1>
    %49 = vector.broadcast %48 : vector<512x1xi1> to vector<512x4xi1>
    %50 = vector.broadcast %cst_22 : f32 to vector<512x4xf32>
    %51 = arith.select %49, %46, %50 : vector<512x4xi1>, vector<512x4xf32>
    %c8 = arith.constant 8 : index
    %c0_23 = arith.constant 0 : index
    %52 = vector.load %arg11[%c8, %c0_23] : memref<560x4xf32, #tpu.memory_space<vmem>>, vector<512x4xf32>
    %cst_24 = arith.constant 0.000000e+00 : f32
    %53 = vector.shape_cast %39 : vector<512x1xi1> to vector<512x1xi1>
    %54 = vector.broadcast %53 : vector<512x1xi1> to vector<512x4xi1>
    %55 = vector.broadcast %cst_24 : f32 to vector<512x4xf32>
    %56 = arith.select %54, %52, %55 : vector<512x4xi1>, vector<512x4xf32>
    %c9 = arith.constant 9 : index
    %c0_25 = arith.constant 0 : index
    %57 = vector.load %arg11[%c9, %c0_25] : memref<560x4xf32, #tpu.memory_space<vmem>>, vector<512x4xf32>
    %58 = arith.andi %39, %45 : vector<512x1xi1>
    %cst_26 = arith.constant 0.000000e+00 : f32
    %59 = vector.shape_cast %58 : vector<512x1xi1> to vector<512x1xi1>
    %60 = vector.broadcast %59 : vector<512x1xi1> to vector<512x4xi1>
    %61 = vector.broadcast %cst_26 : f32 to vector<512x4xf32>
    %62 = arith.select %60, %57, %61 : vector<512x4xi1>, vector<512x4xf32>
    %c23 = arith.constant 23 : index
    %c0_27 = arith.constant 0 : index
    %63 = vector.load %arg11[%c23, %c0_27] : memref<560x4xf32, #tpu.memory_space<vmem>>, vector<512x4xf32>
    %cst_28 = arith.constant 0.000000e+00 : f32
    %64 = vector.shape_cast %43 : vector<512x1xi1> to vector<512x1xi1>
    %65 = vector.broadcast %64 : vector<512x1xi1> to vector<512x4xi1>
    %66 = vector.broadcast %cst_28 : f32 to vector<512x4xf32>
    %67 = arith.select %65, %63, %66 : vector<512x4xi1>, vector<512x4xf32>
    %c24_29 = arith.constant 24 : index
    %c0_30 = arith.constant 0 : index
    %68 = vector.load %arg11[%c24_29, %c0_30] : memref<560x4xf32, #tpu.memory_space<vmem>>, vector<512x4xf32>
    %c25 = arith.constant 25 : index
    %c0_31 = arith.constant 0 : index
    %69 = vector.load %arg11[%c25, %c0_31] : memref<560x4xf32, #tpu.memory_space<vmem>>, vector<512x4xf32>
    %cst_32 = arith.constant 0.000000e+00 : f32
    %70 = vector.shape_cast %45 : vector<512x1xi1> to vector<512x1xi1>
    %71 = vector.broadcast %70 : vector<512x1xi1> to vector<512x4xi1>
    %72 = vector.broadcast %cst_32 : f32 to vector<512x4xf32>
    %73 = arith.select %71, %69, %72 : vector<512x4xi1>, vector<512x4xf32>
    %c39 = arith.constant 39 : index
    %c0_33 = arith.constant 0 : index
    %74 = vector.load %arg11[%c39, %c0_33] : memref<560x4xf32, #tpu.memory_space<vmem>>, vector<512x4xf32>
    %75 = arith.andi %41, %43 : vector<512x1xi1>
    %cst_34 = arith.constant 0.000000e+00 : f32
    %76 = vector.shape_cast %75 : vector<512x1xi1> to vector<512x1xi1>
    %77 = vector.broadcast %76 : vector<512x1xi1> to vector<512x4xi1>
    %78 = vector.broadcast %cst_34 : f32 to vector<512x4xf32>
    %79 = arith.select %77, %74, %78 : vector<512x4xi1>, vector<512x4xf32>
    %c40 = arith.constant 40 : index
    %c0_35 = arith.constant 0 : index
    %80 = vector.load %arg11[%c40, %c0_35] : memref<560x4xf32, #tpu.memory_space<vmem>>, vector<512x4xf32>
    %cst_36 = arith.constant 0.000000e+00 : f32
    %81 = vector.shape_cast %41 : vector<512x1xi1> to vector<512x1xi1>
    %82 = vector.broadcast %81 : vector<512x1xi1> to vector<512x4xi1>
    %83 = vector.broadcast %cst_36 : f32 to vector<512x4xf32>
    %84 = arith.select %82, %80, %83 : vector<512x4xi1>, vector<512x4xf32>
    %c41 = arith.constant 41 : index
    %c0_37 = arith.constant 0 : index
    %85 = vector.load %arg11[%c41, %c0_37] : memref<560x4xf32, #tpu.memory_space<vmem>>, vector<512x4xf32>
    %86 = arith.andi %41, %45 : vector<512x1xi1>
    %cst_38 = arith.constant 0.000000e+00 : f32
    %87 = vector.shape_cast %86 : vector<512x1xi1> to vector<512x1xi1>
    %88 = vector.broadcast %87 : vector<512x1xi1> to vector<512x4xi1>
    %89 = vector.broadcast %cst_38 : f32 to vector<512x4xf32>
    %90 = arith.select %88, %85, %89 : vector<512x4xi1>, vector<512x4xf32>
    %91 = tpu.concatenate %51, %56, %62, %67, %68, %73, %79, %84, %90 in 1 : vector<512x4xf32>, vector<512x4xf32>, vector<512x4xf32>, vector<512x4xf32>, vector<512x4xf32>, vector<512x4xf32>, vector<512x4xf32>, vector<512x4xf32>, vector<512x4xf32> -> vector<512x36xf32>
    %92 = arith.truncf %91 : vector<512x36xf32> to vector<512x36xbf16>
    %c0_39 = arith.constant 0 : index
    %c0_40 = arith.constant 0 : index
    %93 = vector.load %arg2[%c0_39, %c0_40] : memref<36x4xbf16, #tpu.memory_space<vmem>>, vector<36x4xbf16>
    %cst_41 = arith.constant dense<0.000000e+00> : vector<512x4xf32>
    %94 = tpu.matmul %92, %93, %cst_41 {dimension_numbers = #tpu.dot_dimension_numbers<[1], [0], [0], [1], [0, 0, 1, 1], [], []>} : vector<512x36xbf16>, vector<36x4xbf16>, vector<512x4xf32> -> vector<512x4xf32>
    %c0_42 = arith.constant 0 : index
    %c0_43 = arith.constant 0 : index
    %95 = vector.load %arg6[%c0_42, %c0_43] : memref<1x4xf32, #tpu.memory_space<vmem>>, vector<1x4xf32>
    %c0_44 = arith.constant 0 : index
    %c0_45 = arith.constant 0 : index
    %96 = vector.load %arg7[%c0_44, %c0_45] : memref<1x4xf32, #tpu.memory_space<vmem>>, vector<1x4xf32>
    %cst_46 = arith.constant dense<0.000000e+00> : vector<4xf32>
    %97 = vector.multi_reduction <add>, %94, %cst_46 [0] : vector<512x4xf32> to vector<4xf32>
    %98 = vector.shape_cast %97 : vector<4xf32> to vector<1x4xf32>
    %cst_47 = arith.constant 0.001953125 : f32
    %99 = vector.broadcast %cst_47 : f32 to vector<1x4xf32>
    %100 = arith.mulf %98, %99 : vector<1x4xf32>
    %101 = vector.broadcast %100 : vector<1x4xf32> to vector<512x4xf32>
    %102 = arith.subf %94, %101 : vector<512x4xf32>
    %103 = arith.mulf %102, %102 : vector<512x4xf32>
    %cst_48 = arith.constant dense<0.000000e+00> : vector<4xf32>
    %104 = vector.multi_reduction <add>, %103, %cst_48 [0] : vector<512x4xf32> to vector<4xf32>
    %105 = vector.shape_cast %104 : vector<4xf32> to vector<1x4xf32>
    %cst_49 = arith.constant 0.001953125 : f32
    %106 = vector.broadcast %cst_49 : f32 to vector<1x4xf32>
    %107 = arith.mulf %105, %106 : vector<1x4xf32>
    %cst_50 = arith.constant 9.99999974E-6 : f32
    %108 = vector.broadcast %cst_50 : f32 to vector<1x4xf32>
    %109 = arith.addf %107, %108 : vector<1x4xf32>
    %110 = math.rsqrt %109 : vector<1x4xf32>
    %111 = arith.mulf %95, %110 : vector<1x4xf32>
    %112 = vector.broadcast %111 : vector<1x4xf32> to vector<512x4xf32>
    %113 = arith.mulf %102, %112 : vector<512x4xf32>
    %114 = vector.broadcast %96 : vector<1x4xf32> to vector<512x4xf32>
    %115 = arith.addf %113, %114 : vector<512x4xf32>
    %cst_51 = arith.constant 0.000000e+00 : f32
    %116 = vector.broadcast %cst_51 : f32 to vector<512x4xf32>
    %117 = arith.maximumf %115, %116 : vector<512x4xf32>
    %118 = arith.truncf %117 : vector<512x4xf32> to vector<512x4xbf16>
    %c0_52 = arith.constant 0 : index
    %c0_53 = arith.constant 0 : index
    %119 = vector.load %arg3[%c0_52, %c0_53] : memref<4x16xbf16, #tpu.memory_space<vmem>>, vector<4x16xbf16>
    %cst_54 = arith.constant dense<0.000000e+00> : vector<512x16xf32>
    %120 = tpu.matmul %118, %119, %cst_54 {dimension_numbers = #tpu.dot_dimension_numbers<[1], [0], [0], [1], [0, 0, 1, 1], [], []>} : vector<512x4xbf16>, vector<4x16xbf16>, vector<512x16xf32> -> vector<512x16xf32>
    %c0_55 = arith.constant 0 : index
    %c0_56 = arith.constant 0 : index
    %121 = vector.load %arg8[%c0_55, %c0_56] : memref<1x16xf32, #tpu.memory_space<vmem>>, vector<1x16xf32>
    %c0_57 = arith.constant 0 : index
    %c0_58 = arith.constant 0 : index
    %122 = vector.load %arg9[%c0_57, %c0_58] : memref<1x16xf32, #tpu.memory_space<vmem>>, vector<1x16xf32>
    %cst_59 = arith.constant dense<0.000000e+00> : vector<16xf32>
    %123 = vector.multi_reduction <add>, %120, %cst_59 [0] : vector<512x16xf32> to vector<16xf32>
    %124 = vector.shape_cast %123 : vector<16xf32> to vector<1x16xf32>
    %cst_60 = arith.constant 0.001953125 : f32
    %125 = vector.broadcast %cst_60 : f32 to vector<1x16xf32>
    %126 = arith.mulf %124, %125 : vector<1x16xf32>
    %127 = vector.broadcast %126 : vector<1x16xf32> to vector<512x16xf32>
    %128 = arith.subf %120, %127 : vector<512x16xf32>
    %129 = arith.mulf %128, %128 : vector<512x16xf32>
    %cst_61 = arith.constant dense<0.000000e+00> : vector<16xf32>
    %130 = vector.multi_reduction <add>, %129, %cst_61 [0] : vector<512x16xf32> to vector<16xf32>
    %131 = vector.shape_cast %130 : vector<16xf32> to vector<1x16xf32>
    %cst_62 = arith.constant 0.001953125 : f32
    %132 = vector.broadcast %cst_62 : f32 to vector<1x16xf32>
    %133 = arith.mulf %131, %132 : vector<1x16xf32>
    %cst_63 = arith.constant 9.99999974E-6 : f32
    %134 = vector.broadcast %cst_63 : f32 to vector<1x16xf32>
    %135 = arith.addf %133, %134 : vector<1x16xf32>
    %136 = math.rsqrt %135 : vector<1x16xf32>
    %137 = arith.mulf %121, %136 : vector<1x16xf32>
    %138 = vector.broadcast %137 : vector<1x16xf32> to vector<512x16xf32>
    %139 = arith.mulf %128, %138 : vector<512x16xf32>
    %140 = vector.broadcast %122 : vector<1x16xf32> to vector<512x16xf32>
    %141 = arith.addf %139, %140 : vector<512x16xf32>
    %c0_64 = arith.constant 0 : index
    %c0_65 = arith.constant 0 : index
    %142 = vector.load %arg0[%c0_64, %c0_65] : memref<512x16xf32, #tpu.memory_space<vmem>>, vector<512x16xf32>
    %143 = arith.addf %141, %142 : vector<512x16xf32>
    %cst_66 = arith.constant 0.000000e+00 : f32
    %144 = vector.broadcast %cst_66 : f32 to vector<512x16xf32>
    %145 = arith.maximumf %143, %144 : vector<512x16xf32>
    %c0_67 = arith.constant 0 : index
    %c0_68 = arith.constant 0 : index
    %146 = vector.load %arg10[%c0_67, %c0_68] : memref<512x16xf32, #tpu.memory_space<vmem>>, vector<512x16xf32>
    tpu.vector_store %arg10[%c0_67, %c0_68], %145 {strides = array<i32>} : memref<512x16xf32, #tpu.memory_space<vmem>>, vector<512x16xf32>,
    return
  }
}

</mosaic_0001>

<llo_original>
// kernel: tpu_custom_call.1
$region0: #{tpu_custom_call.1}
  #allocation0 [shape = 'u32[]', space=smem, size = 0x4, offset = 0x4, fixed_abs, tag = 'smem constant byte address 0x4 - core index']
  #allocation1 [shape = 'u32[144,128]{1,0:T(1,128)}', space=vmem, size = 0x12000, scoped, tag = 'internal scratch']
  #allocation2 [shape = 'f32[560,4]{1,0:T(8,128)}', space=vmem, size = 0x46000, scoped, tag = 'scratch operand']
  %s0 = inlined_call_operand.vmem [shape: f32[512,16], index: 0, kind: input, shape index: {}]
  %s1 = inlined_call_operand.vmem [shape: bf16[16,4], index: 1, kind: input, shape index: {}]
  %s2 = inlined_call_operand.vmem [shape: bf16[36,4], index: 2, kind: input, shape index: {}]
  %s3 = inlined_call_operand.vmem [shape: bf16[4,16], index: 3, kind: input, shape index: {}]
  %s4 = inlined_call_operand.vmem [shape: f32[1,4], index: 4, kind: input, shape index: {}]
  %s5 = inlined_call_operand.vmem [shape: f32[1,4], index: 5, kind: input, shape index: {}]
  %s6 = inlined_call_operand.vmem [shape: f32[1,4], index: 6, kind: input, shape index: {}]
  %s7 = inlined_call_operand.vmem [shape: f32[1,4], index: 7, kind: input, shape index: {}]
  %s8 = inlined_call_operand.vmem [shape: f32[1,16], index: 8, kind: input, shape index: {}]
  %s9 = inlined_call_operand.vmem [shape: f32[1,16], index: 9, kind: input, shape index: {}]
  %s10 = inlined_call_operand.vmem [shape: f32[512,16], index: 10, kind: output, shape index: {}]
  %s11 = sld [smem:[#allocation0]]
  $region50: #{tpu_custom_call.1} parent=0
    _
  %s13 = ssub.s32 1, %s11
  %s14 = scalar_select 0, %s13, %s11
  // Predicated region
  $region2: #{tpu_custom_call.1} parent=0 // pred_check
    _
  $region3: #{tpu_custom_call.1} parent=0 // pred_check_branch
    %16 = sbr.rel (0) target = $region5
  $region4: #{tpu_custom_call.1} parent=0 // pred_region
    _
  $region5: #{tpu_custom_call.1} parent=0 // pred_fallthru
    _
  // Predicated region
  $region6: #{tpu_custom_call.1} parent=0 // pred_check
    _
  $region7: #{tpu_custom_call.1} parent=0 // pred_check_branch
    %18 = sbr.rel (0) target = $region9
  $region8: #{tpu_custom_call.1} parent=0 // pred_region
    _
  $region9: #{tpu_custom_call.1} parent=0 // pred_fallthru
    _
  // Predicated region
  $region10: #{tpu_custom_call.1} parent=0 // pred_check
    _
  $region11: #{tpu_custom_call.1} parent=0 // pred_check_branch
    %20 = sbr.rel (0) target = $region13
  $region12: #{tpu_custom_call.1} parent=0 // pred_region
    _
  $region13: #{tpu_custom_call.1} parent=0 // pred_fallthru
    _
  // Predicated region
  $region14: #{tpu_custom_call.1} parent=0 // pred_check
    _
  $region15: #{tpu_custom_call.1} parent=0 // pred_check_branch
    %22 = sbr.rel (0) target = $region17
  $region16: #{tpu_custom_call.1} parent=0 // pred_region
    _
  $region17: #{tpu_custom_call.1} parent=0 // pred_fallthru
    _
  // Predicated region
  $region18: #{tpu_custom_call.1} parent=0 // pred_check
    _
  $region19: #{tpu_custom_call.1} parent=0 // pred_check_branch
    %24 = sbr.rel (0) target = $region21
  $region20: #{tpu_custom_call.1} parent=0 // pred_region
    _
  $region21: #{tpu_custom_call.1} parent=0 // pred_fallthru
    _
  // Predicated region
  $region22: #{tpu_custom_call.1} parent=0 // pred_check
    _
  $region23: #{tpu_custom_call.1} parent=0 // pred_check_branch
    %26 = sbr.rel (0) target = $region25
  $region24: #{tpu_custom_call.1} parent=0 // pred_region
    _
  $region25: #{tpu_custom_call.1} parent=0 // pred_fallthru
    _
  // Predicated region
  $region26: #{tpu_custom_call.1} parent=0 // pred_check
    _
  $region27: #{tpu_custom_call.1} parent=0 // pred_check_branch
    %28 = sbr.rel (0) target = $region29
  $region28: #{tpu_custom_call.1} parent=0 // pred_region
    _
  $region29: #{tpu_custom_call.1} parent=0 // pred_fallthru
    _
  // Predicated region
  $region30: #{tpu_custom_call.1} parent=0 // pred_check
    _
  $region31: #{tpu_custom_call.1} parent=0 // pred_check_branch
    %30 = sbr.rel (0) target = $region33
  $region32: #{tpu_custom_call.1} parent=0 // pred_region
    _
  $region33: #{tpu_custom_call.1} parent=0 // pred_fallthru
    _
  // Predicated region
  $region34: #{tpu_custom_call.1} parent=0 // pred_check
    _
  $region35: #{tpu_custom_call.1} parent=0 // pred_check_branch
    %32 = sbr.rel (0) target = $region37
  $region36: #{tpu_custom_call.1} parent=0 // pred_region
    _
  $region37: #{tpu_custom_call.1} parent=0 // pred_fallthru
    _
  // Predicated region
  $region38: #{tpu_custom_call.1} parent=0 // pred_check
    _
  $region39: #{tpu_custom_call.1} parent=0 // pred_check_branch
    %34 = sbr.rel (0) target = $region41
  $region40: #{tpu_custom_call.1} parent=0 // pred_region
    _
  $region41: #{tpu_custom_call.1} parent=0 // pred_fallthru
    _
  %v36 = vld [vmem:[%s0] sm:$0xff]
  %v37 = vld [vmem:[%s0 + $0x8] sm:$0xff]
  %v38 = vld [vmem:[%s0 + $0x10] sm:$0xff]
  %v39 = vld [vmem:[%s0 + $0x18] sm:$0xff]
  %v40 = vld [vmem:[%s0 + $0x20] sm:$0xff]
  %v41 = vld [vmem:[%s0 + $0x28] sm:$0xff]
  %v42 = vld [vmem:[%s0 + $0x30] sm:$0xff]
  %v43 = vld [vmem:[%s0 + $0x38] sm:$0xff]
  %v44 = vld [vmem:[%s0 + $0x40] sm:$0xff]
  %v45 = vld [vmem:[%s0 + $0x48] sm:$0xff]
  %v46 = vld [vmem:[%s0 + $0x50] sm:$0xff]
  %v47 = vld [vmem:[%s0 + $0x58] sm:$0xff]
  %v48 = vld [vmem:[%s0 + $0x60] sm:$0xff]
  %v49 = vld [vmem:[%s0 + $0x68] sm:$0xff]
  %v50 = vld [vmem:[%s0 + $0x70] sm:$0xff]
  %v51 = vld [vmem:[%s0 + $0x78] sm:$0xff]
  %v52 = vld [vmem:[%s0 + $0x80] sm:$0xff]
  %v53 = vld [vmem:[%s0 + $0x88] sm:$0xff]
  %v54 = vld [vmem:[%s0 + $0x90] sm:$0xff]
  %v55 = vld [vmem:[%s0 + $0x98] sm:$0xff]
  %v56 = vld [vmem:[%s0 + $0xa0] sm:$0xff]
  %v57 = vld [vmem:[%s0 + $0xa8] sm:$0xff]
  %v58 = vld [vmem:[%s0 + $0xb0] sm:$0xff]
  %v59 = vld [vmem:[%s0 + $0xb8] sm:$0xff]
  %v60 = vld [vmem:[%s0 + $0xc0] sm:$0xff]
  %v61 = vld [vmem:[%s0 + $0xc8] sm:$0xff]
  %v62 = vld [vmem:[%s0 + $0xd0] sm:$0xff]
  %v63 = vld [vmem:[%s0 + $0xd8] sm:$0xff]
  %v64 = vld [vmem:[%s0 + $0xe0] sm:$0xff]
  %v65 = vld [vmem:[%s0 + $0xe8] sm:$0xff]
  %v66 = vld [vmem:[%s0 + $0xf0] sm:$0xff]
  %v67 = vld [vmem:[%s0 + $0xf8] sm:$0xff]
  %v68 = vld [vmem:[%s0 + $0x100] sm:$0xff]
  %v69 = vld [vmem:[%s0 + $0x108] sm:$0xff]
  %v70 = vld [vmem:[%s0 + $0x110] sm:$0xff]
  %v71 = vld [vmem:[%s0 + $0x118] sm:$0xff]
  %v72 = vld [vmem:[%s0 + $0x120] sm:$0xff]
  %v73 = vld [vmem:[%s0 + $0x128] sm:$0xff]
  %v74 = vld [vmem:[%s0 + $0x130] sm:$0xff]
  %v75 = vld [vmem:[%s0 + $0x138] sm:$0xff]
  %v76 = vld [vmem:[%s0 + $0x140] sm:$0xff]
  %v77 = vld [vmem:[%s0 + $0x148] sm:$0xff]
  %v78 = vld [vmem:[%s0 + $0x150] sm:$0xff]
  %v79 = vld [vmem:[%s0 + $0x158] sm:$0xff]
  %v80 = vld [vmem:[%s0 + $0x160] sm:$0xff]
  %v81 = vld [vmem:[%s0 + $0x168] sm:$0xff]
  %v82 = vld [vmem:[%s0 + $0x170] sm:$0xff]
  %v83 = vld [vmem:[%s0 + $0x178] sm:$0xff]
  %v84 = vld [vmem:[%s0 + $0x180] sm:$0xff]
  %v85 = vld [vmem:[%s0 + $0x188] sm:$0xff]
  %v86 = vld [vmem:[%s0 + $0x190] sm:$0xff]
  %v87 = vld [vmem:[%s0 + $0x198] sm:$0xff]
  %v88 = vld [vmem:[%s0 + $0x1a0] sm:$0xff]
  %v89 = vld [vmem:[%s0 + $0x1a8] sm:$0xff]
  %v90 = vld [vmem:[%s0 + $0x1b0] sm:$0xff]
  %v91 = vld [vmem:[%s0 + $0x1b8] sm:$0xff]
  %v92 = vld [vmem:[%s0 + $0x1c0] sm:$0xff]
  %v93 = vld [vmem:[%s0 + $0x1c8] sm:$0xff]
  %v94 = vld [vmem:[%s0 + $0x1d0] sm:$0xff]
  %v95 = vld [vmem:[%s0 + $0x1d8] sm:$0xff]
  %v96 = vld [vmem:[%s0 + $0x1e0] sm:$0xff]
  %v97 = vld [vmem:[%s0 + $0x1e8] sm:$0xff]
  %v98 = vld [vmem:[%s0 + $0x1f0] sm:$0xff]
  %v99 = vld [vmem:[%s0 + $0x1f8] sm:$0xff]
  %v100 = vpack.c.bf16 %v37, %v36
  %v101 = vpack.c.bf16 %v39, %v38
  %v102 = vpack.c.bf16 %v41, %v40
  %v103 = vpack.c.bf16 %v43, %v42
  %v104 = vpack.c.bf16 %v45, %v44
  %v105 = vpack.c.bf16 %v47, %v46
  %v106 = vpack.c.bf16 %v49, %v48
  %v107 = vpack.c.bf16 %v51, %v50
  %v108 = vpack.c.bf16 %v53, %v52
  %v109 = vpack.c.bf16 %v55, %v54
  %v110 = vpack.c.bf16 %v57, %v56
  %v111 = vpack.c.bf16 %v59, %v58
  %v112 = vpack.c.bf16 %v61, %v60
  %v113 = vpack.c.bf16 %v63, %v62
  %v114 = vpack.c.bf16 %v65, %v64
  %v115 = vpack.c.bf16 %v67, %v66
  %v116 = vpack.c.bf16 %v69, %v68
  %v117 = vpack.c.bf16 %v71, %v70
  %v118 = vpack.c.bf16 %v73, %v72
  %v119 = vpack.c.bf16 %v75, %v74
  %v120 = vpack.c.bf16 %v77, %v76
  %v121 = vpack.c.bf16 %v79, %v78
  %v122 = vpack.c.bf16 %v81, %v80
  %v123 = vpack.c.bf16 %v83, %v82
  %v124 = vpack.c.bf16 %v85, %v84
  %v125 = vpack.c.bf16 %v87, %v86
  %v126 = vpack.c.bf16 %v89, %v88
  %v127 = vpack.c.bf16 %v91, %v90
  %v128 = vpack.c.bf16 %v93, %v92
  %v129 = vpack.c.bf16 %v95, %v94
  %v130 = vpack.c.bf16 %v97, %v96
  %v131 = vpack.c.bf16 %v99, %v98
  %v132 = vld [vmem:[%s1] sm:$0xf]
  %v133 = vld [vmem:[%s1 + $0x4] sm:$0xf]
  %v136 = vunpack.c.l.b16 %v132
  %v137 = vunpack.c.l.b16 %v133
  %v138 = vpack.c.b16 %v137, %v136
  %vm140 = vcmask 130048
  %v142 = vsel %vm140, %v100, 0
  %v145 = vsel %vm140, %v101, 0
  %v148 = vsel %vm140, %v102, 0
  %v151 = vsel %vm140, %v103, 0
  %v154 = vsel %vm140, %v104, 0
  %v157 = vsel %vm140, %v105, 0
  %v160 = vsel %vm140, %v106, 0
  %v163 = vsel %vm140, %v107, 0
  %v166 = vsel %vm140, %v108, 0
  %v169 = vsel %vm140, %v109, 0
  %v172 = vsel %vm140, %v110, 0
  %v175 = vsel %vm140, %v111, 0
  %v178 = vsel %vm140, %v112, 0
  %v181 = vsel %vm140, %v113, 0
  %v184 = vsel %vm140, %v114, 0
  %v187 = vsel %vm140, %v115, 0
  %v190 = vsel %vm140, %v116, 0
  %v193 = vsel %vm140, %v117, 0
  %v196 = vsel %vm140, %v118, 0
  %v199 = vsel %vm140, %v119, 0
  %v202 = vsel %vm140, %v120, 0
  %v205 = vsel %vm140, %v121, 0
  %v208 = vsel %vm140, %v122, 0
  %v211 = vsel %vm140, %v123, 0
  %v214 = vsel %vm140, %v124, 0
  %v217 = vsel %vm140, %v125, 0
  %v220 = vsel %vm140, %v126, 0
  %v223 = vsel %vm140, %v127, 0
  %v226 = vsel %vm140, %v128, 0
  %v229 = vsel %vm140, %v129, 0
  %v232 = vsel %vm140, %v130, 0
  %v235 = vsel %vm140, %v131, 0
  %237 = vmatprep.subr.bf16.mxu0 0
  %238 = vmatpush1.bf16.msra.mxu0 0
  %239 = vmatprep.subr.bf16.mxu0 0
  %240 = vmatpush1.bf16.msra.mxu0 0
  %241 = vmatprep.subr.bf16.mxu0 0
  %242 = vmatpush1.bf16.msra.mxu0 0
  %243 = vmatprep.subr.bf16.mxu0 0
  %244 = vmatpush1.bf16.msra.mxu0 0
  %245 = vmatprep.subr.bf16.mxu0 0
  %246 = vmatpush1.bf16.msra.mxu0 0
  %247 = vmatprep.subr.bf16.mxu0 0
  %248 = vmatpush1.bf16.msra.mxu0 0
  %249 = vmatprep.subr.bf16.mxu0 0
  %250 = vmatpush1.bf16.msra.mxu0 0
  %251 = vmatprep.subr.bf16.mxu0 0
  %252 = vmatpush1.bf16.msra.mxu0 %v138
  %253 = vmatprep.subr.bf16.mxu0 0
  %254 = vmatpush2.bf16.msra.mxu0 0
  %255 = vmatprep.subr.bf16.mxu0 0
  %256 = vmatpush2.bf16.msra.mxu0 0
  %257 = vmatprep.subr.bf16.mxu0 0
  %258 = vmatpush2.bf16.msra.mxu0 0
  %259 = vmatprep.subr.bf16.mxu0 0
  %260 = vmatpush2.bf16.msra.mxu0 0
  %261 = vmatprep.subr.bf16.mxu0 0
  %262 = vmatpush2.bf16.msra.mxu0 0
  %263 = vmatprep.subr.bf16.mxu0 0
  %264 = vmatpush2.bf16.msra.mxu0 0
  %265 = vmatprep.subr.bf16.mxu0 0
  %266 = vmatpush2.bf16.msra.mxu0 0
  %267 = vmatprep.subr.bf16.mxu0 0
  %268 = vmatpush2.bf16.msra.mxu0 0
  %269 = vmatprep.mubr.bf16.mxu0 0
  %270 = vmatmul.mubr.bf16.gmra.mxu0 %v142
  %v271 = vpop.f32.mrf.mxu0
  %v272 = vadd.f32 0.0, %v271
  %v273 = vpop.f32.mrf.mxu0
  %v274 = vpop.f32.mrf.mxu0
  %v275 = vadd.f32 0.0, %v274
  %v276 = vpop.f32.mrf.mxu0
  %277 = vmatprep.mubr.bf16.mxu0 0
  %278 = vmatmul.mubr.bf16.gmra.mxu0 %v145
  %v279 = vpop.f32.mrf.mxu0
  %v280 = vadd.f32 0.0, %v279
  %v281 = vpop.f32.mrf.mxu0
  %v282 = vpop.f32.mrf.mxu0
  %v283 = vadd.f32 0.0, %v282
  %v284 = vpop.f32.mrf.mxu0
  %285 = vmatprep.mubr.bf16.mxu0 0
  %286 = vmatmul.mubr.bf16.gmra.mxu0 %v148
  %v287 = vpop.f32.mrf.mxu0
  %v288 = vadd.f32 0.0, %v287
  %v289 = vpop.f32.mrf.mxu0
  %v290 = vpop.f32.mrf.mxu0
  %v291 = vadd.f32 0.0, %v290
  %v292 = vpop.f32.mrf.mxu0
  %293 = vmatprep.mubr.bf16.mxu0 0
  %294 = vmatmul.mubr.bf16.gmra.mxu0 %v151
  %v295 = vpop.f32.mrf.mxu0
  %v296 = vadd.f32 0.0, %v295
  %v297 = vpop.f32.mrf.mxu0
  %v298 = vpop.f32.mrf.mxu0
  %v299 = vadd.f32 0.0, %v298
  %v300 = vpop.f32.mrf.mxu0
  %301 = vmatprep.mubr.bf16.mxu0 0
  %302 = vmatmul.mubr.bf16.gmra.mxu0 %v154
  %v303 = vpop.f32.mrf.mxu0
  %v304 = vadd.f32 0.0, %v303
  %v305 = vpop.f32.mrf.mxu0
  %v306 = vpop.f32.mrf.mxu0
  %v307 = vadd.f32 0.0, %v306
  %v308 = vpop.f32.mrf.mxu0
  %309 = vmatprep.mubr.bf16.mxu0 0
  %310 = vmatmul.mubr.bf16.gmra.mxu0 %v157
  %v311 = vpop.f32.mrf.mxu0
  %v312 = vadd.f32 0.0, %v311
  %v313 = vpop.f32.mrf.mxu0
  %v314 = vpop.f32.mrf.mxu0
  %v315 = vadd.f32 0.0, %v314
  %v316 = vpop.f32.mrf.mxu0
  %317 = vmatprep.mubr.bf16.mxu0 0
  %318 = vmatmul.mubr.bf16.gmra.mxu0 %v160
  %v319 = vpop.f32.mrf.mxu0
  %v320 = vadd.f32 0.0, %v319
  %v321 = vpop.f32.mrf.mxu0
  %v322 = vpop.f32.mrf.mxu0
  %v323 = vadd.f32 0.0, %v322
  %v324 = vpop.f32.mrf.mxu0
  %325 = vmatprep.mubr.bf16.mxu0 0
  %326 = vmatmul.mubr.bf16.gmra.mxu0 %v163
  %v327 = vpop.f32.mrf.mxu0
  %v328 = vadd.f32 0.0, %v327
  %v329 = vpop.f32.mrf.mxu0
  %v330 = vpop.f32.mrf.mxu0
  %v331 = vadd.f32 0.0, %v330
  %v332 = vpop.f32.mrf.mxu0
  %333 = vmatprep.mubr.bf16.mxu0 0
  %334 = vmatmul.mubr.bf16.gmra.mxu0 %v166
  %v335 = vpop.f32.mrf.mxu0
  %v336 = vadd.f32 0.0, %v335
  %v337 = vpop.f32.mrf.mxu0
  %v338 = vpop.f32.mrf.mxu0
  %v339 = vadd.f32 0.0, %v338
  %v340 = vpop.f32.mrf.mxu0
  %341 = vmatprep.mubr.bf16.mxu0 0
  %342 = vmatmul.mubr.bf16.gmra.mxu0 %v169
  %v343 = vpop.f32.mrf.mxu0
  %v344 = vadd.f32 0.0, %v343
  %v345 = vpop.f32.mrf.mxu0
  %v346 = vpop.f32.mrf.mxu0
  %v347 = vadd.f32 0.0, %v346
  %v348 = vpop.f32.mrf.mxu0
  %349 = vmatprep.mubr.bf16.mxu0 0
  %350 = vmatmul.mubr.bf16.gmra.mxu0 %v172
  %v351 = vpop.f32.mrf.mxu0
  %v352 = vadd.f32 0.0, %v351
  %v353 = vpop.f32.mrf.mxu0
  %v354 = vpop.f32.mrf.mxu0
  %v355 = vadd.f32 0.0, %v354
  %v356 = vpop.f32.mrf.mxu0
  %357 = vmatprep.mubr.bf16.mxu0 0
  %358 = vmatmul.mubr.bf16.gmra.mxu0 %v175
  %v359 = vpop.f32.mrf.mxu0
  %v360 = vadd.f32 0.0, %v359
  %v361 = vpop.f32.mrf.mxu0
  %v362 = vpop.f32.mrf.mxu0
  %v363 = vadd.f32 0.0, %v362
  %v364 = vpop.f32.mrf.mxu0
  %365 = vmatprep.mubr.bf16.mxu0 0
  %366 = vmatmul.mubr.bf16.gmra.mxu0 %v178
  %v367 = vpop.f32.mrf.mxu0
  %v368 = vadd.f32 0.0, %v367
  %v369 = vpop.f32.mrf.mxu0
  %v370 = vpop.f32.mrf.mxu0
  %v371 = vadd.f32 0.0, %v370
  %v372 = vpop.f32.mrf.mxu0
  %373 = vmatprep.mubr.bf16.mxu0 0
  %374 = vmatmul.mubr.bf16.gmra.mxu0 %v181
  %v375 = vpop.f32.mrf.mxu0
  %v376 = vadd.f32 0.0, %v375
  %v377 = vpop.f32.mrf.mxu0
  %v378 = vpop.f32.mrf.mxu0
  %v379 = vadd.f32 0.0, %v378
  %v380 = vpop.f32.mrf.mxu0
  %381 = vmatprep.mubr.bf16.mxu0 0
  %382 = vmatmul.mubr.bf16.gmra.mxu0 %v184
  %v383 = vpop.f32.mrf.mxu0
  %v384 = vadd.f32 0.0, %v383
  %v385 = vpop.f32.mrf.mxu0
  %v386 = vpop.f32.mrf.mxu0
  %v387 = vadd.f32 0.0, %v386
  %v388 = vpop.f32.mrf.mxu0
  %389 = vmatprep.mubr.bf16.mxu0 0
  %390 = vmatmul.mubr.bf16.gmra.mxu0 %v187
  %v391 = vpop.f32.mrf.mxu0
  %v392 = vadd.f32 0.0, %v391
  %v393 = vpop.f32.mrf.mxu0
  %v394 = vpop.f32.mrf.mxu0
  %v395 = vadd.f32 0.0, %v394
  %v396 = vpop.f32.mrf.mxu0
  %397 = vmatprep.mubr.bf16.mxu0 0
  %398 = vmatmul.mubr.bf16.gmra.mxu0 %v190
  %v399 = vpop.f32.mrf.mxu0
  %v400 = vadd.f32 0.0, %v399
  %v401 = vpop.f32.mrf.mxu0
  %v402 = vpop.f32.mrf.mxu0
  %v403 = vadd.f32 0.0, %v402
  %v404 = vpop.f32.mrf.mxu0
  %405 = vmatprep.mubr.bf16.mxu0 0
  %406 = vmatmul.mubr.bf16.gmra.mxu0 %v193
  %v407 = vpop.f32.mrf.mxu0
  %v408 = vadd.f32 0.0, %v407
  %v409 = vpop.f32.mrf.mxu0
  %v410 = vpop.f32.mrf.mxu0
  %v411 = vadd.f32 0.0, %v410
  %v412 = vpop.f32.mrf.mxu0
  %413 = vmatprep.mubr.bf16.mxu0 0
  %414 = vmatmul.mubr.bf16.gmra.mxu0 %v196
  %v415 = vpop.f32.mrf.mxu0
  %v416 = vadd.f32 0.0, %v415
  %v417 = vpop.f32.mrf.mxu0
  %v418 = vpop.f32.mrf.mxu0
  %v419 = vadd.f32 0.0, %v418
  %v420 = vpop.f32.mrf.mxu0
  %421 = vmatprep.mubr.bf16.mxu0 0
  %422 = vmatmul.mubr.bf16.gmra.mxu0 %v199
  %v423 = vpop.f32.mrf.mxu0
  %v424 = vadd.f32 0.0, %v423
  %v425 = vpop.f32.mrf.mxu0
  %v426 = vpop.f32.mrf.mxu0
  %v427 = vadd.f32 0.0, %v426
  %v428 = vpop.f32.mrf.mxu0
  %429 = vmatprep.mubr.bf16.mxu0 0
  %430 = vmatmul.mubr.bf16.gmra.mxu0 %v202
  %v431 = vpop.f32.mrf.mxu0
  %v432 = vadd.f32 0.0, %v431
  %v433 = vpop.f32.mrf.mxu0
  %v434 = vpop.f32.mrf.mxu0
  %v435 = vadd.f32 0.0, %v434
  %v436 = vpop.f32.mrf.mxu0
  %437 = vmatprep.mubr.bf16.mxu0 0
  %438 = vmatmul.mubr.bf16.gmra.mxu0 %v205
  %v439 = vpop.f32.mrf.mxu0
  %v440 = vadd.f32 0.0, %v439
  %v441 = vpop.f32.mrf.mxu0
  %v442 = vpop.f32.mrf.mxu0
  %v443 = vadd.f32 0.0, %v442
  %v444 = vpop.f32.mrf.mxu0
  %445 = vmatprep.mubr.bf16.mxu0 0
  %446 = vmatmul.mubr.bf16.gmra.mxu0 %v208
  %v447 = vpop.f32.mrf.mxu0
  %v448 = vadd.f32 0.0, %v447
  %v449 = vpop.f32.mrf.mxu0
  %v450 = vpop.f32.mrf.mxu0
  %v451 = vadd.f32 0.0, %v450
  %v452 = vpop.f32.mrf.mxu0
  %453 = vmatprep.mubr.bf16.mxu0 0
  %454 = vmatmul.mubr.bf16.gmra.mxu0 %v211
  %v455 = vpop.f32.mrf.mxu0
  %v456 = vadd.f32 0.0, %v455
  %v457 = vpop.f32.mrf.mxu0
  %v458 = vpop.f32.mrf.mxu0
  %v459 = vadd.f32 0.0, %v458
  %v460 = vpop.f32.mrf.mxu0
  %461 = vmatprep.mubr.bf16.mxu0 0
  %462 = vmatmul.mubr.bf16.gmra.mxu0 %v214
  %v463 = vpop.f32.mrf.mxu0
  %v464 = vadd.f32 0.0, %v463
  %v465 = vpop.f32.mrf.mxu0
  %v466 = vpop.f32.mrf.mxu0
  %v467 = vadd.f32 0.0, %v466
  %v468 = vpop.f32.mrf.mxu0
  %469 = vmatprep.mubr.bf16.mxu0 0
  %470 = vmatmul.mubr.bf16.gmra.mxu0 %v217
  %v471 = vpop.f32.mrf.mxu0
  %v472 = vadd.f32 0.0, %v471
  %v473 = vpop.f32.mrf.mxu0
  %v474 = vpop.f32.mrf.mxu0
  %v475 = vadd.f32 0.0, %v474
  %v476 = vpop.f32.mrf.mxu0
  %477 = vmatprep.mubr.bf16.mxu0 0
  %478 = vmatmul.mubr.bf16.gmra.mxu0 %v220
  %v479 = vpop.f32.mrf.mxu0
  %v480 = vadd.f32 0.0, %v479
  %v481 = vpop.f32.mrf.mxu0
  %v482 = vpop.f32.mrf.mxu0
  %v483 = vadd.f32 0.0, %v482
  %v484 = vpop.f32.mrf.mxu0
  %485 = vmatprep.mubr.bf16.mxu0 0
  %486 = vmatmul.mubr.bf16.gmra.mxu0 %v223
  %v487 = vpop.f32.mrf.mxu0
  %v488 = vadd.f32 0.0, %v487
  %v489 = vpop.f32.mrf.mxu0
  %v490 = vpop.f32.mrf.mxu0
  %v491 = vadd.f32 0.0, %v490
  %v492 = vpop.f32.mrf.mxu0
  %493 = vmatprep.mubr.bf16.mxu0 0
  %494 = vmatmul.mubr.bf16.gmra.mxu0 %v226
  %v495 = vpop.f32.mrf.mxu0
  %v496 = vadd.f32 0.0, %v495
  %v497 = vpop.f32.mrf.mxu0
  %v498 = vpop.f32.mrf.mxu0
  %v499 = vadd.f32 0.0, %v498
  %v500 = vpop.f32.mrf.mxu0
  %501 = vmatprep.mubr.bf16.mxu0 0
  %502 = vmatmul.mubr.bf16.gmra.mxu0 %v229
  %v503 = vpop.f32.mrf.mxu0
  %v504 = vadd.f32 0.0, %v503
  %v505 = vpop.f32.mrf.mxu0
  %v506 = vpop.f32.mrf.mxu0
  %v507 = vadd.f32 0.0, %v506
  %v508 = vpop.f32.mrf.mxu0
  %509 = vmatprep.mubr.bf16.mxu0 0
  %510 = vmatmul.mubr.bf16.gmra.mxu0 %v232
  %v511 = vpop.f32.mrf.mxu0
  %v512 = vadd.f32 0.0, %v511
  %v513 = vpop.f32.mrf.mxu0
  %v514 = vpop.f32.mrf.mxu0
  %v515 = vadd.f32 0.0, %v514
  %v516 = vpop.f32.mrf.mxu0
  %517 = vmatprep.mubr.bf16.mxu0 0
  %518 = vmatmul.mubr.bf16.gmra.mxu0 %v235
  %v519 = vpop.f32.mrf.mxu0
  %v520 = vadd.f32 0.0, %v519
  %v521 = vpop.f32.mrf.mxu0
  %v522 = vpop.f32.mrf.mxu0
  %v523 = vadd.f32 0.0, %v522
  %v524 = vpop.f32.mrf.mxu0
  %525 = vdwg.mxu0
  %v526 = vld [vmem:[%s4] sm:$0x1]
  %v527 = vld [vmem:[%s5] sm:$0x1]
  %vm528 = vcmask 31744
  %v529 = vsel %vm528, %v272, 0.0
  %v530 = vsel %vm528, %v275, 0.0
  %v531 = vadd.f32 %v529, %v530
  %v532 = vsel %vm528, %v280, 0.0
  %v533 = vadd.f32 %v531, %v532
  %v534 = vsel %vm528, %v283, 0.0
  %v535 = vadd.f32 %v533, %v534
  %v536 = vsel %vm528, %v288, 0.0
  %v537 = vadd.f32 %v535, %v536
  %v538 = vsel %vm528, %v291, 0.0
  %v539 = vadd.f32 %v537, %v538
  %v540 = vsel %vm528, %v296, 0.0
  %v541 = vadd.f32 %v539, %v540
  %v542 = vsel %vm528, %v299, 0.0
  %v543 = vadd.f32 %v541, %v542
  %v544 = vsel %vm528, %v304, 0.0
  %v545 = vadd.f32 %v543, %v544
  %v546 = vsel %vm528, %v307, 0.0
  %v547 = vadd.f32 %v545, %v546
  %v548 = vsel %vm528, %v312, 0.0
  %v549 = vadd.f32 %v547, %v548
  %v550 = vsel %vm528, %v315, 0.0
  %v551 = vadd.f32 %v549, %v550
  %v552 = vsel %vm528, %v320, 0.0
  %v553 = vadd.f32 %v551, %v552
  %v554 = vsel %vm528, %v323, 0.0
  %v555 = vadd.f32 %v553, %v554
  %v556 = vsel %vm528, %v328, 0.0
  %v557 = vadd.f32 %v555, %v556
  %v558 = vsel %vm528, %v331, 0.0
  %v559 = vadd.f32 %v557, %v558
  %v560 = vsel %vm528, %v336, 0.0
  %v561 = vadd.f32 %v559, %v560
  %v562 = vsel %vm528, %v339, 0.0
  %v563 = vadd.f32 %v561, %v562
  %v564 = vsel %vm528, %v344, 0.0
  %v565 = vadd.f32 %v563, %v564
  %v566 = vsel %vm528, %v347, 0.0
  %v567 = vadd.f32 %v565, %v566
  %v568 = vsel %vm528, %v352, 0.0
  %v569 = vadd.f32 %v567, %v568
  %v570 = vsel %vm528, %v355, 0.0
  %v571 = vadd.f32 %v569, %v570
  %v572 = vsel %vm528, %v360, 0.0
  %v573 = vadd.f32 %v571, %v572
  %v574 = vsel %vm528, %v363, 0.0
  %v575 = vadd.f32 %v573, %v574
  %v576 = vsel %vm528, %v368, 0.0
  %v577 = vadd.f32 %v575, %v576
  %v578 = vsel %vm528, %v371, 0.0
  %v579 = vadd.f32 %v577, %v578
  %v580 = vsel %vm528, %v376, 0.0
  %v581 = vadd.f32 %v579, %v580
  %v582 = vsel %vm528, %v379, 0.0
  %v583 = vadd.f32 %v581, %v582
  %v584 = vsel %vm528, %v384, 0.0
  %v585 = vadd.f32 %v583, %v584
  %v586 = vsel %vm528, %v387, 0.0
  %v587 = vadd.f32 %v585, %v586
  %v588 = vsel %vm528, %v392, 0.0
  %v589 = vadd.f32 %v587, %v588
  %v590 = vsel %vm528, %v395, 0.0
  %v591 = vadd.f32 %v589, %v590
  %v592 = vsel %vm528, %v400, 0.0
  %v593 = vadd.f32 %v591, %v592
  %v594 = vsel %vm528, %v403, 0.0
  %v595 = vadd.f32 %v593, %v594
  %v596 = vsel %vm528, %v408, 0.0
  %v597 = vadd.f32 %v595, %v596
  %v598 = vsel %vm528, %v411, 0.0
  %v599 = vadd.f32 %v597, %v598
  %v600 = vsel %vm528, %v416, 0.0
  %v601 = vadd.f32 %v599, %v600
  %v602 = vsel %vm528, %v419, 0.0
  %v603 = vadd.f32 %v601, %v602
  %v604 = vsel %vm528, %v424, 0.0
  %v605 = vadd.f32 %v603, %v604
  %v606 = vsel %vm528, %v427, 0.0
  %v607 = vadd.f32 %v605, %v606
  %v608 = vsel %vm528, %v432, 0.0
  %v609 = vadd.f32 %v607, %v608
  %v610 = vsel %vm528, %v435, 0.0
  %v611 = vadd.f32 %v609, %v610
  %v612 = vsel %vm528, %v440, 0.0
  %v613 = vadd.f32 %v611, %v612
  %v614 = vsel %vm528, %v443, 0.0
  %v615 = vadd.f32 %v613, %v614
  %v616 = vsel %vm528, %v448, 0.0
  %v617 = vadd.f32 %v615, %v616
  %v618 = vsel %vm528, %v451, 0.0
  %v619 = vadd.f32 %v617, %v618
  %v620 = vsel %vm528, %v456, 0.0
  %v621 = vadd.f32 %v619, %v620
  %v622 = vsel %vm528, %v459, 0.0
  %v623 = vadd.f32 %v621, %v622
  %v624 = vsel %vm528, %v464, 0.0
  %v625 = vadd.f32 %v623, %v624
  %v626 = vsel %vm528, %v467, 0.0
  %v627 = vadd.f32 %v625, %v626
  %v628 = vsel %vm528, %v472, 0.0
  %v629 = vadd.f32 %v627, %v628
  %v630 = vsel %vm528, %v475, 0.0
  %v631 = vadd.f32 %v629, %v630
  %v632 = vsel %vm528, %v480, 0.0
  %v633 = vadd.f32 %v631, %v632
  %v634 = vsel %vm528, %v483, 0.0
  %v635 = vadd.f32 %v633, %v634
  %v636 = vsel %vm528, %v488, 0.0
  %v637 = vadd.f32 %v635, %v636
  %v638 = vsel %vm528, %v491, 0.0
  %v639 = vadd.f32 %v637, %v638
  %v640 = vsel %vm528, %v496, 0.0
  %v641 = vadd.f32 %v639, %v640
  %v642 = vsel %vm528, %v499, 0.0
  %v643 = vadd.f32 %v641, %v642
  %v644 = vsel %vm528, %v504, 0.0
  %v645 = vadd.f32 %v643, %v644
  %v646 = vsel %vm528, %v507, 0.0
  %v647 = vadd.f32 %v645, %v646
  %v648 = vsel %vm528, %v512, 0.0
  %v649 = vadd.f32 %v647, %v648
  %v650 = vsel %vm528, %v515, 0.0
  %v651 = vadd.f32 %v649, %v650
  %v652 = vsel %vm528, %v520, 0.0
  %v653 = vadd.f32 %v651, %v652
  %v654 = vsel %vm528, %v523, 0.0
  %v655 = vadd.f32 %v653, %v654
  %v656 = vrot.slane %v655, 4
  %v657 = vadd.f32 %v655, %v656
  %v658 = vrot.slane %v657, 2
  %v659 = vadd.f32 %v657, %v658
  %v660 = vrot.slane %v659, 1
  %v661 = vadd.f32 %v659, %v660
  %v662 = vmul.f32 %v661, 0.001953125
  %v663 = vsub.f32 %v272, %v662
  %v664 = vsub.f32 %v275, %v662
  %v665 = vsub.f32 %v280, %v662
  %v666 = vsub.f32 %v283, %v662
  %v667 = vsub.f32 %v288, %v662
  %v668 = vsub.f32 %v291, %v662
  %v669 = vsub.f32 %v296, %v662
  %v670 = vsub.f32 %v299, %v662
  %v671 = vsub.f32 %v304, %v662
  %v672 = vsub.f32 %v307, %v662
  %v673 = vsub.f32 %v312, %v662
  %v674 = vsub.f32 %v315, %v662
  %v675 = vsub.f32 %v320, %v662
  %v676 = vsub.f32 %v323, %v662
  %v677 = vsub.f32 %v328, %v662
  %v678 = vsub.f32 %v331, %v662
  %v679 = vsub.f32 %v336, %v662
  %v680 = vsub.f32 %v339, %v662
  %v681 = vsub.f32 %v344, %v662
  %v682 = vsub.f32 %v347, %v662
  %v683 = vsub.f32 %v352, %v662
  %v684 = vsub.f32 %v355, %v662
  %v685 = vsub.f32 %v360, %v662
  %v686 = vsub.f32 %v363, %v662
  %v687 = vsub.f32 %v368, %v662
  %v688 = vsub.f32 %v371, %v662
  %v689 = vsub.f32 %v376, %v662
  %v690 = vsub.f32 %v379, %v662
  %v691 = vsub.f32 %v384, %v662
  %v692 = vsub.f32 %v387, %v662
  %v693 = vsub.f32 %v392, %v662
  %v694 = vsub.f32 %v395, %v662
  %v695 = vsub.f32 %v400, %v662
  %v696 = vsub.f32 %v403, %v662
  %v697 = vsub.f32 %v408, %v662
  %v698 = vsub.f32 %v411, %v662
  %v699 = vsub.f32 %v416, %v662
  %v700 = vsub.f32 %v419, %v662
  %v701 = vsub.f32 %v424, %v662
  %v702 = vsub.f32 %v427, %v662
  %v703 = vsub.f32 %v432, %v662
  %v704 = vsub.f32 %v435, %v662
  %v705 = vsub.f32 %v440, %v662
  %v706 = vsub.f32 %v443, %v662
  %v707 = vsub.f32 %v448, %v662
  %v708 = vsub.f32 %v451, %v662
  %v709 = vsub.f32 %v456, %v662
  %v710 = vsub.f32 %v459, %v662
  %v711 = vsub.f32 %v464, %v662
  %v712 = vsub.f32 %v467, %v662
  %v713 = vsub.f32 %v472, %v662
  %v714 = vsub.f32 %v475, %v662
  %v715 = vsub.f32 %v480, %v662
  %v716 = vsub.f32 %v483, %v662
  %v717 = vsub.f32 %v488, %v662
  %v718 = vsub.f32 %v491, %v662
  %v719 = vsub.f32 %v496, %v662
  %v720 = vsub.f32 %v499, %v662
  %v721 = vsub.f32 %v504, %v662
  %v722 = vsub.f32 %v507, %v662
  %v723 = vsub.f32 %v512, %v662
  %v724 = vsub.f32 %v515, %v662
  %v725 = vsub.f32 %v520, %v662
  %v726 = vsub.f32 %v523, %v662
  %v727 = vmul.f32 %v663, %v663
  %v728 = vmul.f32 %v664, %v664
  %v729 = vmul.f32 %v665, %v665
  %v730 = vmul.f32 %v666, %v666
  %v731 = vmul.f32 %v667, %v667
  %v732 = vmul.f32 %v668, %v668
  %v733 = vmul.f32 %v669, %v669
  %v734 = vmul.f32 %v670, %v670
  %v735 = vmul.f32 %v671, %v671
  %v736 = vmul.f32 %v672, %v672
  %v737 = vmul.f32 %v673, %v673
  %v738 = vmul.f32 %v674, %v674
  %v739 = vmul.f32 %v675, %v675
  %v740 = vmul.f32 %v676, %v676
  %v741 = vmul.f32 %v677, %v677
  %v742 = vmul.f32 %v678, %v678
  %v743 = vmul.f32 %v679, %v679
  %v744 = vmul.f32 %v680, %v680
  %v745 = vmul.f32 %v681, %v681
  %v746 = vmul.f32 %v682, %v682
  %v747 = vmul.f32 %v683, %v683
  %v748 = vmul.f32 %v684, %v684
  %v749 = vmul.f32 %v685, %v685
  %v750 = vmul.f32 %v686, %v686
  %v751 = vmul.f32 %v687, %v687
  %v752 = vmul.f32 %v688, %v688
  %v753 = vmul.f32 %v689, %v689
  %v754 = vmul.f32 %v690, %v690
  %v755 = vmul.f32 %v691, %v691
  %v756 = vmul.f32 %v692, %v692
  %v757 = vmul.f32 %v693, %v693
  %v758 = vmul.f32 %v694, %v694
  %v759 = vmul.f32 %v695, %v695
  %v760 = vmul.f32 %v696, %v696
  %v761 = vmul.f32 %v697, %v697
  %v762 = vmul.f32 %v698, %v698
  %v763 = vmul.f32 %v699, %v699
  %v764 = vmul.f32 %v700, %v700
  %v765 = vmul.f32 %v701, %v701
  %v766 = vmul.f32 %v702, %v702
  %v767 = vmul.f32 %v703, %v703
  %v768 = vmul.f32 %v704, %v704
  %v769 = vmul.f32 %v705, %v705
  %v770 = vmul.f32 %v706, %v706
  %v771 = vmul.f32 %v707, %v707
  %v772 = vmul.f32 %v708, %v708
  %v773 = vmul.f32 %v709, %v709
  %v774 = vmul.f32 %v710, %v710
  %v775 = vmul.f32 %v711, %v711
  %v776 = vmul.f32 %v712, %v712
  %v777 = vmul.f32 %v713, %v713
  %v778 = vmul.f32 %v714, %v714
  %v779 = vmul.f32 %v715, %v715
  %v780 = vmul.f32 %v716, %v716
  %v781 = vmul.f32 %v717, %v717
  %v782 = vmul.f32 %v718, %v718
  %v783 = vmul.f32 %v719, %v719
  %v784 = vmul.f32 %v720, %v720
  %v785 = vmul.f32 %v721, %v721
  %v786 = vmul.f32 %v722, %v722
  %v787 = vmul.f32 %v723, %v723
  %v788 = vmul.f32 %v724, %v724
  %v789 = vmul.f32 %v725, %v725
  %v790 = vmul.f32 %v726, %v726
  %v791 = vsel %vm528, %v727, 0.0
  %v792 = vsel %vm528, %v728, 0.0
  %v793 = vadd.f32 %v791, %v792
  %v794 = vsel %vm528, %v729, 0.0
  %v795 = vadd.f32 %v793, %v794
  %v796 = vsel %vm528, %v730, 0.0
  %v797 = vadd.f32 %v795, %v796
  %v798 = vsel %vm528, %v731, 0.0
  %v799 = vadd.f32 %v797, %v798
  %v800 = vsel %vm528, %v732, 0.0
  %v801 = vadd.f32 %v799, %v800
  %v802 = vsel %vm528, %v733, 0.0
  %v803 = vadd.f32 %v801, %v802
  %v804 = vsel %vm528, %v734, 0.0
  %v805 = vadd.f32 %v803, %v804
  %v806 = vsel %vm528, %v735, 0.0
  %v807 = vadd.f32 %v805, %v806
  %v808 = vsel %vm528, %v736, 0.0
  %v809 = vadd.f32 %v807, %v808
  %v810 = vsel %vm528, %v737, 0.0
  %v811 = vadd.f32 %v809, %v810
  %v812 = vsel %vm528, %v738, 0.0
  %v813 = vadd.f32 %v811, %v812
  %v814 = vsel %vm528, %v739, 0.0
  %v815 = vadd.f32 %v813, %v814
  %v816 = vsel %vm528, %v740, 0.0
  %v817 = vadd.f32 %v815, %v816
  %v818 = vsel %vm528, %v741, 0.0
  %v819 = vadd.f32 %v817, %v818
  %v820 = vsel %vm528, %v742, 0.0
  %v821 = vadd.f32 %v819, %v820
  %v822 = vsel %vm528, %v743, 0.0
  %v823 = vadd.f32 %v821, %v822
  %v824 = vsel %vm528, %v744, 0.0
  %v825 = vadd.f32 %v823, %v824
  %v826 = vsel %vm528, %v745, 0.0
  %v827 = vadd.f32 %v825, %v826
  %v828 = vsel %vm528, %v746, 0.0
  %v829 = vadd.f32 %v827, %v828
  %v830 = vsel %vm528, %v747, 0.0
  %v831 = vadd.f32 %v829, %v830
  %v832 = vsel %vm528, %v748, 0.0
  %v833 = vadd.f32 %v831, %v832
  %v834 = vsel %vm528, %v749, 0.0
  %v835 = vadd.f32 %v833, %v834
  %v836 = vsel %vm528, %v750, 0.0
  %v837 = vadd.f32 %v835, %v836
  %v838 = vsel %vm528, %v751, 0.0
  %v839 = vadd.f32 %v837, %v838
  %v840 = vsel %vm528, %v752, 0.0
  %v841 = vadd.f32 %v839, %v840
  %v842 = vsel %vm528, %v753, 0.0
  %v843 = vadd.f32 %v841, %v842
  %v844 = vsel %vm528, %v754, 0.0
  %v845 = vadd.f32 %v843, %v844
  %v846 = vsel %vm528, %v755, 0.0
  %v847 = vadd.f32 %v845, %v846
  %v848 = vsel %vm528, %v756, 0.0
  %v849 = vadd.f32 %v847, %v848
  %v850 = vsel %vm528, %v757, 0.0
  %v851 = vadd.f32 %v849, %v850
  %v852 = vsel %vm528, %v758, 0.0
  %v853 = vadd.f32 %v851, %v852
  %v854 = vsel %vm528, %v759, 0.0
  %v855 = vadd.f32 %v853, %v854
  %v856 = vsel %vm528, %v760, 0.0
  %v857 = vadd.f32 %v855, %v856
  %v858 = vsel %vm528, %v761, 0.0
  %v859 = vadd.f32 %v857, %v858
  %v860 = vsel %vm528, %v762, 0.0
  %v861 = vadd.f32 %v859, %v860
  %v862 = vsel %vm528, %v763, 0.0
  %v863 = vadd.f32 %v861, %v862
  %v864 = vsel %vm528, %v764, 0.0
  %v865 = vadd.f32 %v863, %v864
  %v866 = vsel %vm528, %v765, 0.0
  %v867 = vadd.f32 %v865, %v866
  %v868 = vsel %vm528, %v766, 0.0
  %v869 = vadd.f32 %v867, %v868
  %v870 = vsel %vm528, %v767, 0.0
  %v871 = vadd.f32 %v869, %v870
  %v872 = vsel %vm528, %v768, 0.0
  %v873 = vadd.f32 %v871, %v872
  %v874 = vsel %vm528, %v769, 0.0
  %v875 = vadd.f32 %v873, %v874
  %v876 = vsel %vm528, %v770, 0.0
  %v877 = vadd.f32 %v875, %v876
  %v878 = vsel %vm528, %v771, 0.0
  %v879 = vadd.f32 %v877, %v878
  %v880 = vsel %vm528, %v772, 0.0
  %v881 = vadd.f32 %v879, %v880
  %v882 = vsel %vm528, %v773, 0.0
  %v883 = vadd.f32 %v881, %v882
  %v884 = vsel %vm528, %v774, 0.0
  %v885 = vadd.f32 %v883, %v884
  %v886 = vsel %vm528, %v775, 0.0
  %v887 = vadd.f32 %v885, %v886
  %v888 = vsel %vm528, %v776, 0.0
  %v889 = vadd.f32 %v887, %v888
  %v890 = vsel %vm528, %v777, 0.0
  %v891 = vadd.f32 %v889, %v890
  %v892 = vsel %vm528, %v778, 0.0
  %v893 = vadd.f32 %v891, %v892
  %v894 = vsel %vm528, %v779, 0.0
  %v895 = vadd.f32 %v893, %v894
  %v896 = vsel %vm528, %v780, 0.0
  %v897 = vadd.f32 %v895, %v896
  %v898 = vsel %vm528, %v781, 0.0
  %v899 = vadd.f32 %v897, %v898
  %v900 = vsel %vm528, %v782, 0.0
  %v901 = vadd.f32 %v899, %v900
  %v902 = vsel %vm528, %v783, 0.0
  %v903 = vadd.f32 %v901, %v902
  %v904 = vsel %vm528, %v784, 0.0
  %v905 = vadd.f32 %v903, %v904
  %v906 = vsel %vm528, %v785, 0.0
  %v907 = vadd.f32 %v905, %v906
  %v908 = vsel %vm528, %v786, 0.0
  %v909 = vadd.f32 %v907, %v908
  %v910 = vsel %vm528, %v787, 0.0
  %v911 = vadd.f32 %v909, %v910
  %v912 = vsel %vm528, %v788, 0.0
  %v913 = vadd.f32 %v911, %v912
  %v914 = vsel %vm528, %v789, 0.0
  %v915 = vadd.f32 %v913, %v914
  %v916 = vsel %vm528, %v790, 0.0
  %v917 = vadd.f32 %v915, %v916
  %v918 = vrot.slane %v917, 4
  %v919 = vadd.f32 %v917, %v918
  %v920 = vrot.slane %v919, 2
  %v921 = vadd.f32 %v919, %v920
  %v922 = vrot.slane %v921, 1
  %v923 = vadd.f32 %v921, %v922
  %v924 = vmul.f32 %v923, 0.001953125
  %v925 = vadd.f32 %v924, 1e-05
  %v926 = vrsqrt.pop %v925
  %v927 = vmul.f32 %v526, %v926
  %v929 = vlaneseq
  %v930 = vshrl.u32 %v929, 7
  %v931 = vsub.s32 0, %v930
  %v932 = vrot.slane %v927, %v931
  %v934 = vmul.f32 %v663, %v932
  %v935 = vmul.f32 %v664, %v932
  %v936 = vmul.f32 %v665, %v932
  %v937 = vmul.f32 %v666, %v932
  %v938 = vmul.f32 %v667, %v932
  %v939 = vmul.f32 %v668, %v932
  %v940 = vmul.f32 %v669, %v932
  %v941 = vmul.f32 %v670, %v932
  %v942 = vmul.f32 %v671, %v932
  %v943 = vmul.f32 %v672, %v932
  %v944 = vmul.f32 %v673, %v932
  %v945 = vmul.f32 %v674, %v932
  %v946 = vmul.f32 %v675, %v932
  %v947 = vmul.f32 %v676, %v932
  %v948 = vmul.f32 %v677, %v932
  %v949 = vmul.f32 %v678, %v932
  %v950 = vmul.f32 %v679, %v932
  %v951 = vmul.f32 %v680, %v932
  %v952 = vmul.f32 %v681, %v932
  %v953 = vmul.f32 %v682, %v932
  %v954 = vmul.f32 %v683, %v932
  %v955 = vmul.f32 %v684, %v932
  %v956 = vmul.f32 %v685, %v932
  %v957 = vmul.f32 %v686, %v932
  %v958 = vmul.f32 %v687, %v932
  %v959 = vmul.f32 %v688, %v932
  %v960 = vmul.f32 %v689, %v932
  %v961 = vmul.f32 %v690, %v932
  %v962 = vmul.f32 %v691, %v932
  %v963 = vmul.f32 %v692, %v932
  %v964 = vmul.f32 %v693, %v932
  %v965 = vmul.f32 %v694, %v932
  %v966 = vmul.f32 %v695, %v932
  %v967 = vmul.f32 %v696, %v932
  %v968 = vmul.f32 %v697, %v932
  %v969 = vmul.f32 %v698, %v932
  %v970 = vmul.f32 %v699, %v932
  %v971 = vmul.f32 %v700, %v932
  %v972 = vmul.f32 %v701, %v932
  %v973 = vmul.f32 %v702, %v932
  %v974 = vmul.f32 %v703, %v932
  %v975 = vmul.f32 %v704, %v932
  %v976 = vmul.f32 %v705, %v932
  %v977 = vmul.f32 %v706, %v932
  %v978 = vmul.f32 %v707, %v932
  %v979 = vmul.f32 %v708, %v932
  %v980 = vmul.f32 %v709, %v932
  %v981 = vmul.f32 %v710, %v932
  %v982 = vmul.f32 %v711, %v932
  %v983 = vmul.f32 %v712, %v932
  %v984 = vmul.f32 %v713, %v932
  %v985 = vmul.f32 %v714, %v932
  %v986 = vmul.f32 %v715, %v932
  %v987 = vmul.f32 %v716, %v932
  %v988 = vmul.f32 %v717, %v932
  %v989 = vmul.f32 %v718, %v932
  %v990 = vmul.f32 %v719, %v932
  %v991 = vmul.f32 %v720, %v932
  %v992 = vmul.f32 %v721, %v932
  %v993 = vmul.f32 %v722, %v932
  %v994 = vmul.f32 %v723, %v932
  %v995 = vmul.f32 %v724, %v932
  %v996 = vmul.f32 %v725, %v932
  %v997 = vmul.f32 %v726, %v932
  %v999 = vlaneseq
  %v1000 = vshrl.u32 %v999, 7
  %v1001 = vsub.s32 0, %v1000
  %v1002 = vrot.slane %v527, %v1001
  %v1004 = vadd.f32 %v934, %v1002
  %v1005 = vadd.f32 %v935, %v1002
  %v1006 = vadd.f32 %v936, %v1002
  %v1007 = vadd.f32 %v937, %v1002
  %v1008 = vadd.f32 %v938, %v1002
  %v1009 = vadd.f32 %v939, %v1002
  %v1010 = vadd.f32 %v940, %v1002
  %v1011 = vadd.f32 %v941, %v1002
  %v1012 = vadd.f32 %v942, %v1002
  %v1013 = vadd.f32 %v943, %v1002
  %v1014 = vadd.f32 %v944, %v1002
  %v1015 = vadd.f32 %v945, %v1002
  %v1016 = vadd.f32 %v946, %v1002
  %v1017 = vadd.f32 %v947, %v1002
  %v1018 = vadd.f32 %v948, %v1002
  %v1019 = vadd.f32 %v949, %v1002
  %v1020 = vadd.f32 %v950, %v1002
  %v1021 = vadd.f32 %v951, %v1002
  %v1022 = vadd.f32 %v952, %v1002
  %v1023 = vadd.f32 %v953, %v1002
  %v1024 = vadd.f32 %v954, %v1002
  %v1025 = vadd.f32 %v955, %v1002
  %v1026 = vadd.f32 %v956, %v1002
  %v1027 = vadd.f32 %v957, %v1002
  %v1028 = vadd.f32 %v958, %v1002
  %v1029 = vadd.f32 %v959, %v1002
  %v1030 = vadd.f32 %v960, %v1002
  %v1031 = vadd.f32 %v961, %v1002
  %v1032 = vadd.f32 %v962, %v1002
  %v1033 = vadd.f32 %v963, %v1002
  %v1034 = vadd.f32 %v964, %v1002
  %v1035 = vadd.f32 %v965, %v1002
  %v1036 = vadd.f32 %v966, %v1002
  %v1037 = vadd.f32 %v967, %v1002
  %v1038 = vadd.f32 %v968, %v1002
  %v1039 = vadd.f32 %v969, %v1002
  %v1040 = vadd.f32 %v970, %v1002
  %v1041 = vadd.f32 %v971, %v1002
  %v1042 = vadd.f32 %v972, %v1002
  %v1043 = vadd.f32 %v973, %v1002
  %v1044 = vadd.f32 %v974, %v1002
  %v1045 = vadd.f32 %v975, %v1002
  %v1046 = vadd.f32 %v976, %v1002
  %v1047 = vadd.f32 %v977, %v1002
  %v1048 = vadd.f32 %v978, %v1002
  %v1049 = vadd.f32 %v979, %v1002
  %v1050 = vadd.f32 %v980, %v1002
  %v1051 = vadd.f32 %v981, %v1002
  %v1052 = vadd.f32 %v982, %v1002
  %v1053 = vadd.f32 %v983, %v1002
  %v1054 = vadd.f32 %v984, %v1002
  %v1055 = vadd.f32 %v985, %v1002
  %v1056 = vadd.f32 %v986, %v1002
  %v1057 = vadd.f32 %v987, %v1002
  %v1058 = vadd.f32 %v988, %v1002
  %v1059 = vadd.f32 %v989, %v1002
  %v1060 = vadd.f32 %v990, %v1002
  %v1061 = vadd.f32 %v991, %v1002
  %v1062 = vadd.f32 %v992, %v1002
  %v1063 = vadd.f32 %v993, %v1002
  %v1064 = vadd.f32 %v994, %v1002
  %v1065 = vadd.f32 %v995, %v1002
  %v1066 = vadd.f32 %v996, %v1002
  %v1067 = vadd.f32 %v997, %v1002
  %v1068 = vmax.f32 %v1004, 0.0
  %v1069 = vmax.f32 %v1005, 0.0
  %v1070 = vmax.f32 %v1006, 0.0
  %v1071 = vmax.f32 %v1007, 0.0
  %v1072 = vmax.f32 %v1008, 0.0
  %v1073 = vmax.f32 %v1009, 0.0
  %v1074 = vmax.f32 %v1010, 0.0
  %v1075 = vmax.f32 %v1011, 0.0
  %v1076 = vmax.f32 %v1012, 0.0
  %v1077 = vmax.f32 %v1013, 0.0
  %v1078 = vmax.f32 %v1014, 0.0
  %v1079 = vmax.f32 %v1015, 0.0
  %v1080 = vmax.f32 %v1016, 0.0
  %v1081 = vmax.f32 %v1017, 0.0
  %v1082 = vmax.f32 %v1018, 0.0
  %v1083 = vmax.f32 %v1019, 0.0
  %v1084 = vmax.f32 %v1020, 0.0
  %v1085 = vmax.f32 %v1021, 0.0
  %v1086 = vmax.f32 %v1022, 0.0
  %v1087 = vmax.f32 %v1023, 0.0
  %v1088 = vmax.f32 %v1024, 0.0
  %v1089 = vmax.f32 %v1025, 0.0
  %v1090 = vmax.f32 %v1026, 0.0
  %v1091 = vmax.f32 %v1027, 0.0
  %v1092 = vmax.f32 %v1028, 0.0
  %v1093 = vmax.f32 %v1029, 0.0
  %v1094 = vmax.f32 %v1030, 0.0
  %v1095 = vmax.f32 %v1031, 0.0
  %v1096 = vmax.f32 %v1032, 0.0
  %v1097 = vmax.f32 %v1033, 0.0
  %v1098 = vmax.f32 %v1034, 0.0
  %v1099 = vmax.f32 %v1035, 0.0
  %v1100 = vmax.f32 %v1036, 0.0
  %v1101 = vmax.f32 %v1037, 0.0
  %v1102 = vmax.f32 %v1038, 0.0
  %v1103 = vmax.f32 %v1039, 0.0
  %v1104 = vmax.f32 %v1040, 0.0
  %v1105 = vmax.f32 %v1041, 0.0
  %v1106 = vmax.f32 %v1042, 0.0
  %v1107 = vmax.f32 %v1043, 0.0
  %v1108 = vmax.f32 %v1044, 0.0
  %v1109 = vmax.f32 %v1045, 0.0
  %v1110 = vmax.f32 %v1046, 0.0
  %v1111 = vmax.f32 %v1047, 0.0
  %v1112 = vmax.f32 %v1048, 0.0
  %v1113 = vmax.f32 %v1049, 0.0
  %v1114 = vmax.f32 %v1050, 0.0
  %v1115 = vmax.f32 %v1051, 0.0
  %v1116 = vmax.f32 %v1052, 0.0
  %v1117 = vmax.f32 %v1053, 0.0
  %v1118 = vmax.f32 %v1054, 0.0
  %v1119 = vmax.f32 %v1055, 0.0
  %v1120 = vmax.f32 %v1056, 0.0
  %v1121 = vmax.f32 %v1057, 0.0
  %v1122 = vmax.f32 %v1058, 0.0
  %v1123 = vmax.f32 %v1059, 0.0
  %v1124 = vmax.f32 %v1060, 0.0
  %v1125 = vmax.f32 %v1061, 0.0
  %v1126 = vmax.f32 %v1062, 0.0
  %v1127 = vmax.f32 %v1063, 0.0
  %v1128 = vmax.f32 %v1064, 0.0
  %v1129 = vmax.f32 %v1065, 0.0
  %v1130 = vmax.f32 %v1066, 0.0
  %v1131 = vmax.f32 %v1067, 0.0
  %1132 = vst.msk [vmem:[#allocation2] sm:$0xff] %vm528, 0.0
  %1133 = vst.msk [vmem:[#allocation2 + $0x8] sm:$0xff] %vm528, 0.0
  %1134 = vst.msk [vmem:[#allocation2 + $0x10] sm:$0xff] %vm528, 0.0
  %1135 = vst.msk [vmem:[#allocation2 + $0x218] sm:$0xff] %vm528, 0.0
  %1136 = vst.msk [vmem:[#allocation2 + $0x220] sm:$0xff] %vm528, 0.0
  %1137 = vst.msk [vmem:[#allocation2 + $0x228] sm:$0xff] %vm528, 0.0
  %1138 = vst.msk [vmem:[#allocation2 + $0x18] sm:$0xff] %vm528, %v1068
  %1139 = vst.msk [vmem:[#allocation2 + $0x20] sm:$0xff] %vm528, %v1069
  %1140 = vst.msk [vmem:[#allocation2 + $0x28] sm:$0xff] %vm528, %v1070
  %1141 = vst.msk [vmem:[#allocation2 + $0x30] sm:$0xff] %vm528, %v1071
  %1142 = vst.msk [vmem:[#allocation2 + $0x38] sm:$0xff] %vm528, %v1072
  %1143 = vst.msk [vmem:[#allocation2 + $0x40] sm:$0xff] %vm528, %v1073
  %1144 = vst.msk [vmem:[#allocation2 + $0x48] sm:$0xff] %vm528, %v1074
  %1145 = vst.msk [vmem:[#allocation2 + $0x50] sm:$0xff] %vm528, %v1075
  %1146 = vst.msk [vmem:[#allocation2 + $0x58] sm:$0xff] %vm528, %v1076
  %1147 = vst.msk [vmem:[#allocation2 + $0x60] sm:$0xff] %vm528, %v1077
  %1148 = vst.msk [vmem:[#allocation2 + $0x68] sm:$0xff] %vm528, %v1078
  %1149 = vst.msk [vmem:[#allocation2 + $0x70] sm:$0xff] %vm528, %v1079
  %1150 = vst.msk [vmem:[#allocation2 + $0x78] sm:$0xff] %vm528, %v1080
  %1151 = vst.msk [vmem:[#allocation2 + $0x80] sm:$0xff] %vm528, %v1081
  %1152 = vst.msk [vmem:[#allocation2 + $0x88] sm:$0xff] %vm528, %v1082
  %1153 = vst.msk [vmem:[#allocation2 + $0x90] sm:$0xff] %vm528, %v1083
  %1154 = vst.msk [vmem:[#allocation2 + $0x98] sm:$0xff] %vm528, %v1084
  %1155 = vst.msk [vmem:[#allocation2 + $0xa0] sm:$0xff] %vm528, %v1085
  %1156 = vst.msk [vmem:[#allocation2 + $0xa8] sm:$0xff] %vm528, %v1086
  %1157 = vst.msk [vmem:[#allocation2 + $0xb0] sm:$0xff] %vm528, %v1087
  %1158 = vst.msk [vmem:[#allocation2 + $0xb8] sm:$0xff] %vm528, %v1088
  %1159 = vst.msk [vmem:[#allocation2 + $0xc0] sm:$0xff] %vm528, %v1089
  %1160 = vst.msk [vmem:[#allocation2 + $0xc8] sm:$0xff] %vm528, %v1090
  %1161 = vst.msk [vmem:[#allocation2 + $0xd0] sm:$0xff] %vm528, %v1091
  %1162 = vst.msk [vmem:[#allocation2 + $0xd8] sm:$0xff] %vm528, %v1092
  %1163 = vst.msk [vmem:[#allocation2 + $0xe0] sm:$0xff] %vm528, %v1093
  %1164 = vst.msk [vmem:[#allocation2 + $0xe8] sm:$0xff] %vm528, %v1094
  %1165 = vst.msk [vmem:[#allocation2 + $0xf0] sm:$0xff] %vm528, %v1095
  %1166 = vst.msk [vmem:[#allocation2 + $0xf8] sm:$0xff] %vm528, %v1096
  %1167 = vst.msk [vmem:[#allocation2 + $0x100] sm:$0xff] %vm528, %v1097
  %1168 = vst.msk [vmem:[#allocation2 + $0x108] sm:$0xff] %vm528, %v1098
  %1169 = vst.msk [vmem:[#allocation2 + $0x110] sm:$0xff] %vm528, %v1099
  %1170 = vst.msk [vmem:[#allocation2 + $0x118] sm:$0xff] %vm528, %v1100
  %1171 = vst.msk [vmem:[#allocation2 + $0x120] sm:$0xff] %vm528, %v1101
  %1172 = vst.msk [vmem:[#allocation2 + $0x128] sm:$0xff] %vm528, %v1102
  %1173 = vst.msk [vmem:[#allocation2 + $0x130] sm:$0xff] %vm528, %v1103
  %1174 = vst.msk [vmem:[#allocation2 + $0x138] sm:$0xff] %vm528, %v1104
  %1175 = vst.msk [vmem:[#allocation2 + $0x140] sm:$0xff] %vm528, %v1105
  %1176 = vst.msk [vmem:[#allocation2 + $0x148] sm:$0xff] %vm528, %v1106
  %1177 = vst.msk [vmem:[#allocation2 + $0x150] sm:$0xff] %vm528, %v1107
  %1178 = vst.msk [vmem:[#allocation2 + $0x158] sm:$0xff] %vm528, %v1108
  %1179 = vst.msk [vmem:[#allocation2 + $0x160] sm:$0xff] %vm528, %v1109
  %1180 = vst.msk [vmem:[#allocation2 + $0x168] sm:$0xff] %vm528, %v1110
  %1181 = vst.msk [vmem:[#allocation2 + $0x170] sm:$0xff] %vm528, %v1111
  %1182 = vst.msk [vmem:[#allocation2 + $0x178] sm:$0xff] %vm528, %v1112
  %1183 = vst.msk [vmem:[#allocation2 + $0x180] sm:$0xff] %vm528, %v1113
  %1184 = vst.msk [vmem:[#allocation2 + $0x188] sm:$0xff] %vm528, %v1114
  %1185 = vst.msk [vmem:[#allocation2 + $0x190] sm:$0xff] %vm528, %v1115
  %1186 = vst.msk [vmem:[#allocation2 + $0x198] sm:$0xff] %vm528, %v1116
  %1187 = vst.msk [vmem:[#allocation2 + $0x1a0] sm:$0xff] %vm528, %v1117
  %1188 = vst.msk [vmem:[#allocation2 + $0x1a8] sm:$0xff] %vm528, %v1118
  %1189 = vst.msk [vmem:[#allocation2 + $0x1b0] sm:$0xff] %vm528, %v1119
  %1190 = vst.msk [vmem:[#allocation2 + $0x1b8] sm:$0xff] %vm528, %v1120
  %1191 = vst.msk [vmem:[#allocation2 + $0x1c0] sm:$0xff] %vm528, %v1121
  %1192 = vst.msk [vmem:[#allocation2 + $0x1c8] sm:$0xff] %vm528, %v1122
  %1193 = vst.msk [vmem:[#allocation2 + $0x1d0] sm:$0xff] %vm528, %v1123
  %1194 = vst.msk [vmem:[#allocation2 + $0x1d8] sm:$0xff] %vm528, %v1124
  %1195 = vst.msk [vmem:[#allocation2 + $0x1e0] sm:$0xff] %vm528, %v1125
  %1196 = vst.msk [vmem:[#allocation2 + $0x1e8] sm:$0xff] %vm528, %v1126
  %1197 = vst.msk [vmem:[#allocation2 + $0x1f0] sm:$0xff] %vm528, %v1127
  %1198 = vst.msk [vmem:[#allocation2 + $0x1f8] sm:$0xff] %vm528, %v1128
  %1199 = vst.msk [vmem:[#allocation2 + $0x200] sm:$0xff] %vm528, %v1129
  %1200 = vst.msk [vmem:[#allocation2 + $0x208] sm:$0xff] %vm528, %v1130
  %1201 = vst.msk [vmem:[#allocation2 + $0x210] sm:$0xff] %vm528, %v1131
  %v1202 = vlaneseq
  %v1203 = vshrl.u32 %v1202, 7
  %v1204 = vadd.s32 %v1203, 8
  %v1205 = vadd.s32 %v1203, 16
  %v1206 = vadd.s32 %v1203, 24
  %v1207 = vadd.s32 %v1203, 32
  %v1208 = vadd.s32 %v1203, 40
  %v1209 = vadd.s32 %v1203, 48
  %v1210 = vadd.s32 %v1203, 56
  %v1211 = vadd.s32 %v1203, 64
  %v1212 = vadd.s32 %v1203, 72
  %v1213 = vadd.s32 %v1203, 80
  %v1214 = vadd.s32 %v1203, 88
  %v1215 = vadd.s32 %v1203, 96
  %v1216 = vadd.s32 %v1203, 104
  %v1217 = vadd.s32 %v1203, 112
  %v1218 = vadd.s32 %v1203, 120
  %v1219 = vadd.s32 %v1203, 128
  %v1220 = vadd.s32 %v1203, 136
  %v1221 = vadd.s32 %v1203, 144
  %v1222 = vadd.s32 %v1203, 152
  %v1223 = vadd.s32 %v1203, 160
  %v1224 = vadd.s32 %v1203, 168
  %v1225 = vadd.s32 %v1203, 176
  %v1226 = vadd.s32 %v1203, 184
  %v1227 = vadd.s32 %v1203, 192
  %v1228 = vadd.s32 %v1203, 200
  %v1229 = vadd.s32 %v1203, 208
  %v1230 = vadd.s32 %v1203, 216
  %v1231 = vadd.s32 %v1203, 224
  %v1232 = vadd.s32 %v1203, 232
  %v1233 = vadd.s32 %v1203, 240
  %v1234 = vadd.s32 %v1203, 248
  %v1235 = vadd.s32 %v1203, 256
  %v1236 = vadd.s32 %v1203, 264
  %v1237 = vadd.s32 %v1203, 272
  %v1238 = vadd.s32 %v1203, 280
  %v1239 = vadd.s32 %v1203, 288
  %v1240 = vadd.s32 %v1203, 296
  %v1241 = vadd.s32 %v1203, 304
  %v1242 = vadd.s32 %v1203, 312
  %v1243 = vadd.s32 %v1203, 320
  %v1244 = vadd.s32 %v1203, 328
  %v1245 = vadd.s32 %v1203, 336
  %v1246 = vadd.s32 %v1203, 344
  %v1247 = vadd.s32 %v1203, 352
  %v1248 = vadd.s32 %v1203, 360
  %v1249 = vadd.s32 %v1203, 368
  %v1250 = vadd.s32 %v1203, 376
  %v1251 = vadd.s32 %v1203, 384
  %v1252 = vadd.s32 %v1203, 392
  %v1253 = vadd.s32 %v1203, 400
  %v1254 = vadd.s32 %v1203, 408
  %v1255 = vadd.s32 %v1203, 416
  %v1256 = vadd.s32 %v1203, 424
  %v1257 = vadd.s32 %v1203, 432
  %v1258 = vadd.s32 %v1203, 440
  %v1259 = vadd.s32 %v1203, 448
  %v1260 = vadd.s32 %v1203, 456
  %v1261 = vadd.s32 %v1203, 464
  %v1262 = vadd.s32 %v1203, 472
  %v1263 = vadd.s32 %v1203, 480
  %v1264 = vadd.s32 %v1203, 488
  %v1265 = vadd.s32 %v1203, 496
  %v1266 = vadd.s32 %v1203, 504
  %v1267 = vand.u32 %v1203, 15
  %v1268 = vand.u32 %v1204, 15
  %v1269 = vand.u32 %v1205, 15
  %v1270 = vand.u32 %v1206, 15
  %v1271 = vand.u32 %v1207, 15
  %v1272 = vand.u32 %v1208, 15
  %v1273 = vand.u32 %v1209, 15
  %v1274 = vand.u32 %v1210, 15
  %v1275 = vand.u32 %v1211, 15
  %v1276 = vand.u32 %v1212, 15
  %v1277 = vand.u32 %v1213, 15
  %v1278 = vand.u32 %v1214, 15
  %v1279 = vand.u32 %v1215, 15
  %v1280 = vand.u32 %v1216, 15
  %v1281 = vand.u32 %v1217, 15
  %v1282 = vand.u32 %v1218, 15
  %v1283 = vand.u32 %v1219, 15
  %v1284 = vand.u32 %v1220, 15
  %v1285 = vand.u32 %v1221, 15
  %v1286 = vand.u32 %v1222, 15
  %v1287 = vand.u32 %v1223, 15
  %v1288 = vand.u32 %v1224, 15
  %v1289 = vand.u32 %v1225, 15
  %v1290 = vand.u32 %v1226, 15
  %v1291 = vand.u32 %v1227, 15
  %v1292 = vand.u32 %v1228, 15
  %v1293 = vand.u32 %v1229, 15
  %v1294 = vand.u32 %v1230, 15
  %v1295 = vand.u32 %v1231, 15
  %v1296 = vand.u32 %v1232, 15
  %v1297 = vand.u32 %v1233, 15
  %v1298 = vand.u32 %v1234, 15
  %v1299 = vand.u32 %v1235, 15
  %v1300 = vand.u32 %v1236, 15
  %v1301 = vand.u32 %v1237, 15
  %v1302 = vand.u32 %v1238, 15
  %v1303 = vand.u32 %v1239, 15
  %v1304 = vand.u32 %v1240, 15
  %v1305 = vand.u32 %v1241, 15
  %v1306 = vand.u32 %v1242, 15
  %v1307 = vand.u32 %v1243, 15
  %v1308 = vand.u32 %v1244, 15
  %v1309 = vand.u32 %v1245, 15
  %v1310 = vand.u32 %v1246, 15
  %v1311 = vand.u32 %v1247, 15
  %v1312 = vand.u32 %v1248, 15
  %v1313 = vand.u32 %v1249, 15
  %v1314 = vand.u32 %v1250, 15
  %v1315 = vand.u32 %v1251, 15
  %v1316 = vand.u32 %v1252, 15
  %v1317 = vand.u32 %v1253, 15
  %v1318 = vand.u32 %v1254, 15
  %v1319 = vand.u32 %v1255, 15
  %v1320 = vand.u32 %v1256, 15
  %v1321 = vand.u32 %v1257, 15
  %v1322 = vand.u32 %v1258, 15
  %v1323 = vand.u32 %v1259, 15
  %v1324 = vand.u32 %v1260, 15
  %v1325 = vand.u32 %v1261, 15
  %v1326 = vand.u32 %v1262, 15
  %v1327 = vand.u32 %v1263, 15
  %v1328 = vand.u32 %v1264, 15
  %v1329 = vand.u32 %v1265, 15
  %v1330 = vand.u32 %v1266, 15
  %v1331 = vshra.s32 %v1203, 4
  %v1332 = vshra.s32 %v1204, 4
  %v1333 = vshra.s32 %v1205, 4
  %v1334 = vshra.s32 %v1206, 4
  %v1335 = vshra.s32 %v1207, 4
  %v1336 = vshra.s32 %v1208, 4
  %v1337 = vshra.s32 %v1209, 4
  %v1338 = vshra.s32 %v1210, 4
  %v1339 = vshra.s32 %v1211, 4
  %v1340 = vshra.s32 %v1212, 4
  %v1341 = vshra.s32 %v1213, 4
  %v1342 = vshra.s32 %v1214, 4
  %v1343 = vshra.s32 %v1215, 4
  %v1344 = vshra.s32 %v1216, 4
  %v1345 = vshra.s32 %v1217, 4
  %v1346 = vshra.s32 %v1218, 4
  %v1347 = vshra.s32 %v1219, 4
  %v1348 = vshra.s32 %v1220, 4
  %v1349 = vshra.s32 %v1221, 4
  %v1350 = vshra.s32 %v1222, 4
  %v1351 = vshra.s32 %v1223, 4
  %v1352 = vshra.s32 %v1224, 4
  %v1353 = vshra.s32 %v1225, 4
  %v1354 = vshra.s32 %v1226, 4
  %v1355 = vshra.s32 %v1227, 4
  %v1356 = vshra.s32 %v1228, 4
  %v1357 = vshra.s32 %v1229, 4
  %v1358 = vshra.s32 %v1230, 4
  %v1359 = vshra.s32 %v1231, 4
  %v1360 = vshra.s32 %v1232, 4
  %v1361 = vshra.s32 %v1233, 4
  %v1362 = vshra.s32 %v1234, 4
  %v1363 = vshra.s32 %v1235, 4
  %v1364 = vshra.s32 %v1236, 4
  %v1365 = vshra.s32 %v1237, 4
  %v1366 = vshra.s32 %v1238, 4
  %v1367 = vshra.s32 %v1239, 4
  %v1368 = vshra.s32 %v1240, 4
  %v1369 = vshra.s32 %v1241, 4
  %v1370 = vshra.s32 %v1242, 4
  %v1371 = vshra.s32 %v1243, 4
  %v1372 = vshra.s32 %v1244, 4
  %v1373 = vshra.s32 %v1245, 4
  %v1374 = vshra.s32 %v1246, 4
  %v1375 = vshra.s32 %v1247, 4
  %v1376 = vshra.s32 %v1248, 4
  %v1377 = vshra.s32 %v1249, 4
  %v1378 = vshra.s32 %v1250, 4
  %v1379 = vshra.s32 %v1251, 4
  %v1380 = vshra.s32 %v1252, 4
  %v1381 = vshra.s32 %v1253, 4
  %v1382 = vshra.s32 %v1254, 4
  %v1383 = vshra.s32 %v1255, 4
  %v1384 = vshra.s32 %v1256, 4
  %v1385 = vshra.s32 %v1257, 4
  %v1386 = vshra.s32 %v1258, 4
  %v1387 = vshra.s32 %v1259, 4
  %v1388 = vshra.s32 %v1260, 4
  %v1389 = vshra.s32 %v1261, 4
  %v1390 = vshra.s32 %v1262, 4
  %v1391 = vshra.s32 %v1263, 4
  %v1392 = vshra.s32 %v1264, 4
  %v1393 = vshra.s32 %v1265, 4
  %v1394 = vshra.s32 %v1266, 4
  %v1395 = vand.u32 %v1331, 15
  %v1396 = vand.u32 %v1332, 15
  %v1397 = vand.u32 %v1333, 15
  %v1398 = vand.u32 %v1334, 15
  %v1399 = vand.u32 %v1335, 15
  %v1400 = vand.u32 %v1336, 15
  %v1401 = vand.u32 %v1337, 15
  %v1402 = vand.u32 %v1338, 15
  %v1403 = vand.u32 %v1339, 15
  %v1404 = vand.u32 %v1340, 15
  %v1405 = vand.u32 %v1341, 15
  %v1406 = vand.u32 %v1342, 15
  %v1407 = vand.u32 %v1343, 15
  %v1408 = vand.u32 %v1344, 15
  %v1409 = vand.u32 %v1345, 15
  %v1410 = vand.u32 %v1346, 15
  %v1411 = vand.u32 %v1347, 15
  %v1412 = vand.u32 %v1348, 15
  %v1413 = vand.u32 %v1349, 15
  %v1414 = vand.u32 %v1350, 15
  %v1415 = vand.u32 %v1351, 15
  %v1416 = vand.u32 %v1352, 15
  %v1417 = vand.u32 %v1353, 15
  %v1418 = vand.u32 %v1354, 15
  %v1419 = vand.u32 %v1355, 15
  %v1420 = vand.u32 %v1356, 15
  %v1421 = vand.u32 %v1357, 15
  %v1422 = vand.u32 %v1358, 15
  %v1423 = vand.u32 %v1359, 15
  %v1424 = vand.u32 %v1360, 15
  %v1425 = vand.u32 %v1361, 15
  %v1426 = vand.u32 %v1362, 15
  %v1427 = vand.u32 %v1363, 15
  %v1428 = vand.u32 %v1364, 15
  %v1429 = vand.u32 %v1365, 15
  %v1430 = vand.u32 %v1366, 15
  %v1431 = vand.u32 %v1367, 15
  %v1432 = vand.u32 %v1368, 15
  %v1433 = vand.u32 %v1369, 15
  %v1434 = vand.u32 %v1370, 15
  %v1435 = vand.u32 %v1371, 15
  %v1436 = vand.u32 %v1372, 15
  %v1437 = vand.u32 %v1373, 15
  %v1438 = vand.u32 %v1374, 15
  %v1439 = vand.u32 %v1375, 15
  %v1440 = vand.u32 %v1376, 15
  %v1441 = vand.u32 %v1377, 15
  %v1442 = vand.u32 %v1378, 15
  %v1443 = vand.u32 %v1379, 15
  %v1444 = vand.u32 %v1380, 15
  %v1445 = vand.u32 %v1381, 15
  %v1446 = vand.u32 %v1382, 15
  %v1447 = vand.u32 %v1383, 15
  %v1448 = vand.u32 %v1384, 15
  %v1449 = vand.u32 %v1385, 15
  %v1450 = vand.u32 %v1386, 15
  %v1451 = vand.u32 %v1387, 15
  %v1452 = vand.u32 %v1388, 15
  %v1453 = vand.u32 %v1389, 15
  %v1454 = vand.u32 %v1390, 15
  %v1455 = vand.u32 %v1391, 15
  %v1456 = vand.u32 %v1392, 15
  %v1457 = vand.u32 %v1393, 15
  %v1458 = vand.u32 %v1394, 15
  %vm1459 = vcmp.ge.s32.totalorder %v1395, 1
  %vm1460 = vcmp.ge.s32.totalorder %v1396, 1
  %vm1461 = vcmp.ge.s32.totalorder %v1397, 1
  %vm1462 = vcmp.ge.s32.totalorder %v1398, 1
  %vm1463 = vcmp.ge.s32.totalorder %v1399, 1
  %vm1464 = vcmp.ge.s32.totalorder %v1400, 1
  %vm1465 = vcmp.ge.s32.totalorder %v1401, 1
  %vm1466 = vcmp.ge.s32.totalorder %v1402, 1
  %vm1467 = vcmp.ge.s32.totalorder %v1403, 1
  %vm1468 = vcmp.ge.s32.totalorder %v1404, 1
  %vm1469 = vcmp.ge.s32.totalorder %v1405, 1
  %vm1470 = vcmp.ge.s32.totalorder %v1406, 1
  %vm1471 = vcmp.ge.s32.totalorder %v1407, 1
  %vm1472 = vcmp.ge.s32.totalorder %v1408, 1
  %vm1473 = vcmp.ge.s32.totalorder %v1409, 1
  %vm1474 = vcmp.ge.s32.totalorder %v1410, 1
  %vm1475 = vcmp.ge.s32.totalorder %v1411, 1
  %vm1476 = vcmp.ge.s32.totalorder %v1412, 1
  %vm1477 = vcmp.ge.s32.totalorder %v1413, 1
  %vm1478 = vcmp.ge.s32.totalorder %v1414, 1
  %vm1479 = vcmp.ge.s32.totalorder %v1415, 1
  %vm1480 = vcmp.ge.s32.totalorder %v1416, 1
  %vm1481 = vcmp.ge.s32.totalorder %v1417, 1
  %vm1482 = vcmp.ge.s32.totalorder %v1418, 1
  %vm1483 = vcmp.ge.s32.totalorder %v1419, 1
  %vm1484 = vcmp.ge.s32.totalorder %v1420, 1
  %vm1485 = vcmp.ge.s32.totalorder %v1421, 1
  %vm1486 = vcmp.ge.s32.totalorder %v1422, 1
  %vm1487 = vcmp.ge.s32.totalorder %v1423, 1
  %vm1488 = vcmp.ge.s32.totalorder %v1424, 1
  %vm1489 = vcmp.ge.s32.totalorder %v1425, 1
  %vm1490 = vcmp.ge.s32.totalorder %v1426, 1
  %vm1491 = vcmp.ge.s32.totalorder %v1427, 1
  %vm1492 = vcmp.ge.s32.totalorder %v1428, 1
  %vm1493 = vcmp.ge.s32.totalorder %v1429, 1
  %vm1494 = vcmp.ge.s32.totalorder %v1430, 1
  %vm1495 = vcmp.ge.s32.totalorder %v1431, 1
  %vm1496 = vcmp.ge.s32.totalorder %v1432, 1
  %vm1497 = vcmp.ge.s32.totalorder %v1433, 1
  %vm1498 = vcmp.ge.s32.totalorder %v1434, 1
  %vm1499 = vcmp.ge.s32.totalorder %v1435, 1
  %vm1500 = vcmp.ge.s32.totalorder %v1436, 1
  %vm1501 = vcmp.ge.s32.totalorder %v1437, 1
  %vm1502 = vcmp.ge.s32.totalorder %v1438, 1
  %vm1503 = vcmp.ge.s32.totalorder %v1439, 1
  %vm1504 = vcmp.ge.s32.totalorder %v1440, 1
  %vm1505 = vcmp.ge.s32.totalorder %v1441, 1
  %vm1506 = vcmp.ge.s32.totalorder %v1442, 1
  %vm1507 = vcmp.ge.s32.totalorder %v1443, 1
  %vm1508 = vcmp.ge.s32.totalorder %v1444, 1
  %vm1509 = vcmp.ge.s32.totalorder %v1445, 1
  %vm1510 = vcmp.ge.s32.totalorder %v1446, 1
  %vm1511 = vcmp.ge.s32.totalorder %v1447, 1
  %vm1512 = vcmp.ge.s32.totalorder %v1448, 1
  %vm1513 = vcmp.ge.s32.totalorder %v1449, 1
  %vm1514 = vcmp.ge.s32.totalorder %v1450, 1
  %vm1515 = vcmp.ge.s32.totalorder %v1451, 1
  %vm1516 = vcmp.ge.s32.totalorder %v1452, 1
  %vm1517 = vcmp.ge.s32.totalorder %v1453, 1
  %vm1518 = vcmp.ge.s32.totalorder %v1454, 1
  %vm1519 = vcmp.ge.s32.totalorder %v1455, 1
  %vm1520 = vcmp.ge.s32.totalorder %v1456, 1
  %vm1521 = vcmp.ge.s32.totalorder %v1457, 1
  %vm1522 = vcmp.ge.s32.totalorder %v1458, 1
  %vm1523 = vcmp.le.s32.totalorder %v1395, 14
  %vm1524 = vcmp.le.s32.totalorder %v1396, 14
  %vm1525 = vcmp.le.s32.totalorder %v1397, 14
  %vm1526 = vcmp.le.s32.totalorder %v1398, 14
  %vm1527 = vcmp.le.s32.totalorder %v1399, 14
  %vm1528 = vcmp.le.s32.totalorder %v1400, 14
  %vm1529 = vcmp.le.s32.totalorder %v1401, 14
  %vm1530 = vcmp.le.s32.totalorder %v1402, 14
  %vm1531 = vcmp.le.s32.totalorder %v1403, 14
  %vm1532 = vcmp.le.s32.totalorder %v1404, 14
  %vm1533 = vcmp.le.s32.totalorder %v1405, 14
  %vm1534 = vcmp.le.s32.totalorder %v1406, 14
  %vm1535 = vcmp.le.s32.totalorder %v1407, 14
  %vm1536 = vcmp.le.s32.totalorder %v1408, 14
  %vm1537 = vcmp.le.s32.totalorder %v1409, 14
  %vm1538 = vcmp.le.s32.totalorder %v1410, 14
  %vm1539 = vcmp.le.s32.totalorder %v1411, 14
  %vm1540 = vcmp.le.s32.totalorder %v1412, 14
  %vm1541 = vcmp.le.s32.totalorder %v1413, 14
  %vm1542 = vcmp.le.s32.totalorder %v1414, 14
  %vm1543 = vcmp.le.s32.totalorder %v1415, 14
  %vm1544 = vcmp.le.s32.totalorder %v1416, 14
  %vm1545 = vcmp.le.s32.totalorder %v1417, 14
  %vm1546 = vcmp.le.s32.totalorder %v1418, 14
  %vm1547 = vcmp.le.s32.totalorder %v1419, 14
  %vm1548 = vcmp.le.s32.totalorder %v1420, 14
  %vm1549 = vcmp.le.s32.totalorder %v1421, 14
  %vm1550 = vcmp.le.s32.totalorder %v1422, 14
  %vm1551 = vcmp.le.s32.totalorder %v1423, 14
  %vm1552 = vcmp.le.s32.totalorder %v1424, 14
  %vm1553 = vcmp.le.s32.totalorder %v1425, 14
  %vm1554 = vcmp.le.s32.totalorder %v1426, 14
  %vm1555 = vcmp.le.s32.totalorder %v1427, 14
  %vm1556 = vcmp.le.s32.totalorder %v1428, 14
  %vm1557 = vcmp.le.s32.totalorder %v1429, 14
  %vm1558 = vcmp.le.s32.totalorder %v1430, 14
  %vm1559 = vcmp.le.s32.totalorder %v1431, 14
  %vm1560 = vcmp.le.s32.totalorder %v1432, 14
  %vm1561 = vcmp.le.s32.totalorder %v1433, 14
  %vm1562 = vcmp.le.s32.totalorder %v1434, 14
  %vm1563 = vcmp.le.s32.totalorder %v1435, 14
  %vm1564 = vcmp.le.s32.totalorder %v1436, 14
  %vm1565 = vcmp.le.s32.totalorder %v1437, 14
  %vm1566 = vcmp.le.s32.totalorder %v1438, 14
  %vm1567 = vcmp.le.s32.totalorder %v1439, 14
  %vm1568 = vcmp.le.s32.totalorder %v1440, 14
  %vm1569 = vcmp.le.s32.totalorder %v1441, 14
  %vm1570 = vcmp.le.s32.totalorder %v1442, 14
  %vm1571 = vcmp.le.s32.totalorder %v1443, 14
  %vm1572 = vcmp.le.s32.totalorder %v1444, 14
  %vm1573 = vcmp.le.s32.totalorder %v1445, 14
  %vm1574 = vcmp.le.s32.totalorder %v1446, 14
  %vm1575 = vcmp.le.s32.totalorder %v1447, 14
  %vm1576 = vcmp.le.s32.totalorder %v1448, 14
  %vm1577 = vcmp.le.s32.totalorder %v1449, 14
  %vm1578 = vcmp.le.s32.totalorder %v1450, 14
  %vm1579 = vcmp.le.s32.totalorder %v1451, 14
  %vm1580 = vcmp.le.s32.totalorder %v1452, 14
  %vm1581 = vcmp.le.s32.totalorder %v1453, 14
  %vm1582 = vcmp.le.s32.totalorder %v1454, 14
  %vm1583 = vcmp.le.s32.totalorder %v1455, 14
  %vm1584 = vcmp.le.s32.totalorder %v1456, 14
  %vm1585 = vcmp.le.s32.totalorder %v1457, 14
  %vm1586 = vcmp.le.s32.totalorder %v1458, 14
  %vm1587 = vcmp.ge.s32.totalorder %v1267, 1
  %vm1588 = vcmp.ge.s32.totalorder %v1268, 1
  %vm1589 = vcmp.ge.s32.totalorder %v1269, 1
  %vm1590 = vcmp.ge.s32.totalorder %v1270, 1
  %vm1591 = vcmp.ge.s32.totalorder %v1271, 1
  %vm1592 = vcmp.ge.s32.totalorder %v1272, 1
  %vm1593 = vcmp.ge.s32.totalorder %v1273, 1
  %vm1594 = vcmp.ge.s32.totalorder %v1274, 1
  %vm1595 = vcmp.ge.s32.totalorder %v1275, 1
  %vm1596 = vcmp.ge.s32.totalorder %v1276, 1
  %vm1597 = vcmp.ge.s32.totalorder %v1277, 1
  %vm1598 = vcmp.ge.s32.totalorder %v1278, 1
  %vm1599 = vcmp.ge.s32.totalorder %v1279, 1
  %vm1600 = vcmp.ge.s32.totalorder %v1280, 1
  %vm1601 = vcmp.ge.s32.totalorder %v1281, 1
  %vm1602 = vcmp.ge.s32.totalorder %v1282, 1
  %vm1603 = vcmp.ge.s32.totalorder %v1283, 1
  %vm1604 = vcmp.ge.s32.totalorder %v1284, 1
  %vm1605 = vcmp.ge.s32.totalorder %v1285, 1
  %vm1606 = vcmp.ge.s32.totalorder %v1286, 1
  %vm1607 = vcmp.ge.s32.totalorder %v1287, 1
  %vm1608 = vcmp.ge.s32.totalorder %v1288, 1
  %vm1609 = vcmp.ge.s32.totalorder %v1289, 1
  %vm1610 = vcmp.ge.s32.totalorder %v1290, 1
  %vm1611 = vcmp.ge.s32.totalorder %v1291, 1
  %vm1612 = vcmp.ge.s32.totalorder %v1292, 1
  %vm1613 = vcmp.ge.s32.totalorder %v1293, 1
  %vm1614 = vcmp.ge.s32.totalorder %v1294, 1
  %vm1615 = vcmp.ge.s32.totalorder %v1295, 1
  %vm1616 = vcmp.ge.s32.totalorder %v1296, 1
  %vm1617 = vcmp.ge.s32.totalorder %v1297, 1
  %vm1618 = vcmp.ge.s32.totalorder %v1298, 1
  %vm1619 = vcmp.ge.s32.totalorder %v1299, 1
  %vm1620 = vcmp.ge.s32.totalorder %v1300, 1
  %vm1621 = vcmp.ge.s32.totalorder %v1301, 1
  %vm1622 = vcmp.ge.s32.totalorder %v1302, 1
  %vm1623 = vcmp.ge.s32.totalorder %v1303, 1
  %vm1624 = vcmp.ge.s32.totalorder %v1304, 1
  %vm1625 = vcmp.ge.s32.totalorder %v1305, 1
  %vm1626 = vcmp.ge.s32.totalorder %v1306, 1
  %vm1627 = vcmp.ge.s32.totalorder %v1307, 1
  %vm1628 = vcmp.ge.s32.totalorder %v1308, 1
  %vm1629 = vcmp.ge.s32.totalorder %v1309, 1
  %vm1630 = vcmp.ge.s32.totalorder %v1310, 1
  %vm1631 = vcmp.ge.s32.totalorder %v1311, 1
  %vm1632 = vcmp.ge.s32.totalorder %v1312, 1
  %vm1633 = vcmp.ge.s32.totalorder %v1313, 1
  %vm1634 = vcmp.ge.s32.totalorder %v1314, 1
  %vm1635 = vcmp.ge.s32.totalorder %v1315, 1
  %vm1636 = vcmp.ge.s32.totalorder %v1316, 1
  %vm1637 = vcmp.ge.s32.totalorder %v1317, 1
  %vm1638 = vcmp.ge.s32.totalorder %v1318, 1
  %vm1639 = vcmp.ge.s32.totalorder %v1319, 1
  %vm1640 = vcmp.ge.s32.totalorder %v1320, 1
  %vm1641 = vcmp.ge.s32.totalorder %v1321, 1
  %vm1642 = vcmp.ge.s32.totalorder %v1322, 1
  %vm1643 = vcmp.ge.s32.totalorder %v1323, 1
  %vm1644 = vcmp.ge.s32.totalorder %v1324, 1
  %vm1645 = vcmp.ge.s32.totalorder %v1325, 1
  %vm1646 = vcmp.ge.s32.totalorder %v1326, 1
  %vm1647 = vcmp.ge.s32.totalorder %v1327, 1
  %vm1648 = vcmp.ge.s32.totalorder %v1328, 1
  %vm1649 = vcmp.ge.s32.totalorder %v1329, 1
  %vm1650 = vcmp.ge.s32.totalorder %v1330, 1
  %vm1651 = vcmp.le.s32.totalorder %v1267, 14
  %vm1652 = vcmp.le.s32.totalorder %v1268, 14
  %vm1653 = vcmp.le.s32.totalorder %v1269, 14
  %vm1654 = vcmp.le.s32.totalorder %v1270, 14
  %vm1655 = vcmp.le.s32.totalorder %v1271, 14
  %vm1656 = vcmp.le.s32.totalorder %v1272, 14
  %vm1657 = vcmp.le.s32.totalorder %v1273, 14
  %vm1658 = vcmp.le.s32.totalorder %v1274, 14
  %vm1659 = vcmp.le.s32.totalorder %v1275, 14
  %vm1660 = vcmp.le.s32.totalorder %v1276, 14
  %vm1661 = vcmp.le.s32.totalorder %v1277, 14
  %vm1662 = vcmp.le.s32.totalorder %v1278, 14
  %vm1663 = vcmp.le.s32.totalorder %v1279, 14
  %vm1664 = vcmp.le.s32.totalorder %v1280, 14
  %vm1665 = vcmp.le.s32.totalorder %v1281, 14
  %vm1666 = vcmp.le.s32.totalorder %v1282, 14
  %vm1667 = vcmp.le.s32.totalorder %v1283, 14
  %vm1668 = vcmp.le.s32.totalorder %v1284, 14
  %vm1669 = vcmp.le.s32.totalorder %v1285, 14
  %vm1670 = vcmp.le.s32.totalorder %v1286, 14
  %vm1671 = vcmp.le.s32.totalorder %v1287, 14
  %vm1672 = vcmp.le.s32.totalorder %v1288, 14
  %vm1673 = vcmp.le.s32.totalorder %v1289, 14
  %vm1674 = vcmp.le.s32.totalorder %v1290, 14
  %vm1675 = vcmp.le.s32.totalorder %v1291, 14
  %vm1676 = vcmp.le.s32.totalorder %v1292, 14
  %vm1677 = vcmp.le.s32.totalorder %v1293, 14
  %vm1678 = vcmp.le.s32.totalorder %v1294, 14
  %vm1679 = vcmp.le.s32.totalorder %v1295, 14
  %vm1680 = vcmp.le.s32.totalorder %v1296, 14
  %vm1681 = vcmp.le.s32.totalorder %v1297, 14
  %vm1682 = vcmp.le.s32.totalorder %v1298, 14
  %vm1683 = vcmp.le.s32.totalorder %v1299, 14
  %vm1684 = vcmp.le.s32.totalorder %v1300, 14
  %vm1685 = vcmp.le.s32.totalorder %v1301, 14
  %vm1686 = vcmp.le.s32.totalorder %v1302, 14
  %vm1687 = vcmp.le.s32.totalorder %v1303, 14
  %vm1688 = vcmp.le.s32.totalorder %v1304, 14
  %vm1689 = vcmp.le.s32.totalorder %v1305, 14
  %vm1690 = vcmp.le.s32.totalorder %v1306, 14
  %vm1691 = vcmp.le.s32.totalorder %v1307, 14
  %vm1692 = vcmp.le.s32.totalorder %v1308, 14
  %vm1693 = vcmp.le.s32.totalorder %v1309, 14
  %vm1694 = vcmp.le.s32.totalorder %v1310, 14
  %vm1695 = vcmp.le.s32.totalorder %v1311, 14
  %vm1696 = vcmp.le.s32.totalorder %v1312, 14
  %vm1697 = vcmp.le.s32.totalorder %v1313, 14
  %vm1698 = vcmp.le.s32.totalorder %v1314, 14
  %vm1699 = vcmp.le.s32.totalorder %v1315, 14
  %vm1700 = vcmp.le.s32.totalorder %v1316, 14
  %vm1701 = vcmp.le.s32.totalorder %v1317, 14
  %vm1702 = vcmp.le.s32.totalorder %v1318, 14
  %vm1703 = vcmp.le.s32.totalorder %v1319, 14
  %vm1704 = vcmp.le.s32.totalorder %v1320, 14
  %vm1705 = vcmp.le.s32.totalorder %v1321, 14
  %vm1706 = vcmp.le.s32.totalorder %v1322, 14
  %vm1707 = vcmp.le.s32.totalorder %v1323, 14
  %vm1708 = vcmp.le.s32.totalorder %v1324, 14
  %vm1709 = vcmp.le.s32.totalorder %v1325, 14
  %vm1710 = vcmp.le.s32.totalorder %v1326, 14
  %vm1711 = vcmp.le.s32.totalorder %v1327, 14
  %vm1712 = vcmp.le.s32.totalorder %v1328, 14
  %vm1713 = vcmp.le.s32.totalorder %v1329, 14
  %vm1714 = vcmp.le.s32.totalorder %v1330, 14
  %v1715 = vld [vmem:[#allocation2 + $0x7] sm:$0xff]
  %v1716 = vld [vmem:[#allocation2 + $0xf] sm:$0xff]
  %v1717 = vld [vmem:[#allocation2 + $0x17] sm:$0xff]
  %v1718 = vld [vmem:[#allocation2 + $0x1f] sm:$0xff]
  %v1719 = vld [vmem:[#allocation2 + $0x27] sm:$0xff]
  %v1720 = vld [vmem:[#allocation2 + $0x2f] sm:$0xff]
  %v1721 = vld [vmem:[#allocation2 + $0x37] sm:$0xff]
  %v1722 = vld [vmem:[#allocation2 + $0x3f] sm:$0xff]
  %v1723 = vld [vmem:[#allocation2 + $0x47] sm:$0xff]
  %v1724 = vld [vmem:[#allocation2 + $0x4f] sm:$0xff]
  %v1725 = vld [vmem:[#allocation2 + $0x57] sm:$0xff]
  %v1726 = vld [vmem:[#allocation2 + $0x5f] sm:$0xff]
  %v1727 = vld [vmem:[#allocation2 + $0x67] sm:$0xff]
  %v1728 = vld [vmem:[#allocation2 + $0x6f] sm:$0xff]
  %v1729 = vld [vmem:[#allocation2 + $0x77] sm:$0xff]
  %v1730 = vld [vmem:[#allocation2 + $0x7f] sm:$0xff]
  %v1731 = vld [vmem:[#allocation2 + $0x87] sm:$0xff]
  %v1732 = vld [vmem:[#allocation2 + $0x8f] sm:$0xff]
  %v1733 = vld [vmem:[#allocation2 + $0x97] sm:$0xff]
  %v1734 = vld [vmem:[#allocation2 + $0x9f] sm:$0xff]
  %v1735 = vld [vmem:[#allocation2 + $0xa7] sm:$0xff]
  %v1736 = vld [vmem:[#allocation2 + $0xaf] sm:$0xff]
  %v1737 = vld [vmem:[#allocation2 + $0xb7] sm:$0xff]
  %v1738 = vld [vmem:[#allocation2 + $0xbf] sm:$0xff]
  %v1739 = vld [vmem:[#allocation2 + $0xc7] sm:$0xff]
  %v1740 = vld [vmem:[#allocation2 + $0xcf] sm:$0xff]
  %v1741 = vld [vmem:[#allocation2 + $0xd7] sm:$0xff]
  %v1742 = vld [vmem:[#allocation2 + $0xdf] sm:$0xff]
  %v1743 = vld [vmem:[#allocation2 + $0xe7] sm:$0xff]
  %v1744 = vld [vmem:[#allocation2 + $0xef] sm:$0xff]
  %v1745 = vld [vmem:[#allocation2 + $0xf7] sm:$0xff]
  %v1746 = vld [vmem:[#allocation2 + $0xff] sm:$0xff]
  %v1747 = vld [vmem:[#allocation2 + $0x107] sm:$0xff]
  %v1748 = vld [vmem:[#allocation2 + $0x10f] sm:$0xff]
  %v1749 = vld [vmem:[#allocation2 + $0x117] sm:$0xff]
  %v1750 = vld [vmem:[#allocation2 + $0x11f] sm:$0xff]
  %v1751 = vld [vmem:[#allocation2 + $0x127] sm:$0xff]
  %v1752 = vld [vmem:[#allocation2 + $0x12f] sm:$0xff]
  %v1753 = vld [vmem:[#allocation2 + $0x137] sm:$0xff]
  %v1754 = vld [vmem:[#allocation2 + $0x13f] sm:$0xff]
  %v1755 = vld [vmem:[#allocation2 + $0x147] sm:$0xff]
  %v1756 = vld [vmem:[#allocation2 + $0x14f] sm:$0xff]
  %v1757 = vld [vmem:[#allocation2 + $0x157] sm:$0xff]
  %v1758 = vld [vmem:[#allocation2 + $0x15f] sm:$0xff]
  %v1759 = vld [vmem:[#allocation2 + $0x167] sm:$0xff]
  %v1760 = vld [vmem:[#allocation2 + $0x16f] sm:$0xff]
  %v1761 = vld [vmem:[#allocation2 + $0x177] sm:$0xff]
  %v1762 = vld [vmem:[#allocation2 + $0x17f] sm:$0xff]
  %v1763 = vld [vmem:[#allocation2 + $0x187] sm:$0xff]
  %v1764 = vld [vmem:[#allocation2 + $0x18f] sm:$0xff]
  %v1765 = vld [vmem:[#allocation2 + $0x197] sm:$0xff]
  %v1766 = vld [vmem:[#allocation2 + $0x19f] sm:$0xff]
  %v1767 = vld [vmem:[#allocation2 + $0x1a7] sm:$0xff]
  %v1768 = vld [vmem:[#allocation2 + $0x1af] sm:$0xff]
  %v1769 = vld [vmem:[#allocation2 + $0x1b7] sm:$0xff]
  %v1770 = vld [vmem:[#allocation2 + $0x1bf] sm:$0xff]
  %v1771 = vld [vmem:[#allocation2 + $0x1c7] sm:$0xff]
  %v1772 = vld [vmem:[#allocation2 + $0x1cf] sm:$0xff]
  %v1773 = vld [vmem:[#allocation2 + $0x1d7] sm:$0xff]
  %v1774 = vld [vmem:[#allocation2 + $0x1df] sm:$0xff]
  %v1775 = vld [vmem:[#allocation2 + $0x1e7] sm:$0xff]
  %v1776 = vld [vmem:[#allocation2 + $0x1ef] sm:$0xff]
  %v1777 = vld [vmem:[#allocation2 + $0x1f7] sm:$0xff]
  %v1778 = vld [vmem:[#allocation2 + $0x1ff] sm:$0xff]
  %vm1779 = vmand %vm1459, %vm1587
  %vm1780 = vmand %vm1460, %vm1588
  %vm1781 = vmand %vm1461, %vm1589
  %vm1782 = vmand %vm1462, %vm1590
  %vm1783 = vmand %vm1463, %vm1591
  %vm1784 = vmand %vm1464, %vm1592
  %vm1785 = vmand %vm1465, %vm1593
  %vm1786 = vmand %vm1466, %vm1594
  %vm1787 = vmand %vm1467, %vm1595
  %vm1788 = vmand %vm1468, %vm1596
  %vm1789 = vmand %vm1469, %vm1597
  %vm1790 = vmand %vm1470, %vm1598
  %vm1791 = vmand %vm1471, %vm1599
  %vm1792 = vmand %vm1472, %vm1600
  %vm1793 = vmand %vm1473, %vm1601
  %vm1794 = vmand %vm1474, %vm1602
  %vm1795 = vmand %vm1475, %vm1603
  %vm1796 = vmand %vm1476, %vm1604
  %vm1797 = vmand %vm1477, %vm1605
  %vm1798 = vmand %vm1478, %vm1606
  %vm1799 = vmand %vm1479, %vm1607
  %vm1800 = vmand %vm1480, %vm1608
  %vm1801 = vmand %vm1481, %vm1609
  %vm1802 = vmand %vm1482, %vm1610
  %vm1803 = vmand %vm1483, %vm1611
  %vm1804 = vmand %vm1484, %vm1612
  %vm1805 = vmand %vm1485, %vm1613
  %vm1806 = vmand %vm1486, %vm1614
  %vm1807 = vmand %vm1487, %vm1615
  %vm1808 = vmand %vm1488, %vm1616
  %vm1809 = vmand %vm1489, %vm1617
  %vm1810 = vmand %vm1490, %vm1618
  %vm1811 = vmand %vm1491, %vm1619
  %vm1812 = vmand %vm1492, %vm1620
  %vm1813 = vmand %vm1493, %vm1621
  %vm1814 = vmand %vm1494, %vm1622
  %vm1815 = vmand %vm1495, %vm1623
  %vm1816 = vmand %vm1496, %vm1624
  %vm1817 = vmand %vm1497, %vm1625
  %vm1818 = vmand %vm1498, %vm1626
  %vm1819 = vmand %vm1499, %vm1627
  %vm1820 = vmand %vm1500, %vm1628
  %vm1821 = vmand %vm1501, %vm1629
  %vm1822 = vmand %vm1502, %vm1630
  %vm1823 = vmand %vm1503, %vm1631
  %vm1824 = vmand %vm1504, %vm1632
  %vm1825 = vmand %vm1505, %vm1633
  %vm1826 = vmand %vm1506, %vm1634
  %vm1827 = vmand %vm1507, %vm1635
  %vm1828 = vmand %vm1508, %vm1636
  %vm1829 = vmand %vm1509, %vm1637
  %vm1830 = vmand %vm1510, %vm1638
  %vm1831 = vmand %vm1511, %vm1639
  %vm1832 = vmand %vm1512, %vm1640
  %vm1833 = vmand %vm1513, %vm1641
  %vm1834 = vmand %vm1514, %vm1642
  %vm1835 = vmand %vm1515, %vm1643
  %vm1836 = vmand %vm1516, %vm1644
  %vm1837 = vmand %vm1517, %vm1645
  %vm1838 = vmand %vm1518, %vm1646
  %vm1839 = vmand %vm1519, %vm1647
  %vm1840 = vmand %vm1520, %vm1648
  %vm1841 = vmand %vm1521, %vm1649
  %vm1842 = vmand %vm1522, %vm1650
  %v1843 = vsel %vm1779, 1, 0
  %v1844 = vsel %vm1780, 1, 0
  %v1845 = vsel %vm1781, 1, 0
  %v1846 = vsel %vm1782, 1, 0
  %v1847 = vsel %vm1783, 1, 0
  %v1848 = vsel %vm1784, 1, 0
  %v1849 = vsel %vm1785, 1, 0
  %v1850 = vsel %vm1786, 1, 0
  %v1851 = vsel %vm1787, 1, 0
  %v1852 = vsel %vm1788, 1, 0
  %v1853 = vsel %vm1789, 1, 0
  %v1854 = vsel %vm1790, 1, 0
  %v1855 = vsel %vm1791, 1, 0
  %v1856 = vsel %vm1792, 1, 0
  %v1857 = vsel %vm1793, 1, 0
  %v1858 = vsel %vm1794, 1, 0
  %v1859 = vsel %vm1795, 1, 0
  %v1860 = vsel %vm1796, 1, 0
  %v1861 = vsel %vm1797, 1, 0
  %v1862 = vsel %vm1798, 1, 0
  %v1863 = vsel %vm1799, 1, 0
  %v1864 = vsel %vm1800, 1, 0
  %v1865 = vsel %vm1801, 1, 0
  %v1866 = vsel %vm1802, 1, 0
  %v1867 = vsel %vm1803, 1, 0
  %v1868 = vsel %vm1804, 1, 0
  %v1869 = vsel %vm1805, 1, 0
  %v1870 = vsel %vm1806, 1, 0
  %v1871 = vsel %vm1807, 1, 0
  %v1872 = vsel %vm1808, 1, 0
  %v1873 = vsel %vm1809, 1, 0
  %v1874 = vsel %vm1810, 1, 0
  %v1875 = vsel %vm1811, 1, 0
  %v1876 = vsel %vm1812, 1, 0
  %v1877 = vsel %vm1813, 1, 0
  %v1878 = vsel %vm1814, 1, 0
  %v1879 = vsel %vm1815, 1, 0
  %v1880 = vsel %vm1816, 1, 0
  %v1881 = vsel %vm1817, 1, 0
  %v1882 = vsel %vm1818, 1, 0
  %v1883 = vsel %vm1819, 1, 0
  %v1884 = vsel %vm1820, 1, 0
  %v1885 = vsel %vm1821, 1, 0
  %v1886 = vsel %vm1822, 1, 0
  %v1887 = vsel %vm1823, 1, 0
  %v1888 = vsel %vm1824, 1, 0
  %v1889 = vsel %vm1825, 1, 0
  %v1890 = vsel %vm1826, 1, 0
  %v1891 = vsel %vm1827, 1, 0
  %v1892 = vsel %vm1828, 1, 0
  %v1893 = vsel %vm1829, 1, 0
  %v1894 = vsel %vm1830, 1, 0
  %v1895 = vsel %vm1831, 1, 0
  %v1896 = vsel %vm1832, 1, 0
  %v1897 = vsel %vm1833, 1, 0
  %v1898 = vsel %vm1834, 1, 0
  %v1899 = vsel %vm1835, 1, 0
  %v1900 = vsel %vm1836, 1, 0
  %v1901 = vsel %vm1837, 1, 0
  %v1902 = vsel %vm1838, 1, 0
  %v1903 = vsel %vm1839, 1, 0
  %v1904 = vsel %vm1840, 1, 0
  %v1905 = vsel %vm1841, 1, 0
  %v1906 = vsel %vm1842, 1, 0
  %vm1907 = vcmp.eq.s32.totalorder %v1843, 1
  %vm1908 = vcmp.eq.s32.totalorder %v1844, 1
  %vm1909 = vcmp.eq.s32.totalorder %v1845, 1
  %vm1910 = vcmp.eq.s32.totalorder %v1846, 1
  %vm1911 = vcmp.eq.s32.totalorder %v1847, 1
  %vm1912 = vcmp.eq.s32.totalorder %v1848, 1
  %vm1913 = vcmp.eq.s32.totalorder %v1849, 1
  %vm1914 = vcmp.eq.s32.totalorder %v1850, 1
  %vm1915 = vcmp.eq.s32.totalorder %v1851, 1
  %vm1916 = vcmp.eq.s32.totalorder %v1852, 1
  %vm1917 = vcmp.eq.s32.totalorder %v1853, 1
  %vm1918 = vcmp.eq.s32.totalorder %v1854, 1
  %vm1919 = vcmp.eq.s32.totalorder %v1855, 1
  %vm1920 = vcmp.eq.s32.totalorder %v1856, 1
  %vm1921 = vcmp.eq.s32.totalorder %v1857, 1
  %vm1922 = vcmp.eq.s32.totalorder %v1858, 1
  %vm1923 = vcmp.eq.s32.totalorder %v1859, 1
  %vm1924 = vcmp.eq.s32.totalorder %v1860, 1
  %vm1925 = vcmp.eq.s32.totalorder %v1861, 1
  %vm1926 = vcmp.eq.s32.totalorder %v1862, 1
  %vm1927 = vcmp.eq.s32.totalorder %v1863, 1
  %vm1928 = vcmp.eq.s32.totalorder %v1864, 1
  %vm1929 = vcmp.eq.s32.totalorder %v1865, 1
  %vm1930 = vcmp.eq.s32.totalorder %v1866, 1
  %vm1931 = vcmp.eq.s32.totalorder %v1867, 1
  %vm1932 = vcmp.eq.s32.totalorder %v1868, 1
  %vm1933 = vcmp.eq.s32.totalorder %v1869, 1
  %vm1934 = vcmp.eq.s32.totalorder %v1870, 1
  %vm1935 = vcmp.eq.s32.totalorder %v1871, 1
  %vm1936 = vcmp.eq.s32.totalorder %v1872, 1
  %vm1937 = vcmp.eq.s32.totalorder %v1873, 1
  %vm1938 = vcmp.eq.s32.totalorder %v1874, 1
  %vm1939 = vcmp.eq.s32.totalorder %v1875, 1
  %vm1940 = vcmp.eq.s32.totalorder %v1876, 1
  %vm1941 = vcmp.eq.s32.totalorder %v1877, 1
  %vm1942 = vcmp.eq.s32.totalorder %v1878, 1
  %vm1943 = vcmp.eq.s32.totalorder %v1879, 1
  %vm1944 = vcmp.eq.s32.totalorder %v1880, 1
  %vm1945 = vcmp.eq.s32.totalorder %v1881, 1
  %vm1946 = vcmp.eq.s32.totalorder %v1882, 1
  %vm1947 = vcmp.eq.s32.totalorder %v1883, 1
  %vm1948 = vcmp.eq.s32.totalorder %v1884, 1
  %vm1949 = vcmp.eq.s32.totalorder %v1885, 1
  %vm1950 = vcmp.eq.s32.totalorder %v1886, 1
  %vm1951 = vcmp.eq.s32.totalorder %v1887, 1
  %vm1952 = vcmp.eq.s32.totalorder %v1888, 1
  %vm1953 = vcmp.eq.s32.totalorder %v1889, 1
  %vm1954 = vcmp.eq.s32.totalorder %v1890, 1
  %vm1955 = vcmp.eq.s32.totalorder %v1891, 1
  %vm1956 = vcmp.eq.s32.totalorder %v1892, 1
  %vm1957 = vcmp.eq.s32.totalorder %v1893, 1
  %vm1958 = vcmp.eq.s32.totalorder %v1894, 1
  %vm1959 = vcmp.eq.s32.totalorder %v1895, 1
  %vm1960 = vcmp.eq.s32.totalorder %v1896, 1
  %vm1961 = vcmp.eq.s32.totalorder %v1897, 1
  %vm1962 = vcmp.eq.s32.totalorder %v1898, 1
  %vm1963 = vcmp.eq.s32.totalorder %v1899, 1
  %vm1964 = vcmp.eq.s32.totalorder %v1900, 1
  %vm1965 = vcmp.eq.s32.totalorder %v1901, 1
  %vm1966 = vcmp.eq.s32.totalorder %v1902, 1
  %vm1967 = vcmp.eq.s32.totalorder %v1903, 1
  %vm1968 = vcmp.eq.s32.totalorder %v1904, 1
  %vm1969 = vcmp.eq.s32.totalorder %v1905, 1
  %vm1970 = vcmp.eq.s32.totalorder %v1906, 1
  %v1971 = vsel %vm1907, %v1715, 0.0
  %v1972 = vsel %vm1908, %v1716, 0.0
  %v1973 = vsel %vm1909, %v1717, 0.0
  %v1974 = vsel %vm1910, %v1718, 0.0
  %v1975 = vsel %vm1911, %v1719, 0.0
  %v1976 = vsel %vm1912, %v1720, 0.0
  %v1977 = vsel %vm1913, %v1721, 0.0
  %v1978 = vsel %vm1914, %v1722, 0.0
  %v1979 = vsel %vm1915, %v1723, 0.0
  %v1980 = vsel %vm1916, %v1724, 0.0
  %v1981 = vsel %vm1917, %v1725, 0.0
  %v1982 = vsel %vm1918, %v1726, 0.0
  %v1983 = vsel %vm1919, %v1727, 0.0
  %v1984 = vsel %vm1920, %v1728, 0.0
  %v1985 = vsel %vm1921, %v1729, 0.0
  %v1986 = vsel %vm1922, %v1730, 0.0
  %v1987 = vsel %vm1923, %v1731, 0.0
  %v1988 = vsel %vm1924, %v1732, 0.0
  %v1989 = vsel %vm1925, %v1733, 0.0
  %v1990 = vsel %vm1926, %v1734, 0.0
  %v1991 = vsel %vm1927, %v1735, 0.0
  %v1992 = vsel %vm1928, %v1736, 0.0
  %v1993 = vsel %vm1929, %v1737, 0.0
  %v1994 = vsel %vm1930, %v1738, 0.0
  %v1995 = vsel %vm1931, %v1739, 0.0
  %v1996 = vsel %vm1932, %v1740, 0.0
  %v1997 = vsel %vm1933, %v1741, 0.0
  %v1998 = vsel %vm1934, %v1742, 0.0
  %v1999 = vsel %vm1935, %v1743, 0.0
  %v2000 = vsel %vm1936, %v1744, 0.0
  %v2001 = vsel %vm1937, %v1745, 0.0
  %v2002 = vsel %vm1938, %v1746, 0.0
  %v2003 = vsel %vm1939, %v1747, 0.0
  %v2004 = vsel %vm1940, %v1748, 0.0
  %v2005 = vsel %vm1941, %v1749, 0.0
  %v2006 = vsel %vm1942, %v1750, 0.0
  %v2007 = vsel %vm1943, %v1751, 0.0
  %v2008 = vsel %vm1944, %v1752, 0.0
  %v2009 = vsel %vm1945, %v1753, 0.0
  %v2010 = vsel %vm1946, %v1754, 0.0
  %v2011 = vsel %vm1947, %v1755, 0.0
  %v2012 = vsel %vm1948, %v1756, 0.0
  %v2013 = vsel %vm1949, %v1757, 0.0
  %v2014 = vsel %vm1950, %v1758, 0.0
  %v2015 = vsel %vm1951, %v1759, 0.0
  %v2016 = vsel %vm1952, %v1760, 0.0
  %v2017 = vsel %vm1953, %v1761, 0.0
  %v2018 = vsel %vm1954, %v1762, 0.0
  %v2019 = vsel %vm1955, %v1763, 0.0
  %v2020 = vsel %vm1956, %v1764, 0.0
  %v2021 = vsel %vm1957, %v1765, 0.0
  %v2022 = vsel %vm1958, %v1766, 0.0
  %v2023 = vsel %vm1959, %v1767, 0.0
  %v2024 = vsel %vm1960, %v1768, 0.0
  %v2025 = vsel %vm1961, %v1769, 0.0
  %v2026 = vsel %vm1962, %v1770, 0.0
  %v2027 = vsel %vm1963, %v1771, 0.0
  %v2028 = vsel %vm1964, %v1772, 0.0
  %v2029 = vsel %vm1965, %v1773, 0.0
  %v2030 = vsel %vm1966, %v1774, 0.0
  %v2031 = vsel %vm1967, %v1775, 0.0
  %v2032 = vsel %vm1968, %v1776, 0.0
  %v2033 = vsel %vm1969, %v1777, 0.0
  %v2034 = vsel %vm1970, %v1778, 0.0
  %v2035 = vld [vmem:[#allocation2 + $0x8] sm:$0xff]
  %v2036 = vld [vmem:[#allocation2 + $0x10] sm:$0xff]
  %v2037 = vld [vmem:[#allocation2 + $0x18] sm:$0xff]
  %v2038 = vld [vmem:[#allocation2 + $0x20] sm:$0xff]
  %v2039 = vld [vmem:[#allocation2 + $0x28] sm:$0xff]
  %v2040 = vld [vmem:[#allocation2 + $0x30] sm:$0xff]
  %v2041 = vld [vmem:[#allocation2 + $0x38] sm:$0xff]
  %v2042 = vld [vmem:[#allocation2 + $0x40] sm:$0xff]
  %v2043 = vld [vmem:[#allocation2 + $0x48] sm:$0xff]
  %v2044 = vld [vmem:[#allocation2 + $0x50] sm:$0xff]
  %v2045 = vld [vmem:[#allocation2 + $0x58] sm:$0xff]
  %v2046 = vld [vmem:[#allocation2 + $0x60] sm:$0xff]
  %v2047 = vld [vmem:[#allocation2 + $0x68] sm:$0xff]
  %v2048 = vld [vmem:[#allocation2 + $0x70] sm:$0xff]
  %v2049 = vld [vmem:[#allocation2 + $0x78] sm:$0xff]
  %v2050 = vld [vmem:[#allocation2 + $0x80] sm:$0xff]
  %v2051 = vld [vmem:[#allocation2 + $0x88] sm:$0xff]
  %v2052 = vld [vmem:[#allocation2 + $0x90] sm:$0xff]
  %v2053 = vld [vmem:[#allocation2 + $0x98] sm:$0xff]
  %v2054 = vld [vmem:[#allocation2 + $0xa0] sm:$0xff]
  %v2055 = vld [vmem:[#allocation2 + $0xa8] sm:$0xff]
  %v2056 = vld [vmem:[#allocation2 + $0xb0] sm:$0xff]
  %v2057 = vld [vmem:[#allocation2 + $0xb8] sm:$0xff]
  %v2058 = vld [vmem:[#allocation2 + $0xc0] sm:$0xff]
  %v2059 = vld [vmem:[#allocation2 + $0xc8] sm:$0xff]
  %v2060 = vld [vmem:[#allocation2 + $0xd0] sm:$0xff]
  %v2061 = vld [vmem:[#allocation2 + $0xd8] sm:$0xff]
  %v2062 = vld [vmem:[#allocation2 + $0xe0] sm:$0xff]
  %v2063 = vld [vmem:[#allocation2 + $0xe8] sm:$0xff]
  %v2064 = vld [vmem:[#allocation2 + $0xf0] sm:$0xff]
  %v2065 = vld [vmem:[#allocation2 + $0xf8] sm:$0xff]
  %v2066 = vld [vmem:[#allocation2 + $0x100] sm:$0xff]
  %v2067 = vld [vmem:[#allocation2 + $0x108] sm:$0xff]
  %v2068 = vld [vmem:[#allocation2 + $0x110] sm:$0xff]
  %v2069 = vld [vmem:[#allocation2 + $0x118] sm:$0xff]
  %v2070 = vld [vmem:[#allocation2 + $0x120] sm:$0xff]
  %v2071 = vld [vmem:[#allocation2 + $0x128] sm:$0xff]
  %v2072 = vld [vmem:[#allocation2 + $0x130] sm:$0xff]
  %v2073 = vld [vmem:[#allocation2 + $0x138] sm:$0xff]
  %v2074 = vld [vmem:[#allocation2 + $0x140] sm:$0xff]
  %v2075 = vld [vmem:[#allocation2 + $0x148] sm:$0xff]
  %v2076 = vld [vmem:[#allocation2 + $0x150] sm:$0xff]
  %v2077 = vld [vmem:[#allocation2 + $0x158] sm:$0xff]
  %v2078 = vld [vmem:[#allocation2 + $0x160] sm:$0xff]
  %v2079 = vld [vmem:[#allocation2 + $0x168] sm:$0xff]
  %v2080 = vld [vmem:[#allocation2 + $0x170] sm:$0xff]
  %v2081 = vld [vmem:[#allocation2 + $0x178] sm:$0xff]
  %v2082 = vld [vmem:[#allocation2 + $0x180] sm:$0xff]
  %v2083 = vld [vmem:[#allocation2 + $0x188] sm:$0xff]
  %v2084 = vld [vmem:[#allocation2 + $0x190] sm:$0xff]
  %v2085 = vld [vmem:[#allocation2 + $0x198] sm:$0xff]
  %v2086 = vld [vmem:[#allocation2 + $0x1a0] sm:$0xff]
  %v2087 = vld [vmem:[#allocation2 + $0x1a8] sm:$0xff]
  %v2088 = vld [vmem:[#allocation2 + $0x1b0] sm:$0xff]
  %v2089 = vld [vmem:[#allocation2 + $0x1b8] sm:$0xff]
  %v2090 = vld [vmem:[#allocation2 + $0x1c0] sm:$0xff]
  %v2091 = vld [vmem:[#allocation2 + $0x1c8] sm:$0xff]
  %v2092 = vld [vmem:[#allocation2 + $0x1d0] sm:$0xff]
  %v2093 = vld [vmem:[#allocation2 + $0x1d8] sm:$0xff]
  %v2094 = vld [vmem:[#allocation2 + $0x1e0] sm:$0xff]
  %v2095 = vld [vmem:[#allocation2 + $0x1e8] sm:$0xff]
  %v2096 = vld [vmem:[#allocation2 + $0x1f0] sm:$0xff]
  %v2097 = vld [vmem:[#allocation2 + $0x1f8] sm:$0xff]
  %v2098 = vld [vmem:[#allocation2 + $0x200] sm:$0xff]
  %v2099 = vsel %vm1459, 1, 0
  %v2100 = vsel %vm1460, 1, 0
  %v2101 = vsel %vm1461, 1, 0
  %v2102 = vsel %vm1462, 1, 0
  %v2103 = vsel %vm1463, 1, 0
  %v2104 = vsel %vm1464, 1, 0
  %v2105 = vsel %vm1465, 1, 0
  %v2106 = vsel %vm1466, 1, 0
  %v2107 = vsel %vm1467, 1, 0
  %v2108 = vsel %vm1468, 1, 0
  %v2109 = vsel %vm1469, 1, 0
  %v2110 = vsel %vm1470, 1, 0
  %v2111 = vsel %vm1471, 1, 0
  %v2112 = vsel %vm1472, 1, 0
  %v2113 = vsel %vm1473, 1, 0
  %v2114 = vsel %vm1474, 1, 0
  %v2115 = vsel %vm1475, 1, 0
  %v2116 = vsel %vm1476, 1, 0
  %v2117 = vsel %vm1477, 1, 0
  %v2118 = vsel %vm1478, 1, 0
  %v2119 = vsel %vm1479, 1, 0
  %v2120 = vsel %vm1480, 1, 0
  %v2121 = vsel %vm1481, 1, 0
  %v2122 = vsel %vm1482, 1, 0
  %v2123 = vsel %vm1483, 1, 0
  %v2124 = vsel %vm1484, 1, 0
  %v2125 = vsel %vm1485, 1, 0
  %v2126 = vsel %vm1486, 1, 0
  %v2127 = vsel %vm1487, 1, 0
  %v2128 = vsel %vm1488, 1, 0
  %v2129 = vsel %vm1489, 1, 0
  %v2130 = vsel %vm1490, 1, 0
  %v2131 = vsel %vm1491, 1, 0
  %v2132 = vsel %vm1492, 1, 0
  %v2133 = vsel %vm1493, 1, 0
  %v2134 = vsel %vm1494, 1, 0
  %v2135 = vsel %vm1495, 1, 0
  %v2136 = vsel %vm1496, 1, 0
  %v2137 = vsel %vm1497, 1, 0
  %v2138 = vsel %vm1498, 1, 0
  %v2139 = vsel %vm1499, 1, 0
  %v2140 = vsel %vm1500, 1, 0
  %v2141 = vsel %vm1501, 1, 0
  %v2142 = vsel %vm1502, 1, 0
  %v2143 = vsel %vm1503, 1, 0
  %v2144 = vsel %vm1504, 1, 0
  %v2145 = vsel %vm1505, 1, 0
  %v2146 = vsel %vm1506, 1, 0
  %v2147 = vsel %vm1507, 1, 0
  %v2148 = vsel %vm1508, 1, 0
  %v2149 = vsel %vm1509, 1, 0
  %v2150 = vsel %vm1510, 1, 0
  %v2151 = vsel %vm1511, 1, 0
  %v2152 = vsel %vm1512, 1, 0
  %v2153 = vsel %vm1513, 1, 0
  %v2154 = vsel %vm1514, 1, 0
  %v2155 = vsel %vm1515, 1, 0
  %v2156 = vsel %vm1516, 1, 0
  %v2157 = vsel %vm1517, 1, 0
  %v2158 = vsel %vm1518, 1, 0
  %v2159 = vsel %vm1519, 1, 0
  %v2160 = vsel %vm1520, 1, 0
  %v2161 = vsel %vm1521, 1, 0
  %v2162 = vsel %vm1522, 1, 0
  %vm2163 = vcmp.eq.s32.totalorder %v2099, 1
  %vm2164 = vcmp.eq.s32.totalorder %v2100, 1
  %vm2165 = vcmp.eq.s32.totalorder %v2101, 1
  %vm2166 = vcmp.eq.s32.totalorder %v2102, 1
  %vm2167 = vcmp.eq.s32.totalorder %v2103, 1
  %vm2168 = vcmp.eq.s32.totalorder %v2104, 1
  %vm2169 = vcmp.eq.s32.totalorder %v2105, 1
  %vm2170 = vcmp.eq.s32.totalorder %v2106, 1
  %vm2171 = vcmp.eq.s32.totalorder %v2107, 1
  %vm2172 = vcmp.eq.s32.totalorder %v2108, 1
  %vm2173 = vcmp.eq.s32.totalorder %v2109, 1
  %vm2174 = vcmp.eq.s32.totalorder %v2110, 1
  %vm2175 = vcmp.eq.s32.totalorder %v2111, 1
  %vm2176 = vcmp.eq.s32.totalorder %v2112, 1
  %vm2177 = vcmp.eq.s32.totalorder %v2113, 1
  %vm2178 = vcmp.eq.s32.totalorder %v2114, 1
  %vm2179 = vcmp.eq.s32.totalorder %v2115, 1
  %vm2180 = vcmp.eq.s32.totalorder %v2116, 1
  %vm2181 = vcmp.eq.s32.totalorder %v2117, 1
  %vm2182 = vcmp.eq.s32.totalorder %v2118, 1
  %vm2183 = vcmp.eq.s32.totalorder %v2119, 1
  %vm2184 = vcmp.eq.s32.totalorder %v2120, 1
  %vm2185 = vcmp.eq.s32.totalorder %v2121, 1
  %vm2186 = vcmp.eq.s32.totalorder %v2122, 1
  %vm2187 = vcmp.eq.s32.totalorder %v2123, 1
  %vm2188 = vcmp.eq.s32.totalorder %v2124, 1
  %vm2189 = vcmp.eq.s32.totalorder %v2125, 1
  %vm2190 = vcmp.eq.s32.totalorder %v2126, 1
  %vm2191 = vcmp.eq.s32.totalorder %v2127, 1
  %vm2192 = vcmp.eq.s32.totalorder %v2128, 1
  %vm2193 = vcmp.eq.s32.totalorder %v2129, 1
  %vm2194 = vcmp.eq.s32.totalorder %v2130, 1
  %vm2195 = vcmp.eq.s32.totalorder %v2131, 1
  %vm2196 = vcmp.eq.s32.totalorder %v2132, 1
  %vm2197 = vcmp.eq.s32.totalorder %v2133, 1
  %vm2198 = vcmp.eq.s32.totalorder %v2134, 1
  %vm2199 = vcmp.eq.s32.totalorder %v2135, 1
  %vm2200 = vcmp.eq.s32.totalorder %v2136, 1
  %vm2201 = vcmp.eq.s32.totalorder %v2137, 1
  %vm2202 = vcmp.eq.s32.totalorder %v2138, 1
  %vm2203 = vcmp.eq.s32.totalorder %v2139, 1
  %vm2204 = vcmp.eq.s32.totalorder %v2140, 1
  %vm2205 = vcmp.eq.s32.totalorder %v2141, 1
  %vm2206 = vcmp.eq.s32.totalorder %v2142, 1
  %vm2207 = vcmp.eq.s32.totalorder %v2143, 1
  %vm2208 = vcmp.eq.s32.totalorder %v2144, 1
  %vm2209 = vcmp.eq.s32.totalorder %v2145, 1
  %vm2210 = vcmp.eq.s32.totalorder %v2146, 1
  %vm2211 = vcmp.eq.s32.totalorder %v2147, 1
  %vm2212 = vcmp.eq.s32.totalorder %v2148, 1
  %vm2213 = vcmp.eq.s32.totalorder %v2149, 1
  %vm2214 = vcmp.eq.s32.totalorder %v2150, 1
  %vm2215 = vcmp.eq.s32.totalorder %v2151, 1
  %vm2216 = vcmp.eq.s32.totalorder %v2152, 1
  %vm2217 = vcmp.eq.s32.totalorder %v2153, 1
  %vm2218 = vcmp.eq.s32.totalorder %v2154, 1
  %vm2219 = vcmp.eq.s32.totalorder %v2155, 1
  %vm2220 = vcmp.eq.s32.totalorder %v2156, 1
  %vm2221 = vcmp.eq.s32.totalorder %v2157, 1
  %vm2222 = vcmp.eq.s32.totalorder %v2158, 1
  %vm2223 = vcmp.eq.s32.totalorder %v2159, 1
  %vm2224 = vcmp.eq.s32.totalorder %v2160, 1
  %vm2225 = vcmp.eq.s32.totalorder %v2161, 1
  %vm2226 = vcmp.eq.s32.totalorder %v2162, 1
  %v2227 = vsel %vm2163, %v2035, 0.0
  %v2228 = vsel %vm2164, %v2036, 0.0
  %v2229 = vsel %vm2165, %v2037, 0.0
  %v2230 = vsel %vm2166, %v2038, 0.0
  %v2231 = vsel %vm2167, %v2039, 0.0
  %v2232 = vsel %vm2168, %v2040, 0.0
  %v2233 = vsel %vm2169, %v2041, 0.0
  %v2234 = vsel %vm2170, %v2042, 0.0
  %v2235 = vsel %vm2171, %v2043, 0.0
  %v2236 = vsel %vm2172, %v2044, 0.0
  %v2237 = vsel %vm2173, %v2045, 0.0
  %v2238 = vsel %vm2174, %v2046, 0.0
  %v2239 = vsel %vm2175, %v2047, 0.0
  %v2240 = vsel %vm2176, %v2048, 0.0
  %v2241 = vsel %vm2177, %v2049, 0.0
  %v2242 = vsel %vm2178, %v2050, 0.0
  %v2243 = vsel %vm2179, %v2051, 0.0
  %v2244 = vsel %vm2180, %v2052, 0.0
  %v2245 = vsel %vm2181, %v2053, 0.0
  %v2246 = vsel %vm2182, %v2054, 0.0
  %v2247 = vsel %vm2183, %v2055, 0.0
  %v2248 = vsel %vm2184, %v2056, 0.0
  %v2249 = vsel %vm2185, %v2057, 0.0
  %v2250 = vsel %vm2186, %v2058, 0.0
  %v2251 = vsel %vm2187, %v2059, 0.0
  %v2252 = vsel %vm2188, %v2060, 0.0
  %v2253 = vsel %vm2189, %v2061, 0.0
  %v2254 = vsel %vm2190, %v2062, 0.0
  %v2255 = vsel %vm2191, %v2063, 0.0
  %v2256 = vsel %vm2192, %v2064, 0.0
  %v2257 = vsel %vm2193, %v2065, 0.0
  %v2258 = vsel %vm2194, %v2066, 0.0
  %v2259 = vsel %vm2195, %v2067, 0.0
  %v2260 = vsel %vm2196, %v2068, 0.0
  %v2261 = vsel %vm2197, %v2069, 0.0
  %v2262 = vsel %vm2198, %v2070, 0.0
  %v2263 = vsel %vm2199, %v2071, 0.0
  %v2264 = vsel %vm2200, %v2072, 0.0
  %v2265 = vsel %vm2201, %v2073, 0.0
  %v2266 = vsel %vm2202, %v2074, 0.0
  %v2267 = vsel %vm2203, %v2075, 0.0
  %v2268 = vsel %vm2204, %v2076, 0.0
  %v2269 = vsel %vm2205, %v2077, 0.0
  %v2270 = vsel %vm2206, %v2078, 0.0
  %v2271 = vsel %vm2207, %v2079, 0.0
  %v2272 = vsel %vm2208, %v2080, 0.0
  %v2273 = vsel %vm2209, %v2081, 0.0
  %v2274 = vsel %vm2210, %v2082, 0.0
  %v2275 = vsel %vm2211, %v2083, 0.0
  %v2276 = vsel %vm2212, %v2084, 0.0
  %v2277 = vsel %vm2213, %v2085, 0.0
  %v2278 = vsel %vm2214, %v2086, 0.0
  %v2279 = vsel %vm2215, %v2087, 0.0
  %v2280 = vsel %vm2216, %v2088, 0.0
  %v2281 = vsel %vm2217, %v2089, 0.0
  %v2282 = vsel %vm2218, %v2090, 0.0
  %v2283 = vsel %vm2219, %v2091, 0.0
  %v2284 = vsel %vm2220, %v2092, 0.0
  %v2285 = vsel %vm2221, %v2093, 0.0
  %v2286 = vsel %vm2222, %v2094, 0.0
  %v2287 = vsel %vm2223, %v2095, 0.0
  %v2288 = vsel %vm2224, %v2096, 0.0
  %v2289 = vsel %vm2225, %v2097, 0.0
  %v2290 = vsel %vm2226, %v2098, 0.0
  %v2291 = vld [vmem:[#allocation2 + $0x9] sm:$0xff]
  %v2292 = vld [vmem:[#allocation2 + $0x11] sm:$0xff]
  %v2293 = vld [vmem:[#allocation2 + $0x19] sm:$0xff]
  %v2294 = vld [vmem:[#allocation2 + $0x21] sm:$0xff]
  %v2295 = vld [vmem:[#allocation2 + $0x29] sm:$0xff]
  %v2296 = vld [vmem:[#allocation2 + $0x31] sm:$0xff]
  %v2297 = vld [vmem:[#allocation2 + $0x39] sm:$0xff]
  %v2298 = vld [vmem:[#allocation2 + $0x41] sm:$0xff]
  %v2299 = vld [vmem:[#allocation2 + $0x49] sm:$0xff]
  %v2300 = vld [vmem:[#allocation2 + $0x51] sm:$0xff]
  %v2301 = vld [vmem:[#allocation2 + $0x59] sm:$0xff]
  %v2302 = vld [vmem:[#allocation2 + $0x61] sm:$0xff]
  %v2303 = vld [vmem:[#allocation2 + $0x69] sm:$0xff]
  %v2304 = vld [vmem:[#allocation2 + $0x71] sm:$0xff]
  %v2305 = vld [vmem:[#allocation2 + $0x79] sm:$0xff]
  %v2306 = vld [vmem:[#allocation2 + $0x81] sm:$0xff]
  %v2307 = vld [vmem:[#allocation2 + $0x89] sm:$0xff]
  %v2308 = vld [vmem:[#allocation2 + $0x91] sm:$0xff]
  %v2309 = vld [vmem:[#allocation2 + $0x99] sm:$0xff]
  %v2310 = vld [vmem:[#allocation2 + $0xa1] sm:$0xff]
  %v2311 = vld [vmem:[#allocation2 + $0xa9] sm:$0xff]
  %v2312 = vld [vmem:[#allocation2 + $0xb1] sm:$0xff]
  %v2313 = vld [vmem:[#allocation2 + $0xb9] sm:$0xff]
  %v2314 = vld [vmem:[#allocation2 + $0xc1] sm:$0xff]
  %v2315 = vld [vmem:[#allocation2 + $0xc9] sm:$0xff]
  %v2316 = vld [vmem:[#allocation2 + $0xd1] sm:$0xff]
  %v2317 = vld [vmem:[#allocation2 + $0xd9] sm:$0xff]
  %v2318 = vld [vmem:[#allocation2 + $0xe1] sm:$0xff]
  %v2319 = vld [vmem:[#allocation2 + $0xe9] sm:$0xff]
  %v2320 = vld [vmem:[#allocation2 + $0xf1] sm:$0xff]
  %v2321 = vld [vmem:[#allocation2 + $0xf9] sm:$0xff]
  %v2322 = vld [vmem:[#allocation2 + $0x101] sm:$0xff]
  %v2323 = vld [vmem:[#allocation2 + $0x109] sm:$0xff]
  %v2324 = vld [vmem:[#allocation2 + $0x111] sm:$0xff]
  %v2325 = vld [vmem:[#allocation2 + $0x119] sm:$0xff]
  %v2326 = vld [vmem:[#allocation2 + $0x121] sm:$0xff]
  %v2327 = vld [vmem:[#allocation2 + $0x129] sm:$0xff]
  %v2328 = vld [vmem:[#allocation2 + $0x131] sm:$0xff]
  %v2329 = vld [vmem:[#allocation2 + $0x139] sm:$0xff]
  %v2330 = vld [vmem:[#allocation2 + $0x141] sm:$0xff]
  %v2331 = vld [vmem:[#allocation2 + $0x149] sm:$0xff]
  %v2332 = vld [vmem:[#allocation2 + $0x151] sm:$0xff]
  %v2333 = vld [vmem:[#allocation2 + $0x159] sm:$0xff]
  %v2334 = vld [vmem:[#allocation2 + $0x161] sm:$0xff]
  %v2335 = vld [vmem:[#allocation2 + $0x169] sm:$0xff]
  %v2336 = vld [vmem:[#allocation2 + $0x171] sm:$0xff]
  %v2337 = vld [vmem:[#allocation2 + $0x179] sm:$0xff]
  %v2338 = vld [vmem:[#allocation2 + $0x181] sm:$0xff]
  %v2339 = vld [vmem:[#allocation2 + $0x189] sm:$0xff]
  %v2340 = vld [vmem:[#allocation2 + $0x191] sm:$0xff]
  %v2341 = vld [vmem:[#allocation2 + $0x199] sm:$0xff]
  %v2342 = vld [vmem:[#allocation2 + $0x1a1] sm:$0xff]
  %v2343 = vld [vmem:[#allocation2 + $0x1a9] sm:$0xff]
  %v2344 = vld [vmem:[#allocation2 + $0x1b1] sm:$0xff]
  %v2345 = vld [vmem:[#allocation2 + $0x1b9] sm:$0xff]
  %v2346 = vld [vmem:[#allocation2 + $0x1c1] sm:$0xff]
  %v2347 = vld [vmem:[#allocation2 + $0x1c9] sm:$0xff]
  %v2348 = vld [vmem:[#allocation2 + $0x1d1] sm:$0xff]
  %v2349 = vld [vmem:[#allocation2 + $0x1d9] sm:$0xff]
  %v2350 = vld [vmem:[#allocation2 + $0x1e1] sm:$0xff]
  %v2351 = vld [vmem:[#allocation2 + $0x1e9] sm:$0xff]
  %v2352 = vld [vmem:[#allocation2 + $0x1f1] sm:$0xff]
  %v2353 = vld [vmem:[#allocation2 + $0x1f9] sm:$0xff]
  %v2354 = vld [vmem:[#allocation2 + $0x201] sm:$0xff]
  %vm2355 = vmand %vm1459, %vm1651
  %vm2356 = vmand %vm1460, %vm1652
  %vm2357 = vmand %vm1461, %vm1653
  %vm2358 = vmand %vm1462, %vm1654
  %vm2359 = vmand %vm1463, %vm1655
  %vm2360 = vmand %vm1464, %vm1656
  %vm2361 = vmand %vm1465, %vm1657
  %vm2362 = vmand %vm1466, %vm1658
  %vm2363 = vmand %vm1467, %vm1659
  %vm2364 = vmand %vm1468, %vm1660
  %vm2365 = vmand %vm1469, %vm1661
  %vm2366 = vmand %vm1470, %vm1662
  %vm2367 = vmand %vm1471, %vm1663
  %vm2368 = vmand %vm1472, %vm1664
  %vm2369 = vmand %vm1473, %vm1665
  %vm2370 = vmand %vm1474, %vm1666
  %vm2371 = vmand %vm1475, %vm1667
  %vm2372 = vmand %vm1476, %vm1668
  %vm2373 = vmand %vm1477, %vm1669
  %vm2374 = vmand %vm1478, %vm1670
  %vm2375 = vmand %vm1479, %vm1671
  %vm2376 = vmand %vm1480, %vm1672
  %vm2377 = vmand %vm1481, %vm1673
  %vm2378 = vmand %vm1482, %vm1674
  %vm2379 = vmand %vm1483, %vm1675
  %vm2380 = vmand %vm1484, %vm1676
  %vm2381 = vmand %vm1485, %vm1677
  %vm2382 = vmand %vm1486, %vm1678
  %vm2383 = vmand %vm1487, %vm1679
  %vm2384 = vmand %vm1488, %vm1680
  %vm2385 = vmand %vm1489, %vm1681
  %vm2386 = vmand %vm1490, %vm1682
  %vm2387 = vmand %vm1491, %vm1683
  %vm2388 = vmand %vm1492, %vm1684
  %vm2389 = vmand %vm1493, %vm1685
  %vm2390 = vmand %vm1494, %vm1686
  %vm2391 = vmand %vm1495, %vm1687
  %vm2392 = vmand %vm1496, %vm1688
  %vm2393 = vmand %vm1497, %vm1689
  %vm2394 = vmand %vm1498, %vm1690
  %vm2395 = vmand %vm1499, %vm1691
  %vm2396 = vmand %vm1500, %vm1692
  %vm2397 = vmand %vm1501, %vm1693
  %vm2398 = vmand %vm1502, %vm1694
  %vm2399 = vmand %vm1503, %vm1695
  %vm2400 = vmand %vm1504, %vm1696
  %vm2401 = vmand %vm1505, %vm1697
  %vm2402 = vmand %vm1506, %vm1698
  %vm2403 = vmand %vm1507, %vm1699
  %vm2404 = vmand %vm1508, %vm1700
  %vm2405 = vmand %vm1509, %vm1701
  %vm2406 = vmand %vm1510, %vm1702
  %vm2407 = vmand %vm1511, %vm1703
  %vm2408 = vmand %vm1512, %vm1704
  %vm2409 = vmand %vm1513, %vm1705
  %vm2410 = vmand %vm1514, %vm1706
  %vm2411 = vmand %vm1515, %vm1707
  %vm2412 = vmand %vm1516, %vm1708
  %vm2413 = vmand %vm1517, %vm1709
  %vm2414 = vmand %vm1518, %vm1710
  %vm2415 = vmand %vm1519, %vm1711
  %vm2416 = vmand %vm1520, %vm1712
  %vm2417 = vmand %vm1521, %vm1713
  %vm2418 = vmand %vm1522, %vm1714
  %v2419 = vsel %vm2355, 1, 0
  %v2420 = vsel %vm2356, 1, 0
  %v2421 = vsel %vm2357, 1, 0
  %v2422 = vsel %vm2358, 1, 0
  %v2423 = vsel %vm2359, 1, 0
  %v2424 = vsel %vm2360, 1, 0
  %v2425 = vsel %vm2361, 1, 0
  %v2426 = vsel %vm2362, 1, 0
  %v2427 = vsel %vm2363, 1, 0
  %v2428 = vsel %vm2364, 1, 0
  %v2429 = vsel %vm2365, 1, 0
  %v2430 = vsel %vm2366, 1, 0
  %v2431 = vsel %vm2367, 1, 0
  %v2432 = vsel %vm2368, 1, 0
  %v2433 = vsel %vm2369, 1, 0
  %v2434 = vsel %vm2370, 1, 0
  %v2435 = vsel %vm2371, 1, 0
  %v2436 = vsel %vm2372, 1, 0
  %v2437 = vsel %vm2373, 1, 0
  %v2438 = vsel %vm2374, 1, 0
  %v2439 = vsel %vm2375, 1, 0
  %v2440 = vsel %vm2376, 1, 0
  %v2441 = vsel %vm2377, 1, 0
  %v2442 = vsel %vm2378, 1, 0
  %v2443 = vsel %vm2379, 1, 0
  %v2444 = vsel %vm2380, 1, 0
  %v2445 = vsel %vm2381, 1, 0
  %v2446 = vsel %vm2382, 1, 0
  %v2447 = vsel %vm2383, 1, 0
  %v2448 = vsel %vm2384, 1, 0
  %v2449 = vsel %vm2385, 1, 0
  %v2450 = vsel %vm2386, 1, 0
  %v2451 = vsel %vm2387, 1, 0
  %v2452 = vsel %vm2388, 1, 0
  %v2453 = vsel %vm2389, 1, 0
  %v2454 = vsel %vm2390, 1, 0
  %v2455 = vsel %vm2391, 1, 0
  %v2456 = vsel %vm2392, 1, 0
  %v2457 = vsel %vm2393, 1, 0
  %v2458 = vsel %vm2394, 1, 0
  %v2459 = vsel %vm2395, 1, 0
  %v2460 = vsel %vm2396, 1, 0
  %v2461 = vsel %vm2397, 1, 0
  %v2462 = vsel %vm2398, 1, 0
  %v2463 = vsel %vm2399, 1, 0
  %v2464 = vsel %vm2400, 1, 0
  %v2465 = vsel %vm2401, 1, 0
  %v2466 = vsel %vm2402, 1, 0
  %v2467 = vsel %vm2403, 1, 0
  %v2468 = vsel %vm2404, 1, 0
  %v2469 = vsel %vm2405, 1, 0
  %v2470 = vsel %vm2406, 1, 0
  %v2471 = vsel %vm2407, 1, 0
  %v2472 = vsel %vm2408, 1, 0
  %v2473 = vsel %vm2409, 1, 0
  %v2474 = vsel %vm2410, 1, 0
  %v2475 = vsel %vm2411, 1, 0
  %v2476 = vsel %vm2412, 1, 0
  %v2477 = vsel %vm2413, 1, 0
  %v2478 = vsel %vm2414, 1, 0
  %v2479 = vsel %vm2415, 1, 0
  %v2480 = vsel %vm2416, 1, 0
  %v2481 = vsel %vm2417, 1, 0
  %v2482 = vsel %vm2418, 1, 0
  %vm2483 = vcmp.eq.s32.totalorder %v2419, 1
  %vm2484 = vcmp.eq.s32.totalorder %v2420, 1
  %vm2485 = vcmp.eq.s32.totalorder %v2421, 1
  %vm2486 = vcmp.eq.s32.totalorder %v2422, 1
  %vm2487 = vcmp.eq.s32.totalorder %v2423, 1
  %vm2488 = vcmp.eq.s32.totalorder %v2424, 1
  %vm2489 = vcmp.eq.s32.totalorder %v2425, 1
  %vm2490 = vcmp.eq.s32.totalorder %v2426, 1
  %vm2491 = vcmp.eq.s32.totalorder %v2427, 1
  %vm2492 = vcmp.eq.s32.totalorder %v2428, 1
  %vm2493 = vcmp.eq.s32.totalorder %v2429, 1
  %vm2494 = vcmp.eq.s32.totalorder %v2430, 1
  %vm2495 = vcmp.eq.s32.totalorder %v2431, 1
  %vm2496 = vcmp.eq.s32.totalorder %v2432, 1
  %vm2497 = vcmp.eq.s32.totalorder %v2433, 1
  %vm2498 = vcmp.eq.s32.totalorder %v2434, 1
  %vm2499 = vcmp.eq.s32.totalorder %v2435, 1
  %vm2500 = vcmp.eq.s32.totalorder %v2436, 1
  %vm2501 = vcmp.eq.s32.totalorder %v2437, 1
  %vm2502 = vcmp.eq.s32.totalorder %v2438, 1
  %vm2503 = vcmp.eq.s32.totalorder %v2439, 1
  %vm2504 = vcmp.eq.s32.totalorder %v2440, 1
  %vm2505 = vcmp.eq.s32.totalorder %v2441, 1
  %vm2506 = vcmp.eq.s32.totalorder %v2442, 1
  %vm2507 = vcmp.eq.s32.totalorder %v2443, 1
  %vm2508 = vcmp.eq.s32.totalorder %v2444, 1
  %vm2509 = vcmp.eq.s32.totalorder %v2445, 1
  %vm2510 = vcmp.eq.s32.totalorder %v2446, 1
  %vm2511 = vcmp.eq.s32.totalorder %v2447, 1
  %vm2512 = vcmp.eq.s32.totalorder %v2448, 1
  %vm2513 = vcmp.eq.s32.totalorder %v2449, 1
  %vm2514 = vcmp.eq.s32.totalorder %v2450, 1
  %vm2515 = vcmp.eq.s32.totalorder %v2451, 1
  %vm2516 = vcmp.eq.s32.totalorder %v2452, 1
  %vm2517 = vcmp.eq.s32.totalorder %v2453, 1
  %vm2518 = vcmp.eq.s32.totalorder %v2454, 1
  %vm2519 = vcmp.eq.s32.totalorder %v2455, 1
  %vm2520 = vcmp.eq.s32.totalorder %v2456, 1
  %vm2521 = vcmp.eq.s32.totalorder %v2457, 1
  %vm2522 = vcmp.eq.s32.totalorder %v2458, 1
  %vm2523 = vcmp.eq.s32.totalorder %v2459, 1
  %vm2524 = vcmp.eq.s32.totalorder %v2460, 1
  %vm2525 = vcmp.eq.s32.totalorder %v2461, 1
  %vm2526 = vcmp.eq.s32.totalorder %v2462, 1
  %vm2527 = vcmp.eq.s32.totalorder %v2463, 1
  %vm2528 = vcmp.eq.s32.totalorder %v2464, 1
  %vm2529 = vcmp.eq.s32.totalorder %v2465, 1
  %vm2530 = vcmp.eq.s32.totalorder %v2466, 1
  %vm2531 = vcmp.eq.s32.totalorder %v2467, 1
  %vm2532 = vcmp.eq.s32.totalorder %v2468, 1
  %vm2533 = vcmp.eq.s32.totalorder %v2469, 1
  %vm2534 = vcmp.eq.s32.totalorder %v2470, 1
  %vm2535 = vcmp.eq.s32.totalorder %v2471, 1
  %vm2536 = vcmp.eq.s32.totalorder %v2472, 1
  %vm2537 = vcmp.eq.s32.totalorder %v2473, 1
  %vm2538 = vcmp.eq.s32.totalorder %v2474, 1
  %vm2539 = vcmp.eq.s32.totalorder %v2475, 1
  %vm2540 = vcmp.eq.s32.totalorder %v2476, 1
  %vm2541 = vcmp.eq.s32.totalorder %v2477, 1
  %vm2542 = vcmp.eq.s32.totalorder %v2478, 1
  %vm2543 = vcmp.eq.s32.totalorder %v2479, 1
  %vm2544 = vcmp.eq.s32.totalorder %v2480, 1
  %vm2545 = vcmp.eq.s32.totalorder %v2481, 1
  %vm2546 = vcmp.eq.s32.totalorder %v2482, 1
  %v2547 = vsel %vm2483, %v2291, 0.0
  %v2548 = vsel %vm2484, %v2292, 0.0
  %v2549 = vsel %vm2485, %v2293, 0.0
  %v2550 = vsel %vm2486, %v2294, 0.0
  %v2551 = vsel %vm2487, %v2295, 0.0
  %v2552 = vsel %vm2488, %v2296, 0.0
  %v2553 = vsel %vm2489, %v2297, 0.0
  %v2554 = vsel %vm2490, %v2298, 0.0
  %v2555 = vsel %vm2491, %v2299, 0.0
  %v2556 = vsel %vm2492, %v2300, 0.0
  %v2557 = vsel %vm2493, %v2301, 0.0
  %v2558 = vsel %vm2494, %v2302, 0.0
  %v2559 = vsel %vm2495, %v2303, 0.0
  %v2560 = vsel %vm2496, %v2304, 0.0
  %v2561 = vsel %vm2497, %v2305, 0.0
  %v2562 = vsel %vm2498, %v2306, 0.0
  %v2563 = vsel %vm2499, %v2307, 0.0
  %v2564 = vsel %vm2500, %v2308, 0.0
  %v2565 = vsel %vm2501, %v2309, 0.0
  %v2566 = vsel %vm2502, %v2310, 0.0
  %v2567 = vsel %vm2503, %v2311, 0.0
  %v2568 = vsel %vm2504, %v2312, 0.0
  %v2569 = vsel %vm2505, %v2313, 0.0
  %v2570 = vsel %vm2506, %v2314, 0.0
  %v2571 = vsel %vm2507, %v2315, 0.0
  %v2572 = vsel %vm2508, %v2316, 0.0
  %v2573 = vsel %vm2509, %v2317, 0.0
  %v2574 = vsel %vm2510, %v2318, 0.0
  %v2575 = vsel %vm2511, %v2319, 0.0
  %v2576 = vsel %vm2512, %v2320, 0.0
  %v2577 = vsel %vm2513, %v2321, 0.0
  %v2578 = vsel %vm2514, %v2322, 0.0
  %v2579 = vsel %vm2515, %v2323, 0.0
  %v2580 = vsel %vm2516, %v2324, 0.0
  %v2581 = vsel %vm2517, %v2325, 0.0
  %v2582 = vsel %vm2518, %v2326, 0.0
  %v2583 = vsel %vm2519, %v2327, 0.0
  %v2584 = vsel %vm2520, %v2328, 0.0
  %v2585 = vsel %vm2521, %v2329, 0.0
  %v2586 = vsel %vm2522, %v2330, 0.0
  %v2587 = vsel %vm2523, %v2331, 0.0
  %v2588 = vsel %vm2524, %v2332, 0.0
  %v2589 = vsel %vm2525, %v2333, 0.0
  %v2590 = vsel %vm2526, %v2334, 0.0
  %v2591 = vsel %vm2527, %v2335, 0.0
  %v2592 = vsel %vm2528, %v2336, 0.0
  %v2593 = vsel %vm2529, %v2337, 0.0
  %v2594 = vsel %vm2530, %v2338, 0.0
  %v2595 = vsel %vm2531, %v2339, 0.0
  %v2596 = vsel %vm2532, %v2340, 0.0
  %v2597 = vsel %vm2533, %v2341, 0.0
  %v2598 = vsel %vm2534, %v2342, 0.0
  %v2599 = vsel %vm2535, %v2343, 0.0
  %v2600 = vsel %vm2536, %v2344, 0.0
  %v2601 = vsel %vm2537, %v2345, 0.0
  %v2602 = vsel %vm2538, %v2346, 0.0
  %v2603 = vsel %vm2539, %v2347, 0.0
  %v2604 = vsel %vm2540, %v2348, 0.0
  %v2605 = vsel %vm2541, %v2349, 0.0
  %v2606 = vsel %vm2542, %v2350, 0.0
  %v2607 = vsel %vm2543, %v2351, 0.0
  %v2608 = vsel %vm2544, %v2352, 0.0
  %v2609 = vsel %vm2545, %v2353, 0.0
  %v2610 = vsel %vm2546, %v2354, 0.0
  %v2611 = vld [vmem:[#allocation2 + $0x207] sm:$0xff]
  %v2612 = vld [vmem:[#allocation2 + $0x20f] sm:$0xff]
  %v2613 = vsel %vm1587, 1, 0
  %v2614 = vsel %vm1588, 1, 0
  %v2615 = vsel %vm1589, 1, 0
  %v2616 = vsel %vm1590, 1, 0
  %v2617 = vsel %vm1591, 1, 0
  %v2618 = vsel %vm1592, 1, 0
  %v2619 = vsel %vm1593, 1, 0
  %v2620 = vsel %vm1594, 1, 0
  %v2621 = vsel %vm1595, 1, 0
  %v2622 = vsel %vm1596, 1, 0
  %v2623 = vsel %vm1597, 1, 0
  %v2624 = vsel %vm1598, 1, 0
  %v2625 = vsel %vm1599, 1, 0
  %v2626 = vsel %vm1600, 1, 0
  %v2627 = vsel %vm1601, 1, 0
  %v2628 = vsel %vm1602, 1, 0
  %v2629 = vsel %vm1603, 1, 0
  %v2630 = vsel %vm1604, 1, 0
  %v2631 = vsel %vm1605, 1, 0
  %v2632 = vsel %vm1606, 1, 0
  %v2633 = vsel %vm1607, 1, 0
  %v2634 = vsel %vm1608, 1, 0
  %v2635 = vsel %vm1609, 1, 0
  %v2636 = vsel %vm1610, 1, 0
  %v2637 = vsel %vm1611, 1, 0
  %v2638 = vsel %vm1612, 1, 0
  %v2639 = vsel %vm1613, 1, 0
  %v2640 = vsel %vm1614, 1, 0
  %v2641 = vsel %vm1615, 1, 0
  %v2642 = vsel %vm1616, 1, 0
  %v2643 = vsel %vm1617, 1, 0
  %v2644 = vsel %vm1618, 1, 0
  %v2645 = vsel %vm1619, 1, 0
  %v2646 = vsel %vm1620, 1, 0
  %v2647 = vsel %vm1621, 1, 0
  %v2648 = vsel %vm1622, 1, 0
  %v2649 = vsel %vm1623, 1, 0
  %v2650 = vsel %vm1624, 1, 0
  %v2651 = vsel %vm1625, 1, 0
  %v2652 = vsel %vm1626, 1, 0
  %v2653 = vsel %vm1627, 1, 0
  %v2654 = vsel %vm1628, 1, 0
  %v2655 = vsel %vm1629, 1, 0
  %v2656 = vsel %vm1630, 1, 0
  %v2657 = vsel %vm1631, 1, 0
  %v2658 = vsel %vm1632, 1, 0
  %v2659 = vsel %vm1633, 1, 0
  %v2660 = vsel %vm1634, 1, 0
  %v2661 = vsel %vm1635, 1, 0
  %v2662 = vsel %vm1636, 1, 0
  %v2663 = vsel %vm1637, 1, 0
  %v2664 = vsel %vm1638, 1, 0
  %v2665 = vsel %vm1639, 1, 0
  %v2666 = vsel %vm1640, 1, 0
  %v2667 = vsel %vm1641, 1, 0
  %v2668 = vsel %vm1642, 1, 0
  %v2669 = vsel %vm1643, 1, 0
  %v2670 = vsel %vm1644, 1, 0
  %v2671 = vsel %vm1645, 1, 0
  %v2672 = vsel %vm1646, 1, 0
  %v2673 = vsel %vm1647, 1, 0
  %v2674 = vsel %vm1648, 1, 0
  %v2675 = vsel %vm1649, 1, 0
  %v2676 = vsel %vm1650, 1, 0
  %vm2677 = vcmp.eq.s32.totalorder %v2613, 1
  %vm2678 = vcmp.eq.s32.totalorder %v2614, 1
  %vm2679 = vcmp.eq.s32.totalorder %v2615, 1
  %vm2680 = vcmp.eq.s32.totalorder %v2616, 1
  %vm2681 = vcmp.eq.s32.totalorder %v2617, 1
  %vm2682 = vcmp.eq.s32.totalorder %v2618, 1
  %vm2683 = vcmp.eq.s32.totalorder %v2619, 1
  %vm2684 = vcmp.eq.s32.totalorder %v2620, 1
  %vm2685 = vcmp.eq.s32.totalorder %v2621, 1
  %vm2686 = vcmp.eq.s32.totalorder %v2622, 1
  %vm2687 = vcmp.eq.s32.totalorder %v2623, 1
  %vm2688 = vcmp.eq.s32.totalorder %v2624, 1
  %vm2689 = vcmp.eq.s32.totalorder %v2625, 1
  %vm2690 = vcmp.eq.s32.totalorder %v2626, 1
  %vm2691 = vcmp.eq.s32.totalorder %v2627, 1
  %vm2692 = vcmp.eq.s32.totalorder %v2628, 1
  %vm2693 = vcmp.eq.s32.totalorder %v2629, 1
  %vm2694 = vcmp.eq.s32.totalorder %v2630, 1
  %vm2695 = vcmp.eq.s32.totalorder %v2631, 1
  %vm2696 = vcmp.eq.s32.totalorder %v2632, 1
  %vm2697 = vcmp.eq.s32.totalorder %v2633, 1
  %vm2698 = vcmp.eq.s32.totalorder %v2634, 1
  %vm2699 = vcmp.eq.s32.totalorder %v2635, 1
  %vm2700 = vcmp.eq.s32.totalorder %v2636, 1
  %vm2701 = vcmp.eq.s32.totalorder %v2637, 1
  %vm2702 = vcmp.eq.s32.totalorder %v2638, 1
  %vm2703 = vcmp.eq.s32.totalorder %v2639, 1
  %vm2704 = vcmp.eq.s32.totalorder %v2640, 1
  %vm2705 = vcmp.eq.s32.totalorder %v2641, 1
  %vm2706 = vcmp.eq.s32.totalorder %v2642, 1
  %vm2707 = vcmp.eq.s32.totalorder %v2643, 1
  %vm2708 = vcmp.eq.s32.totalorder %v2644, 1
  %vm2709 = vcmp.eq.s32.totalorder %v2645, 1
  %vm2710 = vcmp.eq.s32.totalorder %v2646, 1
  %vm2711 = vcmp.eq.s32.totalorder %v2647, 1
  %vm2712 = vcmp.eq.s32.totalorder %v2648, 1
  %vm2713 = vcmp.eq.s32.totalorder %v2649, 1
  %vm2714 = vcmp.eq.s32.totalorder %v2650, 1
  %vm2715 = vcmp.eq.s32.totalorder %v2651, 1
  %vm2716 = vcmp.eq.s32.totalorder %v2652, 1
  %vm2717 = vcmp.eq.s32.totalorder %v2653, 1
  %vm2718 = vcmp.eq.s32.totalorder %v2654, 1
  %vm2719 = vcmp.eq.s32.totalorder %v2655, 1
  %vm2720 = vcmp.eq.s32.totalorder %v2656, 1
  %vm2721 = vcmp.eq.s32.totalorder %v2657, 1
  %vm2722 = vcmp.eq.s32.totalorder %v2658, 1
  %vm2723 = vcmp.eq.s32.totalorder %v2659, 1
  %vm2724 = vcmp.eq.s32.totalorder %v2660, 1
  %vm2725 = vcmp.eq.s32.totalorder %v2661, 1
  %vm2726 = vcmp.eq.s32.totalorder %v2662, 1
  %vm2727 = vcmp.eq.s32.totalorder %v2663, 1
  %vm2728 = vcmp.eq.s32.totalorder %v2664, 1
  %vm2729 = vcmp.eq.s32.totalorder %v2665, 1
  %vm2730 = vcmp.eq.s32.totalorder %v2666, 1
  %vm2731 = vcmp.eq.s32.totalorder %v2667, 1
  %vm2732 = vcmp.eq.s32.totalorder %v2668, 1
  %vm2733 = vcmp.eq.s32.totalorder %v2669, 1
  %vm2734 = vcmp.eq.s32.totalorder %v2670, 1
  %vm2735 = vcmp.eq.s32.totalorder %v2671, 1
  %vm2736 = vcmp.eq.s32.totalorder %v2672, 1
  %vm2737 = vcmp.eq.s32.totalorder %v2673, 1
  %vm2738 = vcmp.eq.s32.totalorder %v2674, 1
  %vm2739 = vcmp.eq.s32.totalorder %v2675, 1
  %vm2740 = vcmp.eq.s32.totalorder %v2676, 1
  %v2741 = vsel %vm2677, %v1717, 0.0
  %v2742 = vsel %vm2678, %v1718, 0.0
  %v2743 = vsel %vm2679, %v1719, 0.0
  %v2744 = vsel %vm2680, %v1720, 0.0
  %v2745 = vsel %vm2681, %v1721, 0.0
  %v2746 = vsel %vm2682, %v1722, 0.0
  %v2747 = vsel %vm2683, %v1723, 0.0
  %v2748 = vsel %vm2684, %v1724, 0.0
  %v2749 = vsel %vm2685, %v1725, 0.0
  %v2750 = vsel %vm2686, %v1726, 0.0
  %v2751 = vsel %vm2687, %v1727, 0.0
  %v2752 = vsel %vm2688, %v1728, 0.0
  %v2753 = vsel %vm2689, %v1729, 0.0
  %v2754 = vsel %vm2690, %v1730, 0.0
  %v2755 = vsel %vm2691, %v1731, 0.0
  %v2756 = vsel %vm2692, %v1732, 0.0
  %v2757 = vsel %vm2693, %v1733, 0.0
  %v2758 = vsel %vm2694, %v1734, 0.0
  %v2759 = vsel %vm2695, %v1735, 0.0
  %v2760 = vsel %vm2696, %v1736, 0.0
  %v2761 = vsel %vm2697, %v1737, 0.0
  %v2762 = vsel %vm2698, %v1738, 0.0
  %v2763 = vsel %vm2699, %v1739, 0.0
  %v2764 = vsel %vm2700, %v1740, 0.0
  %v2765 = vsel %vm2701, %v1741, 0.0
  %v2766 = vsel %vm2702, %v1742, 0.0
  %v2767 = vsel %vm2703, %v1743, 0.0
  %v2768 = vsel %vm2704, %v1744, 0.0
  %v2769 = vsel %vm2705, %v1745, 0.0
  %v2770 = vsel %vm2706, %v1746, 0.0
  %v2771 = vsel %vm2707, %v1747, 0.0
  %v2772 = vsel %vm2708, %v1748, 0.0
  %v2773 = vsel %vm2709, %v1749, 0.0
  %v2774 = vsel %vm2710, %v1750, 0.0
  %v2775 = vsel %vm2711, %v1751, 0.0
  %v2776 = vsel %vm2712, %v1752, 0.0
  %v2777 = vsel %vm2713, %v1753, 0.0
  %v2778 = vsel %vm2714, %v1754, 0.0
  %v2779 = vsel %vm2715, %v1755, 0.0
  %v2780 = vsel %vm2716, %v1756, 0.0
  %v2781 = vsel %vm2717, %v1757, 0.0
  %v2782 = vsel %vm2718, %v1758, 0.0
  %v2783 = vsel %vm2719, %v1759, 0.0
  %v2784 = vsel %vm2720, %v1760, 0.0
  %v2785 = vsel %vm2721, %v1761, 0.0
  %v2786 = vsel %vm2722, %v1762, 0.0
  %v2787 = vsel %vm2723, %v1763, 0.0
  %v2788 = vsel %vm2724, %v1764, 0.0
  %v2789 = vsel %vm2725, %v1765, 0.0
  %v2790 = vsel %vm2726, %v1766, 0.0
  %v2791 = vsel %vm2727, %v1767, 0.0
  %v2792 = vsel %vm2728, %v1768, 0.0
  %v2793 = vsel %vm2729, %v1769, 0.0
  %v2794 = vsel %vm2730, %v1770, 0.0
  %v2795 = vsel %vm2731, %v1771, 0.0
  %v2796 = vsel %vm2732, %v1772, 0.0
  %v2797 = vsel %vm2733, %v1773, 0.0
  %v2798 = vsel %vm2734, %v1774, 0.0
  %v2799 = vsel %vm2735, %v1775, 0.0
  %v2800 = vsel %vm2736, %v1776, 0.0
  %v2801 = vsel %vm2737, %v1777, 0.0
  %v2802 = vsel %vm2738, %v1778, 0.0
  %v2803 = vsel %vm2739, %v2611, 0.0
  %v2804 = vsel %vm2740, %v2612, 0.0
  %v2805 = vld [vmem:[#allocation2 + $0x208] sm:$0xff]
  %v2806 = vld [vmem:[#allocation2 + $0x210] sm:$0xff]
  %v2807 = vld [vmem:[#allocation2 + $0x209] sm:$0xff]
  %v2808 = vld [vmem:[#allocation2 + $0x211] sm:$0xff]
  %v2809 = vsel %vm1651, 1, 0
  %v2810 = vsel %vm1652, 1, 0
  %v2811 = vsel %vm1653, 1, 0
  %v2812 = vsel %vm1654, 1, 0
  %v2813 = vsel %vm1655, 1, 0
  %v2814 = vsel %vm1656, 1, 0
  %v2815 = vsel %vm1657, 1, 0
  %v2816 = vsel %vm1658, 1, 0
  %v2817 = vsel %vm1659, 1, 0
  %v2818 = vsel %vm1660, 1, 0
  %v2819 = vsel %vm1661, 1, 0
  %v2820 = vsel %vm1662, 1, 0
  %v2821 = vsel %vm1663, 1, 0
  %v2822 = vsel %vm1664, 1, 0
  %v2823 = vsel %vm1665, 1, 0
  %v2824 = vsel %vm1666, 1, 0
  %v2825 = vsel %vm1667, 1, 0
  %v2826 = vsel %vm1668, 1, 0
  %v2827 = vsel %vm1669, 1, 0
  %v2828 = vsel %vm1670, 1, 0
  %v2829 = vsel %vm1671, 1, 0
  %v2830 = vsel %vm1672, 1, 0
  %v2831 = vsel %vm1673, 1, 0
  %v2832 = vsel %vm1674, 1, 0
  %v2833 = vsel %vm1675, 1, 0
  %v2834 = vsel %vm1676, 1, 0
  %v2835 = vsel %vm1677, 1, 0
  %v2836 = vsel %vm1678, 1, 0
  %v2837 = vsel %vm1679, 1, 0
  %v2838 = vsel %vm1680, 1, 0
  %v2839 = vsel %vm1681, 1, 0
  %v2840 = vsel %vm1682, 1, 0
  %v2841 = vsel %vm1683, 1, 0
  %v2842 = vsel %vm1684, 1, 0
  %v2843 = vsel %vm1685, 1, 0
  %v2844 = vsel %vm1686, 1, 0
  %v2845 = vsel %vm1687, 1, 0
  %v2846 = vsel %vm1688, 1, 0
  %v2847 = vsel %vm1689, 1, 0
  %v2848 = vsel %vm1690, 1, 0
  %v2849 = vsel %vm1691, 1, 0
  %v2850 = vsel %vm1692, 1, 0
  %v2851 = vsel %vm1693, 1, 0
  %v2852 = vsel %vm1694, 1, 0
  %v2853 = vsel %vm1695, 1, 0
  %v2854 = vsel %vm1696, 1, 0
  %v2855 = vsel %vm1697, 1, 0
  %v2856 = vsel %vm1698, 1, 0
  %v2857 = vsel %vm1699, 1, 0
  %v2858 = vsel %vm1700, 1, 0
  %v2859 = vsel %vm1701, 1, 0
  %v2860 = vsel %vm1702, 1, 0
  %v2861 = vsel %vm1703, 1, 0
  %v2862 = vsel %vm1704, 1, 0
  %v2863 = vsel %vm1705, 1, 0
  %v2864 = vsel %vm1706, 1, 0
  %v2865 = vsel %vm1707, 1, 0
  %v2866 = vsel %vm1708, 1, 0
  %v2867 = vsel %vm1709, 1, 0
  %v2868 = vsel %vm1710, 1, 0
  %v2869 = vsel %vm1711, 1, 0
  %v2870 = vsel %vm1712, 1, 0
  %v2871 = vsel %vm1713, 1, 0
  %v2872 = vsel %vm1714, 1, 0
  %vm2873 = vcmp.eq.s32.totalorder %v2809, 1
  %vm2874 = vcmp.eq.s32.totalorder %v2810, 1
  %vm2875 = vcmp.eq.s32.totalorder %v2811, 1
  %vm2876 = vcmp.eq.s32.totalorder %v2812, 1
  %vm2877 = vcmp.eq.s32.totalorder %v2813, 1
  %vm2878 = vcmp.eq.s32.totalorder %v2814, 1
  %vm2879 = vcmp.eq.s32.totalorder %v2815, 1
  %vm2880 = vcmp.eq.s32.totalorder %v2816, 1
  %vm2881 = vcmp.eq.s32.totalorder %v2817, 1
  %vm2882 = vcmp.eq.s32.totalorder %v2818, 1
  %vm2883 = vcmp.eq.s32.totalorder %v2819, 1
  %vm2884 = vcmp.eq.s32.totalorder %v2820, 1
  %vm2885 = vcmp.eq.s32.totalorder %v2821, 1
  %vm2886 = vcmp.eq.s32.totalorder %v2822, 1
  %vm2887 = vcmp.eq.s32.totalorder %v2823, 1
  %vm2888 = vcmp.eq.s32.totalorder %v2824, 1
  %vm2889 = vcmp.eq.s32.totalorder %v2825, 1
  %vm2890 = vcmp.eq.s32.totalorder %v2826, 1
  %vm2891 = vcmp.eq.s32.totalorder %v2827, 1
  %vm2892 = vcmp.eq.s32.totalorder %v2828, 1
  %vm2893 = vcmp.eq.s32.totalorder %v2829, 1
  %vm2894 = vcmp.eq.s32.totalorder %v2830, 1
  %vm2895 = vcmp.eq.s32.totalorder %v2831, 1
  %vm2896 = vcmp.eq.s32.totalorder %v2832, 1
  %vm2897 = vcmp.eq.s32.totalorder %v2833, 1
  %vm2898 = vcmp.eq.s32.totalorder %v2834, 1
  %vm2899 = vcmp.eq.s32.totalorder %v2835, 1
  %vm2900 = vcmp.eq.s32.totalorder %v2836, 1
  %vm2901 = vcmp.eq.s32.totalorder %v2837, 1
  %vm2902 = vcmp.eq.s32.totalorder %v2838, 1
  %vm2903 = vcmp.eq.s32.totalorder %v2839, 1
  %vm2904 = vcmp.eq.s32.totalorder %v2840, 1
  %vm2905 = vcmp.eq.s32.totalorder %v2841, 1
  %vm2906 = vcmp.eq.s32.totalorder %v2842, 1
  %vm2907 = vcmp.eq.s32.totalorder %v2843, 1
  %vm2908 = vcmp.eq.s32.totalorder %v2844, 1
  %vm2909 = vcmp.eq.s32.totalorder %v2845, 1
  %vm2910 = vcmp.eq.s32.totalorder %v2846, 1
  %vm2911 = vcmp.eq.s32.totalorder %v2847, 1
  %vm2912 = vcmp.eq.s32.totalorder %v2848, 1
  %vm2913 = vcmp.eq.s32.totalorder %v2849, 1
  %vm2914 = vcmp.eq.s32.totalorder %v2850, 1
  %vm2915 = vcmp.eq.s32.totalorder %v2851, 1
  %vm2916 = vcmp.eq.s32.totalorder %v2852, 1
  %vm2917 = vcmp.eq.s32.totalorder %v2853, 1
  %vm2918 = vcmp.eq.s32.totalorder %v2854, 1
  %vm2919 = vcmp.eq.s32.totalorder %v2855, 1
  %vm2920 = vcmp.eq.s32.totalorder %v2856, 1
  %vm2921 = vcmp.eq.s32.totalorder %v2857, 1
  %vm2922 = vcmp.eq.s32.totalorder %v2858, 1
  %vm2923 = vcmp.eq.s32.totalorder %v2859, 1
  %vm2924 = vcmp.eq.s32.totalorder %v2860, 1
  %vm2925 = vcmp.eq.s32.totalorder %v2861, 1
  %vm2926 = vcmp.eq.s32.totalorder %v2862, 1
  %vm2927 = vcmp.eq.s32.totalorder %v2863, 1
  %vm2928 = vcmp.eq.s32.totalorder %v2864, 1
  %vm2929 = vcmp.eq.s32.totalorder %v2865, 1
  %vm2930 = vcmp.eq.s32.totalorder %v2866, 1
  %vm2931 = vcmp.eq.s32.totalorder %v2867, 1
  %vm2932 = vcmp.eq.s32.totalorder %v2868, 1
  %vm2933 = vcmp.eq.s32.totalorder %v2869, 1
  %vm2934 = vcmp.eq.s32.totalorder %v2870, 1
  %vm2935 = vcmp.eq.s32.totalorder %v2871, 1
  %vm2936 = vcmp.eq.s32.totalorder %v2872, 1
  %v2937 = vsel %vm2873, %v2293, 0.0
  %v2938 = vsel %vm2874, %v2294, 0.0
  %v2939 = vsel %vm2875, %v2295, 0.0
  %v2940 = vsel %vm2876, %v2296, 0.0
  %v2941 = vsel %vm2877, %v2297, 0.0
  %v2942 = vsel %vm2878, %v2298, 0.0
  %v2943 = vsel %vm2879, %v2299, 0.0
  %v2944 = vsel %vm2880, %v2300, 0.0
  %v2945 = vsel %vm2881, %v2301, 0.0
  %v2946 = vsel %vm2882, %v2302, 0.0
  %v2947 = vsel %vm2883, %v2303, 0.0
  %v2948 = vsel %vm2884, %v2304, 0.0
  %v2949 = vsel %vm2885, %v2305, 0.0
  %v2950 = vsel %vm2886, %v2306, 0.0
  %v2951 = vsel %vm2887, %v2307, 0.0
  %v2952 = vsel %vm2888, %v2308, 0.0
  %v2953 = vsel %vm2889, %v2309, 0.0
  %v2954 = vsel %vm2890, %v2310, 0.0
  %v2955 = vsel %vm2891, %v2311, 0.0
  %v2956 = vsel %vm2892, %v2312, 0.0
  %v2957 = vsel %vm2893, %v2313, 0.0
  %v2958 = vsel %vm2894, %v2314, 0.0
  %v2959 = vsel %vm2895, %v2315, 0.0
  %v2960 = vsel %vm2896, %v2316, 0.0
  %v2961 = vsel %vm2897, %v2317, 0.0
  %v2962 = vsel %vm2898, %v2318, 0.0
  %v2963 = vsel %vm2899, %v2319, 0.0
  %v2964 = vsel %vm2900, %v2320, 0.0
  %v2965 = vsel %vm2901, %v2321, 0.0
  %v2966 = vsel %vm2902, %v2322, 0.0
  %v2967 = vsel %vm2903, %v2323, 0.0
  %v2968 = vsel %vm2904, %v2324, 0.0
  %v2969 = vsel %vm2905, %v2325, 0.0
  %v2970 = vsel %vm2906, %v2326, 0.0
  %v2971 = vsel %vm2907, %v2327, 0.0
  %v2972 = vsel %vm2908, %v2328, 0.0
  %v2973 = vsel %vm2909, %v2329, 0.0
  %v2974 = vsel %vm2910, %v2330, 0.0
  %v2975 = vsel %vm2911, %v2331, 0.0
  %v2976 = vsel %vm2912, %v2332, 0.0
  %v2977 = vsel %vm2913, %v2333, 0.0
  %v2978 = vsel %vm2914, %v2334, 0.0
  %v2979 = vsel %vm2915, %v2335, 0.0
  %v2980 = vsel %vm2916, %v2336, 0.0
  %v2981 = vsel %vm2917, %v2337, 0.0
  %v2982 = vsel %vm2918, %v2338, 0.0
  %v2983 = vsel %vm2919, %v2339, 0.0
  %v2984 = vsel %vm2920, %v2340, 0.0
  %v2985 = vsel %vm2921, %v2341, 0.0
  %v2986 = vsel %vm2922, %v2342, 0.0
  %v2987 = vsel %vm2923, %v2343, 0.0
  %v2988 = vsel %vm2924, %v2344, 0.0
  %v2989 = vsel %vm2925, %v2345, 0.0
  %v2990 = vsel %vm2926, %v2346, 0.0
  %v2991 = vsel %vm2927, %v2347, 0.0
  %v2992 = vsel %vm2928, %v2348, 0.0
  %v2993 = vsel %vm2929, %v2349, 0.0
  %v2994 = vsel %vm2930, %v2350, 0.0
  %v2995 = vsel %vm2931, %v2351, 0.0
  %v2996 = vsel %vm2932, %v2352, 0.0
  %v2997 = vsel %vm2933, %v2353, 0.0
  %v2998 = vsel %vm2934, %v2354, 0.0
  %v2999 = vsel %vm2935, %v2807, 0.0
  %v3000 = vsel %vm2936, %v2808, 0.0
  %v3001 = vld [vmem:[#allocation2 + $0x217] sm:$0xff]
  %v3002 = vld [vmem:[#allocation2 + $0x21f] sm:$0xff]
  %vm3003 = vmand %vm1523, %vm1587
  %vm3004 = vmand %vm1524, %vm1588
  %vm3005 = vmand %vm1525, %vm1589
  %vm3006 = vmand %vm1526, %vm1590
  %vm3007 = vmand %vm1527, %vm1591
  %vm3008 = vmand %vm1528, %vm1592
  %vm3009 = vmand %vm1529, %vm1593
  %vm3010 = vmand %vm1530, %vm1594
  %vm3011 = vmand %vm1531, %vm1595
  %vm3012 = vmand %vm1532, %vm1596
  %vm3013 = vmand %vm1533, %vm1597
  %vm3014 = vmand %vm1534, %vm1598
  %vm3015 = vmand %vm1535, %vm1599
  %vm3016 = vmand %vm1536, %vm1600
  %vm3017 = vmand %vm1537, %vm1601
  %vm3018 = vmand %vm1538, %vm1602
  %vm3019 = vmand %vm1539, %vm1603
  %vm3020 = vmand %vm1540, %vm1604
  %vm3021 = vmand %vm1541, %vm1605
  %vm3022 = vmand %vm1542, %vm1606
  %vm3023 = vmand %vm1543, %vm1607
  %vm3024 = vmand %vm1544, %vm1608
  %vm3025 = vmand %vm1545, %vm1609
  %vm3026 = vmand %vm1546, %vm1610
  %vm3027 = vmand %vm1547, %vm1611
  %vm3028 = vmand %vm1548, %vm1612
  %vm3029 = vmand %vm1549, %vm1613
  %vm3030 = vmand %vm1550, %vm1614
  %vm3031 = vmand %vm1551, %vm1615
  %vm3032 = vmand %vm1552, %vm1616
  %vm3033 = vmand %vm1553, %vm1617
  %vm3034 = vmand %vm1554, %vm1618
  %vm3035 = vmand %vm1555, %vm1619
  %vm3036 = vmand %vm1556, %vm1620
  %vm3037 = vmand %vm1557, %vm1621
  %vm3038 = vmand %vm1558, %vm1622
  %vm3039 = vmand %vm1559, %vm1623
  %vm3040 = vmand %vm1560, %vm1624
  %vm3041 = vmand %vm1561, %vm1625
  %vm3042 = vmand %vm1562, %vm1626
  %vm3043 = vmand %vm1563, %vm1627
  %vm3044 = vmand %vm1564, %vm1628
  %vm3045 = vmand %vm1565, %vm1629
  %vm3046 = vmand %vm1566, %vm1630
  %vm3047 = vmand %vm1567, %vm1631
  %vm3048 = vmand %vm1568, %vm1632
  %vm3049 = vmand %vm1569, %vm1633
  %vm3050 = vmand %vm1570, %vm1634
  %vm3051 = vmand %vm1571, %vm1635
  %vm3052 = vmand %vm1572, %vm1636
  %vm3053 = vmand %vm1573, %vm1637
  %vm3054 = vmand %vm1574, %vm1638
  %vm3055 = vmand %vm1575, %vm1639
  %vm3056 = vmand %vm1576, %vm1640
  %vm3057 = vmand %vm1577, %vm1641
  %vm3058 = vmand %vm1578, %vm1642
  %vm3059 = vmand %vm1579, %vm1643
  %vm3060 = vmand %vm1580, %vm1644
  %vm3061 = vmand %vm1581, %vm1645
  %vm3062 = vmand %vm1582, %vm1646
  %vm3063 = vmand %vm1583, %vm1647
  %vm3064 = vmand %vm1584, %vm1648
  %vm3065 = vmand %vm1585, %vm1649
  %vm3066 = vmand %vm1586, %vm1650
  %v3067 = vsel %vm3003, 1, 0
  %v3068 = vsel %vm3004, 1, 0
  %v3069 = vsel %vm3005, 1, 0
  %v3070 = vsel %vm3006, 1, 0
  %v3071 = vsel %vm3007, 1, 0
  %v3072 = vsel %vm3008, 1, 0
  %v3073 = vsel %vm3009, 1, 0
  %v3074 = vsel %vm3010, 1, 0
  %v3075 = vsel %vm3011, 1, 0
  %v3076 = vsel %vm3012, 1, 0
  %v3077 = vsel %vm3013, 1, 0
  %v3078 = vsel %vm3014, 1, 0
  %v3079 = vsel %vm3015, 1, 0
  %v3080 = vsel %vm3016, 1, 0
  %v3081 = vsel %vm3017, 1, 0
  %v3082 = vsel %vm3018, 1, 0
  %v3083 = vsel %vm3019, 1, 0
  %v3084 = vsel %vm3020, 1, 0
  %v3085 = vsel %vm3021, 1, 0
  %v3086 = vsel %vm3022, 1, 0
  %v3087 = vsel %vm3023, 1, 0
  %v3088 = vsel %vm3024, 1, 0
  %v3089 = vsel %vm3025, 1, 0
  %v3090 = vsel %vm3026, 1, 0
  %v3091 = vsel %vm3027, 1, 0
  %v3092 = vsel %vm3028, 1, 0
  %v3093 = vsel %vm3029, 1, 0
  %v3094 = vsel %vm3030, 1, 0
  %v3095 = vsel %vm3031, 1, 0
  %v3096 = vsel %vm3032, 1, 0
  %v3097 = vsel %vm3033, 1, 0
  %v3098 = vsel %vm3034, 1, 0
  %v3099 = vsel %vm3035, 1, 0
  %v3100 = vsel %vm3036, 1, 0
  %v3101 = vsel %vm3037, 1, 0
  %v3102 = vsel %vm3038, 1, 0
  %v3103 = vsel %vm3039, 1, 0
  %v3104 = vsel %vm3040, 1, 0
  %v3105 = vsel %vm3041, 1, 0
  %v3106 = vsel %vm3042, 1, 0
  %v3107 = vsel %vm3043, 1, 0
  %v3108 = vsel %vm3044, 1, 0
  %v3109 = vsel %vm3045, 1, 0
  %v3110 = vsel %vm3046, 1, 0
  %v3111 = vsel %vm3047, 1, 0
  %v3112 = vsel %vm3048, 1, 0
  %v3113 = vsel %vm3049, 1, 0
  %v3114 = vsel %vm3050, 1, 0
  %v3115 = vsel %vm3051, 1, 0
  %v3116 = vsel %vm3052, 1, 0
  %v3117 = vsel %vm3053, 1, 0
  %v3118 = vsel %vm3054, 1, 0
  %v3119 = vsel %vm3055, 1, 0
  %v3120 = vsel %vm3056, 1, 0
  %v3121 = vsel %vm3057, 1, 0
  %v3122 = vsel %vm3058, 1, 0
  %v3123 = vsel %vm3059, 1, 0
  %v3124 = vsel %vm3060, 1, 0
  %v3125 = vsel %vm3061, 1, 0
  %v3126 = vsel %vm3062, 1, 0
  %v3127 = vsel %vm3063, 1, 0
  %v3128 = vsel %vm3064, 1, 0
  %v3129 = vsel %vm3065, 1, 0
  %v3130 = vsel %vm3066, 1, 0
  %vm3131 = vcmp.eq.s32.totalorder %v3067, 1
  %vm3132 = vcmp.eq.s32.totalorder %v3068, 1
  %vm3133 = vcmp.eq.s32.totalorder %v3069, 1
  %vm3134 = vcmp.eq.s32.totalorder %v3070, 1
  %vm3135 = vcmp.eq.s32.totalorder %v3071, 1
  %vm3136 = vcmp.eq.s32.totalorder %v3072, 1
  %vm3137 = vcmp.eq.s32.totalorder %v3073, 1
  %vm3138 = vcmp.eq.s32.totalorder %v3074, 1
  %vm3139 = vcmp.eq.s32.totalorder %v3075, 1
  %vm3140 = vcmp.eq.s32.totalorder %v3076, 1
  %vm3141 = vcmp.eq.s32.totalorder %v3077, 1
  %vm3142 = vcmp.eq.s32.totalorder %v3078, 1
  %vm3143 = vcmp.eq.s32.totalorder %v3079, 1
  %vm3144 = vcmp.eq.s32.totalorder %v3080, 1
  %vm3145 = vcmp.eq.s32.totalorder %v3081, 1
  %vm3146 = vcmp.eq.s32.totalorder %v3082, 1
  %vm3147 = vcmp.eq.s32.totalorder %v3083, 1
  %vm3148 = vcmp.eq.s32.totalorder %v3084, 1
  %vm3149 = vcmp.eq.s32.totalorder %v3085, 1
  %vm3150 = vcmp.eq.s32.totalorder %v3086, 1
  %vm3151 = vcmp.eq.s32.totalorder %v3087, 1
  %vm3152 = vcmp.eq.s32.totalorder %v3088, 1
  %vm3153 = vcmp.eq.s32.totalorder %v3089, 1
  %vm3154 = vcmp.eq.s32.totalorder %v3090, 1
  %vm3155 = vcmp.eq.s32.totalorder %v3091, 1
  %vm3156 = vcmp.eq.s32.totalorder %v3092, 1
  %vm3157 = vcmp.eq.s32.totalorder %v3093, 1
  %vm3158 = vcmp.eq.s32.totalorder %v3094, 1
  %vm3159 = vcmp.eq.s32.totalorder %v3095, 1
  %vm3160 = vcmp.eq.s32.totalorder %v3096, 1
  %vm3161 = vcmp.eq.s32.totalorder %v3097, 1
  %vm3162 = vcmp.eq.s32.totalorder %v3098, 1
  %vm3163 = vcmp.eq.s32.totalorder %v3099, 1
  %vm3164 = vcmp.eq.s32.totalorder %v3100, 1
  %vm3165 = vcmp.eq.s32.totalorder %v3101, 1
  %vm3166 = vcmp.eq.s32.totalorder %v3102, 1
  %vm3167 = vcmp.eq.s32.totalorder %v3103, 1
  %vm3168 = vcmp.eq.s32.totalorder %v3104, 1
  %vm3169 = vcmp.eq.s32.totalorder %v3105, 1
  %vm3170 = vcmp.eq.s32.totalorder %v3106, 1
  %vm3171 = vcmp.eq.s32.totalorder %v3107, 1
  %vm3172 = vcmp.eq.s32.totalorder %v3108, 1
  %vm3173 = vcmp.eq.s32.totalorder %v3109, 1
  %vm3174 = vcmp.eq.s32.totalorder %v3110, 1
  %vm3175 = vcmp.eq.s32.totalorder %v3111, 1
  %vm3176 = vcmp.eq.s32.totalorder %v3112, 1
  %vm3177 = vcmp.eq.s32.totalorder %v3113, 1
  %vm3178 = vcmp.eq.s32.totalorder %v3114, 1
  %vm3179 = vcmp.eq.s32.totalorder %v3115, 1
  %vm3180 = vcmp.eq.s32.totalorder %v3116, 1
  %vm3181 = vcmp.eq.s32.totalorder %v3117, 1
  %vm3182 = vcmp.eq.s32.totalorder %v3118, 1
  %vm3183 = vcmp.eq.s32.totalorder %v3119, 1
  %vm3184 = vcmp.eq.s32.totalorder %v3120, 1
  %vm3185 = vcmp.eq.s32.totalorder %v3121, 1
  %vm3186 = vcmp.eq.s32.totalorder %v3122, 1
  %vm3187 = vcmp.eq.s32.totalorder %v3123, 1
  %vm3188 = vcmp.eq.s32.totalorder %v3124, 1
  %vm3189 = vcmp.eq.s32.totalorder %v3125, 1
  %vm3190 = vcmp.eq.s32.totalorder %v3126, 1
  %vm3191 = vcmp.eq.s32.totalorder %v3127, 1
  %vm3192 = vcmp.eq.s32.totalorder %v3128, 1
  %vm3193 = vcmp.eq.s32.totalorder %v3129, 1
  %vm3194 = vcmp.eq.s32.totalorder %v3130, 1
  %v3195 = vsel %vm3131, %v1719, 0.0
  %v3196 = vsel %vm3132, %v1720, 0.0
  %v3197 = vsel %vm3133, %v1721, 0.0
  %v3198 = vsel %vm3134, %v1722, 0.0
  %v3199 = vsel %vm3135, %v1723, 0.0
  %v3200 = vsel %vm3136, %v1724, 0.0
  %v3201 = vsel %vm3137, %v1725, 0.0
  %v3202 = vsel %vm3138, %v1726, 0.0
  %v3203 = vsel %vm3139, %v1727, 0.0
  %v3204 = vsel %vm3140, %v1728, 0.0
  %v3205 = vsel %vm3141, %v1729, 0.0
  %v3206 = vsel %vm3142, %v1730, 0.0
  %v3207 = vsel %vm3143, %v1731, 0.0
  %v3208 = vsel %vm3144, %v1732, 0.0
  %v3209 = vsel %vm3145, %v1733, 0.0
  %v3210 = vsel %vm3146, %v1734, 0.0
  %v3211 = vsel %vm3147, %v1735, 0.0
  %v3212 = vsel %vm3148, %v1736, 0.0
  %v3213 = vsel %vm3149, %v1737, 0.0
  %v3214 = vsel %vm3150, %v1738, 0.0
  %v3215 = vsel %vm3151, %v1739, 0.0
  %v3216 = vsel %vm3152, %v1740, 0.0
  %v3217 = vsel %vm3153, %v1741, 0.0
  %v3218 = vsel %vm3154, %v1742, 0.0
  %v3219 = vsel %vm3155, %v1743, 0.0
  %v3220 = vsel %vm3156, %v1744, 0.0
  %v3221 = vsel %vm3157, %v1745, 0.0
  %v3222 = vsel %vm3158, %v1746, 0.0
  %v3223 = vsel %vm3159, %v1747, 0.0
  %v3224 = vsel %vm3160, %v1748, 0.0
  %v3225 = vsel %vm3161, %v1749, 0.0
  %v3226 = vsel %vm3162, %v1750, 0.0
  %v3227 = vsel %vm3163, %v1751, 0.0
  %v3228 = vsel %vm3164, %v1752, 0.0
  %v3229 = vsel %vm3165, %v1753, 0.0
  %v3230 = vsel %vm3166, %v1754, 0.0
  %v3231 = vsel %vm3167, %v1755, 0.0
  %v3232 = vsel %vm3168, %v1756, 0.0
  %v3233 = vsel %vm3169, %v1757, 0.0
  %v3234 = vsel %vm3170, %v1758, 0.0
  %v3235 = vsel %vm3171, %v1759, 0.0
  %v3236 = vsel %vm3172, %v1760, 0.0
  %v3237 = vsel %vm3173, %v1761, 0.0
  %v3238 = vsel %vm3174, %v1762, 0.0
  %v3239 = vsel %vm3175, %v1763, 0.0
  %v3240 = vsel %vm3176, %v1764, 0.0
  %v3241 = vsel %vm3177, %v1765, 0.0
  %v3242 = vsel %vm3178, %v1766, 0.0
  %v3243 = vsel %vm3179, %v1767, 0.0
  %v3244 = vsel %vm3180, %v1768, 0.0
  %v3245 = vsel %vm3181, %v1769, 0.0
  %v3246 = vsel %vm3182, %v1770, 0.0
  %v3247 = vsel %vm3183, %v1771, 0.0
  %v3248 = vsel %vm3184, %v1772, 0.0
  %v3249 = vsel %vm3185, %v1773, 0.0
  %v3250 = vsel %vm3186, %v1774, 0.0
  %v3251 = vsel %vm3187, %v1775, 0.0
  %v3252 = vsel %vm3188, %v1776, 0.0
  %v3253 = vsel %vm3189, %v1777, 0.0
  %v3254 = vsel %vm3190, %v1778, 0.0
  %v3255 = vsel %vm3191, %v2611, 0.0
  %v3256 = vsel %vm3192, %v2612, 0.0
  %v3257 = vsel %vm3193, %v3001, 0.0
  %v3258 = vsel %vm3194, %v3002, 0.0
  %v3259 = vld [vmem:[#allocation2 + $0x218] sm:$0xff]
  %v3260 = vld [vmem:[#allocation2 + $0x220] sm:$0xff]
  %v3261 = vsel %vm1523, 1, 0
  %v3262 = vsel %vm1524, 1, 0
  %v3263 = vsel %vm1525, 1, 0
  %v3264 = vsel %vm1526, 1, 0
  %v3265 = vsel %vm1527, 1, 0
  %v3266 = vsel %vm1528, 1, 0
  %v3267 = vsel %vm1529, 1, 0
  %v3268 = vsel %vm1530, 1, 0
  %v3269 = vsel %vm1531, 1, 0
  %v3270 = vsel %vm1532, 1, 0
  %v3271 = vsel %vm1533, 1, 0
  %v3272 = vsel %vm1534, 1, 0
  %v3273 = vsel %vm1535, 1, 0
  %v3274 = vsel %vm1536, 1, 0
  %v3275 = vsel %vm1537, 1, 0
  %v3276 = vsel %vm1538, 1, 0
  %v3277 = vsel %vm1539, 1, 0
  %v3278 = vsel %vm1540, 1, 0
  %v3279 = vsel %vm1541, 1, 0
  %v3280 = vsel %vm1542, 1, 0
  %v3281 = vsel %vm1543, 1, 0
  %v3282 = vsel %vm1544, 1, 0
  %v3283 = vsel %vm1545, 1, 0
  %v3284 = vsel %vm1546, 1, 0
  %v3285 = vsel %vm1547, 1, 0
  %v3286 = vsel %vm1548, 1, 0
  %v3287 = vsel %vm1549, 1, 0
  %v3288 = vsel %vm1550, 1, 0
  %v3289 = vsel %vm1551, 1, 0
  %v3290 = vsel %vm1552, 1, 0
  %v3291 = vsel %vm1553, 1, 0
  %v3292 = vsel %vm1554, 1, 0
  %v3293 = vsel %vm1555, 1, 0
  %v3294 = vsel %vm1556, 1, 0
  %v3295 = vsel %vm1557, 1, 0
  %v3296 = vsel %vm1558, 1, 0
  %v3297 = vsel %vm1559, 1, 0
  %v3298 = vsel %vm1560, 1, 0
  %v3299 = vsel %vm1561, 1, 0
  %v3300 = vsel %vm1562, 1, 0
  %v3301 = vsel %vm1563, 1, 0
  %v3302 = vsel %vm1564, 1, 0
  %v3303 = vsel %vm1565, 1, 0
  %v3304 = vsel %vm1566, 1, 0
  %v3305 = vsel %vm1567, 1, 0
  %v3306 = vsel %vm1568, 1, 0
  %v3307 = vsel %vm1569, 1, 0
  %v3308 = vsel %vm1570, 1, 0
  %v3309 = vsel %vm1571, 1, 0
  %v3310 = vsel %vm1572, 1, 0
  %v3311 = vsel %vm1573, 1, 0
  %v3312 = vsel %vm1574, 1, 0
  %v3313 = vsel %vm1575, 1, 0
  %v3314 = vsel %vm1576, 1, 0
  %v3315 = vsel %vm1577, 1, 0
  %v3316 = vsel %vm1578, 1, 0
  %v3317 = vsel %vm1579, 1, 0
  %v3318 = vsel %vm1580, 1, 0
  %v3319 = vsel %vm1581, 1, 0
  %v3320 = vsel %vm1582, 1, 0
  %v3321 = vsel %vm1583, 1, 0
  %v3322 = vsel %vm1584, 1, 0
  %v3323 = vsel %vm1585, 1, 0
  %v3324 = vsel %vm1586, 1, 0
  %vm3325 = vcmp.eq.s32.totalorder %v3261, 1
  %vm3326 = vcmp.eq.s32.totalorder %v3262, 1
  %vm3327 = vcmp.eq.s32.totalorder %v3263, 1
  %vm3328 = vcmp.eq.s32.totalorder %v3264, 1
  %vm3329 = vcmp.eq.s32.totalorder %v3265, 1
  %vm3330 = vcmp.eq.s32.totalorder %v3266, 1
  %vm3331 = vcmp.eq.s32.totalorder %v3267, 1
  %vm3332 = vcmp.eq.s32.totalorder %v3268, 1
  %vm3333 = vcmp.eq.s32.totalorder %v3269, 1
  %vm3334 = vcmp.eq.s32.totalorder %v3270, 1
  %vm3335 = vcmp.eq.s32.totalorder %v3271, 1
  %vm3336 = vcmp.eq.s32.totalorder %v3272, 1
  %vm3337 = vcmp.eq.s32.totalorder %v3273, 1
  %vm3338 = vcmp.eq.s32.totalorder %v3274, 1
  %vm3339 = vcmp.eq.s32.totalorder %v3275, 1
  %vm3340 = vcmp.eq.s32.totalorder %v3276, 1
  %vm3341 = vcmp.eq.s32.totalorder %v3277, 1
  %vm3342 = vcmp.eq.s32.totalorder %v3278, 1
  %vm3343 = vcmp.eq.s32.totalorder %v3279, 1
  %vm3344 = vcmp.eq.s32.totalorder %v3280, 1
  %vm3345 = vcmp.eq.s32.totalorder %v3281, 1
  %vm3346 = vcmp.eq.s32.totalorder %v3282, 1
  %vm3347 = vcmp.eq.s32.totalorder %v3283, 1
  %vm3348 = vcmp.eq.s32.totalorder %v3284, 1
  %vm3349 = vcmp.eq.s32.totalorder %v3285, 1
  %vm3350 = vcmp.eq.s32.totalorder %v3286, 1
  %vm3351 = vcmp.eq.s32.totalorder %v3287, 1
  %vm3352 = vcmp.eq.s32.totalorder %v3288, 1
  %vm3353 = vcmp.eq.s32.totalorder %v3289, 1
  %vm3354 = vcmp.eq.s32.totalorder %v3290, 1
  %vm3355 = vcmp.eq.s32.totalorder %v3291, 1
  %vm3356 = vcmp.eq.s32.totalorder %v3292, 1
  %vm3357 = vcmp.eq.s32.totalorder %v3293, 1
  %vm3358 = vcmp.eq.s32.totalorder %v3294, 1
  %vm3359 = vcmp.eq.s32.totalorder %v3295, 1
  %vm3360 = vcmp.eq.s32.totalorder %v3296, 1
  %vm3361 = vcmp.eq.s32.totalorder %v3297, 1
  %vm3362 = vcmp.eq.s32.totalorder %v3298, 1
  %vm3363 = vcmp.eq.s32.totalorder %v3299, 1
  %vm3364 = vcmp.eq.s32.totalorder %v3300, 1
  %vm3365 = vcmp.eq.s32.totalorder %v3301, 1
  %vm3366 = vcmp.eq.s32.totalorder %v3302, 1
  %vm3367 = vcmp.eq.s32.totalorder %v3303, 1
  %vm3368 = vcmp.eq.s32.totalorder %v3304, 1
  %vm3369 = vcmp.eq.s32.totalorder %v3305, 1
  %vm3370 = vcmp.eq.s32.totalorder %v3306, 1
  %vm3371 = vcmp.eq.s32.totalorder %v3307, 1
  %vm3372 = vcmp.eq.s32.totalorder %v3308, 1
  %vm3373 = vcmp.eq.s32.totalorder %v3309, 1
  %vm3374 = vcmp.eq.s32.totalorder %v3310, 1
  %vm3375 = vcmp.eq.s32.totalorder %v3311, 1
  %vm3376 = vcmp.eq.s32.totalorder %v3312, 1
  %vm3377 = vcmp.eq.s32.totalorder %v3313, 1
  %vm3378 = vcmp.eq.s32.totalorder %v3314, 1
  %vm3379 = vcmp.eq.s32.totalorder %v3315, 1
  %vm3380 = vcmp.eq.s32.totalorder %v3316, 1
  %vm3381 = vcmp.eq.s32.totalorder %v3317, 1
  %vm3382 = vcmp.eq.s32.totalorder %v3318, 1
  %vm3383 = vcmp.eq.s32.totalorder %v3319, 1
  %vm3384 = vcmp.eq.s32.totalorder %v3320, 1
  %vm3385 = vcmp.eq.s32.totalorder %v3321, 1
  %vm3386 = vcmp.eq.s32.totalorder %v3322, 1
  %vm3387 = vcmp.eq.s32.totalorder %v3323, 1
  %vm3388 = vcmp.eq.s32.totalorder %v3324, 1
  %v3389 = vsel %vm3325, %v2039, 0.0
  %v3390 = vsel %vm3326, %v2040, 0.0
  %v3391 = vsel %vm3327, %v2041, 0.0
  %v3392 = vsel %vm3328, %v2042, 0.0
  %v3393 = vsel %vm3329, %v2043, 0.0
  %v3394 = vsel %vm3330, %v2044, 0.0
  %v3395 = vsel %vm3331, %v2045, 0.0
  %v3396 = vsel %vm3332, %v2046, 0.0
  %v3397 = vsel %vm3333, %v2047, 0.0
  %v3398 = vsel %vm3334, %v2048, 0.0
  %v3399 = vsel %vm3335, %v2049, 0.0
  %v3400 = vsel %vm3336, %v2050, 0.0
  %v3401 = vsel %vm3337, %v2051, 0.0
  %v3402 = vsel %vm3338, %v2052, 0.0
  %v3403 = vsel %vm3339, %v2053, 0.0
  %v3404 = vsel %vm3340, %v2054, 0.0
  %v3405 = vsel %vm3341, %v2055, 0.0
  %v3406 = vsel %vm3342, %v2056, 0.0
  %v3407 = vsel %vm3343, %v2057, 0.0
  %v3408 = vsel %vm3344, %v2058, 0.0
  %v3409 = vsel %vm3345, %v2059, 0.0
  %v3410 = vsel %vm3346, %v2060, 0.0
  %v3411 = vsel %vm3347, %v2061, 0.0
  %v3412 = vsel %vm3348, %v2062, 0.0
  %v3413 = vsel %vm3349, %v2063, 0.0
  %v3414 = vsel %vm3350, %v2064, 0.0
  %v3415 = vsel %vm3351, %v2065, 0.0
  %v3416 = vsel %vm3352, %v2066, 0.0
  %v3417 = vsel %vm3353, %v2067, 0.0
  %v3418 = vsel %vm3354, %v2068, 0.0
  %v3419 = vsel %vm3355, %v2069, 0.0
  %v3420 = vsel %vm3356, %v2070, 0.0
  %v3421 = vsel %vm3357, %v2071, 0.0
  %v3422 = vsel %vm3358, %v2072, 0.0
  %v3423 = vsel %vm3359, %v2073, 0.0
  %v3424 = vsel %vm3360, %v2074, 0.0
  %v3425 = vsel %vm3361, %v2075, 0.0
  %v3426 = vsel %vm3362, %v2076, 0.0
  %v3427 = vsel %vm3363, %v2077, 0.0
  %v3428 = vsel %vm3364, %v2078, 0.0
  %v3429 = vsel %vm3365, %v2079, 0.0
  %v3430 = vsel %vm3366, %v2080, 0.0
  %v3431 = vsel %vm3367, %v2081, 0.0
  %v3432 = vsel %vm3368, %v2082, 0.0
  %v3433 = vsel %vm3369, %v2083, 0.0
  %v3434 = vsel %vm3370, %v2084, 0.0
  %v3435 = vsel %vm3371, %v2085, 0.0
  %v3436 = vsel %vm3372, %v2086, 0.0
  %v3437 = vsel %vm3373, %v2087, 0.0
  %v3438 = vsel %vm3374, %v2088, 0.0
  %v3439 = vsel %vm3375, %v2089, 0.0
  %v3440 = vsel %vm3376, %v2090, 0.0
  %v3441 = vsel %vm3377, %v2091, 0.0
  %v3442 = vsel %vm3378, %v2092, 0.0
  %v3443 = vsel %vm3379, %v2093, 0.0
  %v3444 = vsel %vm3380, %v2094, 0.0
  %v3445 = vsel %vm3381, %v2095, 0.0
  %v3446 = vsel %vm3382, %v2096, 0.0
  %v3447 = vsel %vm3383, %v2097, 0.0
  %v3448 = vsel %vm3384, %v2098, 0.0
  %v3449 = vsel %vm3385, %v2805, 0.0
  %v3450 = vsel %vm3386, %v2806, 0.0
  %v3451 = vsel %vm3387, %v3259, 0.0
  %v3452 = vsel %vm3388, %v3260, 0.0
  %v3453 = vld [vmem:[#allocation2 + $0x219] sm:$0xff]
  %v3454 = vld [vmem:[#allocation2 + $0x221] sm:$0xff]
  %vm3455 = vmand %vm1523, %vm1651
  %vm3456 = vmand %vm1524, %vm1652
  %vm3457 = vmand %vm1525, %vm1653
  %vm3458 = vmand %vm1526, %vm1654
  %vm3459 = vmand %vm1527, %vm1655
  %vm3460 = vmand %vm1528, %vm1656
  %vm3461 = vmand %vm1529, %vm1657
  %vm3462 = vmand %vm1530, %vm1658
  %vm3463 = vmand %vm1531, %vm1659
  %vm3464 = vmand %vm1532, %vm1660
  %vm3465 = vmand %vm1533, %vm1661
  %vm3466 = vmand %vm1534, %vm1662
  %vm3467 = vmand %vm1535, %vm1663
  %vm3468 = vmand %vm1536, %vm1664
  %vm3469 = vmand %vm1537, %vm1665
  %vm3470 = vmand %vm1538, %vm1666
  %vm3471 = vmand %vm1539, %vm1667
  %vm3472 = vmand %vm1540, %vm1668
  %vm3473 = vmand %vm1541, %vm1669
  %vm3474 = vmand %vm1542, %vm1670
  %vm3475 = vmand %vm1543, %vm1671
  %vm3476 = vmand %vm1544, %vm1672
  %vm3477 = vmand %vm1545, %vm1673
  %vm3478 = vmand %vm1546, %vm1674
  %vm3479 = vmand %vm1547, %vm1675
  %vm3480 = vmand %vm1548, %vm1676
  %vm3481 = vmand %vm1549, %vm1677
  %vm3482 = vmand %vm1550, %vm1678
  %vm3483 = vmand %vm1551, %vm1679
  %vm3484 = vmand %vm1552, %vm1680
  %vm3485 = vmand %vm1553, %vm1681
  %vm3486 = vmand %vm1554, %vm1682
  %vm3487 = vmand %vm1555, %vm1683
  %vm3488 = vmand %vm1556, %vm1684
  %vm3489 = vmand %vm1557, %vm1685
  %vm3490 = vmand %vm1558, %vm1686
  %vm3491 = vmand %vm1559, %vm1687
  %vm3492 = vmand %vm1560, %vm1688
  %vm3493 = vmand %vm1561, %vm1689
  %vm3494 = vmand %vm1562, %vm1690
  %vm3495 = vmand %vm1563, %vm1691
  %vm3496 = vmand %vm1564, %vm1692
  %vm3497 = vmand %vm1565, %vm1693
  %vm3498 = vmand %vm1566, %vm1694
  %vm3499 = vmand %vm1567, %vm1695
  %vm3500 = vmand %vm1568, %vm1696
  %vm3501 = vmand %vm1569, %vm1697
  %vm3502 = vmand %vm1570, %vm1698
  %vm3503 = vmand %vm1571, %vm1699
  %vm3504 = vmand %vm1572, %vm1700
  %vm3505 = vmand %vm1573, %vm1701
  %vm3506 = vmand %vm1574, %vm1702
  %vm3507 = vmand %vm1575, %vm1703
  %vm3508 = vmand %vm1576, %vm1704
  %vm3509 = vmand %vm1577, %vm1705
  %vm3510 = vmand %vm1578, %vm1706
  %vm3511 = vmand %vm1579, %vm1707
  %vm3512 = vmand %vm1580, %vm1708
  %vm3513 = vmand %vm1581, %vm1709
  %vm3514 = vmand %vm1582, %vm1710
  %vm3515 = vmand %vm1583, %vm1711
  %vm3516 = vmand %vm1584, %vm1712
  %vm3517 = vmand %vm1585, %vm1713
  %vm3518 = vmand %vm1586, %vm1714
  %v3519 = vsel %vm3455, 1, 0
  %v3520 = vsel %vm3456, 1, 0
  %v3521 = vsel %vm3457, 1, 0
  %v3522 = vsel %vm3458, 1, 0
  %v3523 = vsel %vm3459, 1, 0
  %v3524 = vsel %vm3460, 1, 0
  %v3525 = vsel %vm3461, 1, 0
  %v3526 = vsel %vm3462, 1, 0
  %v3527 = vsel %vm3463, 1, 0
  %v3528 = vsel %vm3464, 1, 0
  %v3529 = vsel %vm3465, 1, 0
  %v3530 = vsel %vm3466, 1, 0
  %v3531 = vsel %vm3467, 1, 0
  %v3532 = vsel %vm3468, 1, 0
  %v3533 = vsel %vm3469, 1, 0
  %v3534 = vsel %vm3470, 1, 0
  %v3535 = vsel %vm3471, 1, 0
  %v3536 = vsel %vm3472, 1, 0
  %v3537 = vsel %vm3473, 1, 0
  %v3538 = vsel %vm3474, 1, 0
  %v3539 = vsel %vm3475, 1, 0
  %v3540 = vsel %vm3476, 1, 0
  %v3541 = vsel %vm3477, 1, 0
  %v3542 = vsel %vm3478, 1, 0
  %v3543 = vsel %vm3479, 1, 0
  %v3544 = vsel %vm3480, 1, 0
  %v3545 = vsel %vm3481, 1, 0
  %v3546 = vsel %vm3482, 1, 0
  %v3547 = vsel %vm3483, 1, 0
  %v3548 = vsel %vm3484, 1, 0
  %v3549 = vsel %vm3485, 1, 0
  %v3550 = vsel %vm3486, 1, 0
  %v3551 = vsel %vm3487, 1, 0
  %v3552 = vsel %vm3488, 1, 0
  %v3553 = vsel %vm3489, 1, 0
  %v3554 = vsel %vm3490, 1, 0
  %v3555 = vsel %vm3491, 1, 0
  %v3556 = vsel %vm3492, 1, 0
  %v3557 = vsel %vm3493, 1, 0
  %v3558 = vsel %vm3494, 1, 0
  %v3559 = vsel %vm3495, 1, 0
  %v3560 = vsel %vm3496, 1, 0
  %v3561 = vsel %vm3497, 1, 0
  %v3562 = vsel %vm3498, 1, 0
  %v3563 = vsel %vm3499, 1, 0
  %v3564 = vsel %vm3500, 1, 0
  %v3565 = vsel %vm3501, 1, 0
  %v3566 = vsel %vm3502, 1, 0
  %v3567 = vsel %vm3503, 1, 0
  %v3568 = vsel %vm3504, 1, 0
  %v3569 = vsel %vm3505, 1, 0
  %v3570 = vsel %vm3506, 1, 0
  %v3571 = vsel %vm3507, 1, 0
  %v3572 = vsel %vm3508, 1, 0
  %v3573 = vsel %vm3509, 1, 0
  %v3574 = vsel %vm3510, 1, 0
  %v3575 = vsel %vm3511, 1, 0
  %v3576 = vsel %vm3512, 1, 0
  %v3577 = vsel %vm3513, 1, 0
  %v3578 = vsel %vm3514, 1, 0
  %v3579 = vsel %vm3515, 1, 0
  %v3580 = vsel %vm3516, 1, 0
  %v3581 = vsel %vm3517, 1, 0
  %v3582 = vsel %vm3518, 1, 0
  %vm3583 = vcmp.eq.s32.totalorder %v3519, 1
  %vm3584 = vcmp.eq.s32.totalorder %v3520, 1
  %vm3585 = vcmp.eq.s32.totalorder %v3521, 1
  %vm3586 = vcmp.eq.s32.totalorder %v3522, 1
  %vm3587 = vcmp.eq.s32.totalorder %v3523, 1
  %vm3588 = vcmp.eq.s32.totalorder %v3524, 1
  %vm3589 = vcmp.eq.s32.totalorder %v3525, 1
  %vm3590 = vcmp.eq.s32.totalorder %v3526, 1
  %vm3591 = vcmp.eq.s32.totalorder %v3527, 1
  %vm3592 = vcmp.eq.s32.totalorder %v3528, 1
  %vm3593 = vcmp.eq.s32.totalorder %v3529, 1
  %vm3594 = vcmp.eq.s32.totalorder %v3530, 1
  %vm3595 = vcmp.eq.s32.totalorder %v3531, 1
  %vm3596 = vcmp.eq.s32.totalorder %v3532, 1
  %vm3597 = vcmp.eq.s32.totalorder %v3533, 1
  %vm3598 = vcmp.eq.s32.totalorder %v3534, 1
  %vm3599 = vcmp.eq.s32.totalorder %v3535, 1
  %vm3600 = vcmp.eq.s32.totalorder %v3536, 1
  %vm3601 = vcmp.eq.s32.totalorder %v3537, 1
  %vm3602 = vcmp.eq.s32.totalorder %v3538, 1
  %vm3603 = vcmp.eq.s32.totalorder %v3539, 1
  %vm3604 = vcmp.eq.s32.totalorder %v3540, 1
  %vm3605 = vcmp.eq.s32.totalorder %v3541, 1
  %vm3606 = vcmp.eq.s32.totalorder %v3542, 1
  %vm3607 = vcmp.eq.s32.totalorder %v3543, 1
  %vm3608 = vcmp.eq.s32.totalorder %v3544, 1
  %vm3609 = vcmp.eq.s32.totalorder %v3545, 1
  %vm3610 = vcmp.eq.s32.totalorder %v3546, 1
  %vm3611 = vcmp.eq.s32.totalorder %v3547, 1
  %vm3612 = vcmp.eq.s32.totalorder %v3548, 1
  %vm3613 = vcmp.eq.s32.totalorder %v3549, 1
  %vm3614 = vcmp.eq.s32.totalorder %v3550, 1
  %vm3615 = vcmp.eq.s32.totalorder %v3551, 1
  %vm3616 = vcmp.eq.s32.totalorder %v3552, 1
  %vm3617 = vcmp.eq.s32.totalorder %v3553, 1
  %vm3618 = vcmp.eq.s32.totalorder %v3554, 1
  %vm3619 = vcmp.eq.s32.totalorder %v3555, 1
  %vm3620 = vcmp.eq.s32.totalorder %v3556, 1
  %vm3621 = vcmp.eq.s32.totalorder %v3557, 1
  %vm3622 = vcmp.eq.s32.totalorder %v3558, 1
  %vm3623 = vcmp.eq.s32.totalorder %v3559, 1
  %vm3624 = vcmp.eq.s32.totalorder %v3560, 1
  %vm3625 = vcmp.eq.s32.totalorder %v3561, 1
  %vm3626 = vcmp.eq.s32.totalorder %v3562, 1
  %vm3627 = vcmp.eq.s32.totalorder %v3563, 1
  %vm3628 = vcmp.eq.s32.totalorder %v3564, 1
  %vm3629 = vcmp.eq.s32.totalorder %v3565, 1
  %vm3630 = vcmp.eq.s32.totalorder %v3566, 1
  %vm3631 = vcmp.eq.s32.totalorder %v3567, 1
  %vm3632 = vcmp.eq.s32.totalorder %v3568, 1
  %vm3633 = vcmp.eq.s32.totalorder %v3569, 1
  %vm3634 = vcmp.eq.s32.totalorder %v3570, 1
  %vm3635 = vcmp.eq.s32.totalorder %v3571, 1
  %vm3636 = vcmp.eq.s32.totalorder %v3572, 1
  %vm3637 = vcmp.eq.s32.totalorder %v3573, 1
  %vm3638 = vcmp.eq.s32.totalorder %v3574, 1
  %vm3639 = vcmp.eq.s32.totalorder %v3575, 1
  %vm3640 = vcmp.eq.s32.totalorder %v3576, 1
  %vm3641 = vcmp.eq.s32.totalorder %v3577, 1
  %vm3642 = vcmp.eq.s32.totalorder %v3578, 1
  %vm3643 = vcmp.eq.s32.totalorder %v3579, 1
  %vm3644 = vcmp.eq.s32.totalorder %v3580, 1
  %vm3645 = vcmp.eq.s32.totalorder %v3581, 1
  %vm3646 = vcmp.eq.s32.totalorder %v3582, 1
  %v3647 = vsel %vm3583, %v2295, 0.0
  %v3648 = vsel %vm3584, %v2296, 0.0
  %v3649 = vsel %vm3585, %v2297, 0.0
  %v3650 = vsel %vm3586, %v2298, 0.0
  %v3651 = vsel %vm3587, %v2299, 0.0
  %v3652 = vsel %vm3588, %v2300, 0.0
  %v3653 = vsel %vm3589, %v2301, 0.0
  %v3654 = vsel %vm3590, %v2302, 0.0
  %v3655 = vsel %vm3591, %v2303, 0.0
  %v3656 = vsel %vm3592, %v2304, 0.0
  %v3657 = vsel %vm3593, %v2305, 0.0
  %v3658 = vsel %vm3594, %v2306, 0.0
  %v3659 = vsel %vm3595, %v2307, 0.0
  %v3660 = vsel %vm3596, %v2308, 0.0
  %v3661 = vsel %vm3597, %v2309, 0.0
  %v3662 = vsel %vm3598, %v2310, 0.0
  %v3663 = vsel %vm3599, %v2311, 0.0
  %v3664 = vsel %vm3600, %v2312, 0.0
  %v3665 = vsel %vm3601, %v2313, 0.0
  %v3666 = vsel %vm3602, %v2314, 0.0
  %v3667 = vsel %vm3603, %v2315, 0.0
  %v3668 = vsel %vm3604, %v2316, 0.0
  %v3669 = vsel %vm3605, %v2317, 0.0
  %v3670 = vsel %vm3606, %v2318, 0.0
  %v3671 = vsel %vm3607, %v2319, 0.0
  %v3672 = vsel %vm3608, %v2320, 0.0
  %v3673 = vsel %vm3609, %v2321, 0.0
  %v3674 = vsel %vm3610, %v2322, 0.0
  %v3675 = vsel %vm3611, %v2323, 0.0
  %v3676 = vsel %vm3612, %v2324, 0.0
  %v3677 = vsel %vm3613, %v2325, 0.0
  %v3678 = vsel %vm3614, %v2326, 0.0
  %v3679 = vsel %vm3615, %v2327, 0.0
  %v3680 = vsel %vm3616, %v2328, 0.0
  %v3681 = vsel %vm3617, %v2329, 0.0
  %v3682 = vsel %vm3618, %v2330, 0.0
  %v3683 = vsel %vm3619, %v2331, 0.0
  %v3684 = vsel %vm3620, %v2332, 0.0
  %v3685 = vsel %vm3621, %v2333, 0.0
  %v3686 = vsel %vm3622, %v2334, 0.0
  %v3687 = vsel %vm3623, %v2335, 0.0
  %v3688 = vsel %vm3624, %v2336, 0.0
  %v3689 = vsel %vm3625, %v2337, 0.0
  %v3690 = vsel %vm3626, %v2338, 0.0
  %v3691 = vsel %vm3627, %v2339, 0.0
  %v3692 = vsel %vm3628, %v2340, 0.0
  %v3693 = vsel %vm3629, %v2341, 0.0
  %v3694 = vsel %vm3630, %v2342, 0.0
  %v3695 = vsel %vm3631, %v2343, 0.0
  %v3696 = vsel %vm3632, %v2344, 0.0
  %v3697 = vsel %vm3633, %v2345, 0.0
  %v3698 = vsel %vm3634, %v2346, 0.0
  %v3699 = vsel %vm3635, %v2347, 0.0
  %v3700 = vsel %vm3636, %v2348, 0.0
  %v3701 = vsel %vm3637, %v2349, 0.0
  %v3702 = vsel %vm3638, %v2350, 0.0
  %v3703 = vsel %vm3639, %v2351, 0.0
  %v3704 = vsel %vm3640, %v2352, 0.0
  %v3705 = vsel %vm3641, %v2353, 0.0
  %v3706 = vsel %vm3642, %v2354, 0.0
  %v3707 = vsel %vm3643, %v2807, 0.0
  %v3708 = vsel %vm3644, %v2808, 0.0
  %v3709 = vsel %vm3645, %v3453, 0.0
  %v3710 = vsel %vm3646, %v3454, 0.0
  %3775 = vrot.lane.b32.xlu0 %v2227, 4
  %v3776 = vpop.permute.xlu0 %3775
  %3777 = vrot.lane.b32.xlu0 %v2228, 4
  %v3778 = vpop.permute.xlu0 %3777
  %3779 = vrot.lane.b32.xlu0 %v2229, 4
  %v3780 = vpop.permute.xlu0 %3779
  %3781 = vrot.lane.b32.xlu0 %v2230, 4
  %v3782 = vpop.permute.xlu0 %3781
  %3783 = vrot.lane.b32.xlu0 %v2231, 4
  %v3784 = vpop.permute.xlu0 %3783
  %3785 = vrot.lane.b32.xlu0 %v2232, 4
  %v3786 = vpop.permute.xlu0 %3785
  %3787 = vrot.lane.b32.xlu0 %v2233, 4
  %v3788 = vpop.permute.xlu0 %3787
  %3789 = vrot.lane.b32.xlu0 %v2234, 4
  %v3790 = vpop.permute.xlu0 %3789
  %3791 = vrot.lane.b32.xlu0 %v2235, 4
  %v3792 = vpop.permute.xlu0 %3791
  %3793 = vrot.lane.b32.xlu0 %v2236, 4
  %v3794 = vpop.permute.xlu0 %3793
  %3795 = vrot.lane.b32.xlu0 %v2237, 4
  %v3796 = vpop.permute.xlu0 %3795
  %3797 = vrot.lane.b32.xlu0 %v2238, 4
  %v3798 = vpop.permute.xlu0 %3797
  %3799 = vrot.lane.b32.xlu0 %v2239, 4
  %v3800 = vpop.permute.xlu0 %3799
  %3801 = vrot.lane.b32.xlu0 %v2240, 4
  %v3802 = vpop.permute.xlu0 %3801
  %3803 = vrot.lane.b32.xlu0 %v2241, 4
  %v3804 = vpop.permute.xlu0 %3803
  %3805 = vrot.lane.b32.xlu0 %v2242, 4
  %v3806 = vpop.permute.xlu0 %3805
  %3807 = vrot.lane.b32.xlu0 %v2243, 4
  %v3808 = vpop.permute.xlu0 %3807
  %3809 = vrot.lane.b32.xlu0 %v2244, 4
  %v3810 = vpop.permute.xlu0 %3809
  %3811 = vrot.lane.b32.xlu0 %v2245, 4
  %v3812 = vpop.permute.xlu0 %3811
  %3813 = vrot.lane.b32.xlu0 %v2246, 4
  %v3814 = vpop.permute.xlu0 %3813
  %3815 = vrot.lane.b32.xlu0 %v2247, 4
  %v3816 = vpop.permute.xlu0 %3815
  %3817 = vrot.lane.b32.xlu0 %v2248, 4
  %v3818 = vpop.permute.xlu0 %3817
  %3819 = vrot.lane.b32.xlu0 %v2249, 4
  %v3820 = vpop.permute.xlu0 %3819
  %3821 = vrot.lane.b32.xlu0 %v2250, 4
  %v3822 = vpop.permute.xlu0 %3821
  %3823 = vrot.lane.b32.xlu0 %v2251, 4
  %v3824 = vpop.permute.xlu0 %3823
  %3825 = vrot.lane.b32.xlu0 %v2252, 4
  %v3826 = vpop.permute.xlu0 %3825
  %3827 = vrot.lane.b32.xlu0 %v2253, 4
  %v3828 = vpop.permute.xlu0 %3827
  %3829 = vrot.lane.b32.xlu0 %v2254, 4
  %v3830 = vpop.permute.xlu0 %3829
  %3831 = vrot.lane.b32.xlu0 %v2255, 4
  %v3832 = vpop.permute.xlu0 %3831
  %3833 = vrot.lane.b32.xlu0 %v2256, 4
  %v3834 = vpop.permute.xlu0 %3833
  %3835 = vrot.lane.b32.xlu0 %v2257, 4
  %v3836 = vpop.permute.xlu0 %3835
  %3837 = vrot.lane.b32.xlu0 %v2258, 4
  %v3838 = vpop.permute.xlu0 %3837
  %3839 = vrot.lane.b32.xlu0 %v2259, 4
  %v3840 = vpop.permute.xlu0 %3839
  %3841 = vrot.lane.b32.xlu0 %v2260, 4
  %v3842 = vpop.permute.xlu0 %3841
  %3843 = vrot.lane.b32.xlu0 %v2261, 4
  %v3844 = vpop.permute.xlu0 %3843
  %3845 = vrot.lane.b32.xlu0 %v2262, 4
  %v3846 = vpop.permute.xlu0 %3845
  %3847 = vrot.lane.b32.xlu0 %v2263, 4
  %v3848 = vpop.permute.xlu0 %3847
  %3849 = vrot.lane.b32.xlu0 %v2264, 4
  %v3850 = vpop.permute.xlu0 %3849
  %3851 = vrot.lane.b32.xlu0 %v2265, 4
  %v3852 = vpop.permute.xlu0 %3851
  %3853 = vrot.lane.b32.xlu0 %v2266, 4
  %v3854 = vpop.permute.xlu0 %3853
  %3855 = vrot.lane.b32.xlu0 %v2267, 4
  %v3856 = vpop.permute.xlu0 %3855
  %3857 = vrot.lane.b32.xlu0 %v2268, 4
  %v3858 = vpop.permute.xlu0 %3857
  %3859 = vrot.lane.b32.xlu0 %v2269, 4
  %v3860 = vpop.permute.xlu0 %3859
  %3861 = vrot.lane.b32.xlu0 %v2270, 4
  %v3862 = vpop.permute.xlu0 %3861
  %3863 = vrot.lane.b32.xlu0 %v2271, 4
  %v3864 = vpop.permute.xlu0 %3863
  %3865 = vrot.lane.b32.xlu0 %v2272, 4
  %v3866 = vpop.permute.xlu0 %3865
  %3867 = vrot.lane.b32.xlu0 %v2273, 4
  %v3868 = vpop.permute.xlu0 %3867
  %3869 = vrot.lane.b32.xlu0 %v2274, 4
  %v3870 = vpop.permute.xlu0 %3869
  %3871 = vrot.lane.b32.xlu0 %v2275, 4
  %v3872 = vpop.permute.xlu0 %3871
  %3873 = vrot.lane.b32.xlu0 %v2276, 4
  %v3874 = vpop.permute.xlu0 %3873
  %3875 = vrot.lane.b32.xlu0 %v2277, 4
  %v3876 = vpop.permute.xlu0 %3875
  %3877 = vrot.lane.b32.xlu0 %v2278, 4
  %v3878 = vpop.permute.xlu0 %3877
  %3879 = vrot.lane.b32.xlu0 %v2279, 4
  %v3880 = vpop.permute.xlu0 %3879
  %3881 = vrot.lane.b32.xlu0 %v2280, 4
  %v3882 = vpop.permute.xlu0 %3881
  %3883 = vrot.lane.b32.xlu0 %v2281, 4
  %v3884 = vpop.permute.xlu0 %3883
  %3885 = vrot.lane.b32.xlu0 %v2282, 4
  %v3886 = vpop.permute.xlu0 %3885
  %3887 = vrot.lane.b32.xlu0 %v2283, 4
  %v3888 = vpop.permute.xlu0 %3887
  %3889 = vrot.lane.b32.xlu0 %v2284, 4
  %v3890 = vpop.permute.xlu0 %3889
  %3891 = vrot.lane.b32.xlu0 %v2285, 4
  %v3892 = vpop.permute.xlu0 %3891
  %3893 = vrot.lane.b32.xlu0 %v2286, 4
  %v3894 = vpop.permute.xlu0 %3893
  %3895 = vrot.lane.b32.xlu0 %v2287, 4
  %v3896 = vpop.permute.xlu0 %3895
  %3897 = vrot.lane.b32.xlu0 %v2288, 4
  %v3898 = vpop.permute.xlu0 %3897
  %3899 = vrot.lane.b32.xlu0 %v2289, 4
  %v3900 = vpop.permute.xlu0 %3899
  %3901 = vrot.lane.b32.xlu0 %v2290, 4
  %v3902 = vpop.permute.xlu0 %3901
  %4031 = vrot.lane.b32.xlu0 %v2547, 8
  %v4032 = vpop.permute.xlu0 %4031
  %4033 = vrot.lane.b32.xlu0 %v2548, 8
  %v4034 = vpop.permute.xlu0 %4033
  %4035 = vrot.lane.b32.xlu0 %v2549, 8
  %v4036 = vpop.permute.xlu0 %4035
  %4037 = vrot.lane.b32.xlu0 %v2550, 8
  %v4038 = vpop.permute.xlu0 %4037
  %4039 = vrot.lane.b32.xlu0 %v2551, 8
  %v4040 = vpop.permute.xlu0 %4039
  %4041 = vrot.lane.b32.xlu0 %v2552, 8
  %v4042 = vpop.permute.xlu0 %4041
  %4043 = vrot.lane.b32.xlu0 %v2553, 8
  %v4044 = vpop.permute.xlu0 %4043
  %4045 = vrot.lane.b32.xlu0 %v2554, 8
  %v4046 = vpop.permute.xlu0 %4045
  %4047 = vrot.lane.b32.xlu0 %v2555, 8
  %v4048 = vpop.permute.xlu0 %4047
  %4049 = vrot.lane.b32.xlu0 %v2556, 8
  %v4050 = vpop.permute.xlu0 %4049
  %4051 = vrot.lane.b32.xlu0 %v2557, 8
  %v4052 = vpop.permute.xlu0 %4051
  %4053 = vrot.lane.b32.xlu0 %v2558, 8
  %v4054 = vpop.permute.xlu0 %4053
  %4055 = vrot.lane.b32.xlu0 %v2559, 8
  %v4056 = vpop.permute.xlu0 %4055
  %4057 = vrot.lane.b32.xlu0 %v2560, 8
  %v4058 = vpop.permute.xlu0 %4057
  %4059 = vrot.lane.b32.xlu0 %v2561, 8
  %v4060 = vpop.permute.xlu0 %4059
  %4061 = vrot.lane.b32.xlu0 %v2562, 8
  %v4062 = vpop.permute.xlu0 %4061
  %4063 = vrot.lane.b32.xlu0 %v2563, 8
  %v4064 = vpop.permute.xlu0 %4063
  %4065 = vrot.lane.b32.xlu0 %v2564, 8
  %v4066 = vpop.permute.xlu0 %4065
  %4067 = vrot.lane.b32.xlu0 %v2565, 8
  %v4068 = vpop.permute.xlu0 %4067
  %4069 = vrot.lane.b32.xlu0 %v2566, 8
  %v4070 = vpop.permute.xlu0 %4069
  %4071 = vrot.lane.b32.xlu0 %v2567, 8
  %v4072 = vpop.permute.xlu0 %4071
  %4073 = vrot.lane.b32.xlu0 %v2568, 8
  %v4074 = vpop.permute.xlu0 %4073
  %4075 = vrot.lane.b32.xlu0 %v2569, 8
  %v4076 = vpop.permute.xlu0 %4075
  %4077 = vrot.lane.b32.xlu0 %v2570, 8
  %v4078 = vpop.permute.xlu0 %4077
  %4079 = vrot.lane.b32.xlu0 %v2571, 8
  %v4080 = vpop.permute.xlu0 %4079
  %4081 = vrot.lane.b32.xlu0 %v2572, 8
  %v4082 = vpop.permute.xlu0 %4081
  %4083 = vrot.lane.b32.xlu0 %v2573, 8
  %v4084 = vpop.permute.xlu0 %4083
  %4085 = vrot.lane.b32.xlu0 %v2574, 8
  %v4086 = vpop.permute.xlu0 %4085
  %4087 = vrot.lane.b32.xlu0 %v2575, 8
  %v4088 = vpop.permute.xlu0 %4087
  %4089 = vrot.lane.b32.xlu0 %v2576, 8
  %v4090 = vpop.permute.xlu0 %4089
  %4091 = vrot.lane.b32.xlu0 %v2577, 8
  %v4092 = vpop.permute.xlu0 %4091
  %4093 = vrot.lane.b32.xlu0 %v2578, 8
  %v4094 = vpop.permute.xlu0 %4093
  %4095 = vrot.lane.b32.xlu0 %v2579, 8
  %v4096 = vpop.permute.xlu0 %4095
  %4097 = vrot.lane.b32.xlu0 %v2580, 8
  %v4098 = vpop.permute.xlu0 %4097
  %4099 = vrot.lane.b32.xlu0 %v2581, 8
  %v4100 = vpop.permute.xlu0 %4099
  %4101 = vrot.lane.b32.xlu0 %v2582, 8
  %v4102 = vpop.permute.xlu0 %4101
  %4103 = vrot.lane.b32.xlu0 %v2583, 8
  %v4104 = vpop.permute.xlu0 %4103
  %4105 = vrot.lane.b32.xlu0 %v2584, 8
  %v4106 = vpop.permute.xlu0 %4105
  %4107 = vrot.lane.b32.xlu0 %v2585, 8
  %v4108 = vpop.permute.xlu0 %4107
  %4109 = vrot.lane.b32.xlu0 %v2586, 8
  %v4110 = vpop.permute.xlu0 %4109
  %4111 = vrot.lane.b32.xlu0 %v2587, 8
  %v4112 = vpop.permute.xlu0 %4111
  %4113 = vrot.lane.b32.xlu0 %v2588, 8
  %v4114 = vpop.permute.xlu0 %4113
  %4115 = vrot.lane.b32.xlu0 %v2589, 8
  %v4116 = vpop.permute.xlu0 %4115
  %4117 = vrot.lane.b32.xlu0 %v2590, 8
  %v4118 = vpop.permute.xlu0 %4117
  %4119 = vrot.lane.b32.xlu0 %v2591, 8
  %v4120 = vpop.permute.xlu0 %4119
  %4121 = vrot.lane.b32.xlu0 %v2592, 8
  %v4122 = vpop.permute.xlu0 %4121
  %4123 = vrot.lane.b32.xlu0 %v2593, 8
  %v4124 = vpop.permute.xlu0 %4123
  %4125 = vrot.lane.b32.xlu0 %v2594, 8
  %v4126 = vpop.permute.xlu0 %4125
  %4127 = vrot.lane.b32.xlu0 %v2595, 8
  %v4128 = vpop.permute.xlu0 %4127
  %4129 = vrot.lane.b32.xlu0 %v2596, 8
  %v4130 = vpop.permute.xlu0 %4129
  %4131 = vrot.lane.b32.xlu0 %v2597, 8
  %v4132 = vpop.permute.xlu0 %4131
  %4133 = vrot.lane.b32.xlu0 %v2598, 8
  %v4134 = vpop.permute.xlu0 %4133
  %4135 = vrot.lane.b32.xlu0 %v2599, 8
  %v4136 = vpop.permute.xlu0 %4135
  %4137 = vrot.lane.b32.xlu0 %v2600, 8
  %v4138 = vpop.permute.xlu0 %4137
  %4139 = vrot.lane.b32.xlu0 %v2601, 8
  %v4140 = vpop.permute.xlu0 %4139
  %4141 = vrot.lane.b32.xlu0 %v2602, 8
  %v4142 = vpop.permute.xlu0 %4141
  %4143 = vrot.lane.b32.xlu0 %v2603, 8
  %v4144 = vpop.permute.xlu0 %4143
  %4145 = vrot.lane.b32.xlu0 %v2604, 8
  %v4146 = vpop.permute.xlu0 %4145
  %4147 = vrot.lane.b32.xlu0 %v2605, 8
  %v4148 = vpop.permute.xlu0 %4147
  %4149 = vrot.lane.b32.xlu0 %v2606, 8
  %v4150 = vpop.permute.xlu0 %4149
  %4151 = vrot.lane.b32.xlu0 %v2607, 8
  %v4152 = vpop.permute.xlu0 %4151
  %4153 = vrot.lane.b32.xlu0 %v2608, 8
  %v4154 = vpop.permute.xlu0 %4153
  %4155 = vrot.lane.b32.xlu0 %v2609, 8
  %v4156 = vpop.permute.xlu0 %4155
  %4157 = vrot.lane.b32.xlu0 %v2610, 8
  %v4158 = vpop.permute.xlu0 %4157
  %4287 = vrot.lane.b32.xlu0 %v2741, 12
  %v4288 = vpop.permute.xlu0 %4287
  %4289 = vrot.lane.b32.xlu0 %v2742, 12
  %v4290 = vpop.permute.xlu0 %4289
  %4291 = vrot.lane.b32.xlu0 %v2743, 12
  %v4292 = vpop.permute.xlu0 %4291
  %4293 = vrot.lane.b32.xlu0 %v2744, 12
  %v4294 = vpop.permute.xlu0 %4293
  %4295 = vrot.lane.b32.xlu0 %v2745, 12
  %v4296 = vpop.permute.xlu0 %4295
  %4297 = vrot.lane.b32.xlu0 %v2746, 12
  %v4298 = vpop.permute.xlu0 %4297
  %4299 = vrot.lane.b32.xlu0 %v2747, 12
  %v4300 = vpop.permute.xlu0 %4299
  %4301 = vrot.lane.b32.xlu0 %v2748, 12
  %v4302 = vpop.permute.xlu0 %4301
  %4303 = vrot.lane.b32.xlu0 %v2749, 12
  %v4304 = vpop.permute.xlu0 %4303
  %4305 = vrot.lane.b32.xlu0 %v2750, 12
  %v4306 = vpop.permute.xlu0 %4305
  %4307 = vrot.lane.b32.xlu0 %v2751, 12
  %v4308 = vpop.permute.xlu0 %4307
  %4309 = vrot.lane.b32.xlu0 %v2752, 12
  %v4310 = vpop.permute.xlu0 %4309
  %4311 = vrot.lane.b32.xlu0 %v2753, 12
  %v4312 = vpop.permute.xlu0 %4311
  %4313 = vrot.lane.b32.xlu0 %v2754, 12
  %v4314 = vpop.permute.xlu0 %4313
  %4315 = vrot.lane.b32.xlu0 %v2755, 12
  %v4316 = vpop.permute.xlu0 %4315
  %4317 = vrot.lane.b32.xlu0 %v2756, 12
  %v4318 = vpop.permute.xlu0 %4317
  %4319 = vrot.lane.b32.xlu0 %v2757, 12
  %v4320 = vpop.permute.xlu0 %4319
  %4321 = vrot.lane.b32.xlu0 %v2758, 12
  %v4322 = vpop.permute.xlu0 %4321
  %4323 = vrot.lane.b32.xlu0 %v2759, 12
  %v4324 = vpop.permute.xlu0 %4323
  %4325 = vrot.lane.b32.xlu0 %v2760, 12
  %v4326 = vpop.permute.xlu0 %4325
  %4327 = vrot.lane.b32.xlu0 %v2761, 12
  %v4328 = vpop.permute.xlu0 %4327
  %4329 = vrot.lane.b32.xlu0 %v2762, 12
  %v4330 = vpop.permute.xlu0 %4329
  %4331 = vrot.lane.b32.xlu0 %v2763, 12
  %v4332 = vpop.permute.xlu0 %4331
  %4333 = vrot.lane.b32.xlu0 %v2764, 12
  %v4334 = vpop.permute.xlu0 %4333
  %4335 = vrot.lane.b32.xlu0 %v2765, 12
  %v4336 = vpop.permute.xlu0 %4335
  %4337 = vrot.lane.b32.xlu0 %v2766, 12
  %v4338 = vpop.permute.xlu0 %4337
  %4339 = vrot.lane.b32.xlu0 %v2767, 12
  %v4340 = vpop.permute.xlu0 %4339
  %4341 = vrot.lane.b32.xlu0 %v2768, 12
  %v4342 = vpop.permute.xlu0 %4341
  %4343 = vrot.lane.b32.xlu0 %v2769, 12
  %v4344 = vpop.permute.xlu0 %4343
  %4345 = vrot.lane.b32.xlu0 %v2770, 12
  %v4346 = vpop.permute.xlu0 %4345
  %4347 = vrot.lane.b32.xlu0 %v2771, 12
  %v4348 = vpop.permute.xlu0 %4347
  %4349 = vrot.lane.b32.xlu0 %v2772, 12
  %v4350 = vpop.permute.xlu0 %4349
  %4351 = vrot.lane.b32.xlu0 %v2773, 12
  %v4352 = vpop.permute.xlu0 %4351
  %4353 = vrot.lane.b32.xlu0 %v2774, 12
  %v4354 = vpop.permute.xlu0 %4353
  %4355 = vrot.lane.b32.xlu0 %v2775, 12
  %v4356 = vpop.permute.xlu0 %4355
  %4357 = vrot.lane.b32.xlu0 %v2776, 12
  %v4358 = vpop.permute.xlu0 %4357
  %4359 = vrot.lane.b32.xlu0 %v2777, 12
  %v4360 = vpop.permute.xlu0 %4359
  %4361 = vrot.lane.b32.xlu0 %v2778, 12
  %v4362 = vpop.permute.xlu0 %4361
  %4363 = vrot.lane.b32.xlu0 %v2779, 12
  %v4364 = vpop.permute.xlu0 %4363
  %4365 = vrot.lane.b32.xlu0 %v2780, 12
  %v4366 = vpop.permute.xlu0 %4365
  %4367 = vrot.lane.b32.xlu0 %v2781, 12
  %v4368 = vpop.permute.xlu0 %4367
  %4369 = vrot.lane.b32.xlu0 %v2782, 12
  %v4370 = vpop.permute.xlu0 %4369
  %4371 = vrot.lane.b32.xlu0 %v2783, 12
  %v4372 = vpop.permute.xlu0 %4371
  %4373 = vrot.lane.b32.xlu0 %v2784, 12
  %v4374 = vpop.permute.xlu0 %4373
  %4375 = vrot.lane.b32.xlu0 %v2785, 12
  %v4376 = vpop.permute.xlu0 %4375
  %4377 = vrot.lane.b32.xlu0 %v2786, 12
  %v4378 = vpop.permute.xlu0 %4377
  %4379 = vrot.lane.b32.xlu0 %v2787, 12
  %v4380 = vpop.permute.xlu0 %4379
  %4381 = vrot.lane.b32.xlu0 %v2788, 12
  %v4382 = vpop.permute.xlu0 %4381
  %4383 = vrot.lane.b32.xlu0 %v2789, 12
  %v4384 = vpop.permute.xlu0 %4383
  %4385 = vrot.lane.b32.xlu0 %v2790, 12
  %v4386 = vpop.permute.xlu0 %4385
  %4387 = vrot.lane.b32.xlu0 %v2791, 12
  %v4388 = vpop.permute.xlu0 %4387
  %4389 = vrot.lane.b32.xlu0 %v2792, 12
  %v4390 = vpop.permute.xlu0 %4389
  %4391 = vrot.lane.b32.xlu0 %v2793, 12
  %v4392 = vpop.permute.xlu0 %4391
  %4393 = vrot.lane.b32.xlu0 %v2794, 12
  %v4394 = vpop.permute.xlu0 %4393
  %4395 = vrot.lane.b32.xlu0 %v2795, 12
  %v4396 = vpop.permute.xlu0 %4395
  %4397 = vrot.lane.b32.xlu0 %v2796, 12
  %v4398 = vpop.permute.xlu0 %4397
  %4399 = vrot.lane.b32.xlu0 %v2797, 12
  %v4400 = vpop.permute.xlu0 %4399
  %4401 = vrot.lane.b32.xlu0 %v2798, 12
  %v4402 = vpop.permute.xlu0 %4401
  %4403 = vrot.lane.b32.xlu0 %v2799, 12
  %v4404 = vpop.permute.xlu0 %4403
  %4405 = vrot.lane.b32.xlu0 %v2800, 12
  %v4406 = vpop.permute.xlu0 %4405
  %4407 = vrot.lane.b32.xlu0 %v2801, 12
  %v4408 = vpop.permute.xlu0 %4407
  %4409 = vrot.lane.b32.xlu0 %v2802, 12
  %v4410 = vpop.permute.xlu0 %4409
  %4411 = vrot.lane.b32.xlu0 %v2803, 12
  %v4412 = vpop.permute.xlu0 %4411
  %4413 = vrot.lane.b32.xlu0 %v2804, 12
  %v4414 = vpop.permute.xlu0 %4413
  %4543 = vrot.lane.b32.xlu0 %v2037, 16
  %v4544 = vpop.permute.xlu0 %4543
  %4545 = vrot.lane.b32.xlu0 %v2038, 16
  %v4546 = vpop.permute.xlu0 %4545
  %4547 = vrot.lane.b32.xlu0 %v2039, 16
  %v4548 = vpop.permute.xlu0 %4547
  %4549 = vrot.lane.b32.xlu0 %v2040, 16
  %v4550 = vpop.permute.xlu0 %4549
  %4551 = vrot.lane.b32.xlu0 %v2041, 16
  %v4552 = vpop.permute.xlu0 %4551
  %4553 = vrot.lane.b32.xlu0 %v2042, 16
  %v4554 = vpop.permute.xlu0 %4553
  %4555 = vrot.lane.b32.xlu0 %v2043, 16
  %v4556 = vpop.permute.xlu0 %4555
  %4557 = vrot.lane.b32.xlu0 %v2044, 16
  %v4558 = vpop.permute.xlu0 %4557
  %4559 = vrot.lane.b32.xlu0 %v2045, 16
  %v4560 = vpop.permute.xlu0 %4559
  %4561 = vrot.lane.b32.xlu0 %v2046, 16
  %v4562 = vpop.permute.xlu0 %4561
  %4563 = vrot.lane.b32.xlu0 %v2047, 16
  %v4564 = vpop.permute.xlu0 %4563
  %4565 = vrot.lane.b32.xlu0 %v2048, 16
  %v4566 = vpop.permute.xlu0 %4565
  %4567 = vrot.lane.b32.xlu0 %v2049, 16
  %v4568 = vpop.permute.xlu0 %4567
  %4569 = vrot.lane.b32.xlu0 %v2050, 16
  %v4570 = vpop.permute.xlu0 %4569
  %4571 = vrot.lane.b32.xlu0 %v2051, 16
  %v4572 = vpop.permute.xlu0 %4571
  %4573 = vrot.lane.b32.xlu0 %v2052, 16
  %v4574 = vpop.permute.xlu0 %4573
  %4575 = vrot.lane.b32.xlu0 %v2053, 16
  %v4576 = vpop.permute.xlu0 %4575
  %4577 = vrot.lane.b32.xlu0 %v2054, 16
  %v4578 = vpop.permute.xlu0 %4577
  %4579 = vrot.lane.b32.xlu0 %v2055, 16
  %v4580 = vpop.permute.xlu0 %4579
  %4581 = vrot.lane.b32.xlu0 %v2056, 16
  %v4582 = vpop.permute.xlu0 %4581
  %4583 = vrot.lane.b32.xlu0 %v2057, 16
  %v4584 = vpop.permute.xlu0 %4583
  %4585 = vrot.lane.b32.xlu0 %v2058, 16
  %v4586 = vpop.permute.xlu0 %4585
  %4587 = vrot.lane.b32.xlu0 %v2059, 16
  %v4588 = vpop.permute.xlu0 %4587
  %4589 = vrot.lane.b32.xlu0 %v2060, 16
  %v4590 = vpop.permute.xlu0 %4589
  %4591 = vrot.lane.b32.xlu0 %v2061, 16
  %v4592 = vpop.permute.xlu0 %4591
  %4593 = vrot.lane.b32.xlu0 %v2062, 16
  %v4594 = vpop.permute.xlu0 %4593
  %4595 = vrot.lane.b32.xlu0 %v2063, 16
  %v4596 = vpop.permute.xlu0 %4595
  %4597 = vrot.lane.b32.xlu0 %v2064, 16
  %v4598 = vpop.permute.xlu0 %4597
  %4599 = vrot.lane.b32.xlu0 %v2065, 16
  %v4600 = vpop.permute.xlu0 %4599
  %4601 = vrot.lane.b32.xlu0 %v2066, 16
  %v4602 = vpop.permute.xlu0 %4601
  %4603 = vrot.lane.b32.xlu0 %v2067, 16
  %v4604 = vpop.permute.xlu0 %4603
  %4605 = vrot.lane.b32.xlu0 %v2068, 16
  %v4606 = vpop.permute.xlu0 %4605
  %4607 = vrot.lane.b32.xlu0 %v2069, 16
  %v4608 = vpop.permute.xlu0 %4607
  %4609 = vrot.lane.b32.xlu0 %v2070, 16
  %v4610 = vpop.permute.xlu0 %4609
  %4611 = vrot.lane.b32.xlu0 %v2071, 16
  %v4612 = vpop.permute.xlu0 %4611
  %4613 = vrot.lane.b32.xlu0 %v2072, 16
  %v4614 = vpop.permute.xlu0 %4613
  %4615 = vrot.lane.b32.xlu0 %v2073, 16
  %v4616 = vpop.permute.xlu0 %4615
  %4617 = vrot.lane.b32.xlu0 %v2074, 16
  %v4618 = vpop.permute.xlu0 %4617
  %4619 = vrot.lane.b32.xlu0 %v2075, 16
  %v4620 = vpop.permute.xlu0 %4619
  %4621 = vrot.lane.b32.xlu0 %v2076, 16
  %v4622 = vpop.permute.xlu0 %4621
  %4623 = vrot.lane.b32.xlu0 %v2077, 16
  %v4624 = vpop.permute.xlu0 %4623
  %4625 = vrot.lane.b32.xlu0 %v2078, 16
  %v4626 = vpop.permute.xlu0 %4625
  %4627 = vrot.lane.b32.xlu0 %v2079, 16
  %v4628 = vpop.permute.xlu0 %4627
  %4629 = vrot.lane.b32.xlu0 %v2080, 16
  %v4630 = vpop.permute.xlu0 %4629
  %4631 = vrot.lane.b32.xlu0 %v2081, 16
  %v4632 = vpop.permute.xlu0 %4631
  %4633 = vrot.lane.b32.xlu0 %v2082, 16
  %v4634 = vpop.permute.xlu0 %4633
  %4635 = vrot.lane.b32.xlu0 %v2083, 16
  %v4636 = vpop.permute.xlu0 %4635
  %4637 = vrot.lane.b32.xlu0 %v2084, 16
  %v4638 = vpop.permute.xlu0 %4637
  %4639 = vrot.lane.b32.xlu0 %v2085, 16
  %v4640 = vpop.permute.xlu0 %4639
  %4641 = vrot.lane.b32.xlu0 %v2086, 16
  %v4642 = vpop.permute.xlu0 %4641
  %4643 = vrot.lane.b32.xlu0 %v2087, 16
  %v4644 = vpop.permute.xlu0 %4643
  %4645 = vrot.lane.b32.xlu0 %v2088, 16
  %v4646 = vpop.permute.xlu0 %4645
  %4647 = vrot.lane.b32.xlu0 %v2089, 16
  %v4648 = vpop.permute.xlu0 %4647
  %4649 = vrot.lane.b32.xlu0 %v2090, 16
  %v4650 = vpop.permute.xlu0 %4649
  %4651 = vrot.lane.b32.xlu0 %v2091, 16
  %v4652 = vpop.permute.xlu0 %4651
  %4653 = vrot.lane.b32.xlu0 %v2092, 16
  %v4654 = vpop.permute.xlu0 %4653
  %4655 = vrot.lane.b32.xlu0 %v2093, 16
  %v4656 = vpop.permute.xlu0 %4655
  %4657 = vrot.lane.b32.xlu0 %v2094, 16
  %v4658 = vpop.permute.xlu0 %4657
  %4659 = vrot.lane.b32.xlu0 %v2095, 16
  %v4660 = vpop.permute.xlu0 %4659
  %4661 = vrot.lane.b32.xlu0 %v2096, 16
  %v4662 = vpop.permute.xlu0 %4661
  %4663 = vrot.lane.b32.xlu0 %v2097, 16
  %v4664 = vpop.permute.xlu0 %4663
  %4665 = vrot.lane.b32.xlu0 %v2098, 16
  %v4666 = vpop.permute.xlu0 %4665
  %4667 = vrot.lane.b32.xlu0 %v2805, 16
  %v4668 = vpop.permute.xlu0 %4667
  %4669 = vrot.lane.b32.xlu0 %v2806, 16
  %v4670 = vpop.permute.xlu0 %4669
  %4799 = vrot.lane.b32.xlu0 %v2937, 20
  %v4800 = vpop.permute.xlu0 %4799
  %4801 = vrot.lane.b32.xlu0 %v2938, 20
  %v4802 = vpop.permute.xlu0 %4801
  %4803 = vrot.lane.b32.xlu0 %v2939, 20
  %v4804 = vpop.permute.xlu0 %4803
  %4805 = vrot.lane.b32.xlu0 %v2940, 20
  %v4806 = vpop.permute.xlu0 %4805
  %4807 = vrot.lane.b32.xlu0 %v2941, 20
  %v4808 = vpop.permute.xlu0 %4807
  %4809 = vrot.lane.b32.xlu0 %v2942, 20
  %v4810 = vpop.permute.xlu0 %4809
  %4811 = vrot.lane.b32.xlu0 %v2943, 20
  %v4812 = vpop.permute.xlu0 %4811
  %4813 = vrot.lane.b32.xlu0 %v2944, 20
  %v4814 = vpop.permute.xlu0 %4813
  %4815 = vrot.lane.b32.xlu0 %v2945, 20
  %v4816 = vpop.permute.xlu0 %4815
  %4817 = vrot.lane.b32.xlu0 %v2946, 20
  %v4818 = vpop.permute.xlu0 %4817
  %4819 = vrot.lane.b32.xlu0 %v2947, 20
  %v4820 = vpop.permute.xlu0 %4819
  %4821 = vrot.lane.b32.xlu0 %v2948, 20
  %v4822 = vpop.permute.xlu0 %4821
  %4823 = vrot.lane.b32.xlu0 %v2949, 20
  %v4824 = vpop.permute.xlu0 %4823
  %4825 = vrot.lane.b32.xlu0 %v2950, 20
  %v4826 = vpop.permute.xlu0 %4825
  %4827 = vrot.lane.b32.xlu0 %v2951, 20
  %v4828 = vpop.permute.xlu0 %4827
  %4829 = vrot.lane.b32.xlu0 %v2952, 20
  %v4830 = vpop.permute.xlu0 %4829
  %4831 = vrot.lane.b32.xlu0 %v2953, 20
  %v4832 = vpop.permute.xlu0 %4831
  %4833 = vrot.lane.b32.xlu0 %v2954, 20
  %v4834 = vpop.permute.xlu0 %4833
  %4835 = vrot.lane.b32.xlu0 %v2955, 20
  %v4836 = vpop.permute.xlu0 %4835
  %4837 = vrot.lane.b32.xlu0 %v2956, 20
  %v4838 = vpop.permute.xlu0 %4837
  %4839 = vrot.lane.b32.xlu0 %v2957, 20
  %v4840 = vpop.permute.xlu0 %4839
  %4841 = vrot.lane.b32.xlu0 %v2958, 20
  %v4842 = vpop.permute.xlu0 %4841
  %4843 = vrot.lane.b32.xlu0 %v2959, 20
  %v4844 = vpop.permute.xlu0 %4843
  %4845 = vrot.lane.b32.xlu0 %v2960, 20
  %v4846 = vpop.permute.xlu0 %4845
  %4847 = vrot.lane.b32.xlu0 %v2961, 20
  %v4848 = vpop.permute.xlu0 %4847
  %4849 = vrot.lane.b32.xlu0 %v2962, 20
  %v4850 = vpop.permute.xlu0 %4849
  %4851 = vrot.lane.b32.xlu0 %v2963, 20
  %v4852 = vpop.permute.xlu0 %4851
  %4853 = vrot.lane.b32.xlu0 %v2964, 20
  %v4854 = vpop.permute.xlu0 %4853
  %4855 = vrot.lane.b32.xlu0 %v2965, 20
  %v4856 = vpop.permute.xlu0 %4855
  %4857 = vrot.lane.b32.xlu0 %v2966, 20
  %v4858 = vpop.permute.xlu0 %4857
  %4859 = vrot.lane.b32.xlu0 %v2967, 20
  %v4860 = vpop.permute.xlu0 %4859
  %4861 = vrot.lane.b32.xlu0 %v2968, 20
  %v4862 = vpop.permute.xlu0 %4861
  %4863 = vrot.lane.b32.xlu0 %v2969, 20
  %v4864 = vpop.permute.xlu0 %4863
  %4865 = vrot.lane.b32.xlu0 %v2970, 20
  %v4866 = vpop.permute.xlu0 %4865
  %4867 = vrot.lane.b32.xlu0 %v2971, 20
  %v4868 = vpop.permute.xlu0 %4867
  %4869 = vrot.lane.b32.xlu0 %v2972, 20
  %v4870 = vpop.permute.xlu0 %4869
  %4871 = vrot.lane.b32.xlu0 %v2973, 20
  %v4872 = vpop.permute.xlu0 %4871
  %4873 = vrot.lane.b32.xlu0 %v2974, 20
  %v4874 = vpop.permute.xlu0 %4873
  %4875 = vrot.lane.b32.xlu0 %v2975, 20
  %v4876 = vpop.permute.xlu0 %4875
  %4877 = vrot.lane.b32.xlu0 %v2976, 20
  %v4878 = vpop.permute.xlu0 %4877
  %4879 = vrot.lane.b32.xlu0 %v2977, 20
  %v4880 = vpop.permute.xlu0 %4879
  %4881 = vrot.lane.b32.xlu0 %v2978, 20
  %v4882 = vpop.permute.xlu0 %4881
  %4883 = vrot.lane.b32.xlu0 %v2979, 20
  %v4884 = vpop.permute.xlu0 %4883
  %4885 = vrot.lane.b32.xlu0 %v2980, 20
  %v4886 = vpop.permute.xlu0 %4885
  %4887 = vrot.lane.b32.xlu0 %v2981, 20
  %v4888 = vpop.permute.xlu0 %4887
  %4889 = vrot.lane.b32.xlu0 %v2982, 20
  %v4890 = vpop.permute.xlu0 %4889
  %4891 = vrot.lane.b32.xlu0 %v2983, 20
  %v4892 = vpop.permute.xlu0 %4891
  %4893 = vrot.lane.b32.xlu0 %v2984, 20
  %v4894 = vpop.permute.xlu0 %4893
  %4895 = vrot.lane.b32.xlu0 %v2985, 20
  %v4896 = vpop.permute.xlu0 %4895
  %4897 = vrot.lane.b32.xlu0 %v2986, 20
  %v4898 = vpop.permute.xlu0 %4897
  %4899 = vrot.lane.b32.xlu0 %v2987, 20
  %v4900 = vpop.permute.xlu0 %4899
  %4901 = vrot.lane.b32.xlu0 %v2988, 20
  %v4902 = vpop.permute.xlu0 %4901
  %4903 = vrot.lane.b32.xlu0 %v2989, 20
  %v4904 = vpop.permute.xlu0 %4903
  %4905 = vrot.lane.b32.xlu0 %v2990, 20
  %v4906 = vpop.permute.xlu0 %4905
  %4907 = vrot.lane.b32.xlu0 %v2991, 20
  %v4908 = vpop.permute.xlu0 %4907
  %4909 = vrot.lane.b32.xlu0 %v2992, 20
  %v4910 = vpop.permute.xlu0 %4909
  %4911 = vrot.lane.b32.xlu0 %v2993, 20
  %v4912 = vpop.permute.xlu0 %4911
  %4913 = vrot.lane.b32.xlu0 %v2994, 20
  %v4914 = vpop.permute.xlu0 %4913
  %4915 = vrot.lane.b32.xlu0 %v2995, 20
  %v4916 = vpop.permute.xlu0 %4915
  %4917 = vrot.lane.b32.xlu0 %v2996, 20
  %v4918 = vpop.permute.xlu0 %4917
  %4919 = vrot.lane.b32.xlu0 %v2997, 20
  %v4920 = vpop.permute.xlu0 %4919
  %4921 = vrot.lane.b32.xlu0 %v2998, 20
  %v4922 = vpop.permute.xlu0 %4921
  %4923 = vrot.lane.b32.xlu0 %v2999, 20
  %v4924 = vpop.permute.xlu0 %4923
  %4925 = vrot.lane.b32.xlu0 %v3000, 20
  %v4926 = vpop.permute.xlu0 %4925
  %5055 = vrot.lane.b32.xlu0 %v3195, 24
  %v5056 = vpop.permute.xlu0 %5055
  %5057 = vrot.lane.b32.xlu0 %v3196, 24
  %v5058 = vpop.permute.xlu0 %5057
  %5059 = vrot.lane.b32.xlu0 %v3197, 24
  %v5060 = vpop.permute.xlu0 %5059
  %5061 = vrot.lane.b32.xlu0 %v3198, 24
  %v5062 = vpop.permute.xlu0 %5061
  %5063 = vrot.lane.b32.xlu0 %v3199, 24
  %v5064 = vpop.permute.xlu0 %5063
  %5065 = vrot.lane.b32.xlu0 %v3200, 24
  %v5066 = vpop.permute.xlu0 %5065
  %5067 = vrot.lane.b32.xlu0 %v3201, 24
  %v5068 = vpop.permute.xlu0 %5067
  %5069 = vrot.lane.b32.xlu0 %v3202, 24
  %v5070 = vpop.permute.xlu0 %5069
  %5071 = vrot.lane.b32.xlu0 %v3203, 24
  %v5072 = vpop.permute.xlu0 %5071
  %5073 = vrot.lane.b32.xlu0 %v3204, 24
  %v5074 = vpop.permute.xlu0 %5073
  %5075 = vrot.lane.b32.xlu0 %v3205, 24
  %v5076 = vpop.permute.xlu0 %5075
  %5077 = vrot.lane.b32.xlu0 %v3206, 24
  %v5078 = vpop.permute.xlu0 %5077
  %5079 = vrot.lane.b32.xlu0 %v3207, 24
  %v5080 = vpop.permute.xlu0 %5079
  %5081 = vrot.lane.b32.xlu0 %v3208, 24
  %v5082 = vpop.permute.xlu0 %5081
  %5083 = vrot.lane.b32.xlu0 %v3209, 24
  %v5084 = vpop.permute.xlu0 %5083
  %5085 = vrot.lane.b32.xlu0 %v3210, 24
  %v5086 = vpop.permute.xlu0 %5085
  %5087 = vrot.lane.b32.xlu0 %v3211, 24
  %v5088 = vpop.permute.xlu0 %5087
  %5089 = vrot.lane.b32.xlu0 %v3212, 24
  %v5090 = vpop.permute.xlu0 %5089
  %5091 = vrot.lane.b32.xlu0 %v3213, 24
  %v5092 = vpop.permute.xlu0 %5091
  %5093 = vrot.lane.b32.xlu0 %v3214, 24
  %v5094 = vpop.permute.xlu0 %5093
  %5095 = vrot.lane.b32.xlu0 %v3215, 24
  %v5096 = vpop.permute.xlu0 %5095
  %5097 = vrot.lane.b32.xlu0 %v3216, 24
  %v5098 = vpop.permute.xlu0 %5097
  %5099 = vrot.lane.b32.xlu0 %v3217, 24
  %v5100 = vpop.permute.xlu0 %5099
  %5101 = vrot.lane.b32.xlu0 %v3218, 24
  %v5102 = vpop.permute.xlu0 %5101
  %5103 = vrot.lane.b32.xlu0 %v3219, 24
  %v5104 = vpop.permute.xlu0 %5103
  %5105 = vrot.lane.b32.xlu0 %v3220, 24
  %v5106 = vpop.permute.xlu0 %5105
  %5107 = vrot.lane.b32.xlu0 %v3221, 24
  %v5108 = vpop.permute.xlu0 %5107
  %5109 = vrot.lane.b32.xlu0 %v3222, 24
  %v5110 = vpop.permute.xlu0 %5109
  %5111 = vrot.lane.b32.xlu0 %v3223, 24
  %v5112 = vpop.permute.xlu0 %5111
  %5113 = vrot.lane.b32.xlu0 %v3224, 24
  %v5114 = vpop.permute.xlu0 %5113
  %5115 = vrot.lane.b32.xlu0 %v3225, 24
  %v5116 = vpop.permute.xlu0 %5115
  %5117 = vrot.lane.b32.xlu0 %v3226, 24
  %v5118 = vpop.permute.xlu0 %5117
  %5119 = vrot.lane.b32.xlu0 %v3227, 24
  %v5120 = vpop.permute.xlu0 %5119
  %5121 = vrot.lane.b32.xlu0 %v3228, 24
  %v5122 = vpop.permute.xlu0 %5121
  %5123 = vrot.lane.b32.xlu0 %v3229, 24
  %v5124 = vpop.permute.xlu0 %5123
  %5125 = vrot.lane.b32.xlu0 %v3230, 24
  %v5126 = vpop.permute.xlu0 %5125
  %5127 = vrot.lane.b32.xlu0 %v3231, 24
  %v5128 = vpop.permute.xlu0 %5127
  %5129 = vrot.lane.b32.xlu0 %v3232, 24
  %v5130 = vpop.permute.xlu0 %5129
  %5131 = vrot.lane.b32.xlu0 %v3233, 24
  %v5132 = vpop.permute.xlu0 %5131
  %5133 = vrot.lane.b32.xlu0 %v3234, 24
  %v5134 = vpop.permute.xlu0 %5133
  %5135 = vrot.lane.b32.xlu0 %v3235, 24
  %v5136 = vpop.permute.xlu0 %5135
  %5137 = vrot.lane.b32.xlu0 %v3236, 24
  %v5138 = vpop.permute.xlu0 %5137
  %5139 = vrot.lane.b32.xlu0 %v3237, 24
  %v5140 = vpop.permute.xlu0 %5139
  %5141 = vrot.lane.b32.xlu0 %v3238, 24
  %v5142 = vpop.permute.xlu0 %5141
  %5143 = vrot.lane.b32.xlu0 %v3239, 24
  %v5144 = vpop.permute.xlu0 %5143
  %5145 = vrot.lane.b32.xlu0 %v3240, 24
  %v5146 = vpop.permute.xlu0 %5145
  %5147 = vrot.lane.b32.xlu0 %v3241, 24
  %v5148 = vpop.permute.xlu0 %5147
  %5149 = vrot.lane.b32.xlu0 %v3242, 24
  %v5150 = vpop.permute.xlu0 %5149
  %5151 = vrot.lane.b32.xlu0 %v3243, 24
  %v5152 = vpop.permute.xlu0 %5151
  %5153 = vrot.lane.b32.xlu0 %v3244, 24
  %v5154 = vpop.permute.xlu0 %5153
  %5155 = vrot.lane.b32.xlu0 %v3245, 24
  %v5156 = vpop.permute.xlu0 %5155
  %5157 = vrot.lane.b32.xlu0 %v3246, 24
  %v5158 = vpop.permute.xlu0 %5157
  %5159 = vrot.lane.b32.xlu0 %v3247, 24
  %v5160 = vpop.permute.xlu0 %5159
  %5161 = vrot.lane.b32.xlu0 %v3248, 24
  %v5162 = vpop.permute.xlu0 %5161
  %5163 = vrot.lane.b32.xlu0 %v3249, 24
  %v5164 = vpop.permute.xlu0 %5163
  %5165 = vrot.lane.b32.xlu0 %v3250, 24
  %v5166 = vpop.permute.xlu0 %5165
  %5167 = vrot.lane.b32.xlu0 %v3251, 24
  %v5168 = vpop.permute.xlu0 %5167
  %5169 = vrot.lane.b32.xlu0 %v3252, 24
  %v5170 = vpop.permute.xlu0 %5169
  %5171 = vrot.lane.b32.xlu0 %v3253, 24
  %v5172 = vpop.permute.xlu0 %5171
  %5173 = vrot.lane.b32.xlu0 %v3254, 24
  %v5174 = vpop.permute.xlu0 %5173
  %5175 = vrot.lane.b32.xlu0 %v3255, 24
  %v5176 = vpop.permute.xlu0 %5175
  %5177 = vrot.lane.b32.xlu0 %v3256, 24
  %v5178 = vpop.permute.xlu0 %5177
  %5179 = vrot.lane.b32.xlu0 %v3257, 24
  %v5180 = vpop.permute.xlu0 %5179
  %5181 = vrot.lane.b32.xlu0 %v3258, 24
  %v5182 = vpop.permute.xlu0 %5181
  %5311 = vrot.lane.b32.xlu0 %v3389, 28
  %v5312 = vpop.permute.xlu0 %5311
  %5313 = vrot.lane.b32.xlu0 %v3390, 28
  %v5314 = vpop.permute.xlu0 %5313
  %5315 = vrot.lane.b32.xlu0 %v3391, 28
  %v5316 = vpop.permute.xlu0 %5315
  %5317 = vrot.lane.b32.xlu0 %v3392, 28
  %v5318 = vpop.permute.xlu0 %5317
  %5319 = vrot.lane.b32.xlu0 %v3393, 28
  %v5320 = vpop.permute.xlu0 %5319
  %5321 = vrot.lane.b32.xlu0 %v3394, 28
  %v5322 = vpop.permute.xlu0 %5321
  %5323 = vrot.lane.b32.xlu0 %v3395, 28
  %v5324 = vpop.permute.xlu0 %5323
  %5325 = vrot.lane.b32.xlu0 %v3396, 28
  %v5326 = vpop.permute.xlu0 %5325
  %5327 = vrot.lane.b32.xlu0 %v3397, 28
  %v5328 = vpop.permute.xlu0 %5327
  %5329 = vrot.lane.b32.xlu0 %v3398, 28
  %v5330 = vpop.permute.xlu0 %5329
  %5331 = vrot.lane.b32.xlu0 %v3399, 28
  %v5332 = vpop.permute.xlu0 %5331
  %5333 = vrot.lane.b32.xlu0 %v3400, 28
  %v5334 = vpop.permute.xlu0 %5333
  %5335 = vrot.lane.b32.xlu0 %v3401, 28
  %v5336 = vpop.permute.xlu0 %5335
  %5337 = vrot.lane.b32.xlu0 %v3402, 28
  %v5338 = vpop.permute.xlu0 %5337
  %5339 = vrot.lane.b32.xlu0 %v3403, 28
  %v5340 = vpop.permute.xlu0 %5339
  %5341 = vrot.lane.b32.xlu0 %v3404, 28
  %v5342 = vpop.permute.xlu0 %5341
  %5343 = vrot.lane.b32.xlu0 %v3405, 28
  %v5344 = vpop.permute.xlu0 %5343
  %5345 = vrot.lane.b32.xlu0 %v3406, 28
  %v5346 = vpop.permute.xlu0 %5345
  %5347 = vrot.lane.b32.xlu0 %v3407, 28
  %v5348 = vpop.permute.xlu0 %5347
  %5349 = vrot.lane.b32.xlu0 %v3408, 28
  %v5350 = vpop.permute.xlu0 %5349
  %5351 = vrot.lane.b32.xlu0 %v3409, 28
  %v5352 = vpop.permute.xlu0 %5351
  %5353 = vrot.lane.b32.xlu0 %v3410, 28
  %v5354 = vpop.permute.xlu0 %5353
  %5355 = vrot.lane.b32.xlu0 %v3411, 28
  %v5356 = vpop.permute.xlu0 %5355
  %5357 = vrot.lane.b32.xlu0 %v3412, 28
  %v5358 = vpop.permute.xlu0 %5357
  %5359 = vrot.lane.b32.xlu0 %v3413, 28
  %v5360 = vpop.permute.xlu0 %5359
  %5361 = vrot.lane.b32.xlu0 %v3414, 28
  %v5362 = vpop.permute.xlu0 %5361
  %5363 = vrot.lane.b32.xlu0 %v3415, 28
  %v5364 = vpop.permute.xlu0 %5363
  %5365 = vrot.lane.b32.xlu0 %v3416, 28
  %v5366 = vpop.permute.xlu0 %5365
  %5367 = vrot.lane.b32.xlu0 %v3417, 28
  %v5368 = vpop.permute.xlu0 %5367
  %5369 = vrot.lane.b32.xlu0 %v3418, 28
  %v5370 = vpop.permute.xlu0 %5369
  %5371 = vrot.lane.b32.xlu0 %v3419, 28
  %v5372 = vpop.permute.xlu0 %5371
  %5373 = vrot.lane.b32.xlu0 %v3420, 28
  %v5374 = vpop.permute.xlu0 %5373
  %5375 = vrot.lane.b32.xlu0 %v3421, 28
  %v5376 = vpop.permute.xlu0 %5375
  %5377 = vrot.lane.b32.xlu0 %v3422, 28
  %v5378 = vpop.permute.xlu0 %5377
  %5379 = vrot.lane.b32.xlu0 %v3423, 28
  %v5380 = vpop.permute.xlu0 %5379
  %5381 = vrot.lane.b32.xlu0 %v3424, 28
  %v5382 = vpop.permute.xlu0 %5381
  %5383 = vrot.lane.b32.xlu0 %v3425, 28
  %v5384 = vpop.permute.xlu0 %5383
  %5385 = vrot.lane.b32.xlu0 %v3426, 28
  %v5386 = vpop.permute.xlu0 %5385
  %5387 = vrot.lane.b32.xlu0 %v3427, 28
  %v5388 = vpop.permute.xlu0 %5387
  %5389 = vrot.lane.b32.xlu0 %v3428, 28
  %v5390 = vpop.permute.xlu0 %5389
  %5391 = vrot.lane.b32.xlu0 %v3429, 28
  %v5392 = vpop.permute.xlu0 %5391
  %5393 = vrot.lane.b32.xlu0 %v3430, 28
  %v5394 = vpop.permute.xlu0 %5393
  %5395 = vrot.lane.b32.xlu0 %v3431, 28
  %v5396 = vpop.permute.xlu0 %5395
  %5397 = vrot.lane.b32.xlu0 %v3432, 28
  %v5398 = vpop.permute.xlu0 %5397
  %5399 = vrot.lane.b32.xlu0 %v3433, 28
  %v5400 = vpop.permute.xlu0 %5399
  %5401 = vrot.lane.b32.xlu0 %v3434, 28
  %v5402 = vpop.permute.xlu0 %5401
  %5403 = vrot.lane.b32.xlu0 %v3435, 28
  %v5404 = vpop.permute.xlu0 %5403
  %5405 = vrot.lane.b32.xlu0 %v3436, 28
  %v5406 = vpop.permute.xlu0 %5405
  %5407 = vrot.lane.b32.xlu0 %v3437, 28
  %v5408 = vpop.permute.xlu0 %5407
  %5409 = vrot.lane.b32.xlu0 %v3438, 28
  %v5410 = vpop.permute.xlu0 %5409
  %5411 = vrot.lane.b32.xlu0 %v3439, 28
  %v5412 = vpop.permute.xlu0 %5411
  %5413 = vrot.lane.b32.xlu0 %v3440, 28
  %v5414 = vpop.permute.xlu0 %5413
  %5415 = vrot.lane.b32.xlu0 %v3441, 28
  %v5416 = vpop.permute.xlu0 %5415
  %5417 = vrot.lane.b32.xlu0 %v3442, 28
  %v5418 = vpop.permute.xlu0 %5417
  %5419 = vrot.lane.b32.xlu0 %v3443, 28
  %v5420 = vpop.permute.xlu0 %5419
  %5421 = vrot.lane.b32.xlu0 %v3444, 28
  %v5422 = vpop.permute.xlu0 %5421
  %5423 = vrot.lane.b32.xlu0 %v3445, 28
  %v5424 = vpop.permute.xlu0 %5423
  %5425 = vrot.lane.b32.xlu0 %v3446, 28
  %v5426 = vpop.permute.xlu0 %5425
  %5427 = vrot.lane.b32.xlu0 %v3447, 28
  %v5428 = vpop.permute.xlu0 %5427
  %5429 = vrot.lane.b32.xlu0 %v3448, 28
  %v5430 = vpop.permute.xlu0 %5429
  %5431 = vrot.lane.b32.xlu0 %v3449, 28
  %v5432 = vpop.permute.xlu0 %5431
  %5433 = vrot.lane.b32.xlu0 %v3450, 28
  %v5434 = vpop.permute.xlu0 %5433
  %5435 = vrot.lane.b32.xlu0 %v3451, 28
  %v5436 = vpop.permute.xlu0 %5435
  %5437 = vrot.lane.b32.xlu0 %v3452, 28
  %v5438 = vpop.permute.xlu0 %5437
  %5567 = vrot.lane.b32.xlu0 %v3647, 32
  %v5568 = vpop.permute.xlu0 %5567
  %5569 = vrot.lane.b32.xlu0 %v3648, 32
  %v5570 = vpop.permute.xlu0 %5569
  %5571 = vrot.lane.b32.xlu0 %v3649, 32
  %v5572 = vpop.permute.xlu0 %5571
  %5573 = vrot.lane.b32.xlu0 %v3650, 32
  %v5574 = vpop.permute.xlu0 %5573
  %5575 = vrot.lane.b32.xlu0 %v3651, 32
  %v5576 = vpop.permute.xlu0 %5575
  %5577 = vrot.lane.b32.xlu0 %v3652, 32
  %v5578 = vpop.permute.xlu0 %5577
  %5579 = vrot.lane.b32.xlu0 %v3653, 32
  %v5580 = vpop.permute.xlu0 %5579
  %5581 = vrot.lane.b32.xlu0 %v3654, 32
  %v5582 = vpop.permute.xlu0 %5581
  %5583 = vrot.lane.b32.xlu0 %v3655, 32
  %v5584 = vpop.permute.xlu0 %5583
  %5585 = vrot.lane.b32.xlu0 %v3656, 32
  %v5586 = vpop.permute.xlu0 %5585
  %5587 = vrot.lane.b32.xlu0 %v3657, 32
  %v5588 = vpop.permute.xlu0 %5587
  %5589 = vrot.lane.b32.xlu0 %v3658, 32
  %v5590 = vpop.permute.xlu0 %5589
  %5591 = vrot.lane.b32.xlu0 %v3659, 32
  %v5592 = vpop.permute.xlu0 %5591
  %5593 = vrot.lane.b32.xlu0 %v3660, 32
  %v5594 = vpop.permute.xlu0 %5593
  %5595 = vrot.lane.b32.xlu0 %v3661, 32
  %v5596 = vpop.permute.xlu0 %5595
  %5597 = vrot.lane.b32.xlu0 %v3662, 32
  %v5598 = vpop.permute.xlu0 %5597
  %5599 = vrot.lane.b32.xlu0 %v3663, 32
  %v5600 = vpop.permute.xlu0 %5599
  %5601 = vrot.lane.b32.xlu0 %v3664, 32
  %v5602 = vpop.permute.xlu0 %5601
  %5603 = vrot.lane.b32.xlu0 %v3665, 32
  %v5604 = vpop.permute.xlu0 %5603
  %5605 = vrot.lane.b32.xlu0 %v3666, 32
  %v5606 = vpop.permute.xlu0 %5605
  %5607 = vrot.lane.b32.xlu0 %v3667, 32
  %v5608 = vpop.permute.xlu0 %5607
  %5609 = vrot.lane.b32.xlu0 %v3668, 32
  %v5610 = vpop.permute.xlu0 %5609
  %5611 = vrot.lane.b32.xlu0 %v3669, 32
  %v5612 = vpop.permute.xlu0 %5611
  %5613 = vrot.lane.b32.xlu0 %v3670, 32
  %v5614 = vpop.permute.xlu0 %5613
  %5615 = vrot.lane.b32.xlu0 %v3671, 32
  %v5616 = vpop.permute.xlu0 %5615
  %5617 = vrot.lane.b32.xlu0 %v3672, 32
  %v5618 = vpop.permute.xlu0 %5617
  %5619 = vrot.lane.b32.xlu0 %v3673, 32
  %v5620 = vpop.permute.xlu0 %5619
  %5621 = vrot.lane.b32.xlu0 %v3674, 32
  %v5622 = vpop.permute.xlu0 %5621
  %5623 = vrot.lane.b32.xlu0 %v3675, 32
  %v5624 = vpop.permute.xlu0 %5623
  %5625 = vrot.lane.b32.xlu0 %v3676, 32
  %v5626 = vpop.permute.xlu0 %5625
  %5627 = vrot.lane.b32.xlu0 %v3677, 32
  %v5628 = vpop.permute.xlu0 %5627
  %5629 = vrot.lane.b32.xlu0 %v3678, 32
  %v5630 = vpop.permute.xlu0 %5629
  %5631 = vrot.lane.b32.xlu0 %v3679, 32
  %v5632 = vpop.permute.xlu0 %5631
  %5633 = vrot.lane.b32.xlu0 %v3680, 32
  %v5634 = vpop.permute.xlu0 %5633
  %5635 = vrot.lane.b32.xlu0 %v3681, 32
  %v5636 = vpop.permute.xlu0 %5635
  %5637 = vrot.lane.b32.xlu0 %v3682, 32
  %v5638 = vpop.permute.xlu0 %5637
  %5639 = vrot.lane.b32.xlu0 %v3683, 32
  %v5640 = vpop.permute.xlu0 %5639
  %5641 = vrot.lane.b32.xlu0 %v3684, 32
  %v5642 = vpop.permute.xlu0 %5641
  %5643 = vrot.lane.b32.xlu0 %v3685, 32
  %v5644 = vpop.permute.xlu0 %5643
  %5645 = vrot.lane.b32.xlu0 %v3686, 32
  %v5646 = vpop.permute.xlu0 %5645
  %5647 = vrot.lane.b32.xlu0 %v3687, 32
  %v5648 = vpop.permute.xlu0 %5647
  %5649 = vrot.lane.b32.xlu0 %v3688, 32
  %v5650 = vpop.permute.xlu0 %5649
  %5651 = vrot.lane.b32.xlu0 %v3689, 32
  %v5652 = vpop.permute.xlu0 %5651
  %5653 = vrot.lane.b32.xlu0 %v3690, 32
  %v5654 = vpop.permute.xlu0 %5653
  %5655 = vrot.lane.b32.xlu0 %v3691, 32
  %v5656 = vpop.permute.xlu0 %5655
  %5657 = vrot.lane.b32.xlu0 %v3692, 32
  %v5658 = vpop.permute.xlu0 %5657
  %5659 = vrot.lane.b32.xlu0 %v3693, 32
  %v5660 = vpop.permute.xlu0 %5659
  %5661 = vrot.lane.b32.xlu0 %v3694, 32
  %v5662 = vpop.permute.xlu0 %5661
  %5663 = vrot.lane.b32.xlu0 %v3695, 32
  %v5664 = vpop.permute.xlu0 %5663
  %5665 = vrot.lane.b32.xlu0 %v3696, 32
  %v5666 = vpop.permute.xlu0 %5665
  %5667 = vrot.lane.b32.xlu0 %v3697, 32
  %v5668 = vpop.permute.xlu0 %5667
  %5669 = vrot.lane.b32.xlu0 %v3698, 32
  %v5670 = vpop.permute.xlu0 %5669
  %5671 = vrot.lane.b32.xlu0 %v3699, 32
  %v5672 = vpop.permute.xlu0 %5671
  %5673 = vrot.lane.b32.xlu0 %v3700, 32
  %v5674 = vpop.permute.xlu0 %5673
  %5675 = vrot.lane.b32.xlu0 %v3701, 32
  %v5676 = vpop.permute.xlu0 %5675
  %5677 = vrot.lane.b32.xlu0 %v3702, 32
  %v5678 = vpop.permute.xlu0 %5677
  %5679 = vrot.lane.b32.xlu0 %v3703, 32
  %v5680 = vpop.permute.xlu0 %5679
  %5681 = vrot.lane.b32.xlu0 %v3704, 32
  %v5682 = vpop.permute.xlu0 %5681
  %5683 = vrot.lane.b32.xlu0 %v3705, 32
  %v5684 = vpop.permute.xlu0 %5683
  %5685 = vrot.lane.b32.xlu0 %v3706, 32
  %v5686 = vpop.permute.xlu0 %5685
  %5687 = vrot.lane.b32.xlu0 %v3707, 32
  %v5688 = vpop.permute.xlu0 %5687
  %5689 = vrot.lane.b32.xlu0 %v3708, 32
  %v5690 = vpop.permute.xlu0 %5689
  %5691 = vrot.lane.b32.xlu0 %v3709, 32
  %v5692 = vpop.permute.xlu0 %5691
  %5693 = vrot.lane.b32.xlu0 %v3710, 32
  %v5694 = vpop.permute.xlu0 %5693
  %v5759 = vsel %vm528, %v1971, %v3776
  %v5760 = vsel %vm528, %v1972, %v3778
  %v5761 = vsel %vm528, %v1973, %v3780
  %v5762 = vsel %vm528, %v1974, %v3782
  %v5763 = vsel %vm528, %v1975, %v3784
  %v5764 = vsel %vm528, %v1976, %v3786
  %v5765 = vsel %vm528, %v1977, %v3788
  %v5766 = vsel %vm528, %v1978, %v3790
  %v5767 = vsel %vm528, %v1979, %v3792
  %v5768 = vsel %vm528, %v1980, %v3794
  %v5769 = vsel %vm528, %v1981, %v3796
  %v5770 = vsel %vm528, %v1982, %v3798
  %v5771 = vsel %vm528, %v1983, %v3800
  %v5772 = vsel %vm528, %v1984, %v3802
  %v5773 = vsel %vm528, %v1985, %v3804
  %v5774 = vsel %vm528, %v1986, %v3806
  %v5775 = vsel %vm528, %v1987, %v3808
  %v5776 = vsel %vm528, %v1988, %v3810
  %v5777 = vsel %vm528, %v1989, %v3812
  %v5778 = vsel %vm528, %v1990, %v3814
  %v5779 = vsel %vm528, %v1991, %v3816
  %v5780 = vsel %vm528, %v1992, %v3818
  %v5781 = vsel %vm528, %v1993, %v3820
  %v5782 = vsel %vm528, %v1994, %v3822
  %v5783 = vsel %vm528, %v1995, %v3824
  %v5784 = vsel %vm528, %v1996, %v3826
  %v5785 = vsel %vm528, %v1997, %v3828
  %v5786 = vsel %vm528, %v1998, %v3830
  %v5787 = vsel %vm528, %v1999, %v3832
  %v5788 = vsel %vm528, %v2000, %v3834
  %v5789 = vsel %vm528, %v2001, %v3836
  %v5790 = vsel %vm528, %v2002, %v3838
  %v5791 = vsel %vm528, %v2003, %v3840
  %v5792 = vsel %vm528, %v2004, %v3842
  %v5793 = vsel %vm528, %v2005, %v3844
  %v5794 = vsel %vm528, %v2006, %v3846
  %v5795 = vsel %vm528, %v2007, %v3848
  %v5796 = vsel %vm528, %v2008, %v3850
  %v5797 = vsel %vm528, %v2009, %v3852
  %v5798 = vsel %vm528, %v2010, %v3854
  %v5799 = vsel %vm528, %v2011, %v3856
  %v5800 = vsel %vm528, %v2012, %v3858
  %v5801 = vsel %vm528, %v2013, %v3860
  %v5802 = vsel %vm528, %v2014, %v3862
  %v5803 = vsel %vm528, %v2015, %v3864
  %v5804 = vsel %vm528, %v2016, %v3866
  %v5805 = vsel %vm528, %v2017, %v3868
  %v5806 = vsel %vm528, %v2018, %v3870
  %v5807 = vsel %vm528, %v2019, %v3872
  %v5808 = vsel %vm528, %v2020, %v3874
  %v5809 = vsel %vm528, %v2021, %v3876
  %v5810 = vsel %vm528, %v2022, %v3878
  %v5811 = vsel %vm528, %v2023, %v3880
  %v5812 = vsel %vm528, %v2024, %v3882
  %v5813 = vsel %vm528, %v2025, %v3884
  %v5814 = vsel %vm528, %v2026, %v3886
  %v5815 = vsel %vm528, %v2027, %v3888
  %v5816 = vsel %vm528, %v2028, %v3890
  %v5817 = vsel %vm528, %v2029, %v3892
  %v5818 = vsel %vm528, %v2030, %v3894
  %v5819 = vsel %vm528, %v2031, %v3896
  %v5820 = vsel %vm528, %v2032, %v3898
  %v5821 = vsel %vm528, %v2033, %v3900
  %v5822 = vsel %vm528, %v2034, %v3902
  %vm5823 = vcmask 64512
  %v5824 = vsel %vm5823, %v5759, %v4032
  %v5825 = vsel %vm5823, %v5760, %v4034
  %v5826 = vsel %vm5823, %v5761, %v4036
  %v5827 = vsel %vm5823, %v5762, %v4038
  %v5828 = vsel %vm5823, %v5763, %v4040
  %v5829 = vsel %vm5823, %v5764, %v4042
  %v5830 = vsel %vm5823, %v5765, %v4044
  %v5831 = vsel %vm5823, %v5766, %v4046
  %v5832 = vsel %vm5823, %v5767, %v4048
  %v5833 = vsel %vm5823, %v5768, %v4050
  %v5834 = vsel %vm5823, %v5769, %v4052
  %v5835 = vsel %vm5823, %v5770, %v4054
  %v5836 = vsel %vm5823, %v5771, %v4056
  %v5837 = vsel %vm5823, %v5772, %v4058
  %v5838 = vsel %vm5823, %v5773, %v4060
  %v5839 = vsel %vm5823, %v5774, %v4062
  %v5840 = vsel %vm5823, %v5775, %v4064
  %v5841 = vsel %vm5823, %v5776, %v4066
  %v5842 = vsel %vm5823, %v5777, %v4068
  %v5843 = vsel %vm5823, %v5778, %v4070
  %v5844 = vsel %vm5823, %v5779, %v4072
  %v5845 = vsel %vm5823, %v5780, %v4074
  %v5846 = vsel %vm5823, %v5781, %v4076
  %v5847 = vsel %vm5823, %v5782, %v4078
  %v5848 = vsel %vm5823, %v5783, %v4080
  %v5849 = vsel %vm5823, %v5784, %v4082
  %v5850 = vsel %vm5823, %v5785, %v4084
  %v5851 = vsel %vm5823, %v5786, %v4086
  %v5852 = vsel %vm5823, %v5787, %v4088
  %v5853 = vsel %vm5823, %v5788, %v4090
  %v5854 = vsel %vm5823, %v5789, %v4092
  %v5855 = vsel %vm5823, %v5790, %v4094
  %v5856 = vsel %vm5823, %v5791, %v4096
  %v5857 = vsel %vm5823, %v5792, %v4098
  %v5858 = vsel %vm5823, %v5793, %v4100
  %v5859 = vsel %vm5823, %v5794, %v4102
  %v5860 = vsel %vm5823, %v5795, %v4104
  %v5861 = vsel %vm5823, %v5796, %v4106
  %v5862 = vsel %vm5823, %v5797, %v4108
  %v5863 = vsel %vm5823, %v5798, %v4110
  %v5864 = vsel %vm5823, %v5799, %v4112
  %v5865 = vsel %vm5823, %v5800, %v4114
  %v5866 = vsel %vm5823, %v5801, %v4116
  %v5867 = vsel %vm5823, %v5802, %v4118
  %v5868 = vsel %vm5823, %v5803, %v4120
  %v5869 = vsel %vm5823, %v5804, %v4122
  %v5870 = vsel %vm5823, %v5805, %v4124
  %v5871 = vsel %vm5823, %v5806, %v4126
  %v5872 = vsel %vm5823, %v5807, %v4128
  %v5873 = vsel %vm5823, %v5808, %v4130
  %v5874 = vsel %vm5823, %v5809, %v4132
  %v5875 = vsel %vm5823, %v5810, %v4134
  %v5876 = vsel %vm5823, %v5811, %v4136
  %v5877 = vsel %vm5823, %v5812, %v4138
  %v5878 = vsel %vm5823, %v5813, %v4140
  %v5879 = vsel %vm5823, %v5814, %v4142
  %v5880 = vsel %vm5823, %v5815, %v4144
  %v5881 = vsel %vm5823, %v5816, %v4146
  %v5882 = vsel %vm5823, %v5817, %v4148
  %v5883 = vsel %vm5823, %v5818, %v4150
  %v5884 = vsel %vm5823, %v5819, %v4152
  %v5885 = vsel %vm5823, %v5820, %v4154
  %v5886 = vsel %vm5823, %v5821, %v4156
  %v5887 = vsel %vm5823, %v5822, %v4158
  %vm5888 = vcmask 97280
  %v5889 = vsel %vm5888, %v5824, %v4288
  %v5890 = vsel %vm5888, %v5825, %v4290
  %v5891 = vsel %vm5888, %v5826, %v4292
  %v5892 = vsel %vm5888, %v5827, %v4294
  %v5893 = vsel %vm5888, %v5828, %v4296
  %v5894 = vsel %vm5888, %v5829, %v4298
  %v5895 = vsel %vm5888, %v5830, %v4300
  %v5896 = vsel %vm5888, %v5831, %v4302
  %v5897 = vsel %vm5888, %v5832, %v4304
  %v5898 = vsel %vm5888, %v5833, %v4306
  %v5899 = vsel %vm5888, %v5834, %v4308
  %v5900 = vsel %vm5888, %v5835, %v4310
  %v5901 = vsel %vm5888, %v5836, %v4312
  %v5902 = vsel %vm5888, %v5837, %v4314
  %v5903 = vsel %vm5888, %v5838, %v4316
  %v5904 = vsel %vm5888, %v5839, %v4318
  %v5905 = vsel %vm5888, %v5840, %v4320
  %v5906 = vsel %vm5888, %v5841, %v4322
  %v5907 = vsel %vm5888, %v5842, %v4324
  %v5908 = vsel %vm5888, %v5843, %v4326
  %v5909 = vsel %vm5888, %v5844, %v4328
  %v5910 = vsel %vm5888, %v5845, %v4330
  %v5911 = vsel %vm5888, %v5846, %v4332
  %v5912 = vsel %vm5888, %v5847, %v4334
  %v5913 = vsel %vm5888, %v5848, %v4336
  %v5914 = vsel %vm5888, %v5849, %v4338
  %v5915 = vsel %vm5888, %v5850, %v4340
  %v5916 = vsel %vm5888, %v5851, %v4342
  %v5917 = vsel %vm5888, %v5852, %v4344
  %v5918 = vsel %vm5888, %v5853, %v4346
  %v5919 = vsel %vm5888, %v5854, %v4348
  %v5920 = vsel %vm5888, %v5855, %v4350
  %v5921 = vsel %vm5888, %v5856, %v4352
  %v5922 = vsel %vm5888, %v5857, %v4354
  %v5923 = vsel %vm5888, %v5858, %v4356
  %v5924 = vsel %vm5888, %v5859, %v4358
  %v5925 = vsel %vm5888, %v5860, %v4360
  %v5926 = vsel %vm5888, %v5861, %v4362
  %v5927 = vsel %vm5888, %v5862, %v4364
  %v5928 = vsel %vm5888, %v5863, %v4366
  %v5929 = vsel %vm5888, %v5864, %v4368
  %v5930 = vsel %vm5888, %v5865, %v4370
  %v5931 = vsel %vm5888, %v5866, %v4372
  %v5932 = vsel %vm5888, %v5867, %v4374
  %v5933 = vsel %vm5888, %v5868, %v4376
  %v5934 = vsel %vm5888, %v5869, %v4378
  %v5935 = vsel %vm5888, %v5870, %v4380
  %v5936 = vsel %vm5888, %v5871, %v4382
  %v5937 = vsel %vm5888, %v5872, %v4384
  %v5938 = vsel %vm5888, %v5873, %v4386
  %v5939 = vsel %vm5888, %v5874, %v4388
  %v5940 = vsel %vm5888, %v5875, %v4390
  %v5941 = vsel %vm5888, %v5876, %v4392
  %v5942 = vsel %vm5888, %v5877, %v4394
  %v5943 = vsel %vm5888, %v5878, %v4396
  %v5944 = vsel %vm5888, %v5879, %v4398
  %v5945 = vsel %vm5888, %v5880, %v4400
  %v5946 = vsel %vm5888, %v5881, %v4402
  %v5947 = vsel %vm5888, %v5882, %v4404
  %v5948 = vsel %vm5888, %v5883, %v4406
  %v5949 = vsel %vm5888, %v5884, %v4408
  %v5950 = vsel %vm5888, %v5885, %v4410
  %v5951 = vsel %vm5888, %v5886, %v4412
  %v5952 = vsel %vm5888, %v5887, %v4414
  %v5953 = vsel %vm140, %v5889, %v4544
  %v5954 = vsel %vm140, %v5890, %v4546
  %v5955 = vsel %vm140, %v5891, %v4548
  %v5956 = vsel %vm140, %v5892, %v4550
  %v5957 = vsel %vm140, %v5893, %v4552
  %v5958 = vsel %vm140, %v5894, %v4554
  %v5959 = vsel %vm140, %v5895, %v4556
  %v5960 = vsel %vm140, %v5896, %v4558
  %v5961 = vsel %vm140, %v5897, %v4560
  %v5962 = vsel %vm140, %v5898, %v4562
  %v5963 = vsel %vm140, %v5899, %v4564
  %v5964 = vsel %vm140, %v5900, %v4566
  %v5965 = vsel %vm140, %v5901, %v4568
  %v5966 = vsel %vm140, %v5902, %v4570
  %v5967 = vsel %vm140, %v5903, %v4572
  %v5968 = vsel %vm140, %v5904, %v4574
  %v5969 = vsel %vm140, %v5905, %v4576
  %v5970 = vsel %vm140, %v5906, %v4578
  %v5971 = vsel %vm140, %v5907, %v4580
  %v5972 = vsel %vm140, %v5908, %v4582
  %v5973 = vsel %vm140, %v5909, %v4584
  %v5974 = vsel %vm140, %v5910, %v4586
  %v5975 = vsel %vm140, %v5911, %v4588
  %v5976 = vsel %vm140, %v5912, %v4590
  %v5977 = vsel %vm140, %v5913, %v4592
  %v5978 = vsel %vm140, %v5914, %v4594
  %v5979 = vsel %vm140, %v5915, %v4596
  %v5980 = vsel %vm140, %v5916, %v4598
  %v5981 = vsel %vm140, %v5917, %v4600
  %v5982 = vsel %vm140, %v5918, %v4602
  %v5983 = vsel %vm140, %v5919, %v4604
  %v5984 = vsel %vm140, %v5920, %v4606
  %v5985 = vsel %vm140, %v5921, %v4608
  %v5986 = vsel %vm140, %v5922, %v4610
  %v5987 = vsel %vm140, %v5923, %v4612
  %v5988 = vsel %vm140, %v5924, %v4614
  %v5989 = vsel %vm140, %v5925, %v4616
  %v5990 = vsel %vm140, %v5926, %v4618
  %v5991 = vsel %vm140, %v5927, %v4620
  %v5992 = vsel %vm140, %v5928, %v4622
  %v5993 = vsel %vm140, %v5929, %v4624
  %v5994 = vsel %vm140, %v5930, %v4626
  %v5995 = vsel %vm140, %v5931, %v4628
  %v5996 = vsel %vm140, %v5932, %v4630
  %v5997 = vsel %vm140, %v5933, %v4632
  %v5998 = vsel %vm140, %v5934, %v4634
  %v5999 = vsel %vm140, %v5935, %v4636
  %v6000 = vsel %vm140, %v5936, %v4638
  %v6001 = vsel %vm140, %v5937, %v4640
  %v6002 = vsel %vm140, %v5938, %v4642
  %v6003 = vsel %vm140, %v5939, %v4644
  %v6004 = vsel %vm140, %v5940, %v4646
  %v6005 = vsel %vm140, %v5941, %v4648
  %v6006 = vsel %vm140, %v5942, %v4650
  %v6007 = vsel %vm140, %v5943, %v4652
  %v6008 = vsel %vm140, %v5944, %v4654
  %v6009 = vsel %vm140, %v5945, %v4656
  %v6010 = vsel %vm140, %v5946, %v4658
  %v6011 = vsel %vm140, %v5947, %v4660
  %v6012 = vsel %vm140, %v5948, %v4662
  %v6013 = vsel %vm140, %v5949, %v4664
  %v6014 = vsel %vm140, %v5950, %v4666
  %v6015 = vsel %vm140, %v5951, %v4668
  %v6016 = vsel %vm140, %v5952, %v4670
  %vm6017 = vcmask 162816
  %v6018 = vsel %vm6017, %v5953, %v4800
  %v6019 = vsel %vm6017, %v5954, %v4802
  %v6020 = vsel %vm6017, %v5955, %v4804
  %v6021 = vsel %vm6017, %v5956, %v4806
  %v6022 = vsel %vm6017, %v5957, %v4808
  %v6023 = vsel %vm6017, %v5958, %v4810
  %v6024 = vsel %vm6017, %v5959, %v4812
  %v6025 = vsel %vm6017, %v5960, %v4814
  %v6026 = vsel %vm6017, %v5961, %v4816
  %v6027 = vsel %vm6017, %v5962, %v4818
  %v6028 = vsel %vm6017, %v5963, %v4820
  %v6029 = vsel %vm6017, %v5964, %v4822
  %v6030 = vsel %vm6017, %v5965, %v4824
  %v6031 = vsel %vm6017, %v5966, %v4826
  %v6032 = vsel %vm6017, %v5967, %v4828
  %v6033 = vsel %vm6017, %v5968, %v4830
  %v6034 = vsel %vm6017, %v5969, %v4832
  %v6035 = vsel %vm6017, %v5970, %v4834
  %v6036 = vsel %vm6017, %v5971, %v4836
  %v6037 = vsel %vm6017, %v5972, %v4838
  %v6038 = vsel %vm6017, %v5973, %v4840
  %v6039 = vsel %vm6017, %v5974, %v4842
  %v6040 = vsel %vm6017, %v5975, %v4844
  %v6041 = vsel %vm6017, %v5976, %v4846
  %v6042 = vsel %vm6017, %v5977, %v4848
  %v6043 = vsel %vm6017, %v5978, %v4850
  %v6044 = vsel %vm6017, %v5979, %v4852
  %v6045 = vsel %vm6017, %v5980, %v4854
  %v6046 = vsel %vm6017, %v5981, %v4856
  %v6047 = vsel %vm6017, %v5982, %v4858
  %v6048 = vsel %vm6017, %v5983, %v4860
  %v6049 = vsel %vm6017, %v5984, %v4862
  %v6050 = vsel %vm6017, %v5985, %v4864
  %v6051 = vsel %vm6017, %v5986, %v4866
  %v6052 = vsel %vm6017, %v5987, %v4868
  %v6053 = vsel %vm6017, %v5988, %v4870
  %v6054 = vsel %vm6017, %v5989, %v4872
  %v6055 = vsel %vm6017, %v5990, %v4874
  %v6056 = vsel %vm6017, %v5991, %v4876
  %v6057 = vsel %vm6017, %v5992, %v4878
  %v6058 = vsel %vm6017, %v5993, %v4880
  %v6059 = vsel %vm6017, %v5994, %v4882
  %v6060 = vsel %vm6017, %v5995, %v4884
  %v6061 = vsel %vm6017, %v5996, %v4886
  %v6062 = vsel %vm6017, %v5997, %v4888
  %v6063 = vsel %vm6017, %v5998, %v4890
  %v6064 = vsel %vm6017, %v5999, %v4892
  %v6065 = vsel %vm6017, %v6000, %v4894
  %v6066 = vsel %vm6017, %v6001, %v4896
  %v6067 = vsel %vm6017, %v6002, %v4898
  %v6068 = vsel %vm6017, %v6003, %v4900
  %v6069 = vsel %vm6017, %v6004, %v4902
  %v6070 = vsel %vm6017, %v6005, %v4904
  %v6071 = vsel %vm6017, %v6006, %v4906
  %v6072 = vsel %vm6017, %v6007, %v4908
  %v6073 = vsel %vm6017, %v6008, %v4910
  %v6074 = vsel %vm6017, %v6009, %v4912
  %v6075 = vsel %vm6017, %v6010, %v4914
  %v6076 = vsel %vm6017, %v6011, %v4916
  %v6077 = vsel %vm6017, %v6012, %v4918
  %v6078 = vsel %vm6017, %v6013, %v4920
  %v6079 = vsel %vm6017, %v6014, %v4922
  %v6080 = vsel %vm6017, %v6015, %v4924
  %v6081 = vsel %vm6017, %v6016, %v4926
  %vm6082 = vcmask 195584
  %v6083 = vsel %vm6082, %v6018, %v5056
  %v6084 = vsel %vm6082, %v6019, %v5058
  %v6085 = vsel %vm6082, %v6020, %v5060
  %v6086 = vsel %vm6082, %v6021, %v5062
  %v6087 = vsel %vm6082, %v6022, %v5064
  %v6088 = vsel %vm6082, %v6023, %v5066
  %v6089 = vsel %vm6082, %v6024, %v5068
  %v6090 = vsel %vm6082, %v6025, %v5070
  %v6091 = vsel %vm6082, %v6026, %v5072
  %v6092 = vsel %vm6082, %v6027, %v5074
  %v6093 = vsel %vm6082, %v6028, %v5076
  %v6094 = vsel %vm6082, %v6029, %v5078
  %v6095 = vsel %vm6082, %v6030, %v5080
  %v6096 = vsel %vm6082, %v6031, %v5082
  %v6097 = vsel %vm6082, %v6032, %v5084
  %v6098 = vsel %vm6082, %v6033, %v5086
  %v6099 = vsel %vm6082, %v6034, %v5088
  %v6100 = vsel %vm6082, %v6035, %v5090
  %v6101 = vsel %vm6082, %v6036, %v5092
  %v6102 = vsel %vm6082, %v6037, %v5094
  %v6103 = vsel %vm6082, %v6038, %v5096
  %v6104 = vsel %vm6082, %v6039, %v5098
  %v6105 = vsel %vm6082, %v6040, %v5100
  %v6106 = vsel %vm6082, %v6041, %v5102
  %v6107 = vsel %vm6082, %v6042, %v5104
  %v6108 = vsel %vm6082, %v6043, %v5106
  %v6109 = vsel %vm6082, %v6044, %v5108
  %v6110 = vsel %vm6082, %v6045, %v5110
  %v6111 = vsel %vm6082, %v6046, %v5112
  %v6112 = vsel %vm6082, %v6047, %v5114
  %v6113 = vsel %vm6082, %v6048, %v5116
  %v6114 = vsel %vm6082, %v6049, %v5118
  %v6115 = vsel %vm6082, %v6050, %v5120
  %v6116 = vsel %vm6082, %v6051, %v5122
  %v6117 = vsel %vm6082, %v6052, %v5124
  %v6118 = vsel %vm6082, %v6053, %v5126
  %v6119 = vsel %vm6082, %v6054, %v5128
  %v6120 = vsel %vm6082, %v6055, %v5130
  %v6121 = vsel %vm6082, %v6056, %v5132
  %v6122 = vsel %vm6082, %v6057, %v5134
  %v6123 = vsel %vm6082, %v6058, %v5136
  %v6124 = vsel %vm6082, %v6059, %v5138
  %v6125 = vsel %vm6082, %v6060, %v5140
  %v6126 = vsel %vm6082, %v6061, %v5142
  %v6127 = vsel %vm6082, %v6062, %v5144
  %v6128 = vsel %vm6082, %v6063, %v5146
  %v6129 = vsel %vm6082, %v6064, %v5148
  %v6130 = vsel %vm6082, %v6065, %v5150
  %v6131 = vsel %vm6082, %v6066, %v5152
  %v6132 = vsel %vm6082, %v6067, %v5154
  %v6133 = vsel %vm6082, %v6068, %v5156
  %v6134 = vsel %vm6082, %v6069, %v5158
  %v6135 = vsel %vm6082, %v6070, %v5160
  %v6136 = vsel %vm6082, %v6071, %v5162
  %v6137 = vsel %vm6082, %v6072, %v5164
  %v6138 = vsel %vm6082, %v6073, %v5166
  %v6139 = vsel %vm6082, %v6074, %v5168
  %v6140 = vsel %vm6082, %v6075, %v5170
  %v6141 = vsel %vm6082, %v6076, %v5172
  %v6142 = vsel %vm6082, %v6077, %v5174
  %v6143 = vsel %vm6082, %v6078, %v5176
  %v6144 = vsel %vm6082, %v6079, %v5178
  %v6145 = vsel %vm6082, %v6080, %v5180
  %v6146 = vsel %vm6082, %v6081, %v5182
  %vm6147 = vcmask 228352
  %v6148 = vsel %vm6147, %v6083, %v5312
  %v6149 = vsel %vm6147, %v6084, %v5314
  %v6150 = vsel %vm6147, %v6085, %v5316
  %v6151 = vsel %vm6147, %v6086, %v5318
  %v6152 = vsel %vm6147, %v6087, %v5320
  %v6153 = vsel %vm6147, %v6088, %v5322
  %v6154 = vsel %vm6147, %v6089, %v5324
  %v6155 = vsel %vm6147, %v6090, %v5326
  %v6156 = vsel %vm6147, %v6091, %v5328
  %v6157 = vsel %vm6147, %v6092, %v5330
  %v6158 = vsel %vm6147, %v6093, %v5332
  %v6159 = vsel %vm6147, %v6094, %v5334
  %v6160 = vsel %vm6147, %v6095, %v5336
  %v6161 = vsel %vm6147, %v6096, %v5338
  %v6162 = vsel %vm6147, %v6097, %v5340
  %v6163 = vsel %vm6147, %v6098, %v5342
  %v6164 = vsel %vm6147, %v6099, %v5344
  %v6165 = vsel %vm6147, %v6100, %v5346
  %v6166 = vsel %vm6147, %v6101, %v5348
  %v6167 = vsel %vm6147, %v6102, %v5350
  %v6168 = vsel %vm6147, %v6103, %v5352
  %v6169 = vsel %vm6147, %v6104, %v5354
  %v6170 = vsel %vm6147, %v6105, %v5356
  %v6171 = vsel %vm6147, %v6106, %v5358
  %v6172 = vsel %vm6147, %v6107, %v5360
  %v6173 = vsel %vm6147, %v6108, %v5362
  %v6174 = vsel %vm6147, %v6109, %v5364
  %v6175 = vsel %vm6147, %v6110, %v5366
  %v6176 = vsel %vm6147, %v6111, %v5368
  %v6177 = vsel %vm6147, %v6112, %v5370
  %v6178 = vsel %vm6147, %v6113, %v5372
  %v6179 = vsel %vm6147, %v6114, %v5374
  %v6180 = vsel %vm6147, %v6115, %v5376
  %v6181 = vsel %vm6147, %v6116, %v5378
  %v6182 = vsel %vm6147, %v6117, %v5380
  %v6183 = vsel %vm6147, %v6118, %v5382
  %v6184 = vsel %vm6147, %v6119, %v5384
  %v6185 = vsel %vm6147, %v6120, %v5386
  %v6186 = vsel %vm6147, %v6121, %v5388
  %v6187 = vsel %vm6147, %v6122, %v5390
  %v6188 = vsel %vm6147, %v6123, %v5392
  %v6189 = vsel %vm6147, %v6124, %v5394
  %v6190 = vsel %vm6147, %v6125, %v5396
  %v6191 = vsel %vm6147, %v6126, %v5398
  %v6192 = vsel %vm6147, %v6127, %v5400
  %v6193 = vsel %vm6147, %v6128, %v5402
  %v6194 = vsel %vm6147, %v6129, %v5404
  %v6195 = vsel %vm6147, %v6130, %v5406
  %v6196 = vsel %vm6147, %v6131, %v5408
  %v6197 = vsel %vm6147, %v6132, %v5410
  %v6198 = vsel %vm6147, %v6133, %v5412
  %v6199 = vsel %vm6147, %v6134, %v5414
  %v6200 = vsel %vm6147, %v6135, %v5416
  %v6201 = vsel %vm6147, %v6136, %v5418
  %v6202 = vsel %vm6147, %v6137, %v5420
  %v6203 = vsel %vm6147, %v6138, %v5422
  %v6204 = vsel %vm6147, %v6139, %v5424
  %v6205 = vsel %vm6147, %v6140, %v5426
  %v6206 = vsel %vm6147, %v6141, %v5428
  %v6207 = vsel %vm6147, %v6142, %v5430
  %v6208 = vsel %vm6147, %v6143, %v5432
  %v6209 = vsel %vm6147, %v6144, %v5434
  %v6210 = vsel %vm6147, %v6145, %v5436
  %v6211 = vsel %vm6147, %v6146, %v5438
  %vm6212 = vcmask 261120
  %v6213 = vsel %vm6212, %v6148, %v5568
  %v6214 = vsel %vm6212, %v6149, %v5570
  %v6215 = vsel %vm6212, %v6150, %v5572
  %v6216 = vsel %vm6212, %v6151, %v5574
  %v6217 = vsel %vm6212, %v6152, %v5576
  %v6218 = vsel %vm6212, %v6153, %v5578
  %v6219 = vsel %vm6212, %v6154, %v5580
  %v6220 = vsel %vm6212, %v6155, %v5582
  %v6221 = vsel %vm6212, %v6156, %v5584
  %v6222 = vsel %vm6212, %v6157, %v5586
  %v6223 = vsel %vm6212, %v6158, %v5588
  %v6224 = vsel %vm6212, %v6159, %v5590
  %v6225 = vsel %vm6212, %v6160, %v5592
  %v6226 = vsel %vm6212, %v6161, %v5594
  %v6227 = vsel %vm6212, %v6162, %v5596
  %v6228 = vsel %vm6212, %v6163, %v5598
  %v6229 = vsel %vm6212, %v6164, %v5600
  %v6230 = vsel %vm6212, %v6165, %v5602
  %v6231 = vsel %vm6212, %v6166, %v5604
  %v6232 = vsel %vm6212, %v6167, %v5606
  %v6233 = vsel %vm6212, %v6168, %v5608
  %v6234 = vsel %vm6212, %v6169, %v5610
  %v6235 = vsel %vm6212, %v6170, %v5612
  %v6236 = vsel %vm6212, %v6171, %v5614
  %v6237 = vsel %vm6212, %v6172, %v5616
  %v6238 = vsel %vm6212, %v6173, %v5618
  %v6239 = vsel %vm6212, %v6174, %v5620
  %v6240 = vsel %vm6212, %v6175, %v5622
  %v6241 = vsel %vm6212, %v6176, %v5624
  %v6242 = vsel %vm6212, %v6177, %v5626
  %v6243 = vsel %vm6212, %v6178, %v5628
  %v6244 = vsel %vm6212, %v6179, %v5630
  %v6245 = vsel %vm6212, %v6180, %v5632
  %v6246 = vsel %vm6212, %v6181, %v5634
  %v6247 = vsel %vm6212, %v6182, %v5636
  %v6248 = vsel %vm6212, %v6183, %v5638
  %v6249 = vsel %vm6212, %v6184, %v5640
  %v6250 = vsel %vm6212, %v6185, %v5642
  %v6251 = vsel %vm6212, %v6186, %v5644
  %v6252 = vsel %vm6212, %v6187, %v5646
  %v6253 = vsel %vm6212, %v6188, %v5648
  %v6254 = vsel %vm6212, %v6189, %v5650
  %v6255 = vsel %vm6212, %v6190, %v5652
  %v6256 = vsel %vm6212, %v6191, %v5654
  %v6257 = vsel %vm6212, %v6192, %v5656
  %v6258 = vsel %vm6212, %v6193, %v5658
  %v6259 = vsel %vm6212, %v6194, %v5660
  %v6260 = vsel %vm6212, %v6195, %v5662
  %v6261 = vsel %vm6212, %v6196, %v5664
  %v6262 = vsel %vm6212, %v6197, %v5666
  %v6263 = vsel %vm6212, %v6198, %v5668
  %v6264 = vsel %vm6212, %v6199, %v5670
  %v6265 = vsel %vm6212, %v6200, %v5672
  %v6266 = vsel %vm6212, %v6201, %v5674
  %v6267 = vsel %vm6212, %v6202, %v5676
  %v6268 = vsel %vm6212, %v6203, %v5678
  %v6269 = vsel %vm6212, %v6204, %v5680
  %v6270 = vsel %vm6212, %v6205, %v5682
  %v6271 = vsel %vm6212, %v6206, %v5684
  %v6272 = vsel %vm6212, %v6207, %v5686
  %v6273 = vsel %vm6212, %v6208, %v5688
  %v6274 = vsel %vm6212, %v6209, %v5690
  %v6275 = vsel %vm6212, %v6210, %v5692
  %v6276 = vsel %vm6212, %v6211, %v5694
  %v6277 = vpack.c.bf16 %v6214, %v6213
  %v6278 = vpack.c.bf16 %v6216, %v6215
  %v6279 = vpack.c.bf16 %v6218, %v6217
  %v6280 = vpack.c.bf16 %v6220, %v6219
  %v6281 = vpack.c.bf16 %v6222, %v6221
  %v6282 = vpack.c.bf16 %v6224, %v6223
  %v6283 = vpack.c.bf16 %v6226, %v6225
  %v6284 = vpack.c.bf16 %v6228, %v6227
  %v6285 = vpack.c.bf16 %v6230, %v6229
  %v6286 = vpack.c.bf16 %v6232, %v6231
  %v6287 = vpack.c.bf16 %v6234, %v6233
  %v6288 = vpack.c.bf16 %v6236, %v6235
  %v6289 = vpack.c.bf16 %v6238, %v6237
  %v6290 = vpack.c.bf16 %v6240, %v6239
  %v6291 = vpack.c.bf16 %v6242, %v6241
  %v6292 = vpack.c.bf16 %v6244, %v6243
  %v6293 = vpack.c.bf16 %v6246, %v6245
  %v6294 = vpack.c.bf16 %v6248, %v6247
  %v6295 = vpack.c.bf16 %v6250, %v6249
  %v6296 = vpack.c.bf16 %v6252, %v6251
  %v6297 = vpack.c.bf16 %v6254, %v6253
  %v6298 = vpack.c.bf16 %v6256, %v6255
  %v6299 = vpack.c.bf16 %v6258, %v6257
  %v6300 = vpack.c.bf16 %v6260, %v6259
  %v6301 = vpack.c.bf16 %v6262, %v6261
  %v6302 = vpack.c.bf16 %v6264, %v6263
  %v6303 = vpack.c.bf16 %v6266, %v6265
  %v6304 = vpack.c.bf16 %v6268, %v6267
  %v6305 = vpack.c.bf16 %v6270, %v6269
  %v6306 = vpack.c.bf16 %v6272, %v6271
  %v6307 = vpack.c.bf16 %v6274, %v6273
  %v6308 = vpack.c.bf16 %v6276, %v6275
  %v6309 = vld [vmem:[%s2] sm:$0xf]
  %v6310 = vld [vmem:[%s2 + $0x4] sm:$0xf]
  %v6311 = vld [vmem:[%s2 + $0x8] sm:$0xf]
  %v6312 = vld [vmem:[%s2 + $0xc] sm:$0xf]
  %v6313 = vld [vmem:[%s2 + $0x10] sm:$0x3]
  %v6319 = vunpack.c.l.b16 %v6309
  %v6320 = vunpack.c.l.b16 %v6310
  %v6321 = vunpack.c.l.b16 %v6311
  %v6322 = vunpack.c.l.b16 %v6312
  %v6323 = vunpack.c.l.b16 %v6313
  %v6324 = vpack.c.b16 %v6320, %v6319
  %v6325 = vpack.c.b16 %v6322, %v6321
  %v6326 = vpack.c.b16 %v6323, %v6323
  %vm6329 = vcmask 293888
  %v6331 = vsel %vm6329, %v6277, 0
  %v6334 = vsel %vm6329, %v6278, 0
  %v6337 = vsel %vm6329, %v6279, 0
  %v6340 = vsel %vm6329, %v6280, 0
  %v6343 = vsel %vm6329, %v6281, 0
  %v6346 = vsel %vm6329, %v6282, 0
  %v6349 = vsel %vm6329, %v6283, 0
  %v6352 = vsel %vm6329, %v6284, 0
  %v6355 = vsel %vm6329, %v6285, 0
  %v6358 = vsel %vm6329, %v6286, 0
  %v6361 = vsel %vm6329, %v6287, 0
  %v6364 = vsel %vm6329, %v6288, 0
  %v6367 = vsel %vm6329, %v6289, 0
  %v6370 = vsel %vm6329, %v6290, 0
  %v6373 = vsel %vm6329, %v6291, 0
  %v6376 = vsel %vm6329, %v6292, 0
  %v6379 = vsel %vm6329, %v6293, 0
  %v6382 = vsel %vm6329, %v6294, 0
  %v6385 = vsel %vm6329, %v6295, 0
  %v6388 = vsel %vm6329, %v6296, 0
  %v6391 = vsel %vm6329, %v6297, 0
  %v6394 = vsel %vm6329, %v6298, 0
  %v6397 = vsel %vm6329, %v6299, 0
  %v6400 = vsel %vm6329, %v6300, 0
  %v6403 = vsel %vm6329, %v6301, 0
  %v6406 = vsel %vm6329, %v6302, 0
  %v6409 = vsel %vm6329, %v6303, 0
  %v6412 = vsel %vm6329, %v6304, 0
  %v6415 = vsel %vm6329, %v6305, 0
  %v6418 = vsel %vm6329, %v6306, 0
  %v6421 = vsel %vm6329, %v6307, 0
  %v6424 = vsel %vm6329, %v6308, 0
  %vm6426 = vcmask 1041408
  %v6428 = vsel %vm6426, %v6326, 0
  %6430 = vmatprep.subr.bf16.mxu0 0
  %6431 = vmatpush1.bf16.msra.mxu0 0
  %6432 = vmatprep.subr.bf16.mxu0 0
  %6433 = vmatpush1.bf16.msra.mxu0 0
  %6434 = vmatprep.subr.bf16.mxu0 0
  %6435 = vmatpush1.bf16.msra.mxu0 0
  %6436 = vmatprep.subr.bf16.mxu0 0
  %6437 = vmatpush1.bf16.msra.mxu0 0
  %6438 = vmatprep.subr.bf16.mxu0 0
  %6439 = vmatpush1.bf16.msra.mxu0 0
  %6440 = vmatprep.subr.bf16.mxu0 0
  %6441 = vmatpush1.bf16.msra.mxu0 %v6428
  %6442 = vmatprep.subr.bf16.mxu0 0
  %6443 = vmatpush1.bf16.msra.mxu0 %v6325
  %6444 = vmatprep.subr.bf16.mxu0 0
  %6445 = vmatpush1.bf16.msra.mxu0 %v6324
  %6446 = vmatprep.subr.bf16.mxu0 0
  %6447 = vmatpush2.bf16.msra.mxu0 0
  %6448 = vmatprep.subr.bf16.mxu0 0
  %6449 = vmatpush2.bf16.msra.mxu0 0
  %6450 = vmatprep.subr.bf16.mxu0 0
  %6451 = vmatpush2.bf16.msra.mxu0 0
  %6452 = vmatprep.subr.bf16.mxu0 0
  %6453 = vmatpush2.bf16.msra.mxu0 0
  %6454 = vmatprep.subr.bf16.mxu0 0
  %6455 = vmatpush2.bf16.msra.mxu0 0
  %6456 = vmatprep.subr.bf16.mxu0 0
  %6457 = vmatpush2.bf16.msra.mxu0 0
  %6458 = vmatprep.subr.bf16.mxu0 0
  %6459 = vmatpush2.bf16.msra.mxu0 0
  %6460 = vmatprep.subr.bf16.mxu0 0
  %6461 = vmatpush2.bf16.msra.mxu0 0
  %6462 = vmatprep.mubr.bf16.mxu0 0
  %6463 = vmatmul.mubr.bf16.gmra.mxu0 %v6331
  %v6464 = vpop.f32.mrf.mxu0
  %v6465 = vadd.f32 0.0, %v6464
  %v6466 = vpop.f32.mrf.mxu0
  %v6467 = vpop.f32.mrf.mxu0
  %v6468 = vadd.f32 0.0, %v6467
  %v6469 = vpop.f32.mrf.mxu0
  %6470 = vmatprep.mubr.bf16.mxu0 0
  %6471 = vmatmul.mubr.bf16.gmra.mxu0 %v6334
  %v6472 = vpop.f32.mrf.mxu0
  %v6473 = vadd.f32 0.0, %v6472
  %v6474 = vpop.f32.mrf.mxu0
  %v6475 = vpop.f32.mrf.mxu0
  %v6476 = vadd.f32 0.0, %v6475
  %v6477 = vpop.f32.mrf.mxu0
  %6478 = vmatprep.mubr.bf16.mxu0 0
  %6479 = vmatmul.mubr.bf16.gmra.mxu0 %v6337
  %v6480 = vpop.f32.mrf.mxu0
  %v6481 = vadd.f32 0.0, %v6480
  %v6482 = vpop.f32.mrf.mxu0
  %v6483 = vpop.f32.mrf.mxu0
  %v6484 = vadd.f32 0.0, %v6483
  %v6485 = vpop.f32.mrf.mxu0
  %6486 = vmatprep.mubr.bf16.mxu0 0
  %6487 = vmatmul.mubr.bf16.gmra.mxu0 %v6340
  %v6488 = vpop.f32.mrf.mxu0
  %v6489 = vadd.f32 0.0, %v6488
  %v6490 = vpop.f32.mrf.mxu0
  %v6491 = vpop.f32.mrf.mxu0
  %v6492 = vadd.f32 0.0, %v6491
  %v6493 = vpop.f32.mrf.mxu0
  %6494 = vmatprep.mubr.bf16.mxu0 0
  %6495 = vmatmul.mubr.bf16.gmra.mxu0 %v6343
  %v6496 = vpop.f32.mrf.mxu0
  %v6497 = vadd.f32 0.0, %v6496
  %v6498 = vpop.f32.mrf.mxu0
  %v6499 = vpop.f32.mrf.mxu0
  %v6500 = vadd.f32 0.0, %v6499
  %v6501 = vpop.f32.mrf.mxu0
  %6502 = vmatprep.mubr.bf16.mxu0 0
  %6503 = vmatmul.mubr.bf16.gmra.mxu0 %v6346
  %v6504 = vpop.f32.mrf.mxu0
  %v6505 = vadd.f32 0.0, %v6504
  %v6506 = vpop.f32.mrf.mxu0
  %v6507 = vpop.f32.mrf.mxu0
  %v6508 = vadd.f32 0.0, %v6507
  %v6509 = vpop.f32.mrf.mxu0
  %6510 = vmatprep.mubr.bf16.mxu0 0
  %6511 = vmatmul.mubr.bf16.gmra.mxu0 %v6349
  %v6512 = vpop.f32.mrf.mxu0
  %v6513 = vadd.f32 0.0, %v6512
  %v6514 = vpop.f32.mrf.mxu0
  %v6515 = vpop.f32.mrf.mxu0
  %v6516 = vadd.f32 0.0, %v6515
  %v6517 = vpop.f32.mrf.mxu0
  %6518 = vmatprep.mubr.bf16.mxu0 0
  %6519 = vmatmul.mubr.bf16.gmra.mxu0 %v6352
  %v6520 = vpop.f32.mrf.mxu0
  %v6521 = vadd.f32 0.0, %v6520
  %v6522 = vpop.f32.mrf.mxu0
  %v6523 = vpop.f32.mrf.mxu0
  %v6524 = vadd.f32 0.0, %v6523
  %v6525 = vpop.f32.mrf.mxu0
  %6526 = vmatprep.mubr.bf16.mxu0 0
  %6527 = vmatmul.mubr.bf16.gmra.mxu0 %v6355
  %v6528 = vpop.f32.mrf.mxu0
  %v6529 = vadd.f32 0.0, %v6528
  %v6530 = vpop.f32.mrf.mxu0
  %v6531 = vpop.f32.mrf.mxu0
  %v6532 = vadd.f32 0.0, %v6531
  %v6533 = vpop.f32.mrf.mxu0
  %6534 = vmatprep.mubr.bf16.mxu0 0
  %6535 = vmatmul.mubr.bf16.gmra.mxu0 %v6358
  %v6536 = vpop.f32.mrf.mxu0
  %v6537 = vadd.f32 0.0, %v6536
  %v6538 = vpop.f32.mrf.mxu0
  %v6539 = vpop.f32.mrf.mxu0
  %v6540 = vadd.f32 0.0, %v6539
  %v6541 = vpop.f32.mrf.mxu0
  %6542 = vmatprep.mubr.bf16.mxu0 0
  %6543 = vmatmul.mubr.bf16.gmra.mxu0 %v6361
  %v6544 = vpop.f32.mrf.mxu0
  %v6545 = vadd.f32 0.0, %v6544
  %v6546 = vpop.f32.mrf.mxu0
  %v6547 = vpop.f32.mrf.mxu0
  %v6548 = vadd.f32 0.0, %v6547
  %v6549 = vpop.f32.mrf.mxu0
  %6550 = vmatprep.mubr.bf16.mxu0 0
  %6551 = vmatmul.mubr.bf16.gmra.mxu0 %v6364
  %v6552 = vpop.f32.mrf.mxu0
  %v6553 = vadd.f32 0.0, %v6552
  %v6554 = vpop.f32.mrf.mxu0
  %v6555 = vpop.f32.mrf.mxu0
  %v6556 = vadd.f32 0.0, %v6555
  %v6557 = vpop.f32.mrf.mxu0
  %6558 = vmatprep.mubr.bf16.mxu0 0
  %6559 = vmatmul.mubr.bf16.gmra.mxu0 %v6367
  %v6560 = vpop.f32.mrf.mxu0
  %v6561 = vadd.f32 0.0, %v6560
  %v6562 = vpop.f32.mrf.mxu0
  %v6563 = vpop.f32.mrf.mxu0
  %v6564 = vadd.f32 0.0, %v6563
  %v6565 = vpop.f32.mrf.mxu0
  %6566 = vmatprep.mubr.bf16.mxu0 0
  %6567 = vmatmul.mubr.bf16.gmra.mxu0 %v6370
  %v6568 = vpop.f32.mrf.mxu0
  %v6569 = vadd.f32 0.0, %v6568
  %v6570 = vpop.f32.mrf.mxu0
  %v6571 = vpop.f32.mrf.mxu0
  %v6572 = vadd.f32 0.0, %v6571
  %v6573 = vpop.f32.mrf.mxu0
  %6574 = vmatprep.mubr.bf16.mxu0 0
  %6575 = vmatmul.mubr.bf16.gmra.mxu0 %v6373
  %v6576 = vpop.f32.mrf.mxu0
  %v6577 = vadd.f32 0.0, %v6576
  %v6578 = vpop.f32.mrf.mxu0
  %v6579 = vpop.f32.mrf.mxu0
  %v6580 = vadd.f32 0.0, %v6579
  %v6581 = vpop.f32.mrf.mxu0
  %6582 = vmatprep.mubr.bf16.mxu0 0
  %6583 = vmatmul.mubr.bf16.gmra.mxu0 %v6376
  %v6584 = vpop.f32.mrf.mxu0
  %v6585 = vadd.f32 0.0, %v6584
  %v6586 = vpop.f32.mrf.mxu0
  %v6587 = vpop.f32.mrf.mxu0
  %v6588 = vadd.f32 0.0, %v6587
  %v6589 = vpop.f32.mrf.mxu0
  %6590 = vmatprep.mubr.bf16.mxu0 0
  %6591 = vmatmul.mubr.bf16.gmra.mxu0 %v6379
  %v6592 = vpop.f32.mrf.mxu0
  %v6593 = vadd.f32 0.0, %v6592
  %v6594 = vpop.f32.mrf.mxu0
  %v6595 = vpop.f32.mrf.mxu0
  %v6596 = vadd.f32 0.0, %v6595
  %v6597 = vpop.f32.mrf.mxu0
  %6598 = vmatprep.mubr.bf16.mxu0 0
  %6599 = vmatmul.mubr.bf16.gmra.mxu0 %v6382
  %v6600 = vpop.f32.mrf.mxu0
  %v6601 = vadd.f32 0.0, %v6600
  %v6602 = vpop.f32.mrf.mxu0
  %v6603 = vpop.f32.mrf.mxu0
  %v6604 = vadd.f32 0.0, %v6603
  %v6605 = vpop.f32.mrf.mxu0
  %6606 = vmatprep.mubr.bf16.mxu0 0
  %6607 = vmatmul.mubr.bf16.gmra.mxu0 %v6385
  %v6608 = vpop.f32.mrf.mxu0
  %v6609 = vadd.f32 0.0, %v6608
  %v6610 = vpop.f32.mrf.mxu0
  %v6611 = vpop.f32.mrf.mxu0
  %v6612 = vadd.f32 0.0, %v6611
  %v6613 = vpop.f32.mrf.mxu0
  %6614 = vmatprep.mubr.bf16.mxu0 0
  %6615 = vmatmul.mubr.bf16.gmra.mxu0 %v6388
  %v6616 = vpop.f32.mrf.mxu0
  %v6617 = vadd.f32 0.0, %v6616
  %v6618 = vpop.f32.mrf.mxu0
  %v6619 = vpop.f32.mrf.mxu0
  %v6620 = vadd.f32 0.0, %v6619
  %v6621 = vpop.f32.mrf.mxu0
  %6622 = vmatprep.mubr.bf16.mxu0 0
  %6623 = vmatmul.mubr.bf16.gmra.mxu0 %v6391
  %v6624 = vpop.f32.mrf.mxu0
  %v6625 = vadd.f32 0.0, %v6624
  %v6626 = vpop.f32.mrf.mxu0
  %v6627 = vpop.f32.mrf.mxu0
  %v6628 = vadd.f32 0.0, %v6627
  %v6629 = vpop.f32.mrf.mxu0
  %6630 = vmatprep.mubr.bf16.mxu0 0
  %6631 = vmatmul.mubr.bf16.gmra.mxu0 %v6394
  %v6632 = vpop.f32.mrf.mxu0
  %v6633 = vadd.f32 0.0, %v6632
  %v6634 = vpop.f32.mrf.mxu0
  %v6635 = vpop.f32.mrf.mxu0
  %v6636 = vadd.f32 0.0, %v6635
  %v6637 = vpop.f32.mrf.mxu0
  %6638 = vmatprep.mubr.bf16.mxu0 0
  %6639 = vmatmul.mubr.bf16.gmra.mxu0 %v6397
  %v6640 = vpop.f32.mrf.mxu0
  %v6641 = vadd.f32 0.0, %v6640
  %v6642 = vpop.f32.mrf.mxu0
  %v6643 = vpop.f32.mrf.mxu0
  %v6644 = vadd.f32 0.0, %v6643
  %v6645 = vpop.f32.mrf.mxu0
  %6646 = vmatprep.mubr.bf16.mxu0 0
  %6647 = vmatmul.mubr.bf16.gmra.mxu0 %v6400
  %v6648 = vpop.f32.mrf.mxu0
  %v6649 = vadd.f32 0.0, %v6648
  %v6650 = vpop.f32.mrf.mxu0
  %v6651 = vpop.f32.mrf.mxu0
  %v6652 = vadd.f32 0.0, %v6651
  %v6653 = vpop.f32.mrf.mxu0
  %6654 = vmatprep.mubr.bf16.mxu0 0
  %6655 = vmatmul.mubr.bf16.gmra.mxu0 %v6403
  %v6656 = vpop.f32.mrf.mxu0
  %v6657 = vadd.f32 0.0, %v6656
  %v6658 = vpop.f32.mrf.mxu0
  %v6659 = vpop.f32.mrf.mxu0
  %v6660 = vadd.f32 0.0, %v6659
  %v6661 = vpop.f32.mrf.mxu0
  %6662 = vmatprep.mubr.bf16.mxu0 0
  %6663 = vmatmul.mubr.bf16.gmra.mxu0 %v6406
  %v6664 = vpop.f32.mrf.mxu0
  %v6665 = vadd.f32 0.0, %v6664
  %v6666 = vpop.f32.mrf.mxu0
  %v6667 = vpop.f32.mrf.mxu0
  %v6668 = vadd.f32 0.0, %v6667
  %v6669 = vpop.f32.mrf.mxu0
  %6670 = vmatprep.mubr.bf16.mxu0 0
  %6671 = vmatmul.mubr.bf16.gmra.mxu0 %v6409
  %v6672 = vpop.f32.mrf.mxu0
  %v6673 = vadd.f32 0.0, %v6672
  %v6674 = vpop.f32.mrf.mxu0
  %v6675 = vpop.f32.mrf.mxu0
  %v6676 = vadd.f32 0.0, %v6675
  %v6677 = vpop.f32.mrf.mxu0
  %6678 = vmatprep.mubr.bf16.mxu0 0
  %6679 = vmatmul.mubr.bf16.gmra.mxu0 %v6412
  %v6680 = vpop.f32.mrf.mxu0
  %v6681 = vadd.f32 0.0, %v6680
  %v6682 = vpop.f32.mrf.mxu0
  %v6683 = vpop.f32.mrf.mxu0
  %v6684 = vadd.f32 0.0, %v6683
  %v6685 = vpop.f32.mrf.mxu0
  %6686 = vmatprep.mubr.bf16.mxu0 0
  %6687 = vmatmul.mubr.bf16.gmra.mxu0 %v6415
  %v6688 = vpop.f32.mrf.mxu0
  %v6689 = vadd.f32 0.0, %v6688
  %v6690 = vpop.f32.mrf.mxu0
  %v6691 = vpop.f32.mrf.mxu0
  %v6692 = vadd.f32 0.0, %v6691
  %v6693 = vpop.f32.mrf.mxu0
  %6694 = vmatprep.mubr.bf16.mxu0 0
  %6695 = vmatmul.mubr.bf16.gmra.mxu0 %v6418
  %v6696 = vpop.f32.mrf.mxu0
  %v6697 = vadd.f32 0.0, %v6696
  %v6698 = vpop.f32.mrf.mxu0
  %v6699 = vpop.f32.mrf.mxu0
  %v6700 = vadd.f32 0.0, %v6699
  %v6701 = vpop.f32.mrf.mxu0
  %6702 = vmatprep.mubr.bf16.mxu0 0
  %6703 = vmatmul.mubr.bf16.gmra.mxu0 %v6421
  %v6704 = vpop.f32.mrf.mxu0
  %v6705 = vadd.f32 0.0, %v6704
  %v6706 = vpop.f32.mrf.mxu0
  %v6707 = vpop.f32.mrf.mxu0
  %v6708 = vadd.f32 0.0, %v6707
  %v6709 = vpop.f32.mrf.mxu0
  %6710 = vmatprep.mubr.bf16.mxu0 0
  %6711 = vmatmul.mubr.bf16.gmra.mxu0 %v6424
  %v6712 = vpop.f32.mrf.mxu0
  %v6713 = vadd.f32 0.0, %v6712
  %v6714 = vpop.f32.mrf.mxu0
  %v6715 = vpop.f32.mrf.mxu0
  %v6716 = vadd.f32 0.0, %v6715
  %v6717 = vpop.f32.mrf.mxu0
  %6718 = vdwg.mxu0
  %v6719 = vld [vmem:[%s6] sm:$0x1]
  %v6720 = vld [vmem:[%s7] sm:$0x1]
  %v6721 = vsel %vm528, %v6465, 0.0
  %v6722 = vsel %vm528, %v6468, 0.0
  %v6723 = vadd.f32 %v6721, %v6722
  %v6724 = vsel %vm528, %v6473, 0.0
  %v6725 = vadd.f32 %v6723, %v6724
  %v6726 = vsel %vm528, %v6476, 0.0
  %v6727 = vadd.f32 %v6725, %v6726
  %v6728 = vsel %vm528, %v6481, 0.0
  %v6729 = vadd.f32 %v6727, %v6728
  %v6730 = vsel %vm528, %v6484, 0.0
  %v6731 = vadd.f32 %v6729, %v6730
  %v6732 = vsel %vm528, %v6489, 0.0
  %v6733 = vadd.f32 %v6731, %v6732
  %v6734 = vsel %vm528, %v6492, 0.0
  %v6735 = vadd.f32 %v6733, %v6734
  %v6736 = vsel %vm528, %v6497, 0.0
  %v6737 = vadd.f32 %v6735, %v6736
  %v6738 = vsel %vm528, %v6500, 0.0
  %v6739 = vadd.f32 %v6737, %v6738
  %v6740 = vsel %vm528, %v6505, 0.0
  %v6741 = vadd.f32 %v6739, %v6740
  %v6742 = vsel %vm528, %v6508, 0.0
  %v6743 = vadd.f32 %v6741, %v6742
  %v6744 = vsel %vm528, %v6513, 0.0
  %v6745 = vadd.f32 %v6743, %v6744
  %v6746 = vsel %vm528, %v6516, 0.0
  %v6747 = vadd.f32 %v6745, %v6746
  %v6748 = vsel %vm528, %v6521, 0.0
  %v6749 = vadd.f32 %v6747, %v6748
  %v6750 = vsel %vm528, %v6524, 0.0
  %v6751 = vadd.f32 %v6749, %v6750
  %v6752 = vsel %vm528, %v6529, 0.0
  %v6753 = vadd.f32 %v6751, %v6752
  %v6754 = vsel %vm528, %v6532, 0.0
  %v6755 = vadd.f32 %v6753, %v6754
  %v6756 = vsel %vm528, %v6537, 0.0
  %v6757 = vadd.f32 %v6755, %v6756
  %v6758 = vsel %vm528, %v6540, 0.0
  %v6759 = vadd.f32 %v6757, %v6758
  %v6760 = vsel %vm528, %v6545, 0.0
  %v6761 = vadd.f32 %v6759, %v6760
  %v6762 = vsel %vm528, %v6548, 0.0
  %v6763 = vadd.f32 %v6761, %v6762
  %v6764 = vsel %vm528, %v6553, 0.0
  %v6765 = vadd.f32 %v6763, %v6764
  %v6766 = vsel %vm528, %v6556, 0.0
  %v6767 = vadd.f32 %v6765, %v6766
  %v6768 = vsel %vm528, %v6561, 0.0
  %v6769 = vadd.f32 %v6767, %v6768
  %v6770 = vsel %vm528, %v6564, 0.0
  %v6771 = vadd.f32 %v6769, %v6770
  %v6772 = vsel %vm528, %v6569, 0.0
  %v6773 = vadd.f32 %v6771, %v6772
  %v6774 = vsel %vm528, %v6572, 0.0
  %v6775 = vadd.f32 %v6773, %v6774
  %v6776 = vsel %vm528, %v6577, 0.0
  %v6777 = vadd.f32 %v6775, %v6776
  %v6778 = vsel %vm528, %v6580, 0.0
  %v6779 = vadd.f32 %v6777, %v6778
  %v6780 = vsel %vm528, %v6585, 0.0
  %v6781 = vadd.f32 %v6779, %v6780
  %v6782 = vsel %vm528, %v6588, 0.0
  %v6783 = vadd.f32 %v6781, %v6782
  %v6784 = vsel %vm528, %v6593, 0.0
  %v6785 = vadd.f32 %v6783, %v6784
  %v6786 = vsel %vm528, %v6596, 0.0
  %v6787 = vadd.f32 %v6785, %v6786
  %v6788 = vsel %vm528, %v6601, 0.0
  %v6789 = vadd.f32 %v6787, %v6788
  %v6790 = vsel %vm528, %v6604, 0.0
  %v6791 = vadd.f32 %v6789, %v6790
  %v6792 = vsel %vm528, %v6609, 0.0
  %v6793 = vadd.f32 %v6791, %v6792
  %v6794 = vsel %vm528, %v6612, 0.0
  %v6795 = vadd.f32 %v6793, %v6794
  %v6796 = vsel %vm528, %v6617, 0.0
  %v6797 = vadd.f32 %v6795, %v6796
  %v6798 = vsel %vm528, %v6620, 0.0
  %v6799 = vadd.f32 %v6797, %v6798
  %v6800 = vsel %vm528, %v6625, 0.0
  %v6801 = vadd.f32 %v6799, %v6800
  %v6802 = vsel %vm528, %v6628, 0.0
  %v6803 = vadd.f32 %v6801, %v6802
  %v6804 = vsel %vm528, %v6633, 0.0
  %v6805 = vadd.f32 %v6803, %v6804
  %v6806 = vsel %vm528, %v6636, 0.0
  %v6807 = vadd.f32 %v6805, %v6806
  %v6808 = vsel %vm528, %v6641, 0.0
  %v6809 = vadd.f32 %v6807, %v6808
  %v6810 = vsel %vm528, %v6644, 0.0
  %v6811 = vadd.f32 %v6809, %v6810
  %v6812 = vsel %vm528, %v6649, 0.0
  %v6813 = vadd.f32 %v6811, %v6812
  %v6814 = vsel %vm528, %v6652, 0.0
  %v6815 = vadd.f32 %v6813, %v6814
  %v6816 = vsel %vm528, %v6657, 0.0
  %v6817 = vadd.f32 %v6815, %v6816
  %v6818 = vsel %vm528, %v6660, 0.0
  %v6819 = vadd.f32 %v6817, %v6818
  %v6820 = vsel %vm528, %v6665, 0.0
  %v6821 = vadd.f32 %v6819, %v6820
  %v6822 = vsel %vm528, %v6668, 0.0
  %v6823 = vadd.f32 %v6821, %v6822
  %v6824 = vsel %vm528, %v6673, 0.0
  %v6825 = vadd.f32 %v6823, %v6824
  %v6826 = vsel %vm528, %v6676, 0.0
  %v6827 = vadd.f32 %v6825, %v6826
  %v6828 = vsel %vm528, %v6681, 0.0
  %v6829 = vadd.f32 %v6827, %v6828
  %v6830 = vsel %vm528, %v6684, 0.0
  %v6831 = vadd.f32 %v6829, %v6830
  %v6832 = vsel %vm528, %v6689, 0.0
  %v6833 = vadd.f32 %v6831, %v6832
  %v6834 = vsel %vm528, %v6692, 0.0
  %v6835 = vadd.f32 %v6833, %v6834
  %v6836 = vsel %vm528, %v6697, 0.0
  %v6837 = vadd.f32 %v6835, %v6836
  %v6838 = vsel %vm528, %v6700, 0.0
  %v6839 = vadd.f32 %v6837, %v6838
  %v6840 = vsel %vm528, %v6705, 0.0
  %v6841 = vadd.f32 %v6839, %v6840
  %v6842 = vsel %vm528, %v6708, 0.0
  %v6843 = vadd.f32 %v6841, %v6842
  %v6844 = vsel %vm528, %v6713, 0.0
  %v6845 = vadd.f32 %v6843, %v6844
  %v6846 = vsel %vm528, %v6716, 0.0
  %v6847 = vadd.f32 %v6845, %v6846
  %v6848 = vrot.slane %v6847, 4
  %v6849 = vadd.f32 %v6847, %v6848
  %v6850 = vrot.slane %v6849, 2
  %v6851 = vadd.f32 %v6849, %v6850
  %v6852 = vrot.slane %v6851, 1
  %v6853 = vadd.f32 %v6851, %v6852
  %v6854 = vmul.f32 %v6853, 0.001953125
  %v6855 = vsub.f32 %v6465, %v6854
  %v6856 = vsub.f32 %v6468, %v6854
  %v6857 = vsub.f32 %v6473, %v6854
  %v6858 = vsub.f32 %v6476, %v6854
  %v6859 = vsub.f32 %v6481, %v6854
  %v6860 = vsub.f32 %v6484, %v6854
  %v6861 = vsub.f32 %v6489, %v6854
  %v6862 = vsub.f32 %v6492, %v6854
  %v6863 = vsub.f32 %v6497, %v6854
  %v6864 = vsub.f32 %v6500, %v6854
  %v6865 = vsub.f32 %v6505, %v6854
  %v6866 = vsub.f32 %v6508, %v6854
  %v6867 = vsub.f32 %v6513, %v6854
  %v6868 = vsub.f32 %v6516, %v6854
  %v6869 = vsub.f32 %v6521, %v6854
  %v6870 = vsub.f32 %v6524, %v6854
  %v6871 = vsub.f32 %v6529, %v6854
  %v6872 = vsub.f32 %v6532, %v6854
  %v6873 = vsub.f32 %v6537, %v6854
  %v6874 = vsub.f32 %v6540, %v6854
  %v6875 = vsub.f32 %v6545, %v6854
  %v6876 = vsub.f32 %v6548, %v6854
  %v6877 = vsub.f32 %v6553, %v6854
  %v6878 = vsub.f32 %v6556, %v6854
  %v6879 = vsub.f32 %v6561, %v6854
  %v6880 = vsub.f32 %v6564, %v6854
  %v6881 = vsub.f32 %v6569, %v6854
  %v6882 = vsub.f32 %v6572, %v6854
  %v6883 = vsub.f32 %v6577, %v6854
  %v6884 = vsub.f32 %v6580, %v6854
  %v6885 = vsub.f32 %v6585, %v6854
  %v6886 = vsub.f32 %v6588, %v6854
  %v6887 = vsub.f32 %v6593, %v6854
  %v6888 = vsub.f32 %v6596, %v6854
  %v6889 = vsub.f32 %v6601, %v6854
  %v6890 = vsub.f32 %v6604, %v6854
  %v6891 = vsub.f32 %v6609, %v6854
  %v6892 = vsub.f32 %v6612, %v6854
  %v6893 = vsub.f32 %v6617, %v6854
  %v6894 = vsub.f32 %v6620, %v6854
  %v6895 = vsub.f32 %v6625, %v6854
  %v6896 = vsub.f32 %v6628, %v6854
  %v6897 = vsub.f32 %v6633, %v6854
  %v6898 = vsub.f32 %v6636, %v6854
  %v6899 = vsub.f32 %v6641, %v6854
  %v6900 = vsub.f32 %v6644, %v6854
  %v6901 = vsub.f32 %v6649, %v6854
  %v6902 = vsub.f32 %v6652, %v6854
  %v6903 = vsub.f32 %v6657, %v6854
  %v6904 = vsub.f32 %v6660, %v6854
  %v6905 = vsub.f32 %v6665, %v6854
  %v6906 = vsub.f32 %v6668, %v6854
  %v6907 = vsub.f32 %v6673, %v6854
  %v6908 = vsub.f32 %v6676, %v6854
  %v6909 = vsub.f32 %v6681, %v6854
  %v6910 = vsub.f32 %v6684, %v6854
  %v6911 = vsub.f32 %v6689, %v6854
  %v6912 = vsub.f32 %v6692, %v6854
  %v6913 = vsub.f32 %v6697, %v6854
  %v6914 = vsub.f32 %v6700, %v6854
  %v6915 = vsub.f32 %v6705, %v6854
  %v6916 = vsub.f32 %v6708, %v6854
  %v6917 = vsub.f32 %v6713, %v6854
  %v6918 = vsub.f32 %v6716, %v6854
  %v6919 = vmul.f32 %v6855, %v6855
  %v6920 = vmul.f32 %v6856, %v6856
  %v6921 = vmul.f32 %v6857, %v6857
  %v6922 = vmul.f32 %v6858, %v6858
  %v6923 = vmul.f32 %v6859, %v6859
  %v6924 = vmul.f32 %v6860, %v6860
  %v6925 = vmul.f32 %v6861, %v6861
  %v6926 = vmul.f32 %v6862, %v6862
  %v6927 = vmul.f32 %v6863, %v6863
  %v6928 = vmul.f32 %v6864, %v6864
  %v6929 = vmul.f32 %v6865, %v6865
  %v6930 = vmul.f32 %v6866, %v6866
  %v6931 = vmul.f32 %v6867, %v6867
  %v6932 = vmul.f32 %v6868, %v6868
  %v6933 = vmul.f32 %v6869, %v6869
  %v6934 = vmul.f32 %v6870, %v6870
  %v6935 = vmul.f32 %v6871, %v6871
  %v6936 = vmul.f32 %v6872, %v6872
  %v6937 = vmul.f32 %v6873, %v6873
  %v6938 = vmul.f32 %v6874, %v6874
  %v6939 = vmul.f32 %v6875, %v6875
  %v6940 = vmul.f32 %v6876, %v6876
  %v6941 = vmul.f32 %v6877, %v6877
  %v6942 = vmul.f32 %v6878, %v6878
  %v6943 = vmul.f32 %v6879, %v6879
  %v6944 = vmul.f32 %v6880, %v6880
  %v6945 = vmul.f32 %v6881, %v6881
  %v6946 = vmul.f32 %v6882, %v6882
  %v6947 = vmul.f32 %v6883, %v6883
  %v6948 = vmul.f32 %v6884, %v6884
  %v6949 = vmul.f32 %v6885, %v6885
  %v6950 = vmul.f32 %v6886, %v6886
  %v6951 = vmul.f32 %v6887, %v6887
  %v6952 = vmul.f32 %v6888, %v6888
  %v6953 = vmul.f32 %v6889, %v6889
  %v6954 = vmul.f32 %v6890, %v6890
  %v6955 = vmul.f32 %v6891, %v6891
  %v6956 = vmul.f32 %v6892, %v6892
  %v6957 = vmul.f32 %v6893, %v6893
  %v6958 = vmul.f32 %v6894, %v6894
  %v6959 = vmul.f32 %v6895, %v6895
  %v6960 = vmul.f32 %v6896, %v6896
  %v6961 = vmul.f32 %v6897, %v6897
  %v6962 = vmul.f32 %v6898, %v6898
  %v6963 = vmul.f32 %v6899, %v6899
  %v6964 = vmul.f32 %v6900, %v6900
  %v6965 = vmul.f32 %v6901, %v6901
  %v6966 = vmul.f32 %v6902, %v6902
  %v6967 = vmul.f32 %v6903, %v6903
  %v6968 = vmul.f32 %v6904, %v6904
  %v6969 = vmul.f32 %v6905, %v6905
  %v6970 = vmul.f32 %v6906, %v6906
  %v6971 = vmul.f32 %v6907, %v6907
  %v6972 = vmul.f32 %v6908, %v6908
  %v6973 = vmul.f32 %v6909, %v6909
  %v6974 = vmul.f32 %v6910, %v6910
  %v6975 = vmul.f32 %v6911, %v6911
  %v6976 = vmul.f32 %v6912, %v6912
  %v6977 = vmul.f32 %v6913, %v6913
  %v6978 = vmul.f32 %v6914, %v6914
  %v6979 = vmul.f32 %v6915, %v6915
  %v6980 = vmul.f32 %v6916, %v6916
  %v6981 = vmul.f32 %v6917, %v6917
  %v6982 = vmul.f32 %v6918, %v6918
  %v6983 = vsel %vm528, %v6919, 0.0
  %v6984 = vsel %vm528, %v6920, 0.0
  %v6985 = vadd.f32 %v6983, %v6984
  %v6986 = vsel %vm528, %v6921, 0.0
  %v6987 = vadd.f32 %v6985, %v6986
  %v6988 = vsel %vm528, %v6922, 0.0
  %v6989 = vadd.f32 %v6987, %v6988
  %v6990 = vsel %vm528, %v6923, 0.0
  %v6991 = vadd.f32 %v6989, %v6990
  %v6992 = vsel %vm528, %v6924, 0.0
  %v6993 = vadd.f32 %v6991, %v6992
  %v6994 = vsel %vm528, %v6925, 0.0
  %v6995 = vadd.f32 %v6993, %v6994
  %v6996 = vsel %vm528, %v6926, 0.0
  %v6997 = vadd.f32 %v6995, %v6996
  %v6998 = vsel %vm528, %v6927, 0.0
  %v6999 = vadd.f32 %v6997, %v6998
  %v7000 = vsel %vm528, %v6928, 0.0
  %v7001 = vadd.f32 %v6999, %v7000
  %v7002 = vsel %vm528, %v6929, 0.0
  %v7003 = vadd.f32 %v7001, %v7002
  %v7004 = vsel %vm528, %v6930, 0.0
  %v7005 = vadd.f32 %v7003, %v7004
  %v7006 = vsel %vm528, %v6931, 0.0
  %v7007 = vadd.f32 %v7005, %v7006
  %v7008 = vsel %vm528, %v6932, 0.0
  %v7009 = vadd.f32 %v7007, %v7008
  %v7010 = vsel %vm528, %v6933, 0.0
  %v7011 = vadd.f32 %v7009, %v7010
  %v7012 = vsel %vm528, %v6934, 0.0
  %v7013 = vadd.f32 %v7011, %v7012
  %v7014 = vsel %vm528, %v6935, 0.0
  %v7015 = vadd.f32 %v7013, %v7014
  %v7016 = vsel %vm528, %v6936, 0.0
  %v7017 = vadd.f32 %v7015, %v7016
  %v7018 = vsel %vm528, %v6937, 0.0
  %v7019 = vadd.f32 %v7017, %v7018
  %v7020 = vsel %vm528, %v6938, 0.0
  %v7021 = vadd.f32 %v7019, %v7020
  %v7022 = vsel %vm528, %v6939, 0.0
  %v7023 = vadd.f32 %v7021, %v7022
  %v7024 = vsel %vm528, %v6940, 0.0
  %v7025 = vadd.f32 %v7023, %v7024
  %v7026 = vsel %vm528, %v6941, 0.0
  %v7027 = vadd.f32 %v7025, %v7026
  %v7028 = vsel %vm528, %v6942, 0.0
  %v7029 = vadd.f32 %v7027, %v7028
  %v7030 = vsel %vm528, %v6943, 0.0
  %v7031 = vadd.f32 %v7029, %v7030
  %v7032 = vsel %vm528, %v6944, 0.0
  %v7033 = vadd.f32 %v7031, %v7032
  %v7034 = vsel %vm528, %v6945, 0.0
  %v7035 = vadd.f32 %v7033, %v7034
  %v7036 = vsel %vm528, %v6946, 0.0
  %v7037 = vadd.f32 %v7035, %v7036
  %v7038 = vsel %vm528, %v6947, 0.0
  %v7039 = vadd.f32 %v7037, %v7038
  %v7040 = vsel %vm528, %v6948, 0.0
  %v7041 = vadd.f32 %v7039, %v7040
  %v7042 = vsel %vm528, %v6949, 0.0
  %v7043 = vadd.f32 %v7041, %v7042
  %v7044 = vsel %vm528, %v6950, 0.0
  %v7045 = vadd.f32 %v7043, %v7044
  %v7046 = vsel %vm528, %v6951, 0.0
  %v7047 = vadd.f32 %v7045, %v7046
  %v7048 = vsel %vm528, %v6952, 0.0
  %v7049 = vadd.f32 %v7047, %v7048
  %v7050 = vsel %vm528, %v6953, 0.0
  %v7051 = vadd.f32 %v7049, %v7050
  %v7052 = vsel %vm528, %v6954, 0.0
  %v7053 = vadd.f32 %v7051, %v7052
  %v7054 = vsel %vm528, %v6955, 0.0
  %v7055 = vadd.f32 %v7053, %v7054
  %v7056 = vsel %vm528, %v6956, 0.0
  %v7057 = vadd.f32 %v7055, %v7056
  %v7058 = vsel %vm528, %v6957, 0.0
  %v7059 = vadd.f32 %v7057, %v7058
  %v7060 = vsel %vm528, %v6958, 0.0
  %v7061 = vadd.f32 %v7059, %v7060
  %v7062 = vsel %vm528, %v6959, 0.0
  %v7063 = vadd.f32 %v7061, %v7062
  %v7064 = vsel %vm528, %v6960, 0.0
  %v7065 = vadd.f32 %v7063, %v7064
  %v7066 = vsel %vm528, %v6961, 0.0
  %v7067 = vadd.f32 %v7065, %v7066
  %v7068 = vsel %vm528, %v6962, 0.0
  %v7069 = vadd.f32 %v7067, %v7068
  %v7070 = vsel %vm528, %v6963, 0.0
  %v7071 = vadd.f32 %v7069, %v7070
  %v7072 = vsel %vm528, %v6964, 0.0
  %v7073 = vadd.f32 %v7071, %v7072
  %v7074 = vsel %vm528, %v6965, 0.0
  %v7075 = vadd.f32 %v7073, %v7074
  %v7076 = vsel %vm528, %v6966, 0.0
  %v7077 = vadd.f32 %v7075, %v7076
  %v7078 = vsel %vm528, %v6967, 0.0
  %v7079 = vadd.f32 %v7077, %v7078
  %v7080 = vsel %vm528, %v6968, 0.0
  %v7081 = vadd.f32 %v7079, %v7080
  %v7082 = vsel %vm528, %v6969, 0.0
  %v7083 = vadd.f32 %v7081, %v7082
  %v7084 = vsel %vm528, %v6970, 0.0
  %v7085 = vadd.f32 %v7083, %v7084
  %v7086 = vsel %vm528, %v6971, 0.0
  %v7087 = vadd.f32 %v7085, %v7086
  %v7088 = vsel %vm528, %v6972, 0.0
  %v7089 = vadd.f32 %v7087, %v7088
  %v7090 = vsel %vm528, %v6973, 0.0
  %v7091 = vadd.f32 %v7089, %v7090
  %v7092 = vsel %vm528, %v6974, 0.0
  %v7093 = vadd.f32 %v7091, %v7092
  %v7094 = vsel %vm528, %v6975, 0.0
  %v7095 = vadd.f32 %v7093, %v7094
  %v7096 = vsel %vm528, %v6976, 0.0
  %v7097 = vadd.f32 %v7095, %v7096
  %v7098 = vsel %vm528, %v6977, 0.0
  %v7099 = vadd.f32 %v7097, %v7098
  %v7100 = vsel %vm528, %v6978, 0.0
  %v7101 = vadd.f32 %v7099, %v7100
  %v7102 = vsel %vm528, %v6979, 0.0
  %v7103 = vadd.f32 %v7101, %v7102
  %v7104 = vsel %vm528, %v6980, 0.0
  %v7105 = vadd.f32 %v7103, %v7104
  %v7106 = vsel %vm528, %v6981, 0.0
  %v7107 = vadd.f32 %v7105, %v7106
  %v7108 = vsel %vm528, %v6982, 0.0
  %v7109 = vadd.f32 %v7107, %v7108
  %v7110 = vrot.slane %v7109, 4
  %v7111 = vadd.f32 %v7109, %v7110
  %v7112 = vrot.slane %v7111, 2
  %v7113 = vadd.f32 %v7111, %v7112
  %v7114 = vrot.slane %v7113, 1
  %v7115 = vadd.f32 %v7113, %v7114
  %v7116 = vmul.f32 %v7115, 0.001953125
  %v7117 = vadd.f32 %v7116, 1e-05
  %v7118 = vrsqrt.pop %v7117
  %v7119 = vmul.f32 %v6719, %v7118
  %v7121 = vlaneseq
  %v7122 = vshrl.u32 %v7121, 7
  %v7123 = vsub.s32 0, %v7122
  %v7124 = vrot.slane %v7119, %v7123
  %v7126 = vmul.f32 %v6855, %v7124
  %v7127 = vmul.f32 %v6856, %v7124
  %v7128 = vmul.f32 %v6857, %v7124
  %v7129 = vmul.f32 %v6858, %v7124
  %v7130 = vmul.f32 %v6859, %v7124
  %v7131 = vmul.f32 %v6860, %v7124
  %v7132 = vmul.f32 %v6861, %v7124
  %v7133 = vmul.f32 %v6862, %v7124
  %v7134 = vmul.f32 %v6863, %v7124
  %v7135 = vmul.f32 %v6864, %v7124
  %v7136 = vmul.f32 %v6865, %v7124
  %v7137 = vmul.f32 %v6866, %v7124
  %v7138 = vmul.f32 %v6867, %v7124
  %v7139 = vmul.f32 %v6868, %v7124
  %v7140 = vmul.f32 %v6869, %v7124
  %v7141 = vmul.f32 %v6870, %v7124
  %v7142 = vmul.f32 %v6871, %v7124
  %v7143 = vmul.f32 %v6872, %v7124
  %v7144 = vmul.f32 %v6873, %v7124
  %v7145 = vmul.f32 %v6874, %v7124
  %v7146 = vmul.f32 %v6875, %v7124
  %v7147 = vmul.f32 %v6876, %v7124
  %v7148 = vmul.f32 %v6877, %v7124
  %v7149 = vmul.f32 %v6878, %v7124
  %v7150 = vmul.f32 %v6879, %v7124
  %v7151 = vmul.f32 %v6880, %v7124
  %v7152 = vmul.f32 %v6881, %v7124
  %v7153 = vmul.f32 %v6882, %v7124
  %v7154 = vmul.f32 %v6883, %v7124
  %v7155 = vmul.f32 %v6884, %v7124
  %v7156 = vmul.f32 %v6885, %v7124
  %v7157 = vmul.f32 %v6886, %v7124
  %v7158 = vmul.f32 %v6887, %v7124
  %v7159 = vmul.f32 %v6888, %v7124
  %v7160 = vmul.f32 %v6889, %v7124
  %v7161 = vmul.f32 %v6890, %v7124
  %v7162 = vmul.f32 %v6891, %v7124
  %v7163 = vmul.f32 %v6892, %v7124
  %v7164 = vmul.f32 %v6893, %v7124
  %v7165 = vmul.f32 %v6894, %v7124
  %v7166 = vmul.f32 %v6895, %v7124
  %v7167 = vmul.f32 %v6896, %v7124
  %v7168 = vmul.f32 %v6897, %v7124
  %v7169 = vmul.f32 %v6898, %v7124
  %v7170 = vmul.f32 %v6899, %v7124
  %v7171 = vmul.f32 %v6900, %v7124
  %v7172 = vmul.f32 %v6901, %v7124
  %v7173 = vmul.f32 %v6902, %v7124
  %v7174 = vmul.f32 %v6903, %v7124
  %v7175 = vmul.f32 %v6904, %v7124
  %v7176 = vmul.f32 %v6905, %v7124
  %v7177 = vmul.f32 %v6906, %v7124
  %v7178 = vmul.f32 %v6907, %v7124
  %v7179 = vmul.f32 %v6908, %v7124
  %v7180 = vmul.f32 %v6909, %v7124
  %v7181 = vmul.f32 %v6910, %v7124
  %v7182 = vmul.f32 %v6911, %v7124
  %v7183 = vmul.f32 %v6912, %v7124
  %v7184 = vmul.f32 %v6913, %v7124
  %v7185 = vmul.f32 %v6914, %v7124
  %v7186 = vmul.f32 %v6915, %v7124
  %v7187 = vmul.f32 %v6916, %v7124
  %v7188 = vmul.f32 %v6917, %v7124
  %v7189 = vmul.f32 %v6918, %v7124
  %v7191 = vlaneseq
  %v7192 = vshrl.u32 %v7191, 7
  %v7193 = vsub.s32 0, %v7192
  %v7194 = vrot.slane %v6720, %v7193
  %v7196 = vadd.f32 %v7126, %v7194
  %v7197 = vadd.f32 %v7127, %v7194
  %v7198 = vadd.f32 %v7128, %v7194
  %v7199 = vadd.f32 %v7129, %v7194
  %v7200 = vadd.f32 %v7130, %v7194
  %v7201 = vadd.f32 %v7131, %v7194
  %v7202 = vadd.f32 %v7132, %v7194
  %v7203 = vadd.f32 %v7133, %v7194
  %v7204 = vadd.f32 %v7134, %v7194
  %v7205 = vadd.f32 %v7135, %v7194
  %v7206 = vadd.f32 %v7136, %v7194
  %v7207 = vadd.f32 %v7137, %v7194
  %v7208 = vadd.f32 %v7138, %v7194
  %v7209 = vadd.f32 %v7139, %v7194
  %v7210 = vadd.f32 %v7140, %v7194
  %v7211 = vadd.f32 %v7141, %v7194
  %v7212 = vadd.f32 %v7142, %v7194
  %v7213 = vadd.f32 %v7143, %v7194
  %v7214 = vadd.f32 %v7144, %v7194
  %v7215 = vadd.f32 %v7145, %v7194
  %v7216 = vadd.f32 %v7146, %v7194
  %v7217 = vadd.f32 %v7147, %v7194
  %v7218 = vadd.f32 %v7148, %v7194
  %v7219 = vadd.f32 %v7149, %v7194
  %v7220 = vadd.f32 %v7150, %v7194
  %v7221 = vadd.f32 %v7151, %v7194
  %v7222 = vadd.f32 %v7152, %v7194
  %v7223 = vadd.f32 %v7153, %v7194
  %v7224 = vadd.f32 %v7154, %v7194
  %v7225 = vadd.f32 %v7155, %v7194
  %v7226 = vadd.f32 %v7156, %v7194
  %v7227 = vadd.f32 %v7157, %v7194
  %v7228 = vadd.f32 %v7158, %v7194
  %v7229 = vadd.f32 %v7159, %v7194
  %v7230 = vadd.f32 %v7160, %v7194
  %v7231 = vadd.f32 %v7161, %v7194
  %v7232 = vadd.f32 %v7162, %v7194
  %v7233 = vadd.f32 %v7163, %v7194
  %v7234 = vadd.f32 %v7164, %v7194
  %v7235 = vadd.f32 %v7165, %v7194
  %v7236 = vadd.f32 %v7166, %v7194
  %v7237 = vadd.f32 %v7167, %v7194
  %v7238 = vadd.f32 %v7168, %v7194
  %v7239 = vadd.f32 %v7169, %v7194
  %v7240 = vadd.f32 %v7170, %v7194
  %v7241 = vadd.f32 %v7171, %v7194
  %v7242 = vadd.f32 %v7172, %v7194
  %v7243 = vadd.f32 %v7173, %v7194
  %v7244 = vadd.f32 %v7174, %v7194
  %v7245 = vadd.f32 %v7175, %v7194
  %v7246 = vadd.f32 %v7176, %v7194
  %v7247 = vadd.f32 %v7177, %v7194
  %v7248 = vadd.f32 %v7178, %v7194
  %v7249 = vadd.f32 %v7179, %v7194
  %v7250 = vadd.f32 %v7180, %v7194
  %v7251 = vadd.f32 %v7181, %v7194
  %v7252 = vadd.f32 %v7182, %v7194
  %v7253 = vadd.f32 %v7183, %v7194
  %v7254 = vadd.f32 %v7184, %v7194
  %v7255 = vadd.f32 %v7185, %v7194
  %v7256 = vadd.f32 %v7186, %v7194
  %v7257 = vadd.f32 %v7187, %v7194
  %v7258 = vadd.f32 %v7188, %v7194
  %v7259 = vadd.f32 %v7189, %v7194
  %v7260 = vmax.f32 %v7196, 0.0
  %v7261 = vmax.f32 %v7197, 0.0
  %v7262 = vmax.f32 %v7198, 0.0
  %v7263 = vmax.f32 %v7199, 0.0
  %v7264 = vmax.f32 %v7200, 0.0
  %v7265 = vmax.f32 %v7201, 0.0
  %v7266 = vmax.f32 %v7202, 0.0
  %v7267 = vmax.f32 %v7203, 0.0
  %v7268 = vmax.f32 %v7204, 0.0
  %v7269 = vmax.f32 %v7205, 0.0
  %v7270 = vmax.f32 %v7206, 0.0
  %v7271 = vmax.f32 %v7207, 0.0
  %v7272 = vmax.f32 %v7208, 0.0
  %v7273 = vmax.f32 %v7209, 0.0
  %v7274 = vmax.f32 %v7210, 0.0
  %v7275 = vmax.f32 %v7211, 0.0
  %v7276 = vmax.f32 %v7212, 0.0
  %v7277 = vmax.f32 %v7213, 0.0
  %v7278 = vmax.f32 %v7214, 0.0
  %v7279 = vmax.f32 %v7215, 0.0
  %v7280 = vmax.f32 %v7216, 0.0
  %v7281 = vmax.f32 %v7217, 0.0
  %v7282 = vmax.f32 %v7218, 0.0
  %v7283 = vmax.f32 %v7219, 0.0
  %v7284 = vmax.f32 %v7220, 0.0
  %v7285 = vmax.f32 %v7221, 0.0
  %v7286 = vmax.f32 %v7222, 0.0
  %v7287 = vmax.f32 %v7223, 0.0
  %v7288 = vmax.f32 %v7224, 0.0
  %v7289 = vmax.f32 %v7225, 0.0
  %v7290 = vmax.f32 %v7226, 0.0
  %v7291 = vmax.f32 %v7227, 0.0
  %v7292 = vmax.f32 %v7228, 0.0
  %v7293 = vmax.f32 %v7229, 0.0
  %v7294 = vmax.f32 %v7230, 0.0
  %v7295 = vmax.f32 %v7231, 0.0
  %v7296 = vmax.f32 %v7232, 0.0
  %v7297 = vmax.f32 %v7233, 0.0
  %v7298 = vmax.f32 %v7234, 0.0
  %v7299 = vmax.f32 %v7235, 0.0
  %v7300 = vmax.f32 %v7236, 0.0
  %v7301 = vmax.f32 %v7237, 0.0
  %v7302 = vmax.f32 %v7238, 0.0
  %v7303 = vmax.f32 %v7239, 0.0
  %v7304 = vmax.f32 %v7240, 0.0
  %v7305 = vmax.f32 %v7241, 0.0
  %v7306 = vmax.f32 %v7242, 0.0
  %v7307 = vmax.f32 %v7243, 0.0
  %v7308 = vmax.f32 %v7244, 0.0
  %v7309 = vmax.f32 %v7245, 0.0
  %v7310 = vmax.f32 %v7246, 0.0
  %v7311 = vmax.f32 %v7247, 0.0
  %v7312 = vmax.f32 %v7248, 0.0
  %v7313 = vmax.f32 %v7249, 0.0
  %v7314 = vmax.f32 %v7250, 0.0
  %v7315 = vmax.f32 %v7251, 0.0
  %v7316 = vmax.f32 %v7252, 0.0
  %v7317 = vmax.f32 %v7253, 0.0
  %v7318 = vmax.f32 %v7254, 0.0
  %v7319 = vmax.f32 %v7255, 0.0
  %v7320 = vmax.f32 %v7256, 0.0
  %v7321 = vmax.f32 %v7257, 0.0
  %v7322 = vmax.f32 %v7258, 0.0
  %v7323 = vmax.f32 %v7259, 0.0
  %v7324 = vpack.c.bf16 %v7261, %v7260
  %v7325 = vpack.c.bf16 %v7263, %v7262
  %v7326 = vpack.c.bf16 %v7265, %v7264
  %v7327 = vpack.c.bf16 %v7267, %v7266
  %v7328 = vpack.c.bf16 %v7269, %v7268
  %v7329 = vpack.c.bf16 %v7271, %v7270
  %v7330 = vpack.c.bf16 %v7273, %v7272
  %v7331 = vpack.c.bf16 %v7275, %v7274
  %v7332 = vpack.c.bf16 %v7277, %v7276
  %v7333 = vpack.c.bf16 %v7279, %v7278
  %v7334 = vpack.c.bf16 %v7281, %v7280
  %v7335 = vpack.c.bf16 %v7283, %v7282
  %v7336 = vpack.c.bf16 %v7285, %v7284
  %v7337 = vpack.c.bf16 %v7287, %v7286
  %v7338 = vpack.c.bf16 %v7289, %v7288
  %v7339 = vpack.c.bf16 %v7291, %v7290
  %v7340 = vpack.c.bf16 %v7293, %v7292
  %v7341 = vpack.c.bf16 %v7295, %v7294
  %v7342 = vpack.c.bf16 %v7297, %v7296
  %v7343 = vpack.c.bf16 %v7299, %v7298
  %v7344 = vpack.c.bf16 %v7301, %v7300
  %v7345 = vpack.c.bf16 %v7303, %v7302
  %v7346 = vpack.c.bf16 %v7305, %v7304
  %v7347 = vpack.c.bf16 %v7307, %v7306
  %v7348 = vpack.c.bf16 %v7309, %v7308
  %v7349 = vpack.c.bf16 %v7311, %v7310
  %v7350 = vpack.c.bf16 %v7313, %v7312
  %v7351 = vpack.c.bf16 %v7315, %v7314
  %v7352 = vpack.c.bf16 %v7317, %v7316
  %v7353 = vpack.c.bf16 %v7319, %v7318
  %v7354 = vpack.c.bf16 %v7321, %v7320
  %v7355 = vpack.c.bf16 %v7323, %v7322
  %v7356 = vld [vmem:[%s3] sm:$0x3]
  %v7358 = vsel %vm528, %v7324, 0
  %v7361 = vsel %vm528, %v7325, 0
  %v7364 = vsel %vm528, %v7326, 0
  %v7367 = vsel %vm528, %v7327, 0
  %v7370 = vsel %vm528, %v7328, 0
  %v7373 = vsel %vm528, %v7329, 0
  %v7376 = vsel %vm528, %v7330, 0
  %v7379 = vsel %vm528, %v7331, 0
  %v7382 = vsel %vm528, %v7332, 0
  %v7385 = vsel %vm528, %v7333, 0
  %v7388 = vsel %vm528, %v7334, 0
  %v7391 = vsel %vm528, %v7335, 0
  %v7394 = vsel %vm528, %v7336, 0
  %v7397 = vsel %vm528, %v7337, 0
  %v7400 = vsel %vm528, %v7338, 0
  %v7403 = vsel %vm528, %v7339, 0
  %v7406 = vsel %vm528, %v7340, 0
  %v7409 = vsel %vm528, %v7341, 0
  %v7412 = vsel %vm528, %v7342, 0
  %v7415 = vsel %vm528, %v7343, 0
  %v7418 = vsel %vm528, %v7344, 0
  %v7421 = vsel %vm528, %v7345, 0
  %v7424 = vsel %vm528, %v7346, 0
  %v7427 = vsel %vm528, %v7347, 0
  %v7430 = vsel %vm528, %v7348, 0
  %v7433 = vsel %vm528, %v7349, 0
  %v7436 = vsel %vm528, %v7350, 0
  %v7439 = vsel %vm528, %v7351, 0
  %v7442 = vsel %vm528, %v7352, 0
  %v7445 = vsel %vm528, %v7353, 0
  %v7448 = vsel %vm528, %v7354, 0
  %v7451 = vsel %vm528, %v7355, 0
  %v7454 = vsel %vm6426, %v7356, 0
  %7456 = vmatprep.subr.bf16.mxu0 0
  %7457 = vmatpush1.bf16.msra.mxu0 0
  %7458 = vmatprep.subr.bf16.mxu0 0
  %7459 = vmatpush1.bf16.msra.mxu0 0
  %7460 = vmatprep.subr.bf16.mxu0 0
  %7461 = vmatpush1.bf16.msra.mxu0 0
  %7462 = vmatprep.subr.bf16.mxu0 0
  %7463 = vmatpush1.bf16.msra.mxu0 0
  %7464 = vmatprep.subr.bf16.mxu0 0
  %7465 = vmatpush1.bf16.msra.mxu0 0
  %7466 = vmatprep.subr.bf16.mxu0 0
  %7467 = vmatpush1.bf16.msra.mxu0 0
  %7468 = vmatprep.subr.bf16.mxu0 0
  %7469 = vmatpush1.bf16.msra.mxu0 0
  %7470 = vmatprep.subr.bf16.mxu0 0
  %7471 = vmatpush1.bf16.msra.mxu0 %v7454
  %7472 = vmatprep.subr.bf16.mxu0 0
  %7473 = vmatpush2.bf16.msra.mxu0 0
  %7474 = vmatprep.subr.bf16.mxu0 0
  %7475 = vmatpush2.bf16.msra.mxu0 0
  %7476 = vmatprep.subr.bf16.mxu0 0
  %7477 = vmatpush2.bf16.msra.mxu0 0
  %7478 = vmatprep.subr.bf16.mxu0 0
  %7479 = vmatpush2.bf16.msra.mxu0 0
  %7480 = vmatprep.subr.bf16.mxu0 0
  %7481 = vmatpush2.bf16.msra.mxu0 0
  %7482 = vmatprep.subr.bf16.mxu0 0
  %7483 = vmatpush2.bf16.msra.mxu0 0
  %7484 = vmatprep.subr.bf16.mxu0 0
  %7485 = vmatpush2.bf16.msra.mxu0 0
  %7486 = vmatprep.subr.bf16.mxu0 0
  %7487 = vmatpush2.bf16.msra.mxu0 0
  %7488 = vmatprep.mubr.bf16.mxu0 0
  %7489 = vmatmul.mubr.bf16.gmra.mxu0 %v7358
  %v7490 = vpop.f32.mrf.mxu0
  %v7491 = vadd.f32 0.0, %v7490
  %v7492 = vpop.f32.mrf.mxu0
  %v7493 = vpop.f32.mrf.mxu0
  %v7494 = vadd.f32 0.0, %v7493
  %v7495 = vpop.f32.mrf.mxu0
  %7496 = vmatprep.mubr.bf16.mxu0 0
  %7497 = vmatmul.mubr.bf16.gmra.mxu0 %v7361
  %v7498 = vpop.f32.mrf.mxu0
  %v7499 = vadd.f32 0.0, %v7498
  %v7500 = vpop.f32.mrf.mxu0
  %v7501 = vpop.f32.mrf.mxu0
  %v7502 = vadd.f32 0.0, %v7501
  %v7503 = vpop.f32.mrf.mxu0
  %7504 = vmatprep.mubr.bf16.mxu0 0
  %7505 = vmatmul.mubr.bf16.gmra.mxu0 %v7364
  %v7506 = vpop.f32.mrf.mxu0
  %v7507 = vadd.f32 0.0, %v7506
  %v7508 = vpop.f32.mrf.mxu0
  %v7509 = vpop.f32.mrf.mxu0
  %v7510 = vadd.f32 0.0, %v7509
  %v7511 = vpop.f32.mrf.mxu0
  %7512 = vmatprep.mubr.bf16.mxu0 0
  %7513 = vmatmul.mubr.bf16.gmra.mxu0 %v7367
  %v7514 = vpop.f32.mrf.mxu0
  %v7515 = vadd.f32 0.0, %v7514
  %v7516 = vpop.f32.mrf.mxu0
  %v7517 = vpop.f32.mrf.mxu0
  %v7518 = vadd.f32 0.0, %v7517
  %v7519 = vpop.f32.mrf.mxu0
  %7520 = vmatprep.mubr.bf16.mxu0 0
  %7521 = vmatmul.mubr.bf16.gmra.mxu0 %v7370
  %v7522 = vpop.f32.mrf.mxu0
  %v7523 = vadd.f32 0.0, %v7522
  %v7524 = vpop.f32.mrf.mxu0
  %v7525 = vpop.f32.mrf.mxu0
  %v7526 = vadd.f32 0.0, %v7525
  %v7527 = vpop.f32.mrf.mxu0
  %7528 = vmatprep.mubr.bf16.mxu0 0
  %7529 = vmatmul.mubr.bf16.gmra.mxu0 %v7373
  %v7530 = vpop.f32.mrf.mxu0
  %v7531 = vadd.f32 0.0, %v7530
  %v7532 = vpop.f32.mrf.mxu0
  %v7533 = vpop.f32.mrf.mxu0
  %v7534 = vadd.f32 0.0, %v7533
  %v7535 = vpop.f32.mrf.mxu0
  %7536 = vmatprep.mubr.bf16.mxu0 0
  %7537 = vmatmul.mubr.bf16.gmra.mxu0 %v7376
  %v7538 = vpop.f32.mrf.mxu0
  %v7539 = vadd.f32 0.0, %v7538
  %v7540 = vpop.f32.mrf.mxu0
  %v7541 = vpop.f32.mrf.mxu0
  %v7542 = vadd.f32 0.0, %v7541
  %v7543 = vpop.f32.mrf.mxu0
  %7544 = vmatprep.mubr.bf16.mxu0 0
  %7545 = vmatmul.mubr.bf16.gmra.mxu0 %v7379
  %v7546 = vpop.f32.mrf.mxu0
  %v7547 = vadd.f32 0.0, %v7546
  %v7548 = vpop.f32.mrf.mxu0
  %v7549 = vpop.f32.mrf.mxu0
  %v7550 = vadd.f32 0.0, %v7549
  %v7551 = vpop.f32.mrf.mxu0
  %7552 = vmatprep.mubr.bf16.mxu0 0
  %7553 = vmatmul.mubr.bf16.gmra.mxu0 %v7382
  %v7554 = vpop.f32.mrf.mxu0
  %v7555 = vadd.f32 0.0, %v7554
  %v7556 = vpop.f32.mrf.mxu0
  %v7557 = vpop.f32.mrf.mxu0
  %v7558 = vadd.f32 0.0, %v7557
  %v7559 = vpop.f32.mrf.mxu0
  %7560 = vmatprep.mubr.bf16.mxu0 0
  %7561 = vmatmul.mubr.bf16.gmra.mxu0 %v7385
  %v7562 = vpop.f32.mrf.mxu0
  %v7563 = vadd.f32 0.0, %v7562
  %v7564 = vpop.f32.mrf.mxu0
  %v7565 = vpop.f32.mrf.mxu0
  %v7566 = vadd.f32 0.0, %v7565
  %v7567 = vpop.f32.mrf.mxu0
  %7568 = vmatprep.mubr.bf16.mxu0 0
  %7569 = vmatmul.mubr.bf16.gmra.mxu0 %v7388
  %v7570 = vpop.f32.mrf.mxu0
  %v7571 = vadd.f32 0.0, %v7570
  %v7572 = vpop.f32.mrf.mxu0
  %v7573 = vpop.f32.mrf.mxu0
  %v7574 = vadd.f32 0.0, %v7573
  %v7575 = vpop.f32.mrf.mxu0
  %7576 = vmatprep.mubr.bf16.mxu0 0
  %7577 = vmatmul.mubr.bf16.gmra.mxu0 %v7391
  %v7578 = vpop.f32.mrf.mxu0
  %v7579 = vadd.f32 0.0, %v7578
  %v7580 = vpop.f32.mrf.mxu0
  %v7581 = vpop.f32.mrf.mxu0
  %v7582 = vadd.f32 0.0, %v7581
  %v7583 = vpop.f32.mrf.mxu0
  %7584 = vmatprep.mubr.bf16.mxu0 0
  %7585 = vmatmul.mubr.bf16.gmra.mxu0 %v7394
  %v7586 = vpop.f32.mrf.mxu0
  %v7587 = vadd.f32 0.0, %v7586
  %v7588 = vpop.f32.mrf.mxu0
  %v7589 = vpop.f32.mrf.mxu0
  %v7590 = vadd.f32 0.0, %v7589
  %v7591 = vpop.f32.mrf.mxu0
  %7592 = vmatprep.mubr.bf16.mxu0 0
  %7593 = vmatmul.mubr.bf16.gmra.mxu0 %v7397
  %v7594 = vpop.f32.mrf.mxu0
  %v7595 = vadd.f32 0.0, %v7594
  %v7596 = vpop.f32.mrf.mxu0
  %v7597 = vpop.f32.mrf.mxu0
  %v7598 = vadd.f32 0.0, %v7597
  %v7599 = vpop.f32.mrf.mxu0
  %7600 = vmatprep.mubr.bf16.mxu0 0
  %7601 = vmatmul.mubr.bf16.gmra.mxu0 %v7400
  %v7602 = vpop.f32.mrf.mxu0
  %v7603 = vadd.f32 0.0, %v7602
  %v7604 = vpop.f32.mrf.mxu0
  %v7605 = vpop.f32.mrf.mxu0
  %v7606 = vadd.f32 0.0, %v7605
  %v7607 = vpop.f32.mrf.mxu0
  %7608 = vmatprep.mubr.bf16.mxu0 0
  %7609 = vmatmul.mubr.bf16.gmra.mxu0 %v7403
  %v7610 = vpop.f32.mrf.mxu0
  %v7611 = vadd.f32 0.0, %v7610
  %v7612 = vpop.f32.mrf.mxu0
  %v7613 = vpop.f32.mrf.mxu0
  %v7614 = vadd.f32 0.0, %v7613
  %v7615 = vpop.f32.mrf.mxu0
  %7616 = vmatprep.mubr.bf16.mxu0 0
  %7617 = vmatmul.mubr.bf16.gmra.mxu0 %v7406
  %v7618 = vpop.f32.mrf.mxu0
  %v7619 = vadd.f32 0.0, %v7618
  %v7620 = vpop.f32.mrf.mxu0
  %v7621 = vpop.f32.mrf.mxu0
  %v7622 = vadd.f32 0.0, %v7621
  %v7623 = vpop.f32.mrf.mxu0
  %7624 = vmatprep.mubr.bf16.mxu0 0
  %7625 = vmatmul.mubr.bf16.gmra.mxu0 %v7409
  %v7626 = vpop.f32.mrf.mxu0
  %v7627 = vadd.f32 0.0, %v7626
  %v7628 = vpop.f32.mrf.mxu0
  %v7629 = vpop.f32.mrf.mxu0
  %v7630 = vadd.f32 0.0, %v7629
  %v7631 = vpop.f32.mrf.mxu0
  %7632 = vmatprep.mubr.bf16.mxu0 0
  %7633 = vmatmul.mubr.bf16.gmra.mxu0 %v7412
  %v7634 = vpop.f32.mrf.mxu0
  %v7635 = vadd.f32 0.0, %v7634
  %v7636 = vpop.f32.mrf.mxu0
  %v7637 = vpop.f32.mrf.mxu0
  %v7638 = vadd.f32 0.0, %v7637
  %v7639 = vpop.f32.mrf.mxu0
  %7640 = vmatprep.mubr.bf16.mxu0 0
  %7641 = vmatmul.mubr.bf16.gmra.mxu0 %v7415
  %v7642 = vpop.f32.mrf.mxu0
  %v7643 = vadd.f32 0.0, %v7642
  %v7644 = vpop.f32.mrf.mxu0
  %v7645 = vpop.f32.mrf.mxu0
  %v7646 = vadd.f32 0.0, %v7645
  %v7647 = vpop.f32.mrf.mxu0
  %7648 = vmatprep.mubr.bf16.mxu0 0
  %7649 = vmatmul.mubr.bf16.gmra.mxu0 %v7418
  %v7650 = vpop.f32.mrf.mxu0
  %v7651 = vadd.f32 0.0, %v7650
  %v7652 = vpop.f32.mrf.mxu0
  %v7653 = vpop.f32.mrf.mxu0
  %v7654 = vadd.f32 0.0, %v7653
  %v7655 = vpop.f32.mrf.mxu0
  %7656 = vmatprep.mubr.bf16.mxu0 0
  %7657 = vmatmul.mubr.bf16.gmra.mxu0 %v7421
  %v7658 = vpop.f32.mrf.mxu0
  %v7659 = vadd.f32 0.0, %v7658
  %v7660 = vpop.f32.mrf.mxu0
  %v7661 = vpop.f32.mrf.mxu0
  %v7662 = vadd.f32 0.0, %v7661
  %v7663 = vpop.f32.mrf.mxu0
  %7664 = vmatprep.mubr.bf16.mxu0 0
  %7665 = vmatmul.mubr.bf16.gmra.mxu0 %v7424
  %v7666 = vpop.f32.mrf.mxu0
  %v7667 = vadd.f32 0.0, %v7666
  %v7668 = vpop.f32.mrf.mxu0
  %v7669 = vpop.f32.mrf.mxu0
  %v7670 = vadd.f32 0.0, %v7669
  %v7671 = vpop.f32.mrf.mxu0
  %7672 = vmatprep.mubr.bf16.mxu0 0
  %7673 = vmatmul.mubr.bf16.gmra.mxu0 %v7427
  %v7674 = vpop.f32.mrf.mxu0
  %v7675 = vadd.f32 0.0, %v7674
  %v7676 = vpop.f32.mrf.mxu0
  %v7677 = vpop.f32.mrf.mxu0
  %v7678 = vadd.f32 0.0, %v7677
  %v7679 = vpop.f32.mrf.mxu0
  %7680 = vmatprep.mubr.bf16.mxu0 0
  %7681 = vmatmul.mubr.bf16.gmra.mxu0 %v7430
  %v7682 = vpop.f32.mrf.mxu0
  %v7683 = vadd.f32 0.0, %v7682
  %v7684 = vpop.f32.mrf.mxu0
  %v7685 = vpop.f32.mrf.mxu0
  %v7686 = vadd.f32 0.0, %v7685
  %v7687 = vpop.f32.mrf.mxu0
  %7688 = vmatprep.mubr.bf16.mxu0 0
  %7689 = vmatmul.mubr.bf16.gmra.mxu0 %v7433
  %v7690 = vpop.f32.mrf.mxu0
  %v7691 = vadd.f32 0.0, %v7690
  %v7692 = vpop.f32.mrf.mxu0
  %v7693 = vpop.f32.mrf.mxu0
  %v7694 = vadd.f32 0.0, %v7693
  %v7695 = vpop.f32.mrf.mxu0
  %7696 = vmatprep.mubr.bf16.mxu0 0
  %7697 = vmatmul.mubr.bf16.gmra.mxu0 %v7436
  %v7698 = vpop.f32.mrf.mxu0
  %v7699 = vadd.f32 0.0, %v7698
  %v7700 = vpop.f32.mrf.mxu0
  %v7701 = vpop.f32.mrf.mxu0
  %v7702 = vadd.f32 0.0, %v7701
  %v7703 = vpop.f32.mrf.mxu0
  %7704 = vmatprep.mubr.bf16.mxu0 0
  %7705 = vmatmul.mubr.bf16.gmra.mxu0 %v7439
  %v7706 = vpop.f32.mrf.mxu0
  %v7707 = vadd.f32 0.0, %v7706
  %v7708 = vpop.f32.mrf.mxu0
  %v7709 = vpop.f32.mrf.mxu0
  %v7710 = vadd.f32 0.0, %v7709
  %v7711 = vpop.f32.mrf.mxu0
  %7712 = vmatprep.mubr.bf16.mxu0 0
  %7713 = vmatmul.mubr.bf16.gmra.mxu0 %v7442
  %v7714 = vpop.f32.mrf.mxu0
  %v7715 = vadd.f32 0.0, %v7714
  %v7716 = vpop.f32.mrf.mxu0
  %v7717 = vpop.f32.mrf.mxu0
  %v7718 = vadd.f32 0.0, %v7717
  %v7719 = vpop.f32.mrf.mxu0
  %7720 = vmatprep.mubr.bf16.mxu0 0
  %7721 = vmatmul.mubr.bf16.gmra.mxu0 %v7445
  %v7722 = vpop.f32.mrf.mxu0
  %v7723 = vadd.f32 0.0, %v7722
  %v7724 = vpop.f32.mrf.mxu0
  %v7725 = vpop.f32.mrf.mxu0
  %v7726 = vadd.f32 0.0, %v7725
  %v7727 = vpop.f32.mrf.mxu0
  %7728 = vmatprep.mubr.bf16.mxu0 0
  %7729 = vmatmul.mubr.bf16.gmra.mxu0 %v7448
  %v7730 = vpop.f32.mrf.mxu0
  %v7731 = vadd.f32 0.0, %v7730
  %v7732 = vpop.f32.mrf.mxu0
  %v7733 = vpop.f32.mrf.mxu0
  %v7734 = vadd.f32 0.0, %v7733
  %v7735 = vpop.f32.mrf.mxu0
  %7736 = vmatprep.mubr.bf16.mxu0 0
  %7737 = vmatmul.mubr.bf16.gmra.mxu0 %v7451
  %v7738 = vpop.f32.mrf.mxu0
  %v7739 = vadd.f32 0.0, %v7738
  %v7740 = vpop.f32.mrf.mxu0
  %v7741 = vpop.f32.mrf.mxu0
  %v7742 = vadd.f32 0.0, %v7741
  %v7743 = vpop.f32.mrf.mxu0
  %7744 = vdwg.mxu0
  %v7745 = vld [vmem:[%s8] sm:$0x1]
  %v7746 = vld [vmem:[%s9] sm:$0x1]
  %v7747 = vsel %vm140, %v7491, 0.0
  %v7748 = vsel %vm140, %v7494, 0.0
  %v7749 = vadd.f32 %v7747, %v7748
  %v7750 = vsel %vm140, %v7499, 0.0
  %v7751 = vadd.f32 %v7749, %v7750
  %v7752 = vsel %vm140, %v7502, 0.0
  %v7753 = vadd.f32 %v7751, %v7752
  %v7754 = vsel %vm140, %v7507, 0.0
  %v7755 = vadd.f32 %v7753, %v7754
  %v7756 = vsel %vm140, %v7510, 0.0
  %v7757 = vadd.f32 %v7755, %v7756
  %v7758 = vsel %vm140, %v7515, 0.0
  %v7759 = vadd.f32 %v7757, %v7758
  %v7760 = vsel %vm140, %v7518, 0.0
  %v7761 = vadd.f32 %v7759, %v7760
  %v7762 = vsel %vm140, %v7523, 0.0
  %v7763 = vadd.f32 %v7761, %v7762
  %v7764 = vsel %vm140, %v7526, 0.0
  %v7765 = vadd.f32 %v7763, %v7764
  %v7766 = vsel %vm140, %v7531, 0.0
  %v7767 = vadd.f32 %v7765, %v7766
  %v7768 = vsel %vm140, %v7534, 0.0
  %v7769 = vadd.f32 %v7767, %v7768
  %v7770 = vsel %vm140, %v7539, 0.0
  %v7771 = vadd.f32 %v7769, %v7770
  %v7772 = vsel %vm140, %v7542, 0.0
  %v7773 = vadd.f32 %v7771, %v7772
  %v7774 = vsel %vm140, %v7547, 0.0
  %v7775 = vadd.f32 %v7773, %v7774
  %v7776 = vsel %vm140, %v7550, 0.0
  %v7777 = vadd.f32 %v7775, %v7776
  %v7778 = vsel %vm140, %v7555, 0.0
  %v7779 = vadd.f32 %v7777, %v7778
  %v7780 = vsel %vm140, %v7558, 0.0
  %v7781 = vadd.f32 %v7779, %v7780
  %v7782 = vsel %vm140, %v7563, 0.0
  %v7783 = vadd.f32 %v7781, %v7782
  %v7784 = vsel %vm140, %v7566, 0.0
  %v7785 = vadd.f32 %v7783, %v7784
  %v7786 = vsel %vm140, %v7571, 0.0
  %v7787 = vadd.f32 %v7785, %v7786
  %v7788 = vsel %vm140, %v7574, 0.0
  %v7789 = vadd.f32 %v7787, %v7788
  %v7790 = vsel %vm140, %v7579, 0.0
  %v7791 = vadd.f32 %v7789, %v7790
  %v7792 = vsel %vm140, %v7582, 0.0
  %v7793 = vadd.f32 %v7791, %v7792
  %v7794 = vsel %vm140, %v7587, 0.0
  %v7795 = vadd.f32 %v7793, %v7794
  %v7796 = vsel %vm140, %v7590, 0.0
  %v7797 = vadd.f32 %v7795, %v7796
  %v7798 = vsel %vm140, %v7595, 0.0
  %v7799 = vadd.f32 %v7797, %v7798
  %v7800 = vsel %vm140, %v7598, 0.0
  %v7801 = vadd.f32 %v7799, %v7800
  %v7802 = vsel %vm140, %v7603, 0.0
  %v7803 = vadd.f32 %v7801, %v7802
  %v7804 = vsel %vm140, %v7606, 0.0
  %v7805 = vadd.f32 %v7803, %v7804
  %v7806 = vsel %vm140, %v7611, 0.0
  %v7807 = vadd.f32 %v7805, %v7806
  %v7808 = vsel %vm140, %v7614, 0.0
  %v7809 = vadd.f32 %v7807, %v7808
  %v7810 = vsel %vm140, %v7619, 0.0
  %v7811 = vadd.f32 %v7809, %v7810
  %v7812 = vsel %vm140, %v7622, 0.0
  %v7813 = vadd.f32 %v7811, %v7812
  %v7814 = vsel %vm140, %v7627, 0.0
  %v7815 = vadd.f32 %v7813, %v7814
  %v7816 = vsel %vm140, %v7630, 0.0
  %v7817 = vadd.f32 %v7815, %v7816
  %v7818 = vsel %vm140, %v7635, 0.0
  %v7819 = vadd.f32 %v7817, %v7818
  %v7820 = vsel %vm140, %v7638, 0.0
  %v7821 = vadd.f32 %v7819, %v7820
  %v7822 = vsel %vm140, %v7643, 0.0
  %v7823 = vadd.f32 %v7821, %v7822
  %v7824 = vsel %vm140, %v7646, 0.0
  %v7825 = vadd.f32 %v7823, %v7824
  %v7826 = vsel %vm140, %v7651, 0.0
  %v7827 = vadd.f32 %v7825, %v7826
  %v7828 = vsel %vm140, %v7654, 0.0
  %v7829 = vadd.f32 %v7827, %v7828
  %v7830 = vsel %vm140, %v7659, 0.0
  %v7831 = vadd.f32 %v7829, %v7830
  %v7832 = vsel %vm140, %v7662, 0.0
  %v7833 = vadd.f32 %v7831, %v7832
  %v7834 = vsel %vm140, %v7667, 0.0
  %v7835 = vadd.f32 %v7833, %v7834
  %v7836 = vsel %vm140, %v7670, 0.0
  %v7837 = vadd.f32 %v7835, %v7836
  %v7838 = vsel %vm140, %v7675, 0.0
  %v7839 = vadd.f32 %v7837, %v7838
  %v7840 = vsel %vm140, %v7678, 0.0
  %v7841 = vadd.f32 %v7839, %v7840
  %v7842 = vsel %vm140, %v7683, 0.0
  %v7843 = vadd.f32 %v7841, %v7842
  %v7844 = vsel %vm140, %v7686, 0.0
  %v7845 = vadd.f32 %v7843, %v7844
  %v7846 = vsel %vm140, %v7691, 0.0
  %v7847 = vadd.f32 %v7845, %v7846
  %v7848 = vsel %vm140, %v7694, 0.0
  %v7849 = vadd.f32 %v7847, %v7848
  %v7850 = vsel %vm140, %v7699, 0.0
  %v7851 = vadd.f32 %v7849, %v7850
  %v7852 = vsel %vm140, %v7702, 0.0
  %v7853 = vadd.f32 %v7851, %v7852
  %v7854 = vsel %vm140, %v7707, 0.0
  %v7855 = vadd.f32 %v7853, %v7854
  %v7856 = vsel %vm140, %v7710, 0.0
  %v7857 = vadd.f32 %v7855, %v7856
  %v7858 = vsel %vm140, %v7715, 0.0
  %v7859 = vadd.f32 %v7857, %v7858
  %v7860 = vsel %vm140, %v7718, 0.0
  %v7861 = vadd.f32 %v7859, %v7860
  %v7862 = vsel %vm140, %v7723, 0.0
  %v7863 = vadd.f32 %v7861, %v7862
  %v7864 = vsel %vm140, %v7726, 0.0
  %v7865 = vadd.f32 %v7863, %v7864
  %v7866 = vsel %vm140, %v7731, 0.0
  %v7867 = vadd.f32 %v7865, %v7866
  %v7868 = vsel %vm140, %v7734, 0.0
  %v7869 = vadd.f32 %v7867, %v7868
  %v7870 = vsel %vm140, %v7739, 0.0
  %v7871 = vadd.f32 %v7869, %v7870
  %v7872 = vsel %vm140, %v7742, 0.0
  %v7873 = vadd.f32 %v7871, %v7872
  %v7874 = vrot.slane %v7873, 4
  %v7875 = vadd.f32 %v7873, %v7874
  %v7876 = vrot.slane %v7875, 2
  %v7877 = vadd.f32 %v7875, %v7876
  %v7878 = vrot.slane %v7877, 1
  %v7879 = vadd.f32 %v7877, %v7878
  %v7880 = vmul.f32 %v7879, 0.001953125
  %v7881 = vsub.f32 %v7491, %v7880
  %v7882 = vsub.f32 %v7494, %v7880
  %v7883 = vsub.f32 %v7499, %v7880
  %v7884 = vsub.f32 %v7502, %v7880
  %v7885 = vsub.f32 %v7507, %v7880
  %v7886 = vsub.f32 %v7510, %v7880
  %v7887 = vsub.f32 %v7515, %v7880
  %v7888 = vsub.f32 %v7518, %v7880
  %v7889 = vsub.f32 %v7523, %v7880
  %v7890 = vsub.f32 %v7526, %v7880
  %v7891 = vsub.f32 %v7531, %v7880
  %v7892 = vsub.f32 %v7534, %v7880
  %v7893 = vsub.f32 %v7539, %v7880
  %v7894 = vsub.f32 %v7542, %v7880
  %v7895 = vsub.f32 %v7547, %v7880
  %v7896 = vsub.f32 %v7550, %v7880
  %v7897 = vsub.f32 %v7555, %v7880
  %v7898 = vsub.f32 %v7558, %v7880
  %v7899 = vsub.f32 %v7563, %v7880
  %v7900 = vsub.f32 %v7566, %v7880
  %v7901 = vsub.f32 %v7571, %v7880
  %v7902 = vsub.f32 %v7574, %v7880
  %v7903 = vsub.f32 %v7579, %v7880
  %v7904 = vsub.f32 %v7582, %v7880
  %v7905 = vsub.f32 %v7587, %v7880
  %v7906 = vsub.f32 %v7590, %v7880
  %v7907 = vsub.f32 %v7595, %v7880
  %v7908 = vsub.f32 %v7598, %v7880
  %v7909 = vsub.f32 %v7603, %v7880
  %v7910 = vsub.f32 %v7606, %v7880
  %v7911 = vsub.f32 %v7611, %v7880
  %v7912 = vsub.f32 %v7614, %v7880
  %v7913 = vsub.f32 %v7619, %v7880
  %v7914 = vsub.f32 %v7622, %v7880
  %v7915 = vsub.f32 %v7627, %v7880
  %v7916 = vsub.f32 %v7630, %v7880
  %v7917 = vsub.f32 %v7635, %v7880
  %v7918 = vsub.f32 %v7638, %v7880
  %v7919 = vsub.f32 %v7643, %v7880
  %v7920 = vsub.f32 %v7646, %v7880
  %v7921 = vsub.f32 %v7651, %v7880
  %v7922 = vsub.f32 %v7654, %v7880
  %v7923 = vsub.f32 %v7659, %v7880
  %v7924 = vsub.f32 %v7662, %v7880
  %v7925 = vsub.f32 %v7667, %v7880
  %v7926 = vsub.f32 %v7670, %v7880
  %v7927 = vsub.f32 %v7675, %v7880
  %v7928 = vsub.f32 %v7678, %v7880
  %v7929 = vsub.f32 %v7683, %v7880
  %v7930 = vsub.f32 %v7686, %v7880
  %v7931 = vsub.f32 %v7691, %v7880
  %v7932 = vsub.f32 %v7694, %v7880
  %v7933 = vsub.f32 %v7699, %v7880
  %v7934 = vsub.f32 %v7702, %v7880
  %v7935 = vsub.f32 %v7707, %v7880
  %v7936 = vsub.f32 %v7710, %v7880
  %v7937 = vsub.f32 %v7715, %v7880
  %v7938 = vsub.f32 %v7718, %v7880
  %v7939 = vsub.f32 %v7723, %v7880
  %v7940 = vsub.f32 %v7726, %v7880
  %v7941 = vsub.f32 %v7731, %v7880
  %v7942 = vsub.f32 %v7734, %v7880
  %v7943 = vsub.f32 %v7739, %v7880
  %v7944 = vsub.f32 %v7742, %v7880
  %v7945 = vmul.f32 %v7881, %v7881
  %v7946 = vmul.f32 %v7882, %v7882
  %v7947 = vmul.f32 %v7883, %v7883
  %v7948 = vmul.f32 %v7884, %v7884
  %v7949 = vmul.f32 %v7885, %v7885
  %v7950 = vmul.f32 %v7886, %v7886
  %v7951 = vmul.f32 %v7887, %v7887
  %v7952 = vmul.f32 %v7888, %v7888
  %v7953 = vmul.f32 %v7889, %v7889
  %v7954 = vmul.f32 %v7890, %v7890
  %v7955 = vmul.f32 %v7891, %v7891
  %v7956 = vmul.f32 %v7892, %v7892
  %v7957 = vmul.f32 %v7893, %v7893
  %v7958 = vmul.f32 %v7894, %v7894
  %v7959 = vmul.f32 %v7895, %v7895
  %v7960 = vmul.f32 %v7896, %v7896
  %v7961 = vmul.f32 %v7897, %v7897
  %v7962 = vmul.f32 %v7898, %v7898
  %v7963 = vmul.f32 %v7899, %v7899
  %v7964 = vmul.f32 %v7900, %v7900
  %v7965 = vmul.f32 %v7901, %v7901
  %v7966 = vmul.f32 %v7902, %v7902
  %v7967 = vmul.f32 %v7903, %v7903
  %v7968 = vmul.f32 %v7904, %v7904
  %v7969 = vmul.f32 %v7905, %v7905
  %v7970 = vmul.f32 %v7906, %v7906
  %v7971 = vmul.f32 %v7907, %v7907
  %v7972 = vmul.f32 %v7908, %v7908
  %v7973 = vmul.f32 %v7909, %v7909
  %v7974 = vmul.f32 %v7910, %v7910
  %v7975 = vmul.f32 %v7911, %v7911
  %v7976 = vmul.f32 %v7912, %v7912
  %v7977 = vmul.f32 %v7913, %v7913
  %v7978 = vmul.f32 %v7914, %v7914
  %v7979 = vmul.f32 %v7915, %v7915
  %v7980 = vmul.f32 %v7916, %v7916
  %v7981 = vmul.f32 %v7917, %v7917
  %v7982 = vmul.f32 %v7918, %v7918
  %v7983 = vmul.f32 %v7919, %v7919
  %v7984 = vmul.f32 %v7920, %v7920
  %v7985 = vmul.f32 %v7921, %v7921
  %v7986 = vmul.f32 %v7922, %v7922
  %v7987 = vmul.f32 %v7923, %v7923
  %v7988 = vmul.f32 %v7924, %v7924
  %v7989 = vmul.f32 %v7925, %v7925
  %v7990 = vmul.f32 %v7926, %v7926
  %v7991 = vmul.f32 %v7927, %v7927
  %v7992 = vmul.f32 %v7928, %v7928
  %v7993 = vmul.f32 %v7929, %v7929
  %v7994 = vmul.f32 %v7930, %v7930
  %v7995 = vmul.f32 %v7931, %v7931
  %v7996 = vmul.f32 %v7932, %v7932
  %v7997 = vmul.f32 %v7933, %v7933
  %v7998 = vmul.f32 %v7934, %v7934
  %v7999 = vmul.f32 %v7935, %v7935
  %v8000 = vmul.f32 %v7936, %v7936
  %v8001 = vmul.f32 %v7937, %v7937
  %v8002 = vmul.f32 %v7938, %v7938
  %v8003 = vmul.f32 %v7939, %v7939
  %v8004 = vmul.f32 %v7940, %v7940
  %v8005 = vmul.f32 %v7941, %v7941
  %v8006 = vmul.f32 %v7942, %v7942
  %v8007 = vmul.f32 %v7943, %v7943
  %v8008 = vmul.f32 %v7944, %v7944
  %v8009 = vsel %vm140, %v7945, 0.0
  %v8010 = vsel %vm140, %v7946, 0.0
  %v8011 = vadd.f32 %v8009, %v8010
  %v8012 = vsel %vm140, %v7947, 0.0
  %v8013 = vadd.f32 %v8011, %v8012
  %v8014 = vsel %vm140, %v7948, 0.0
  %v8015 = vadd.f32 %v8013, %v8014
  %v8016 = vsel %vm140, %v7949, 0.0
  %v8017 = vadd.f32 %v8015, %v8016
  %v8018 = vsel %vm140, %v7950, 0.0
  %v8019 = vadd.f32 %v8017, %v8018
  %v8020 = vsel %vm140, %v7951, 0.0
  %v8021 = vadd.f32 %v8019, %v8020
  %v8022 = vsel %vm140, %v7952, 0.0
  %v8023 = vadd.f32 %v8021, %v8022
  %v8024 = vsel %vm140, %v7953, 0.0
  %v8025 = vadd.f32 %v8023, %v8024
  %v8026 = vsel %vm140, %v7954, 0.0
  %v8027 = vadd.f32 %v8025, %v8026
  %v8028 = vsel %vm140, %v7955, 0.0
  %v8029 = vadd.f32 %v8027, %v8028
  %v8030 = vsel %vm140, %v7956, 0.0
  %v8031 = vadd.f32 %v8029, %v8030
  %v8032 = vsel %vm140, %v7957, 0.0
  %v8033 = vadd.f32 %v8031, %v8032
  %v8034 = vsel %vm140, %v7958, 0.0
  %v8035 = vadd.f32 %v8033, %v8034
  %v8036 = vsel %vm140, %v7959, 0.0
  %v8037 = vadd.f32 %v8035, %v8036
  %v8038 = vsel %vm140, %v7960, 0.0
  %v8039 = vadd.f32 %v8037, %v8038
  %v8040 = vsel %vm140, %v7961, 0.0
  %v8041 = vadd.f32 %v8039, %v8040
  %v8042 = vsel %vm140, %v7962, 0.0
  %v8043 = vadd.f32 %v8041, %v8042
  %v8044 = vsel %vm140, %v7963, 0.0
  %v8045 = vadd.f32 %v8043, %v8044
  %v8046 = vsel %vm140, %v7964, 0.0
  %v8047 = vadd.f32 %v8045, %v8046
  %v8048 = vsel %vm140, %v7965, 0.0
  %v8049 = vadd.f32 %v8047, %v8048
  %v8050 = vsel %vm140, %v7966, 0.0
  %v8051 = vadd.f32 %v8049, %v8050
  %v8052 = vsel %vm140, %v7967, 0.0
  %v8053 = vadd.f32 %v8051, %v8052
  %v8054 = vsel %vm140, %v7968, 0.0
  %v8055 = vadd.f32 %v8053, %v8054
  %v8056 = vsel %vm140, %v7969, 0.0
  %v8057 = vadd.f32 %v8055, %v8056
  %v8058 = vsel %vm140, %v7970, 0.0
  %v8059 = vadd.f32 %v8057, %v8058
  %v8060 = vsel %vm140, %v7971, 0.0
  %v8061 = vadd.f32 %v8059, %v8060
  %v8062 = vsel %vm140, %v7972, 0.0
  %v8063 = vadd.f32 %v8061, %v8062
  %v8064 = vsel %vm140, %v7973, 0.0
  %v8065 = vadd.f32 %v8063, %v8064
  %v8066 = vsel %vm140, %v7974, 0.0
  %v8067 = vadd.f32 %v8065, %v8066
  %v8068 = vsel %vm140, %v7975, 0.0
  %v8069 = vadd.f32 %v8067, %v8068
  %v8070 = vsel %vm140, %v7976, 0.0
  %v8071 = vadd.f32 %v8069, %v8070
  %v8072 = vsel %vm140, %v7977, 0.0
  %v8073 = vadd.f32 %v8071, %v8072
  %v8074 = vsel %vm140, %v7978, 0.0
  %v8075 = vadd.f32 %v8073, %v8074
  %v8076 = vsel %vm140, %v7979, 0.0
  %v8077 = vadd.f32 %v8075, %v8076
  %v8078 = vsel %vm140, %v7980, 0.0
  %v8079 = vadd.f32 %v8077, %v8078
  %v8080 = vsel %vm140, %v7981, 0.0
  %v8081 = vadd.f32 %v8079, %v8080
  %v8082 = vsel %vm140, %v7982, 0.0
  %v8083 = vadd.f32 %v8081, %v8082
  %v8084 = vsel %vm140, %v7983, 0.0
  %v8085 = vadd.f32 %v8083, %v8084
  %v8086 = vsel %vm140, %v7984, 0.0
  %v8087 = vadd.f32 %v8085, %v8086
  %v8088 = vsel %vm140, %v7985, 0.0
  %v8089 = vadd.f32 %v8087, %v8088
  %v8090 = vsel %vm140, %v7986, 0.0
  %v8091 = vadd.f32 %v8089, %v8090
  %v8092 = vsel %vm140, %v7987, 0.0
  %v8093 = vadd.f32 %v8091, %v8092
  %v8094 = vsel %vm140, %v7988, 0.0
  %v8095 = vadd.f32 %v8093, %v8094
  %v8096 = vsel %vm140, %v7989, 0.0
  %v8097 = vadd.f32 %v8095, %v8096
  %v8098 = vsel %vm140, %v7990, 0.0
  %v8099 = vadd.f32 %v8097, %v8098
  %v8100 = vsel %vm140, %v7991, 0.0
  %v8101 = vadd.f32 %v8099, %v8100
  %v8102 = vsel %vm140, %v7992, 0.0
  %v8103 = vadd.f32 %v8101, %v8102
  %v8104 = vsel %vm140, %v7993, 0.0
  %v8105 = vadd.f32 %v8103, %v8104
  %v8106 = vsel %vm140, %v7994, 0.0
  %v8107 = vadd.f32 %v8105, %v8106
  %v8108 = vsel %vm140, %v7995, 0.0
  %v8109 = vadd.f32 %v8107, %v8108
  %v8110 = vsel %vm140, %v7996, 0.0
  %v8111 = vadd.f32 %v8109, %v8110
  %v8112 = vsel %vm140, %v7997, 0.0
  %v8113 = vadd.f32 %v8111, %v8112
  %v8114 = vsel %vm140, %v7998, 0.0
  %v8115 = vadd.f32 %v8113, %v8114
  %v8116 = vsel %vm140, %v7999, 0.0
  %v8117 = vadd.f32 %v8115, %v8116
  %v8118 = vsel %vm140, %v8000, 0.0
  %v8119 = vadd.f32 %v8117, %v8118
  %v8120 = vsel %vm140, %v8001, 0.0
  %v8121 = vadd.f32 %v8119, %v8120
  %v8122 = vsel %vm140, %v8002, 0.0
  %v8123 = vadd.f32 %v8121, %v8122
  %v8124 = vsel %vm140, %v8003, 0.0
  %v8125 = vadd.f32 %v8123, %v8124
  %v8126 = vsel %vm140, %v8004, 0.0
  %v8127 = vadd.f32 %v8125, %v8126
  %v8128 = vsel %vm140, %v8005, 0.0
  %v8129 = vadd.f32 %v8127, %v8128
  %v8130 = vsel %vm140, %v8006, 0.0
  %v8131 = vadd.f32 %v8129, %v8130
  %v8132 = vsel %vm140, %v8007, 0.0
  %v8133 = vadd.f32 %v8131, %v8132
  %v8134 = vsel %vm140, %v8008, 0.0
  %v8135 = vadd.f32 %v8133, %v8134
  %v8136 = vrot.slane %v8135, 4
  %v8137 = vadd.f32 %v8135, %v8136
  %v8138 = vrot.slane %v8137, 2
  %v8139 = vadd.f32 %v8137, %v8138
  %v8140 = vrot.slane %v8139, 1
  %v8141 = vadd.f32 %v8139, %v8140
  %v8142 = vmul.f32 %v8141, 0.001953125
  %v8143 = vadd.f32 %v8142, 1e-05
  %v8144 = vrsqrt.pop %v8143
  %v8145 = vmul.f32 %v7745, %v8144
  %v8147 = vlaneseq
  %v8148 = vshrl.u32 %v8147, 7
  %v8149 = vsub.s32 0, %v8148
  %v8150 = vrot.slane %v8145, %v8149
  %v8152 = vmul.f32 %v7881, %v8150
  %v8153 = vmul.f32 %v7882, %v8150
  %v8154 = vmul.f32 %v7883, %v8150
  %v8155 = vmul.f32 %v7884, %v8150
  %v8156 = vmul.f32 %v7885, %v8150
  %v8157 = vmul.f32 %v7886, %v8150
  %v8158 = vmul.f32 %v7887, %v8150
  %v8159 = vmul.f32 %v7888, %v8150
  %v8160 = vmul.f32 %v7889, %v8150
  %v8161 = vmul.f32 %v7890, %v8150
  %v8162 = vmul.f32 %v7891, %v8150
  %v8163 = vmul.f32 %v7892, %v8150
  %v8164 = vmul.f32 %v7893, %v8150
  %v8165 = vmul.f32 %v7894, %v8150
  %v8166 = vmul.f32 %v7895, %v8150
  %v8167 = vmul.f32 %v7896, %v8150
  %v8168 = vmul.f32 %v7897, %v8150
  %v8169 = vmul.f32 %v7898, %v8150
  %v8170 = vmul.f32 %v7899, %v8150
  %v8171 = vmul.f32 %v7900, %v8150
  %v8172 = vmul.f32 %v7901, %v8150
  %v8173 = vmul.f32 %v7902, %v8150
  %v8174 = vmul.f32 %v7903, %v8150
  %v8175 = vmul.f32 %v7904, %v8150
  %v8176 = vmul.f32 %v7905, %v8150
  %v8177 = vmul.f32 %v7906, %v8150
  %v8178 = vmul.f32 %v7907, %v8150
  %v8179 = vmul.f32 %v7908, %v8150
  %v8180 = vmul.f32 %v7909, %v8150
  %v8181 = vmul.f32 %v7910, %v8150
  %v8182 = vmul.f32 %v7911, %v8150
  %v8183 = vmul.f32 %v7912, %v8150
  %v8184 = vmul.f32 %v7913, %v8150
  %v8185 = vmul.f32 %v7914, %v8150
  %v8186 = vmul.f32 %v7915, %v8150
  %v8187 = vmul.f32 %v7916, %v8150
  %v8188 = vmul.f32 %v7917, %v8150
  %v8189 = vmul.f32 %v7918, %v8150
  %v8190 = vmul.f32 %v7919, %v8150
  %v8191 = vmul.f32 %v7920, %v8150
  %v8192 = vmul.f32 %v7921, %v8150
  %v8193 = vmul.f32 %v7922, %v8150
  %v8194 = vmul.f32 %v7923, %v8150
  %v8195 = vmul.f32 %v7924, %v8150
  %v8196 = vmul.f32 %v7925, %v8150
  %v8197 = vmul.f32 %v7926, %v8150
  %v8198 = vmul.f32 %v7927, %v8150
  %v8199 = vmul.f32 %v7928, %v8150
  %v8200 = vmul.f32 %v7929, %v8150
  %v8201 = vmul.f32 %v7930, %v8150
  %v8202 = vmul.f32 %v7931, %v8150
  %v8203 = vmul.f32 %v7932, %v8150
  %v8204 = vmul.f32 %v7933, %v8150
  %v8205 = vmul.f32 %v7934, %v8150
  %v8206 = vmul.f32 %v7935, %v8150
  %v8207 = vmul.f32 %v7936, %v8150
  %v8208 = vmul.f32 %v7937, %v8150
  %v8209 = vmul.f32 %v7938, %v8150
  %v8210 = vmul.f32 %v7939, %v8150
  %v8211 = vmul.f32 %v7940, %v8150
  %v8212 = vmul.f32 %v7941, %v8150
  %v8213 = vmul.f32 %v7942, %v8150
  %v8214 = vmul.f32 %v7943, %v8150
  %v8215 = vmul.f32 %v7944, %v8150
  %v8217 = vlaneseq
  %v8218 = vshrl.u32 %v8217, 7
  %v8219 = vsub.s32 0, %v8218
  %v8220 = vrot.slane %v7746, %v8219
  %v8222 = vadd.f32 %v8152, %v8220
  %v8223 = vadd.f32 %v8153, %v8220
  %v8224 = vadd.f32 %v8154, %v8220
  %v8225 = vadd.f32 %v8155, %v8220
  %v8226 = vadd.f32 %v8156, %v8220
  %v8227 = vadd.f32 %v8157, %v8220
  %v8228 = vadd.f32 %v8158, %v8220
  %v8229 = vadd.f32 %v8159, %v8220
  %v8230 = vadd.f32 %v8160, %v8220
  %v8231 = vadd.f32 %v8161, %v8220
  %v8232 = vadd.f32 %v8162, %v8220
  %v8233 = vadd.f32 %v8163, %v8220
  %v8234 = vadd.f32 %v8164, %v8220
  %v8235 = vadd.f32 %v8165, %v8220
  %v8236 = vadd.f32 %v8166, %v8220
  %v8237 = vadd.f32 %v8167, %v8220
  %v8238 = vadd.f32 %v8168, %v8220
  %v8239 = vadd.f32 %v8169, %v8220
  %v8240 = vadd.f32 %v8170, %v8220
  %v8241 = vadd.f32 %v8171, %v8220
  %v8242 = vadd.f32 %v8172, %v8220
  %v8243 = vadd.f32 %v8173, %v8220
  %v8244 = vadd.f32 %v8174, %v8220
  %v8245 = vadd.f32 %v8175, %v8220
  %v8246 = vadd.f32 %v8176, %v8220
  %v8247 = vadd.f32 %v8177, %v8220
  %v8248 = vadd.f32 %v8178, %v8220
  %v8249 = vadd.f32 %v8179, %v8220
  %v8250 = vadd.f32 %v8180, %v8220
  %v8251 = vadd.f32 %v8181, %v8220
  %v8252 = vadd.f32 %v8182, %v8220
  %v8253 = vadd.f32 %v8183, %v8220
  %v8254 = vadd.f32 %v8184, %v8220
  %v8255 = vadd.f32 %v8185, %v8220
  %v8256 = vadd.f32 %v8186, %v8220
  %v8257 = vadd.f32 %v8187, %v8220
  %v8258 = vadd.f32 %v8188, %v8220
  %v8259 = vadd.f32 %v8189, %v8220
  %v8260 = vadd.f32 %v8190, %v8220
  %v8261 = vadd.f32 %v8191, %v8220
  %v8262 = vadd.f32 %v8192, %v8220
  %v8263 = vadd.f32 %v8193, %v8220
  %v8264 = vadd.f32 %v8194, %v8220
  %v8265 = vadd.f32 %v8195, %v8220
  %v8266 = vadd.f32 %v8196, %v8220
  %v8267 = vadd.f32 %v8197, %v8220
  %v8268 = vadd.f32 %v8198, %v8220
  %v8269 = vadd.f32 %v8199, %v8220
  %v8270 = vadd.f32 %v8200, %v8220
  %v8271 = vadd.f32 %v8201, %v8220
  %v8272 = vadd.f32 %v8202, %v8220
  %v8273 = vadd.f32 %v8203, %v8220
  %v8274 = vadd.f32 %v8204, %v8220
  %v8275 = vadd.f32 %v8205, %v8220
  %v8276 = vadd.f32 %v8206, %v8220
  %v8277 = vadd.f32 %v8207, %v8220
  %v8278 = vadd.f32 %v8208, %v8220
  %v8279 = vadd.f32 %v8209, %v8220
  %v8280 = vadd.f32 %v8210, %v8220
  %v8281 = vadd.f32 %v8211, %v8220
  %v8282 = vadd.f32 %v8212, %v8220
  %v8283 = vadd.f32 %v8213, %v8220
  %v8284 = vadd.f32 %v8214, %v8220
  %v8285 = vadd.f32 %v8215, %v8220
  %v8286 = vld [vmem:[%s0] sm:$0xff]
  %v8287 = vld [vmem:[%s0 + $0x8] sm:$0xff]
  %v8288 = vld [vmem:[%s0 + $0x10] sm:$0xff]
  %v8289 = vld [vmem:[%s0 + $0x18] sm:$0xff]
  %v8290 = vld [vmem:[%s0 + $0x20] sm:$0xff]
  %v8291 = vld [vmem:[%s0 + $0x28] sm:$0xff]
  %v8292 = vld [vmem:[%s0 + $0x30] sm:$0xff]
  %v8293 = vld [vmem:[%s0 + $0x38] sm:$0xff]
  %v8294 = vld [vmem:[%s0 + $0x40] sm:$0xff]
  %v8295 = vld [vmem:[%s0 + $0x48] sm:$0xff]
  %v8296 = vld [vmem:[%s0 + $0x50] sm:$0xff]
  %v8297 = vld [vmem:[%s0 + $0x58] sm:$0xff]
  %v8298 = vld [vmem:[%s0 + $0x60] sm:$0xff]
  %v8299 = vld [vmem:[%s0 + $0x68] sm:$0xff]
  %v8300 = vld [vmem:[%s0 + $0x70] sm:$0xff]
  %v8301 = vld [vmem:[%s0 + $0x78] sm:$0xff]
  %v8302 = vld [vmem:[%s0 + $0x80] sm:$0xff]
  %v8303 = vld [vmem:[%s0 + $0x88] sm:$0xff]
  %v8304 = vld [vmem:[%s0 + $0x90] sm:$0xff]
  %v8305 = vld [vmem:[%s0 + $0x98] sm:$0xff]
  %v8306 = vld [vmem:[%s0 + $0xa0] sm:$0xff]
  %v8307 = vld [vmem:[%s0 + $0xa8] sm:$0xff]
  %v8308 = vld [vmem:[%s0 + $0xb0] sm:$0xff]
  %v8309 = vld [vmem:[%s0 + $0xb8] sm:$0xff]
  %v8310 = vld [vmem:[%s0 + $0xc0] sm:$0xff]
  %v8311 = vld [vmem:[%s0 + $0xc8] sm:$0xff]
  %v8312 = vld [vmem:[%s0 + $0xd0] sm:$0xff]
  %v8313 = vld [vmem:[%s0 + $0xd8] sm:$0xff]
  %v8314 = vld [vmem:[%s0 + $0xe0] sm:$0xff]
  %v8315 = vld [vmem:[%s0 + $0xe8] sm:$0xff]
  %v8316 = vld [vmem:[%s0 + $0xf0] sm:$0xff]
  %v8317 = vld [vmem:[%s0 + $0xf8] sm:$0xff]
  %v8318 = vld [vmem:[%s0 + $0x100] sm:$0xff]
  %v8319 = vld [vmem:[%s0 + $0x108] sm:$0xff]
  %v8320 = vld [vmem:[%s0 + $0x110] sm:$0xff]
  %v8321 = vld [vmem:[%s0 + $0x118] sm:$0xff]
  %v8322 = vld [vmem:[%s0 + $0x120] sm:$0xff]
  %v8323 = vld [vmem:[%s0 + $0x128] sm:$0xff]
  %v8324 = vld [vmem:[%s0 + $0x130] sm:$0xff]
  %v8325 = vld [vmem:[%s0 + $0x138] sm:$0xff]
  %v8326 = vld [vmem:[%s0 + $0x140] sm:$0xff]
  %v8327 = vld [vmem:[%s0 + $0x148] sm:$0xff]
  %v8328 = vld [vmem:[%s0 + $0x150] sm:$0xff]
  %v8329 = vld [vmem:[%s0 + $0x158] sm:$0xff]
  %v8330 = vld [vmem:[%s0 + $0x160] sm:$0xff]
  %v8331 = vld [vmem:[%s0 + $0x168] sm:$0xff]
  %v8332 = vld [vmem:[%s0 + $0x170] sm:$0xff]
  %v8333 = vld [vmem:[%s0 + $0x178] sm:$0xff]
  %v8334 = vld [vmem:[%s0 + $0x180] sm:$0xff]
  %v8335 = vld [vmem:[%s0 + $0x188] sm:$0xff]
  %v8336 = vld [vmem:[%s0 + $0x190] sm:$0xff]
  %v8337 = vld [vmem:[%s0 + $0x198] sm:$0xff]
  %v8338 = vld [vmem:[%s0 + $0x1a0] sm:$0xff]
  %v8339 = vld [vmem:[%s0 + $0x1a8] sm:$0xff]
  %v8340 = vld [vmem:[%s0 + $0x1b0] sm:$0xff]
  %v8341 = vld [vmem:[%s0 + $0x1b8] sm:$0xff]
  %v8342 = vld [vmem:[%s0 + $0x1c0] sm:$0xff]
  %v8343 = vld [vmem:[%s0 + $0x1c8] sm:$0xff]
  %v8344 = vld [vmem:[%s0 + $0x1d0] sm:$0xff]
  %v8345 = vld [vmem:[%s0 + $0x1d8] sm:$0xff]
  %v8346 = vld [vmem:[%s0 + $0x1e0] sm:$0xff]
  %v8347 = vld [vmem:[%s0 + $0x1e8] sm:$0xff]
  %v8348 = vld [vmem:[%s0 + $0x1f0] sm:$0xff]
  %v8349 = vld [vmem:[%s0 + $0x1f8] sm:$0xff]
  %v8350 = vadd.f32 %v8222, %v8286
  %v8351 = vadd.f32 %v8223, %v8287
  %v8352 = vadd.f32 %v8224, %v8288
  %v8353 = vadd.f32 %v8225, %v8289
  %v8354 = vadd.f32 %v8226, %v8290
  %v8355 = vadd.f32 %v8227, %v8291
  %v8356 = vadd.f32 %v8228, %v8292
  %v8357 = vadd.f32 %v8229, %v8293
  %v8358 = vadd.f32 %v8230, %v8294
  %v8359 = vadd.f32 %v8231, %v8295
  %v8360 = vadd.f32 %v8232, %v8296
  %v8361 = vadd.f32 %v8233, %v8297
  %v8362 = vadd.f32 %v8234, %v8298
  %v8363 = vadd.f32 %v8235, %v8299
  %v8364 = vadd.f32 %v8236, %v8300
  %v8365 = vadd.f32 %v8237, %v8301
  %v8366 = vadd.f32 %v8238, %v8302
  %v8367 = vadd.f32 %v8239, %v8303
  %v8368 = vadd.f32 %v8240, %v8304
  %v8369 = vadd.f32 %v8241, %v8305
  %v8370 = vadd.f32 %v8242, %v8306
  %v8371 = vadd.f32 %v8243, %v8307
  %v8372 = vadd.f32 %v8244, %v8308
  %v8373 = vadd.f32 %v8245, %v8309
  %v8374 = vadd.f32 %v8246, %v8310
  %v8375 = vadd.f32 %v8247, %v8311
  %v8376 = vadd.f32 %v8248, %v8312
  %v8377 = vadd.f32 %v8249, %v8313
  %v8378 = vadd.f32 %v8250, %v8314
  %v8379 = vadd.f32 %v8251, %v8315
  %v8380 = vadd.f32 %v8252, %v8316
  %v8381 = vadd.f32 %v8253, %v8317
  %v8382 = vadd.f32 %v8254, %v8318
  %v8383 = vadd.f32 %v8255, %v8319
  %v8384 = vadd.f32 %v8256, %v8320
  %v8385 = vadd.f32 %v8257, %v8321
  %v8386 = vadd.f32 %v8258, %v8322
  %v8387 = vadd.f32 %v8259, %v8323
  %v8388 = vadd.f32 %v8260, %v8324
  %v8389 = vadd.f32 %v8261, %v8325
  %v8390 = vadd.f32 %v8262, %v8326
  %v8391 = vadd.f32 %v8263, %v8327
  %v8392 = vadd.f32 %v8264, %v8328
  %v8393 = vadd.f32 %v8265, %v8329
  %v8394 = vadd.f32 %v8266, %v8330
  %v8395 = vadd.f32 %v8267, %v8331
  %v8396 = vadd.f32 %v8268, %v8332
  %v8397 = vadd.f32 %v8269, %v8333
  %v8398 = vadd.f32 %v8270, %v8334
  %v8399 = vadd.f32 %v8271, %v8335
  %v8400 = vadd.f32 %v8272, %v8336
  %v8401 = vadd.f32 %v8273, %v8337
  %v8402 = vadd.f32 %v8274, %v8338
  %v8403 = vadd.f32 %v8275, %v8339
  %v8404 = vadd.f32 %v8276, %v8340
  %v8405 = vadd.f32 %v8277, %v8341
  %v8406 = vadd.f32 %v8278, %v8342
  %v8407 = vadd.f32 %v8279, %v8343
  %v8408 = vadd.f32 %v8280, %v8344
  %v8409 = vadd.f32 %v8281, %v8345
  %v8410 = vadd.f32 %v8282, %v8346
  %v8411 = vadd.f32 %v8283, %v8347
  %v8412 = vadd.f32 %v8284, %v8348
  %v8413 = vadd.f32 %v8285, %v8349
  %v8414 = vmax.f32 %v8350, 0.0
  %v8415 = vmax.f32 %v8351, 0.0
  %v8416 = vmax.f32 %v8352, 0.0
  %v8417 = vmax.f32 %v8353, 0.0
  %v8418 = vmax.f32 %v8354, 0.0
  %v8419 = vmax.f32 %v8355, 0.0
  %v8420 = vmax.f32 %v8356, 0.0
  %v8421 = vmax.f32 %v8357, 0.0
  %v8422 = vmax.f32 %v8358, 0.0
  %v8423 = vmax.f32 %v8359, 0.0
  %v8424 = vmax.f32 %v8360, 0.0
  %v8425 = vmax.f32 %v8361, 0.0
  %v8426 = vmax.f32 %v8362, 0.0
  %v8427 = vmax.f32 %v8363, 0.0
  %v8428 = vmax.f32 %v8364, 0.0
  %v8429 = vmax.f32 %v8365, 0.0
  %v8430 = vmax.f32 %v8366, 0.0
  %v8431 = vmax.f32 %v8367, 0.0
  %v8432 = vmax.f32 %v8368, 0.0
  %v8433 = vmax.f32 %v8369, 0.0
  %v8434 = vmax.f32 %v8370, 0.0
  %v8435 = vmax.f32 %v8371, 0.0
  %v8436 = vmax.f32 %v8372, 0.0
  %v8437 = vmax.f32 %v8373, 0.0
  %v8438 = vmax.f32 %v8374, 0.0
  %v8439 = vmax.f32 %v8375, 0.0
  %v8440 = vmax.f32 %v8376, 0.0
  %v8441 = vmax.f32 %v8377, 0.0
  %v8442 = vmax.f32 %v8378, 0.0
  %v8443 = vmax.f32 %v8379, 0.0
  %v8444 = vmax.f32 %v8380, 0.0
  %v8445 = vmax.f32 %v8381, 0.0
  %v8446 = vmax.f32 %v8382, 0.0
  %v8447 = vmax.f32 %v8383, 0.0
  %v8448 = vmax.f32 %v8384, 0.0
  %v8449 = vmax.f32 %v8385, 0.0
  %v8450 = vmax.f32 %v8386, 0.0
  %v8451 = vmax.f32 %v8387, 0.0
  %v8452 = vmax.f32 %v8388, 0.0
  %v8453 = vmax.f32 %v8389, 0.0
  %v8454 = vmax.f32 %v8390, 0.0
  %v8455 = vmax.f32 %v8391, 0.0
  %v8456 = vmax.f32 %v8392, 0.0
  %v8457 = vmax.f32 %v8393, 0.0
  %v8458 = vmax.f32 %v8394, 0.0
  %v8459 = vmax.f32 %v8395, 0.0
  %v8460 = vmax.f32 %v8396, 0.0
  %v8461 = vmax.f32 %v8397, 0.0
  %v8462 = vmax.f32 %v8398, 0.0
  %v8463 = vmax.f32 %v8399, 0.0
  %v8464 = vmax.f32 %v8400, 0.0
  %v8465 = vmax.f32 %v8401, 0.0
  %v8466 = vmax.f32 %v8402, 0.0
  %v8467 = vmax.f32 %v8403, 0.0
  %v8468 = vmax.f32 %v8404, 0.0
  %v8469 = vmax.f32 %v8405, 0.0
  %v8470 = vmax.f32 %v8406, 0.0
  %v8471 = vmax.f32 %v8407, 0.0
  %v8472 = vmax.f32 %v8408, 0.0
  %v8473 = vmax.f32 %v8409, 0.0
  %v8474 = vmax.f32 %v8410, 0.0
  %v8475 = vmax.f32 %v8411, 0.0
  %v8476 = vmax.f32 %v8412, 0.0
  %v8477 = vmax.f32 %v8413, 0.0
  %8478 = vst.msk [vmem:[%s10] sm:$0xff] %vm140, %v8414
  %8479 = vst.msk [vmem:[%s10 + $0x8] sm:$0xff] %vm140, %v8415
  %8480 = vst.msk [vmem:[%s10 + $0x10] sm:$0xff] %vm140, %v8416
  %8481 = vst.msk [vmem:[%s10 + $0x18] sm:$0xff] %vm140, %v8417
  %8482 = vst.msk [vmem:[%s10 + $0x20] sm:$0xff] %vm140, %v8418
  %8483 = vst.msk [vmem:[%s10 + $0x28] sm:$0xff] %vm140, %v8419
  %8484 = vst.msk [vmem:[%s10 + $0x30] sm:$0xff] %vm140, %v8420
  %8485 = vst.msk [vmem:[%s10 + $0x38] sm:$0xff] %vm140, %v8421
  %8486 = vst.msk [vmem:[%s10 + $0x40] sm:$0xff] %vm140, %v8422
  %8487 = vst.msk [vmem:[%s10 + $0x48] sm:$0xff] %vm140, %v8423
  %8488 = vst.msk [vmem:[%s10 + $0x50] sm:$0xff] %vm140, %v8424
  %8489 = vst.msk [vmem:[%s10 + $0x58] sm:$0xff] %vm140, %v8425
  %8490 = vst.msk [vmem:[%s10 + $0x60] sm:$0xff] %vm140, %v8426
  %8491 = vst.msk [vmem:[%s10 + $0x68] sm:$0xff] %vm140, %v8427
  %8492 = vst.msk [vmem:[%s10 + $0x70] sm:$0xff] %vm140, %v8428
  %8493 = vst.msk [vmem:[%s10 + $0x78] sm:$0xff] %vm140, %v8429
  %8494 = vst.msk [vmem:[%s10 + $0x80] sm:$0xff] %vm140, %v8430
  %8495 = vst.msk [vmem:[%s10 + $0x88] sm:$0xff] %vm140, %v8431
  %8496 = vst.msk [vmem:[%s10 + $0x90] sm:$0xff] %vm140, %v8432
  %8497 = vst.msk [vmem:[%s10 + $0x98] sm:$0xff] %vm140, %v8433
  %8498 = vst.msk [vmem:[%s10 + $0xa0] sm:$0xff] %vm140, %v8434
  %8499 = vst.msk [vmem:[%s10 + $0xa8] sm:$0xff] %vm140, %v8435
  %8500 = vst.msk [vmem:[%s10 + $0xb0] sm:$0xff] %vm140, %v8436
  %8501 = vst.msk [vmem:[%s10 + $0xb8] sm:$0xff] %vm140, %v8437
  %8502 = vst.msk [vmem:[%s10 + $0xc0] sm:$0xff] %vm140, %v8438
  %8503 = vst.msk [vmem:[%s10 + $0xc8] sm:$0xff] %vm140, %v8439
  %8504 = vst.msk [vmem:[%s10 + $0xd0] sm:$0xff] %vm140, %v8440
  %8505 = vst.msk [vmem:[%s10 + $0xd8] sm:$0xff] %vm140, %v8441
  %8506 = vst.msk [vmem:[%s10 + $0xe0] sm:$0xff] %vm140, %v8442
  %8507 = vst.msk [vmem:[%s10 + $0xe8] sm:$0xff] %vm140, %v8443
  %8508 = vst.msk [vmem:[%s10 + $0xf0] sm:$0xff] %vm140, %v8444
  %8509 = vst.msk [vmem:[%s10 + $0xf8] sm:$0xff] %vm140, %v8445
  %8510 = vst.msk [vmem:[%s10 + $0x100] sm:$0xff] %vm140, %v8446
  %8511 = vst.msk [vmem:[%s10 + $0x108] sm:$0xff] %vm140, %v8447
  %8512 = vst.msk [vmem:[%s10 + $0x110] sm:$0xff] %vm140, %v8448
  %8513 = vst.msk [vmem:[%s10 + $0x118] sm:$0xff] %vm140, %v8449
  %8514 = vst.msk [vmem:[%s10 + $0x120] sm:$0xff] %vm140, %v8450
  %8515 = vst.msk [vmem:[%s10 + $0x128] sm:$0xff] %vm140, %v8451
  %8516 = vst.msk [vmem:[%s10 + $0x130] sm:$0xff] %vm140, %v8452
  %8517 = vst.msk [vmem:[%s10 + $0x138] sm:$0xff] %vm140, %v8453
  %8518 = vst.msk [vmem:[%s10 + $0x140] sm:$0xff] %vm140, %v8454
  %8519 = vst.msk [vmem:[%s10 + $0x148] sm:$0xff] %vm140, %v8455
  %8520 = vst.msk [vmem:[%s10 + $0x150] sm:$0xff] %vm140, %v8456
  %8521 = vst.msk [vmem:[%s10 + $0x158] sm:$0xff] %vm140, %v8457
  %8522 = vst.msk [vmem:[%s10 + $0x160] sm:$0xff] %vm140, %v8458
  %8523 = vst.msk [vmem:[%s10 + $0x168] sm:$0xff] %vm140, %v8459
  %8524 = vst.msk [vmem:[%s10 + $0x170] sm:$0xff] %vm140, %v8460
  %8525 = vst.msk [vmem:[%s10 + $0x178] sm:$0xff] %vm140, %v8461
  %8526 = vst.msk [vmem:[%s10 + $0x180] sm:$0xff] %vm140, %v8462
  %8527 = vst.msk [vmem:[%s10 + $0x188] sm:$0xff] %vm140, %v8463
  %8528 = vst.msk [vmem:[%s10 + $0x190] sm:$0xff] %vm140, %v8464
  %8529 = vst.msk [vmem:[%s10 + $0x198] sm:$0xff] %vm140, %v8465
  %8530 = vst.msk [vmem:[%s10 + $0x1a0] sm:$0xff] %vm140, %v8466
  %8531 = vst.msk [vmem:[%s10 + $0x1a8] sm:$0xff] %vm140, %v8467
  %8532 = vst.msk [vmem:[%s10 + $0x1b0] sm:$0xff] %vm140, %v8468
  %8533 = vst.msk [vmem:[%s10 + $0x1b8] sm:$0xff] %vm140, %v8469
  %8534 = vst.msk [vmem:[%s10 + $0x1c0] sm:$0xff] %vm140, %v8470
  %8535 = vst.msk [vmem:[%s10 + $0x1c8] sm:$0xff] %vm140, %v8471
  %8536 = vst.msk [vmem:[%s10 + $0x1d0] sm:$0xff] %vm140, %v8472
  %8537 = vst.msk [vmem:[%s10 + $0x1d8] sm:$0xff] %vm140, %v8473
  %8538 = vst.msk [vmem:[%s10 + $0x1e0] sm:$0xff] %vm140, %v8474
  %8539 = vst.msk [vmem:[%s10 + $0x1e8] sm:$0xff] %vm140, %v8475
  %8540 = vst.msk [vmem:[%s10 + $0x1f0] sm:$0xff] %vm140, %v8476
  %8541 = vst.msk [vmem:[%s10 + $0x1f8] sm:$0xff] %vm140, %v8477
  // Predicated region
  $region42: #{tpu_custom_call.1} parent=0 // pred_check
    _
  $region43: #{tpu_custom_call.1} parent=0 // pred_check_branch
    %8543 = sbr.rel (0) target = $region45
  $region44: #{tpu_custom_call.1} parent=0 // pred_region
    _
  $region45: #{tpu_custom_call.1} parent=0 // pred_fallthru
    _
  // Predicated region
  $region46: #{tpu_custom_call.1} parent=0 // pred_check
    _
  $region47: #{tpu_custom_call.1} parent=0 // pred_check_branch
    %8545 = sbr.rel (0) target = $region49
  $region48: #{tpu_custom_call.1} parent=0 // pred_region
    _
  $region49: #{tpu_custom_call.1} parent=0 // pred_fallthru
    _

</llo_original>
